<compile_context>
chip_gen: v6e
topology: v6e:2x2x1
jax: 0.10.0
libtpu: 0.0.40
codegen_flags: <defaults>
</compile_context>

<pallas_src>
import math
import functools

import jax
import jax.numpy as jnp
from jax.experimental import pallas as pl
from jax.experimental.pallas import tpu as pltpu

NEG_INF = -1e30  # finite "minus infinity" -> no NaN for fully-masked rows


# --------------------------- in-kernel helpers ------------------------------

def _bf16(x):
    return x.astype(jnp.bfloat16)


def _layernorm(x, g, b, eps=1e-5):
    mu = jnp.mean(x, axis=-1, keepdims=True)
    xc = x - mu
    var = jnp.mean(xc * xc, axis=-1, keepdims=True)
    return xc * jax.lax.rsqrt(var + eps) * g + b


def _attention_into(out_scr, q, k, v, mask, num_heads, scale):
    """q (Tq, D) f32, k/v (Tk, D) f32, mask additive broadcastable to (Tq, Tk).
    Writes the (Tq, D) multi-head context into lane slices of out_scr (f32)."""
    D = q.shape[-1]
    Dh = D // num_heads
    qs = _bf16(q * scale)
    kb = _bf16(k)
    vb = _bf16(v)
    for h in range(num_heads):            # static loop over Dh-wide lane slices
        sl = slice(h * Dh, (h + 1) * Dh)
        # contract Dh of q with Dh of k directly (no explicit transpose)
        s = jax.lax.dot_general(qs[:, sl], kb[:, sl],
                                (((1,), (1,)), ((), ())),
                                preferred_element_type=jnp.float32) + mask
        s = s - jnp.max(s, axis=-1, keepdims=True)
        e = jnp.exp(s)
        p = e * pl.reciprocal(jnp.sum(e, axis=-1, keepdims=True), approx=True)
        out_scr[:, sl] = jnp.dot(_bf16(p), vb[:, sl],
                                 preferred_element_type=jnp.float32)


# ------------------------------- kernels ------------------------------------

def encoder_stack_kernel(x_ref, kmask_ref,
                         wqkv_ref, bqkv_ref, wo_ref, bo_ref,
                         g1_ref, b1_ref,
                         w1_ref, bf1_ref, w2_ref, bf2_ref,
                         g2_ref, b2_ref,
                         o_ref, y_scr, att_scr,
                         *, num_heads, scale, num_layers):
    l = pl.program_id(1)

    @pl.when(l == 0)                      # load embedding once per batch
    def _():
        y_scr[...] = x_ref[0]

    x = y_scr[...]                        # (S, D) f32, carried across layers
    D = x.shape[-1]
    kmask = kmask_ref[0]                  # (1, S) additive key-padding row

    qkv = jnp.dot(_bf16(x), wqkv_ref[0],
                  preferred_element_type=jnp.float32) + bqkv_ref[0]
    _attention_into(att_scr, qkv[:, :D], qkv[:, D:2 * D], qkv[:, 2 * D:],
                    kmask, num_heads, scale)
    attn = jnp.dot(_bf16(att_scr[...]), wo_ref[0],
                   preferred_element_type=jnp.float32) + bo_ref[0]
    y = _layernorm(x + attn, g1_ref[0], b1_ref[0])

    h = jnp.maximum(jnp.dot(_bf16(y), w1_ref[0],
                            preferred_element_type=jnp.float32) + bf1_ref[0],
                    0.0)
    f = jnp.dot(_bf16(h), w2_ref[0],
                preferred_element_type=jnp.float32) + bf2_ref[0]
    y2 = _layernorm(y + f, g2_ref[0], b2_ref[0])
    y_scr[...] = y2

    @pl.when(l == num_layers - 1)         # write HBM only once per batch
    def _():
        o_ref[0] = y2


def decoder_stack_kernel(y_ref, enc_ref, tmask_ref, smask_ref,
                         sa_wqkv_ref, sa_bqkv_ref, sa_wo_ref, sa_bo_ref,
                         g1_ref, b1_ref,
                         ca_wq_ref, ca_bq_ref, ca_wkv_ref, ca_bkv_ref,
                         ca_wo_ref, ca_bo_ref,
                         g2_ref, b2_ref,
                         w1_ref, bf1_ref, w2_ref, bf2_ref,
                         g3_ref, b3_ref,
                         fcw_ref, fcb_ref,
                         logits_ref, y_scr, att_scr,
                         *, num_heads, scale, num_layers):
    l = pl.program_id(1)

    @pl.when(l == 0)
    def _():
        y_scr[...] = y_ref[0]

    y = y_scr[...]                        # (T, D)
    enc = enc_ref[0]                      # (S, D)
    T = y.shape[0]
    D = y.shape[-1]

    # masks built in-kernel: causal (iota compare) + key-padding rows
    row = jax.lax.broadcasted_iota(jnp.int32, (T, T), 0)
    col = jax.lax.broadcasted_iota(jnp.int32, (T, T), 1)
    causal = jnp.where(row >= col, 0.0, NEG_INF).astype(jnp.float32)
    self_mask = causal + tmask_ref[0]     # (T, T)
    cross_mask = smask_ref[0]             # (1, S)

    # masked causal self-attention
    qkv = jnp.dot(_bf16(y), sa_wqkv_ref[0],
                  preferred_element_type=jnp.float32) + sa_bqkv_ref[0]
    _attention_into(att_scr, qkv[:, :D], qkv[:, D:2 * D], qkv[:, 2 * D:],
                    self_mask, num_heads, scale)
    a = jnp.dot(_bf16(att_scr[...]), sa_wo_ref[0],
                preferred_element_type=jnp.float32) + sa_bo_ref[0]
    y1 = _layernorm(y + a, g1_ref[0], b1_ref[0])

    # cross-attention over encoder output
    q = jnp.dot(_bf16(y1), ca_wq_ref[0],
                preferred_element_type=jnp.float32) + ca_bq_ref[0]
    kv = jnp.dot(_bf16(enc), ca_wkv_ref[0],
                 preferred_element_type=jnp.float32) + ca_bkv_ref[0]
    _attention_into(att_scr, q, kv[:, :D], kv[:, D:],
                    cross_mask, num_heads, scale)
    c = jnp.dot(_bf16(att_scr[...]), ca_wo_ref[0],
                preferred_element_type=jnp.float32) + ca_bo_ref[0]
    y2 = _layernorm(y1 + c, g2_ref[0], b2_ref[0])

    # feed-forward
    h = jnp.maximum(jnp.dot(_bf16(y2), w1_ref[0],
                            preferred_element_type=jnp.float32) + bf1_ref[0],
                    0.0)
    f = jnp.dot(_bf16(h), w2_ref[0],
                preferred_element_type=jnp.float32) + bf2_ref[0]
    y3 = _layernorm(y2 + f, g3_ref[0], b3_ref[0])
    y_scr[...] = y3

    # classifier fused into the last decoder layer step (lane-dense logits)
    @pl.when(l == num_layers - 1)
    def _():
        logits_ref[0] = (jnp.dot(_bf16(y3), fcw_ref[...],
                                 preferred_element_type=jnp.float32)
                         + fcb_ref[...])


# ------------------------------ wrappers -------------------------------------

def _batch_spec(shape):
    nd = len(shape)
    return pl.BlockSpec((1,) + tuple(shape[1:]),
                        lambda b, l, _nd=nd: (b,) + (0,) * (_nd - 1))


def _layer_spec(shape):
    nd = len(shape)
    return pl.BlockSpec((1,) + tuple(shape[1:]),
                        lambda b, l, _nd=nd: (l,) + (0,) * (_nd - 1))


def _const_spec(shape):
    nd = len(shape)
    return pl.BlockSpec(tuple(shape), lambda b, l, _nd=nd: (0,) * _nd)


def pallas_encoder_stack(x, src_key, p, num_heads):
    B, S, D = x.shape
    L = p["wqkv"].shape[0]
    d_ff = p["w1"].shape[-1]
    scale = 1.0 / math.sqrt(D // num_heads)
    kern = functools.partial(encoder_stack_kernel, num_heads=num_heads,
                             scale=scale, num_layers=L)

    cost = pl.CostEstimate(
        flops=int(2 * B * L * S * (3 * D * D + D * D + 2 * D * d_ff)
                  + 4 * B * L * S * S * D),
        transcendentals=int(B * L * num_heads * S * S),
        bytes_accessed=int(2 * B * S * D * 4
                           + 2 * L * (3 * D * D + D * D + 2 * D * d_ff)))

    in_arrays = [x, src_key,
                 p["wqkv"], p["bqkv"], p["wo"], p["bo"],
                 p["ln1_g"], p["ln1_b"],
                 p["w1"], p["b1"], p["w2"], p["b2"],
                 p["ln2_g"], p["ln2_b"]]
    in_specs = ([_batch_spec(x.shape), _batch_spec(src_key.shape)]
                + [_layer_spec(a.shape) for a in in_arrays[2:]])

    return pl.pallas_call(
        kern,
        grid=(B, L),
        out_shape=jax.ShapeDtypeStruct((B, S, D), jnp.float32),
        in_specs=in_specs,
        out_specs=pl.BlockSpec((1, S, D), lambda b, l: (b, 0, 0)),
        scratch_shapes=[pltpu.VMEM((S, D), jnp.float32),   # activation carry
                        pltpu.VMEM((S, D), jnp.float32)],  # attention context
        compiler_params=pltpu.CompilerParams(
            dimension_semantics=("parallel", "arbitrary")),
        cost_estimate=cost,
    )(*in_arrays)


def pallas_decoder_stack(y, enc_out, tgt_key, src_key, p, fc_w, fc_b,
                         num_heads):
    B, T, D = y.shape
    S = enc_out.shape[1]
    L = p["sa_wqkv"].shape[0]
    d_ff = p["w1"].shape[-1]
    Vpad = fc_w.shape[-1]
    scale = 1.0 / math.sqrt(D // num_heads)
    kern = functools.partial(decoder_stack_kernel, num_heads=num_heads,
                             scale=scale, num_layers=L)

    cost = pl.CostEstimate(
        flops=int(2 * B * L * T * (3 * D * D + 3 * D * D + 2 * D * d_ff)
                  + 2 * B * L * S * 2 * D * D
                  + 4 * B * L * num_heads * T * (T + S) * (D // num_heads)
                  + 2 * B * T * D * Vpad),
        transcendentals=int(B * L * num_heads * T * (T + S)),
        bytes_accessed=int(B * (T * D + S * D + T * Vpad) * 4
                           + 2 * L * (6 * D * D + 2 * D * d_ff)
                           + 2 * D * Vpad))

    in_arrays = [y, enc_out, tgt_key, src_key,
                 p["sa_wqkv"], p["sa_bqkv"], p["sa_wo"], p["sa_bo"],
                 p["ln1_g"], p["ln1_b"],
                 p["ca_wq"], p["ca_bq"], p["ca_wkv"], p["ca_bkv"],
                 p["ca_wo"], p["ca_bo"],
                 p["ln2_g"], p["ln2_b"],
                 p["w1"], p["b1"], p["w2"], p["b2"],
                 p["ln3_g"], p["ln3_b"],
                 fc_w, fc_b]
    in_specs = ([_batch_spec(y.shape), _batch_spec(enc_out.shape),
                 _batch_spec(tgt_key.shape), _batch_spec(src_key.shape)]
                + [_layer_spec(a.shape) for a in in_arrays[4:24]]
                + [_const_spec(fc_w.shape), _const_spec(fc_b.shape)])

    return pl.pallas_call(
        kern,
        grid=(B, L),
        out_shape=jax.ShapeDtypeStruct((B, T, Vpad), jnp.float32),
        in_specs=in_specs,
        out_specs=pl.BlockSpec((1, T, Vpad), lambda b, l: (b, 0, 0)),
        scratch_shapes=[pltpu.VMEM((T, D), jnp.float32),   # activation carry
                        pltpu.VMEM((T, D), jnp.float32)],  # attention context
        compiler_params=pltpu.CompilerParams(
            dimension_semantics=("parallel", "arbitrary")),
        cost_estimate=cost,
    )(*in_arrays)


# ------------------------------ model pieces ---------------------------------

def generate_rail_pattern(seq_len, max_rail=5):
    pattern, direction, rail = [], 1, 0
    for _ in range(seq_len):
        pattern.append(rail)
        rail += direction
        if rail == 0 or rail == max_rail - 1:
            direction *= -1
    return jnp.array(pattern, dtype=jnp.int32)


def sinusoidal_pe(max_len, d_model):
    pos = jnp.arange(max_len, dtype=jnp.float32)[:, None]
    div = jnp.exp(jnp.arange(0, d_model, 2, dtype=jnp.float32)
                  * (-math.log(10000.0) / d_model))
    pe = jnp.zeros((max_len, d_model), dtype=jnp.float32)
    pe = pe.at[:, 0::2].set(jnp.sin(pos * div))
    pe = pe.at[:, 1::2].set(jnp.cos(pos * div))
    return pe


def transformer_forward(params, src, tgt, *, num_heads, vocab,
                        max_rail=5, max_length=300):
    B, S = src.shape
    _, T = tgt.shape
    D = params["enc_emb"].shape[1]

    # key-padding rows only (full additive masks are built inside the kernels)
    src_key = jnp.where((src == 0)[:, None, :], NEG_INF, 0.0).astype(jnp.float32)
    tgt_key = jnp.where((tgt == 0)[:, None, :], NEG_INF, 0.0).astype(jnp.float32)

    # embeddings (gathers stay in plain JAX); dropout is identity (eval)
    # TODO(synk): dropout omitted (inference/eval mode), matching model.eval().
    pe = sinusoidal_pe(max_length, D)
    rail_pattern = generate_rail_pattern(S, max_rail)
    rail_emb = params["rail_emb"][rail_pattern][None]      # (1, S, D)
    rail_pos = params["rail_pos"][rail_pattern][None]      # (1, S, D)
    x = params["enc_emb"][src] + rail_emb + rail_pos + pe[:S][None]
    y = params["dec_emb"][tgt] + pe[:T][None]

    enc_out = pallas_encoder_stack(x, src_key, params["enc"], num_heads)
    logits = pallas_decoder_stack(y, enc_out, tgt_key, src_key,
                                  params["dec"], params["fc_w"],
                                  params["fc_b"], num_heads)
    return logits[:, :, :vocab]                             # drop lane padding


# ------------------------------ parameter init --------------------------------

def init_params(key, vocab, d_model, num_heads, num_layers, d_ff, max_rail):
    keys = iter(jax.random.split(key, 64))
    L, D, BF = num_layers, d_model, jnp.bfloat16

    def nrm(shape, scale=0.02, dtype=jnp.float32):
        return (scale * jax.random.normal(next(keys), shape,
                                          jnp.float32)).astype(dtype)

    enc = {
        "wqkv": nrm((L, D, 3 * D), dtype=BF),
        "bqkv": jnp.zeros((L, 1, 3 * D), jnp.float32),
        "wo": nrm((L, D, D), dtype=BF),
        "bo": jnp.zeros((L, 1, D), jnp.float32),
        "ln1_g": jnp.ones((L, 1, D), jnp.float32),
        "ln1_b": jnp.zeros((L, 1, D), jnp.float32),
        "w1": nrm((L, D, d_ff), dtype=BF),
        "b1": jnp.zeros((L, 1, d_ff), jnp.float32),
        "w2": nrm((L, d_ff, D), dtype=BF),
        "b2": jnp.zeros((L, 1, D), jnp.float32),
        "ln2_g": jnp.ones((L, 1, D), jnp.float32),
        "ln2_b": jnp.zeros((L, 1, D), jnp.float32),
    }
    dec = {
        "sa_wqkv": nrm((L, D, 3 * D), dtype=BF),
        "sa_bqkv": jnp.zeros((L, 1, 3 * D), jnp.float32),
        "sa_wo": nrm((L, D, D), dtype=BF),
        "sa_bo": jnp.zeros((L, 1, D), jnp.float32),
        "ln1_g": jnp.ones((L, 1, D), jnp.float32),
        "ln1_b": jnp.zeros((L, 1, D), jnp.float32),
        "ca_wq": nrm((L, D, D), dtype=BF),
        "ca_bq": jnp.zeros((L, 1, D), jnp.float32),
        "ca_wkv": nrm((L, D, 2 * D), dtype=BF),
        "ca_bkv": jnp.zeros((L, 1, 2 * D), jnp.float32),
        "ca_wo": nrm((L, D, D), dtype=BF),
        "ca_bo": jnp.zeros((L, 1, D), jnp.float32),
        "ln2_g": jnp.ones((L, 1, D), jnp.float32),
        "ln2_b": jnp.zeros((L, 1, D), jnp.float32),
        "w1": nrm((L, D, d_ff), dtype=BF),
        "b1": jnp.zeros((L, 1, d_ff), jnp.float32),
        "w2": nrm((L, d_ff, D), dtype=BF),
        "b2": jnp.zeros((L, 1, D), jnp.float32),
        "ln3_g": jnp.ones((L, 1, D), jnp.float32),
        "ln3_b": jnp.zeros((L, 1, D), jnp.float32),
    }

    vocab_pad = ((vocab + 127) // 128) * 128   # lane-dense classifier output
    fc_w = jnp.zeros((D, vocab_pad), jnp.float32)
    fc_w = fc_w.at[:, :vocab].set(
        0.02 * jax.random.normal(next(keys), (D, vocab), jnp.float32))
    fc_b = jnp.zeros((1, vocab_pad), jnp.float32)

    return {
        "enc_emb": nrm((vocab, D), 1.0),
        "dec_emb": nrm((vocab, D), 1.0),
        "rail_emb": nrm((max_rail, D), 1.0),
        "rail_pos": nrm((max_rail, D), 1.0),
        "fc_w": fc_w.astype(BF),
        "fc_b": fc_b,
        "enc": enc,
        "dec": dec,
    }


# ----------------------------------- main --------------------------------------

if __name__ == "__main__":
    vocab_size = 32
    d_model = 128
    num_heads = 4
    num_layers = 3
    d_ff = 256
    max_rail = 5
    B, S, T = 2, 8, 8

    key = jax.random.PRNGKey(0)
    pkey, skey, tkey = jax.random.split(key, 3)
    params = init_params(pkey, vocab_size, d_model, num_heads, num_layers,
                         d_ff, max_rail)

    src = jax.random.randint(skey, (B, S), 1, vocab_size, dtype=jnp.int32)
    tgt = jax.random.randint(tkey, (B, T), 1, vocab_size, dtype=jnp.int32)
    # trailing padding tokens (id 0) exercise the key-padding masks
    src = src.at[:, -2:].set(0)
    tgt = tgt.at[:, -1:].set(0)

    fwd = jax.jit(functools.partial(transformer_forward,
                                    num_heads=num_heads,
                                    vocab=vocab_size,
                                    max_rail=max_rail,
                                    max_length=300))
    logits = fwd(params, src, tgt)
    jax.block_until_ready(logits)

    assert logits.shape == (B, T, vocab_size)
    assert bool(jnp.all(jnp.isfinite(logits)))
    print("KERNEL_OK")
</pallas_src>

<mosaic_0001>
module attributes {stable_mosaic.version = 11 : i64} {
  func.func @encoder_stack_kernel(%arg0: i32, %arg1: i32, %arg2: memref<1x8x128xf32, #tpu.memory_space<vmem>>, %arg3: memref<1x1x8xf32, #tpu.memory_space<vmem>>, %arg4: memref<1x128x384xbf16, #tpu.memory_space<vmem>>, %arg5: memref<1x1x384xf32, #tpu.memory_space<vmem>>, %arg6: memref<1x128x128xbf16, #tpu.memory_space<vmem>>, %arg7: memref<1x1x128xf32, #tpu.memory_space<vmem>>, %arg8: memref<1x1x128xf32, #tpu.memory_space<vmem>>, %arg9: memref<1x1x128xf32, #tpu.memory_space<vmem>>, %arg10: memref<1x128x256xbf16, #tpu.memory_space<vmem>>, %arg11: memref<1x1x256xf32, #tpu.memory_space<vmem>>, %arg12: memref<1x256x128xbf16, #tpu.memory_space<vmem>>, %arg13: memref<1x1x128xf32, #tpu.memory_space<vmem>>, %arg14: memref<1x1x128xf32, #tpu.memory_space<vmem>>, %arg15: memref<1x1x128xf32, #tpu.memory_space<vmem>>, %arg16: memref<1x8x128xf32, #tpu.memory_space<vmem>>, %arg17: memref<8x128xf32, #tpu.memory_space<vmem>>, %arg18: memref<8x128xf32, #tpu.memory_space<vmem>>) attributes {dimension_semantics = [#tpu.dimension_semantics<parallel>, #tpu.dimension_semantics<arbitrary>], iteration_bounds = array<i64: 2, 3>, scalar_prefetch = 0 : i64, scratch_operands = 2 : i64, tpu.core_type = #tpu.core_type<tc>, window_params = [{transform_indices = @transform_0, window_bounds = array<i64: 1, 8, 128>}, {transform_indices = @transform_1, window_bounds = array<i64: 1, 1, 8>}, {transform_indices = @transform_2, window_bounds = array<i64: 1, 128, 384>}, {transform_indices = @transform_3, window_bounds = array<i64: 1, 1, 384>}, {transform_indices = @transform_4, window_bounds = array<i64: 1, 128, 128>}, {transform_indices = @transform_5, window_bounds = array<i64: 1, 1, 128>}, {transform_indices = @transform_6, window_bounds = array<i64: 1, 1, 128>}, {transform_indices = @transform_7, window_bounds = array<i64: 1, 1, 128>}, {transform_indices = @transform_8, window_bounds = array<i64: 1, 128, 256>}, {transform_indices = @transform_9, window_bounds = array<i64: 1, 1, 256>}, {transform_indices = @transform_10, window_bounds = array<i64: 1, 256, 128>}, {transform_indices = @transform_11, window_bounds = array<i64: 1, 1, 128>}, {transform_indices = @transform_12, window_bounds = array<i64: 1, 1, 128>}, {transform_indices = @transform_13, window_bounds = array<i64: 1, 1, 128>}, {transform_indices = @transform_14, window_bounds = array<i64: 1, 8, 128>}]} {
    %c0_i32 = arith.constant 0 : i32
    %0 = arith.cmpi eq, %arg1, %c0_i32 : i32
    %1 = arith.extui %0 : i1 to i32
    %c0_i32_0 = arith.constant 0 : i32
    %2 = arith.cmpi ne, %1, %c0_i32_0 : i32
    scf.if %2 {
      %c0_82 = arith.constant 0 : index
      %c0_83 = arith.constant 0 : index
      %c0_84 = arith.constant 0 : index
      %179 = vector.load %arg2[%c0_82, %c0_83, %c0_84] : memref<1x8x128xf32, #tpu.memory_space<vmem>>, vector<1x8x128xf32>
      %180 = vector.shape_cast %179 : vector<1x8x128xf32> to vector<8x128xf32>
      %c0_85 = arith.constant 0 : index
      %c0_86 = arith.constant 0 : index
      %181 = vector.load %arg17[%c0_85, %c0_86] : memref<8x128xf32, #tpu.memory_space<vmem>>, vector<8x128xf32>
      tpu.vector_store %arg17[%c0_85, %c0_86], %180 {strides = array<i32>} : memref<8x128xf32, #tpu.memory_space<vmem>>, vector<8x128xf32>,
    } else {
    }
    %c0 = arith.constant 0 : index
    %c0_1 = arith.constant 0 : index
    %3 = vector.load %arg17[%c0, %c0_1] : memref<8x128xf32, #tpu.memory_space<vmem>>, vector<8x128xf32>
    %c0_2 = arith.constant 0 : index
    %c0_3 = arith.constant 0 : index
    %c0_4 = arith.constant 0 : index
    %4 = vector.load %arg3[%c0_2, %c0_3, %c0_4] : memref<1x1x8xf32, #tpu.memory_space<vmem>>, vector<1x1x8xf32>
    %5 = vector.shape_cast %4 : vector<1x1x8xf32> to vector<1x8xf32>
    %6 = arith.truncf %3 : vector<8x128xf32> to vector<8x128xbf16>
    %c0_5 = arith.constant 0 : index
    %c0_6 = arith.constant 0 : index
    %c0_7 = arith.constant 0 : index
    %7 = vector.load %arg4[%c0_5, %c0_6, %c0_7] : memref<1x128x384xbf16, #tpu.memory_space<vmem>>, vector<1x128x384xbf16>
    %8 = vector.shape_cast %7 : vector<1x128x384xbf16> to vector<128x384xbf16>
    %cst = arith.constant dense<0.000000e+00> : vector<8x384xf32>
    %9 = tpu.matmul %6, %8, %cst {dimension_numbers = #tpu.dot_dimension_numbers<[1], [0], [0], [1], [0, 0, 1, 1], [], []>} : vector<8x128xbf16>, vector<128x384xbf16>, vector<8x384xf32> -> vector<8x384xf32>
    %c0_8 = arith.constant 0 : index
    %c0_9 = arith.constant 0 : index
    %c0_10 = arith.constant 0 : index
    %10 = vector.load %arg5[%c0_8, %c0_9, %c0_10] : memref<1x1x384xf32, #tpu.memory_space<vmem>>, vector<1x1x384xf32>
    %11 = vector.shape_cast %10 : vector<1x1x384xf32> to vector<1x384xf32>
    %12 = vector.broadcast %11 : vector<1x384xf32> to vector<8x384xf32>
    %13 = arith.addf %9, %12 : vector<8x384xf32>
    %14 = vector.extract_strided_slice %13 {offsets = [0, 0], sizes = [8, 128], strides = [1, 1]} : vector<8x384xf32> to vector<8x128xf32>
    %15 = vector.extract_strided_slice %13 {offsets = [0, 128], sizes = [8, 128], strides = [1, 1]} : vector<8x384xf32> to vector<8x128xf32>
    %16 = vector.extract_strided_slice %13 {offsets = [0, 256], sizes = [8, 128], strides = [1, 1]} : vector<8x384xf32> to vector<8x128xf32>
    %cst_11 = arith.constant 0.176776692 : f32
    %17 = vector.broadcast %cst_11 : f32 to vector<8x128xf32>
    %18 = arith.mulf %14, %17 : vector<8x128xf32>
    %19 = arith.truncf %18 : vector<8x128xf32> to vector<8x128xbf16>
    %20 = arith.truncf %15 : vector<8x128xf32> to vector<8x128xbf16>
    %21 = arith.truncf %16 : vector<8x128xf32> to vector<8x128xbf16>
    %22 = vector.extract_strided_slice %19 {offsets = [0, 0], sizes = [8, 32], strides = [1, 1]} : vector<8x128xbf16> to vector<8x32xbf16>
    %23 = vector.extract_strided_slice %20 {offsets = [0, 0], sizes = [8, 32], strides = [1, 1]} : vector<8x128xbf16> to vector<8x32xbf16>
    %cst_12 = arith.constant dense<0.000000e+00> : vector<8x8xf32>
    %24 = tpu.matmul %22, %23, %cst_12 {dimension_numbers = #tpu.dot_dimension_numbers<[1], [1], [0], [0], [0, 0, 1, 0], [], []>} : vector<8x32xbf16>, vector<8x32xbf16>, vector<8x8xf32> -> vector<8x8xf32>
    %25 = vector.broadcast %5 : vector<1x8xf32> to vector<8x8xf32>
    %26 = arith.addf %24, %25 : vector<8x8xf32>
    %cst_13 = arith.constant dense<0xFF800000> : vector<8xf32>
    %27 = vector.multi_reduction <maximumf>, %26, %cst_13 [1] : vector<8x8xf32> to vector<8xf32>
    %28 = vector.shape_cast %27 : vector<8xf32> to vector<8x1xf32>
    %29 = vector.broadcast %28 : vector<8x1xf32> to vector<8x8xf32>
    %30 = arith.subf %26, %29 : vector<8x8xf32>
    %31 = math.exp %30 : vector<8x8xf32>
    %cst_14 = arith.constant dense<0.000000e+00> : vector<8xf32>
    %32 = vector.multi_reduction <add>, %31, %cst_14 [1] : vector<8x8xf32> to vector<8xf32>
    %33 = vector.shape_cast %32 : vector<8xf32> to vector<8x1xf32>
    %34 = tpu.reciprocal %33 {approx = true} : vector<8x1xf32> -> vector<8x1xf32>
    %35 = vector.broadcast %34 : vector<8x1xf32> to vector<8x8xf32>
    %36 = arith.mulf %31, %35 : vector<8x8xf32>
    %37 = arith.truncf %36 : vector<8x8xf32> to vector<8x8xbf16>
    %38 = vector.extract_strided_slice %21 {offsets = [0, 0], sizes = [8, 32], strides = [1, 1]} : vector<8x128xbf16> to vector<8x32xbf16>
    %cst_15 = arith.constant dense<0.000000e+00> : vector<8x32xf32>
    %39 = tpu.matmul %37, %38, %cst_15 {dimension_numbers = #tpu.dot_dimension_numbers<[1], [0], [0], [1], [0, 0, 1, 1], [], []>} : vector<8x8xbf16>, vector<8x32xbf16>, vector<8x32xf32> -> vector<8x32xf32>
    %c0_16 = arith.constant 0 : index
    %c0_17 = arith.constant 0 : index
    %40 = vector.load %arg18[%c0_16, %c0_17] : memref<8x128xf32, #tpu.memory_space<vmem>>, vector<8x32xf32>
    tpu.vector_store %arg18[%c0_16, %c0_17], %39 {strides = array<i32>} : memref<8x128xf32, #tpu.memory_space<vmem>>, vector<8x32xf32>,
    %41 = vector.extract_strided_slice %19 {offsets = [0, 32], sizes = [8, 32], strides = [1, 1]} : vector<8x128xbf16> to vector<8x32xbf16>
    %42 = vector.extract_strided_slice %20 {offsets = [0, 32], sizes = [8, 32], strides = [1, 1]} : vector<8x128xbf16> to vector<8x32xbf16>
    %cst_18 = arith.constant dense<0.000000e+00> : vector<8x8xf32>
    %43 = tpu.matmul %41, %42, %cst_18 {dimension_numbers = #tpu.dot_dimension_numbers<[1], [1], [0], [0], [0, 0, 1, 0], [], []>} : vector<8x32xbf16>, vector<8x32xbf16>, vector<8x8xf32> -> vector<8x8xf32>
    %44 = vector.broadcast %5 : vector<1x8xf32> to vector<8x8xf32>
    %45 = arith.addf %43, %44 : vector<8x8xf32>
    %cst_19 = arith.constant dense<0xFF800000> : vector<8xf32>
    %46 = vector.multi_reduction <maximumf>, %45, %cst_19 [1] : vector<8x8xf32> to vector<8xf32>
    %47 = vector.shape_cast %46 : vector<8xf32> to vector<8x1xf32>
    %48 = vector.broadcast %47 : vector<8x1xf32> to vector<8x8xf32>
    %49 = arith.subf %45, %48 : vector<8x8xf32>
    %50 = math.exp %49 : vector<8x8xf32>
    %cst_20 = arith.constant dense<0.000000e+00> : vector<8xf32>
    %51 = vector.multi_reduction <add>, %50, %cst_20 [1] : vector<8x8xf32> to vector<8xf32>
    %52 = vector.shape_cast %51 : vector<8xf32> to vector<8x1xf32>
    %53 = tpu.reciprocal %52 {approx = true} : vector<8x1xf32> -> vector<8x1xf32>
    %54 = vector.broadcast %53 : vector<8x1xf32> to vector<8x8xf32>
    %55 = arith.mulf %50, %54 : vector<8x8xf32>
    %56 = arith.truncf %55 : vector<8x8xf32> to vector<8x8xbf16>
    %57 = vector.extract_strided_slice %21 {offsets = [0, 32], sizes = [8, 32], strides = [1, 1]} : vector<8x128xbf16> to vector<8x32xbf16>
    %cst_21 = arith.constant dense<0.000000e+00> : vector<8x32xf32>
    %58 = tpu.matmul %56, %57, %cst_21 {dimension_numbers = #tpu.dot_dimension_numbers<[1], [0], [0], [1], [0, 0, 1, 1], [], []>} : vector<8x8xbf16>, vector<8x32xbf16>, vector<8x32xf32> -> vector<8x32xf32>
    %c0_22 = arith.constant 0 : index
    %c32 = arith.constant 32 : index
    %59 = vector.load %arg18[%c0_22, %c32] : memref<8x128xf32, #tpu.memory_space<vmem>>, vector<8x32xf32>
    tpu.vector_store %arg18[%c0_22, %c32], %58 {strides = array<i32>} : memref<8x128xf32, #tpu.memory_space<vmem>>, vector<8x32xf32>,
    %60 = vector.extract_strided_slice %19 {offsets = [0, 64], sizes = [8, 32], strides = [1, 1]} : vector<8x128xbf16> to vector<8x32xbf16>
    %61 = vector.extract_strided_slice %20 {offsets = [0, 64], sizes = [8, 32], strides = [1, 1]} : vector<8x128xbf16> to vector<8x32xbf16>
    %cst_23 = arith.constant dense<0.000000e+00> : vector<8x8xf32>
    %62 = tpu.matmul %60, %61, %cst_23 {dimension_numbers = #tpu.dot_dimension_numbers<[1], [1], [0], [0], [0, 0, 1, 0], [], []>} : vector<8x32xbf16>, vector<8x32xbf16>, vector<8x8xf32> -> vector<8x8xf32>
    %63 = vector.broadcast %5 : vector<1x8xf32> to vector<8x8xf32>
    %64 = arith.addf %62, %63 : vector<8x8xf32>
    %cst_24 = arith.constant dense<0xFF800000> : vector<8xf32>
    %65 = vector.multi_reduction <maximumf>, %64, %cst_24 [1] : vector<8x8xf32> to vector<8xf32>
    %66 = vector.shape_cast %65 : vector<8xf32> to vector<8x1xf32>
    %67 = vector.broadcast %66 : vector<8x1xf32> to vector<8x8xf32>
    %68 = arith.subf %64, %67 : vector<8x8xf32>
    %69 = math.exp %68 : vector<8x8xf32>
    %cst_25 = arith.constant dense<0.000000e+00> : vector<8xf32>
    %70 = vector.multi_reduction <add>, %69, %cst_25 [1] : vector<8x8xf32> to vector<8xf32>
    %71 = vector.shape_cast %70 : vector<8xf32> to vector<8x1xf32>
    %72 = tpu.reciprocal %71 {approx = true} : vector<8x1xf32> -> vector<8x1xf32>
    %73 = vector.broadcast %72 : vector<8x1xf32> to vector<8x8xf32>
    %74 = arith.mulf %69, %73 : vector<8x8xf32>
    %75 = arith.truncf %74 : vector<8x8xf32> to vector<8x8xbf16>
    %76 = vector.extract_strided_slice %21 {offsets = [0, 64], sizes = [8, 32], strides = [1, 1]} : vector<8x128xbf16> to vector<8x32xbf16>
    %cst_26 = arith.constant dense<0.000000e+00> : vector<8x32xf32>
    %77 = tpu.matmul %75, %76, %cst_26 {dimension_numbers = #tpu.dot_dimension_numbers<[1], [0], [0], [1], [0, 0, 1, 1], [], []>} : vector<8x8xbf16>, vector<8x32xbf16>, vector<8x32xf32> -> vector<8x32xf32>
    %c0_27 = arith.constant 0 : index
    %c64 = arith.constant 64 : index
    %78 = vector.load %arg18[%c0_27, %c64] : memref<8x128xf32, #tpu.memory_space<vmem>>, vector<8x32xf32>
    tpu.vector_store %arg18[%c0_27, %c64], %77 {strides = array<i32>} : memref<8x128xf32, #tpu.memory_space<vmem>>, vector<8x32xf32>,
    %79 = vector.extract_strided_slice %19 {offsets = [0, 96], sizes = [8, 32], strides = [1, 1]} : vector<8x128xbf16> to vector<8x32xbf16>
    %80 = vector.extract_strided_slice %20 {offsets = [0, 96], sizes = [8, 32], strides = [1, 1]} : vector<8x128xbf16> to vector<8x32xbf16>
    %cst_28 = arith.constant dense<0.000000e+00> : vector<8x8xf32>
    %81 = tpu.matmul %79, %80, %cst_28 {dimension_numbers = #tpu.dot_dimension_numbers<[1], [1], [0], [0], [0, 0, 1, 0], [], []>} : vector<8x32xbf16>, vector<8x32xbf16>, vector<8x8xf32> -> vector<8x8xf32>
    %82 = vector.broadcast %5 : vector<1x8xf32> to vector<8x8xf32>
    %83 = arith.addf %81, %82 : vector<8x8xf32>
    %cst_29 = arith.constant dense<0xFF800000> : vector<8xf32>
    %84 = vector.multi_reduction <maximumf>, %83, %cst_29 [1] : vector<8x8xf32> to vector<8xf32>
    %85 = vector.shape_cast %84 : vector<8xf32> to vector<8x1xf32>
    %86 = vector.broadcast %85 : vector<8x1xf32> to vector<8x8xf32>
    %87 = arith.subf %83, %86 : vector<8x8xf32>
    %88 = math.exp %87 : vector<8x8xf32>
    %cst_30 = arith.constant dense<0.000000e+00> : vector<8xf32>
    %89 = vector.multi_reduction <add>, %88, %cst_30 [1] : vector<8x8xf32> to vector<8xf32>
    %90 = vector.shape_cast %89 : vector<8xf32> to vector<8x1xf32>
    %91 = tpu.reciprocal %90 {approx = true} : vector<8x1xf32> -> vector<8x1xf32>
    %92 = vector.broadcast %91 : vector<8x1xf32> to vector<8x8xf32>
    %93 = arith.mulf %88, %92 : vector<8x8xf32>
    %94 = arith.truncf %93 : vector<8x8xf32> to vector<8x8xbf16>
    %95 = vector.extract_strided_slice %21 {offsets = [0, 96], sizes = [8, 32], strides = [1, 1]} : vector<8x128xbf16> to vector<8x32xbf16>
    %cst_31 = arith.constant dense<0.000000e+00> : vector<8x32xf32>
    %96 = tpu.matmul %94, %95, %cst_31 {dimension_numbers = #tpu.dot_dimension_numbers<[1], [0], [0], [1], [0, 0, 1, 1], [], []>} : vector<8x8xbf16>, vector<8x32xbf16>, vector<8x32xf32> -> vector<8x32xf32>
    %c0_32 = arith.constant 0 : index
    %c96 = arith.constant 96 : index
    %97 = vector.load %arg18[%c0_32, %c96] : memref<8x128xf32, #tpu.memory_space<vmem>>, vector<8x32xf32>
    tpu.vector_store %arg18[%c0_32, %c96], %96 {strides = array<i32>} : memref<8x128xf32, #tpu.memory_space<vmem>>, vector<8x32xf32>,
    %c0_33 = arith.constant 0 : index
    %c0_34 = arith.constant 0 : index
    %98 = vector.load %arg18[%c0_33, %c0_34] : memref<8x128xf32, #tpu.memory_space<vmem>>, vector<8x128xf32>
    %99 = arith.truncf %98 : vector<8x128xf32> to vector<8x128xbf16>
    %c0_35 = arith.constant 0 : index
    %c0_36 = arith.constant 0 : index
    %c0_37 = arith.constant 0 : index
    %100 = vector.load %arg6[%c0_35, %c0_36, %c0_37] : memref<1x128x128xbf16, #tpu.memory_space<vmem>>, vector<1x128x128xbf16>
    %101 = vector.shape_cast %100 : vector<1x128x128xbf16> to vector<128x128xbf16>
    %cst_38 = arith.constant dense<0.000000e+00> : vector<8x128xf32>
    %102 = tpu.matmul %99, %101, %cst_38 {dimension_numbers = #tpu.dot_dimension_numbers<[1], [0], [0], [1], [0, 0, 1, 1], [], []>} : vector<8x128xbf16>, vector<128x128xbf16>, vector<8x128xf32> -> vector<8x128xf32>
    %c0_39 = arith.constant 0 : index
    %c0_40 = arith.constant 0 : index
    %c0_41 = arith.constant 0 : index
    %103 = vector.load %arg7[%c0_39, %c0_40, %c0_41] : memref<1x1x128xf32, #tpu.memory_space<vmem>>, vector<1x1x128xf32>
    %104 = vector.shape_cast %103 : vector<1x1x128xf32> to vector<1x128xf32>
    %105 = vector.broadcast %104 : vector<1x128xf32> to vector<8x128xf32>
    %106 = arith.addf %102, %105 : vector<8x128xf32>
    %107 = arith.addf %3, %106 : vector<8x128xf32>
    %c0_42 = arith.constant 0 : index
    %c0_43 = arith.constant 0 : index
    %c0_44 = arith.constant 0 : index
    %108 = vector.load %arg8[%c0_42, %c0_43, %c0_44] : memref<1x1x128xf32, #tpu.memory_space<vmem>>, vector<1x1x128xf32>
    %109 = vector.shape_cast %108 : vector<1x1x128xf32> to vector<1x128xf32>
    %c0_45 = arith.constant 0 : index
    %c0_46 = arith.constant 0 : index
    %c0_47 = arith.constant 0 : index
    %110 = vector.load %arg9[%c0_45, %c0_46, %c0_47] : memref<1x1x128xf32, #tpu.memory_space<vmem>>, vector<1x1x128xf32>
    %111 = vector.shape_cast %110 : vector<1x1x128xf32> to vector<1x128xf32>
    %cst_48 = arith.constant dense<0.000000e+00> : vector<8xf32>
    %112 = vector.multi_reduction <add>, %107, %cst_48 [1] : vector<8x128xf32> to vector<8xf32>
    %113 = vector.shape_cast %112 : vector<8xf32> to vector<8x1xf32>
    %cst_49 = arith.constant 1.280000e+02 : f32
    %114 = vector.broadcast %cst_49 : f32 to vector<8x1xf32>
    %115 = arith.divf %113, %114 : vector<8x1xf32>
    %116 = vector.broadcast %115 : vector<8x1xf32> to vector<8x128xf32>
    %117 = arith.subf %107, %116 : vector<8x128xf32>
    %118 = arith.mulf %117, %117 : vector<8x128xf32>
    %cst_50 = arith.constant dense<0.000000e+00> : vector<8xf32>
    %119 = vector.multi_reduction <add>, %118, %cst_50 [1] : vector<8x128xf32> to vector<8xf32>
    %120 = vector.shape_cast %119 : vector<8xf32> to vector<8x1xf32>
    %cst_51 = arith.constant 1.280000e+02 : f32
    %121 = vector.broadcast %cst_51 : f32 to vector<8x1xf32>
    %122 = arith.divf %120, %121 : vector<8x1xf32>
    %cst_52 = arith.constant 9.99999974E-6 : f32
    %123 = vector.broadcast %cst_52 : f32 to vector<8x1xf32>
    %124 = arith.addf %122, %123 : vector<8x1xf32>
    %125 = math.rsqrt %124 : vector<8x1xf32>
    %126 = vector.broadcast %125 : vector<8x1xf32> to vector<8x128xf32>
    %127 = arith.mulf %117, %126 : vector<8x128xf32>
    %128 = vector.broadcast %109 : vector<1x128xf32> to vector<8x128xf32>
    %129 = arith.mulf %127, %128 : vector<8x128xf32>
    %130 = vector.broadcast %111 : vector<1x128xf32> to vector<8x128xf32>
    %131 = arith.addf %129, %130 : vector<8x128xf32>
    %132 = arith.truncf %131 : vector<8x128xf32> to vector<8x128xbf16>
    %c0_53 = arith.constant 0 : index
    %c0_54 = arith.constant 0 : index
    %c0_55 = arith.constant 0 : index
    %133 = vector.load %arg10[%c0_53, %c0_54, %c0_55] : memref<1x128x256xbf16, #tpu.memory_space<vmem>>, vector<1x128x256xbf16>
    %134 = vector.shape_cast %133 : vector<1x128x256xbf16> to vector<128x256xbf16>
    %cst_56 = arith.constant dense<0.000000e+00> : vector<8x256xf32>
    %135 = tpu.matmul %132, %134, %cst_56 {dimension_numbers = #tpu.dot_dimension_numbers<[1], [0], [0], [1], [0, 0, 1, 1], [], []>} : vector<8x128xbf16>, vector<128x256xbf16>, vector<8x256xf32> -> vector<8x256xf32>
    %c0_57 = arith.constant 0 : index
    %c0_58 = arith.constant 0 : index
    %c0_59 = arith.constant 0 : index
    %136 = vector.load %arg11[%c0_57, %c0_58, %c0_59] : memref<1x1x256xf32, #tpu.memory_space<vmem>>, vector<1x1x256xf32>
    %137 = vector.shape_cast %136 : vector<1x1x256xf32> to vector<1x256xf32>
    %138 = vector.broadcast %137 : vector<1x256xf32> to vector<8x256xf32>
    %139 = arith.addf %135, %138 : vector<8x256xf32>
    %cst_60 = arith.constant 0.000000e+00 : f32
    %140 = vector.broadcast %cst_60 : f32 to vector<8x256xf32>
    %141 = arith.maximumf %139, %140 : vector<8x256xf32>
    %142 = arith.truncf %141 : vector<8x256xf32> to vector<8x256xbf16>
    %c0_61 = arith.constant 0 : index
    %c0_62 = arith.constant 0 : index
    %c0_63 = arith.constant 0 : index
    %143 = vector.load %arg12[%c0_61, %c0_62, %c0_63] : memref<1x256x128xbf16, #tpu.memory_space<vmem>>, vector<1x256x128xbf16>
    %144 = vector.shape_cast %143 : vector<1x256x128xbf16> to vector<256x128xbf16>
    %cst_64 = arith.constant dense<0.000000e+00> : vector<8x128xf32>
    %145 = tpu.matmul %142, %144, %cst_64 {dimension_numbers = #tpu.dot_dimension_numbers<[1], [0], [0], [1], [0, 0, 1, 1], [], []>} : vector<8x256xbf16>, vector<256x128xbf16>, vector<8x128xf32> -> vector<8x128xf32>
    %c0_65 = arith.constant 0 : index
    %c0_66 = arith.constant 0 : index
    %c0_67 = arith.constant 0 : index
    %146 = vector.load %arg13[%c0_65, %c0_66, %c0_67] : memref<1x1x128xf32, #tpu.memory_space<vmem>>, vector<1x1x128xf32>
    %147 = vector.shape_cast %146 : vector<1x1x128xf32> to vector<1x128xf32>
    %148 = vector.broadcast %147 : vector<1x128xf32> to vector<8x128xf32>
    %149 = arith.addf %145, %148 : vector<8x128xf32>
    %150 = arith.addf %131, %149 : vector<8x128xf32>
    %c0_68 = arith.constant 0 : index
    %c0_69 = arith.constant 0 : index
    %c0_70 = arith.constant 0 : index
    %151 = vector.load %arg14[%c0_68, %c0_69, %c0_70] : memref<1x1x128xf32, #tpu.memory_space<vmem>>, vector<1x1x128xf32>
    %152 = vector.shape_cast %151 : vector<1x1x128xf32> to vector<1x128xf32>
    %c0_71 = arith.constant 0 : index
    %c0_72 = arith.constant 0 : index
    %c0_73 = arith.constant 0 : index
    %153 = vector.load %arg15[%c0_71, %c0_72, %c0_73] : memref<1x1x128xf32, #tpu.memory_space<vmem>>, vector<1x1x128xf32>
    %154 = vector.shape_cast %153 : vector<1x1x128xf32> to vector<1x128xf32>
    %cst_74 = arith.constant dense<0.000000e+00> : vector<8xf32>
    %155 = vector.multi_reduction <add>, %150, %cst_74 [1] : vector<8x128xf32> to vector<8xf32>
    %156 = vector.shape_cast %155 : vector<8xf32> to vector<8x1xf32>
    %cst_75 = arith.constant 1.280000e+02 : f32
    %157 = vector.broadcast %cst_75 : f32 to vector<8x1xf32>
    %158 = arith.divf %156, %157 : vector<8x1xf32>
    %159 = vector.broadcast %158 : vector<8x1xf32> to vector<8x128xf32>
    %160 = arith.subf %150, %159 : vector<8x128xf32>
    %161 = arith.mulf %160, %160 : vector<8x128xf32>
    %cst_76 = arith.constant dense<0.000000e+00> : vector<8xf32>
    %162 = vector.multi_reduction <add>, %161, %cst_76 [1] : vector<8x128xf32> to vector<8xf32>
    %163 = vector.shape_cast %162 : vector<8xf32> to vector<8x1xf32>
    %cst_77 = arith.constant 1.280000e+02 : f32
    %164 = vector.broadcast %cst_77 : f32 to vector<8x1xf32>
    %165 = arith.divf %163, %164 : vector<8x1xf32>
    %cst_78 = arith.constant 9.99999974E-6 : f32
    %166 = vector.broadcast %cst_78 : f32 to vector<8x1xf32>
    %167 = arith.addf %165, %166 : vector<8x1xf32>
    %168 = math.rsqrt %167 : vector<8x1xf32>
    %169 = vector.broadcast %168 : vector<8x1xf32> to vector<8x128xf32>
    %170 = arith.mulf %160, %169 : vector<8x128xf32>
    %171 = vector.broadcast %152 : vector<1x128xf32> to vector<8x128xf32>
    %172 = arith.mulf %170, %171 : vector<8x128xf32>
    %173 = vector.broadcast %154 : vector<1x128xf32> to vector<8x128xf32>
    %174 = arith.addf %172, %173 : vector<8x128xf32>
    %c0_79 = arith.constant 0 : index
    %c0_80 = arith.constant 0 : index
    %175 = vector.load %arg17[%c0_79, %c0_80] : memref<8x128xf32, #tpu.memory_space<vmem>>, vector<8x128xf32>
    tpu.vector_store %arg17[%c0_79, %c0_80], %174 {strides = array<i32>} : memref<8x128xf32, #tpu.memory_space<vmem>>, vector<8x128xf32>,
    %c2_i32 = arith.constant 2 : i32
    %176 = arith.cmpi eq, %arg1, %c2_i32 : i32
    %177 = arith.extui %176 : i1 to i32
    %c0_i32_81 = arith.constant 0 : i32
    %178 = arith.cmpi ne, %177, %c0_i32_81 : i32
    scf.if %178 {
      %c0_82 = arith.constant 0 : index
      %c0_83 = arith.constant 0 : index
      %c0_84 = arith.constant 0 : index
      %179 = vector.load %arg16[%c0_82, %c0_83, %c0_84] : memref<1x8x128xf32, #tpu.memory_space<vmem>>, vector<1x8x128xf32>
      %180 = vector.shape_cast %179 : vector<1x8x128xf32> to vector<8x128xf32>
      %181 = vector.shape_cast %174 : vector<8x128xf32> to vector<1x8x128xf32>
      tpu.vector_store %arg16[%c0_82, %c0_83, %c0_84], %181 {strides = array<i32>} : memref<1x8x128xf32, #tpu.memory_space<vmem>>, vector<1x8x128xf32>,
    } else {
    }
    return
  }
  func.func @transform_0(%arg0: i32, %arg1: i32) -> (i32, i32, i32) {
    %c0_i32 = arith.constant 0 : i32
    %c0_i32_0 = arith.constant 0 : i32
    %c0_i32_1 = arith.constant 0 : i32
    return %arg0, %c0_i32, %c0_i32_0 : i32, i32, i32
  }
  func.func @transform_1(%arg0: i32, %arg1: i32) -> (i32, i32, i32) {
    %c0_i32 = arith.constant 0 : i32
    %c0_i32_0 = arith.constant 0 : i32
    %c0_i32_1 = arith.constant 0 : i32
    return %arg0, %c0_i32, %c0_i32_0 : i32, i32, i32
  }
  func.func @transform_2(%arg0: i32, %arg1: i32) -> (i32, i32, i32) {
    %c0_i32 = arith.constant 0 : i32
    %c0_i32_0 = arith.constant 0 : i32
    %c0_i32_1 = arith.constant 0 : i32
    return %arg1, %c0_i32, %c0_i32_0 : i32, i32, i32
  }
  func.func @transform_3(%arg0: i32, %arg1: i32) -> (i32, i32, i32) {
    %c0_i32 = arith.constant 0 : i32
    %c0_i32_0 = arith.constant 0 : i32
    %c0_i32_1 = arith.constant 0 : i32
    return %arg1, %c0_i32, %c0_i32_0 : i32, i32, i32
  }
  func.func @transform_4(%arg0: i32, %arg1: i32) -> (i32, i32, i32) {
    %c0_i32 = arith.constant 0 : i32
    %c0_i32_0 = arith.constant 0 : i32
    %c0_i32_1 = arith.constant 0 : i32
    return %arg1, %c0_i32, %c0_i32_0 : i32, i32, i32
  }
  func.func @transform_5(%arg0: i32, %arg1: i32) -> (i32, i32, i32) {
    %c0_i32 = arith.constant 0 : i32
    %c0_i32_0 = arith.constant 0 : i32
    %c0_i32_1 = arith.constant 0 : i32
    return %arg1, %c0_i32, %c0_i32_0 : i32, i32, i32
  }
  func.func @transform_6(%arg0: i32, %arg1: i32) -> (i32, i32, i32) {
    %c0_i32 = arith.constant 0 : i32
    %c0_i32_0 = arith.constant 0 : i32
    %c0_i32_1 = arith.constant 0 : i32
    return %arg1, %c0_i32, %c0_i32_0 : i32, i32, i32
  }
  func.func @transform_7(%arg0: i32, %arg1: i32) -> (i32, i32, i32) {
    %c0_i32 = arith.constant 0 : i32
    %c0_i32_0 = arith.constant 0 : i32
    %c0_i32_1 = arith.constant 0 : i32
    return %arg1, %c0_i32, %c0_i32_0 : i32, i32, i32
  }
  func.func @transform_8(%arg0: i32, %arg1: i32) -> (i32, i32, i32) {
    %c0_i32 = arith.constant 0 : i32
    %c0_i32_0 = arith.constant 0 : i32
    %c0_i32_1 = arith.constant 0 : i32
    return %arg1, %c0_i32, %c0_i32_0 : i32, i32, i32
  }
  func.func @transform_9(%arg0: i32, %arg1: i32) -> (i32, i32, i32) {
    %c0_i32 = arith.constant 0 : i32
    %c0_i32_0 = arith.constant 0 : i32
    %c0_i32_1 = arith.constant 0 : i32
    return %arg1, %c0_i32, %c0_i32_0 : i32, i32, i32
  }
  func.func @transform_10(%arg0: i32, %arg1: i32) -> (i32, i32, i32) {
    %c0_i32 = arith.constant 0 : i32
    %c0_i32_0 = arith.constant 0 : i32
    %c0_i32_1 = arith.constant 0 : i32
    return %arg1, %c0_i32, %c0_i32_0 : i32, i32, i32
  }
  func.func @transform_11(%arg0: i32, %arg1: i32) -> (i32, i32, i32) {
    %c0_i32 = arith.constant 0 : i32
    %c0_i32_0 = arith.constant 0 : i32
    %c0_i32_1 = arith.constant 0 : i32
    return %arg1, %c0_i32, %c0_i32_0 : i32, i32, i32
  }
  func.func @transform_12(%arg0: i32, %arg1: i32) -> (i32, i32, i32) {
    %c0_i32 = arith.constant 0 : i32
    %c0_i32_0 = arith.constant 0 : i32
    %c0_i32_1 = arith.constant 0 : i32
    return %arg1, %c0_i32, %c0_i32_0 : i32, i32, i32
  }
  func.func @transform_13(%arg0: i32, %arg1: i32) -> (i32, i32, i32) {
    %c0_i32 = arith.constant 0 : i32
    %c0_i32_0 = arith.constant 0 : i32
    %c0_i32_1 = arith.constant 0 : i32
    return %arg1, %c0_i32, %c0_i32_0 : i32, i32, i32
  }
  func.func @transform_14(%arg0: i32, %arg1: i32) -> (i32, i32, i32) {
    %c0_i32 = arith.constant 0 : i32
    %c0_i32_0 = arith.constant 0 : i32
    %c0_i32_1 = arith.constant 0 : i32
    return %arg0, %c0_i32, %c0_i32_0 : i32, i32, i32
  }
}

module attributes {stable_mosaic.version = 11 : i64} {
  func.func @decoder_stack_kernel(%arg0: i32, %arg1: i32, %arg2: memref<1x8x128xf32, #tpu.memory_space<vmem>>, %arg3: memref<1x8x128xf32, #tpu.memory_space<vmem>>, %arg4: memref<1x1x8xf32, #tpu.memory_space<vmem>>, %arg5: memref<1x1x8xf32, #tpu.memory_space<vmem>>, %arg6: memref<1x128x384xbf16, #tpu.memory_space<vmem>>, %arg7: memref<1x1x384xf32, #tpu.memory_space<vmem>>, %arg8: memref<1x128x128xbf16, #tpu.memory_space<vmem>>, %arg9: memref<1x1x128xf32, #tpu.memory_space<vmem>>, %arg10: memref<1x1x128xf32, #tpu.memory_space<vmem>>, %arg11: memref<1x1x128xf32, #tpu.memory_space<vmem>>, %arg12: memref<1x128x128xbf16, #tpu.memory_space<vmem>>, %arg13: memref<1x1x128xf32, #tpu.memory_space<vmem>>, %arg14: memref<1x128x256xbf16, #tpu.memory_space<vmem>>, %arg15: memref<1x1x256xf32, #tpu.memory_space<vmem>>, %arg16: memref<1x128x128xbf16, #tpu.memory_space<vmem>>, %arg17: memref<1x1x128xf32, #tpu.memory_space<vmem>>, %arg18: memref<1x1x128xf32, #tpu.memory_space<vmem>>, %arg19: memref<1x1x128xf32, #tpu.memory_space<vmem>>, %arg20: memref<1x128x256xbf16, #tpu.memory_space<vmem>>, %arg21: memref<1x1x256xf32, #tpu.memory_space<vmem>>, %arg22: memref<1x256x128xbf16, #tpu.memory_space<vmem>>, %arg23: memref<1x1x128xf32, #tpu.memory_space<vmem>>, %arg24: memref<1x1x128xf32, #tpu.memory_space<vmem>>, %arg25: memref<1x1x128xf32, #tpu.memory_space<vmem>>, %arg26: memref<128x128xbf16, #tpu.memory_space<vmem>>, %arg27: memref<1x128xf32, #tpu.memory_space<vmem>>, %arg28: memref<1x8x128xf32, #tpu.memory_space<vmem>>, %arg29: memref<8x128xf32, #tpu.memory_space<vmem>>, %arg30: memref<8x128xf32, #tpu.memory_space<vmem>>) attributes {dimension_semantics = [#tpu.dimension_semantics<parallel>, #tpu.dimension_semantics<arbitrary>], iteration_bounds = array<i64: 2, 3>, scalar_prefetch = 0 : i64, scratch_operands = 2 : i64, tpu.core_type = #tpu.core_type<tc>, window_params = [{transform_indices = @transform_0, window_bounds = array<i64: 1, 8, 128>}, {transform_indices = @transform_1, window_bounds = array<i64: 1, 8, 128>}, {transform_indices = @transform_2, window_bounds = array<i64: 1, 1, 8>}, {transform_indices = @transform_3, window_bounds = array<i64: 1, 1, 8>}, {transform_indices = @transform_4, window_bounds = array<i64: 1, 128, 384>}, {transform_indices = @transform_5, window_bounds = array<i64: 1, 1, 384>}, {transform_indices = @transform_6, window_bounds = array<i64: 1, 128, 128>}, {transform_indices = @transform_7, window_bounds = array<i64: 1, 1, 128>}, {transform_indices = @transform_8, window_bounds = array<i64: 1, 1, 128>}, {transform_indices = @transform_9, window_bounds = array<i64: 1, 1, 128>}, {transform_indices = @transform_10, window_bounds = array<i64: 1, 128, 128>}, {transform_indices = @transform_11, window_bounds = array<i64: 1, 1, 128>}, {transform_indices = @transform_12, window_bounds = array<i64: 1, 128, 256>}, {transform_indices = @transform_13, window_bounds = array<i64: 1, 1, 256>}, {transform_indices = @transform_14, window_bounds = array<i64: 1, 128, 128>}, {transform_indices = @transform_15, window_bounds = array<i64: 1, 1, 128>}, {transform_indices = @transform_16, window_bounds = array<i64: 1, 1, 128>}, {transform_indices = @transform_17, window_bounds = array<i64: 1, 1, 128>}, {transform_indices = @transform_18, window_bounds = array<i64: 1, 128, 256>}, {transform_indices = @transform_19, window_bounds = array<i64: 1, 1, 256>}, {transform_indices = @transform_20, window_bounds = array<i64: 1, 256, 128>}, {transform_indices = @transform_21, window_bounds = array<i64: 1, 1, 128>}, {transform_indices = @transform_22, window_bounds = array<i64: 1, 1, 128>}, {transform_indices = @transform_23, window_bounds = array<i64: 1, 1, 128>}, {pipeline_mode = #tpu.pipeline_mode<synchronous>, transform_indices = @transform_24, window_bounds = array<i64: 128, 128>}, {pipeline_mode = #tpu.pipeline_mode<synchronous>, transform_indices = @transform_25, window_bounds = array<i64: 1, 128>}, {transform_indices = @transform_26, window_bounds = array<i64: 1, 8, 128>}]} {
    %c0_i32 = arith.constant 0 : i32
    %0 = arith.cmpi eq, %arg1, %c0_i32 : i32
    %1 = arith.extui %0 : i1 to i32
    %c0_i32_0 = arith.constant 0 : i32
    %2 = arith.cmpi ne, %1, %c0_i32_0 : i32
    scf.if %2 {
      %c0_149 = arith.constant 0 : index
      %c0_150 = arith.constant 0 : index
      %c0_151 = arith.constant 0 : index
      %320 = vector.load %arg2[%c0_149, %c0_150, %c0_151] : memref<1x8x128xf32, #tpu.memory_space<vmem>>, vector<1x8x128xf32>
      %321 = vector.shape_cast %320 : vector<1x8x128xf32> to vector<8x128xf32>
      %c0_152 = arith.constant 0 : index
      %c0_153 = arith.constant 0 : index
      %322 = vector.load %arg29[%c0_152, %c0_153] : memref<8x128xf32, #tpu.memory_space<vmem>>, vector<8x128xf32>
      tpu.vector_store %arg29[%c0_152, %c0_153], %321 {strides = array<i32>} : memref<8x128xf32, #tpu.memory_space<vmem>>, vector<8x128xf32>,
    } else {
    }
    %c0 = arith.constant 0 : index
    %c0_1 = arith.constant 0 : index
    %3 = vector.load %arg29[%c0, %c0_1] : memref<8x128xf32, #tpu.memory_space<vmem>>, vector<8x128xf32>
    %c0_2 = arith.constant 0 : index
    %c0_3 = arith.constant 0 : index
    %c0_4 = arith.constant 0 : index
    %4 = vector.load %arg3[%c0_2, %c0_3, %c0_4] : memref<1x8x128xf32, #tpu.memory_space<vmem>>, vector<1x8x128xf32>
    %5 = vector.shape_cast %4 : vector<1x8x128xf32> to vector<8x128xf32>
    %6 = tpu.iota {dimensions = array<i32: 0>} : vector<8x8xi32>
    %7 = tpu.iota {dimensions = array<i32: 1>} : vector<8x8xi32>
    %8 = arith.cmpi sge, %6, %7 : vector<8x8xi32>
    %cst = arith.constant 0.000000e+00 : f32
    %cst_5 = arith.constant -1.000000e+30 : f32
    %9 = vector.broadcast %cst : f32 to vector<8x8xf32>
    %10 = vector.broadcast %cst_5 : f32 to vector<8x8xf32>
    %11 = arith.select %8, %9, %10 : vector<8x8xi1>, vector<8x8xf32>
    %c0_6 = arith.constant 0 : index
    %c0_7 = arith.constant 0 : index
    %c0_8 = arith.constant 0 : index
    %12 = vector.load %arg4[%c0_6, %c0_7, %c0_8] : memref<1x1x8xf32, #tpu.memory_space<vmem>>, vector<1x1x8xf32>
    %13 = vector.shape_cast %12 : vector<1x1x8xf32> to vector<1x8xf32>
    %14 = vector.broadcast %13 : vector<1x8xf32> to vector<8x8xf32>
    %15 = arith.addf %11, %14 : vector<8x8xf32>
    %c0_9 = arith.constant 0 : index
    %c0_10 = arith.constant 0 : index
    %c0_11 = arith.constant 0 : index
    %16 = vector.load %arg5[%c0_9, %c0_10, %c0_11] : memref<1x1x8xf32, #tpu.memory_space<vmem>>, vector<1x1x8xf32>
    %17 = vector.shape_cast %16 : vector<1x1x8xf32> to vector<1x8xf32>
    %18 = arith.truncf %3 : vector<8x128xf32> to vector<8x128xbf16>
    %c0_12 = arith.constant 0 : index
    %c0_13 = arith.constant 0 : index
    %c0_14 = arith.constant 0 : index
    %19 = vector.load %arg6[%c0_12, %c0_13, %c0_14] : memref<1x128x384xbf16, #tpu.memory_space<vmem>>, vector<1x128x384xbf16>
    %20 = vector.shape_cast %19 : vector<1x128x384xbf16> to vector<128x384xbf16>
    %cst_15 = arith.constant dense<0.000000e+00> : vector<8x384xf32>
    %21 = tpu.matmul %18, %20, %cst_15 {dimension_numbers = #tpu.dot_dimension_numbers<[1], [0], [0], [1], [0, 0, 1, 1], [], []>} : vector<8x128xbf16>, vector<128x384xbf16>, vector<8x384xf32> -> vector<8x384xf32>
    %c0_16 = arith.constant 0 : index
    %c0_17 = arith.constant 0 : index
    %c0_18 = arith.constant 0 : index
    %22 = vector.load %arg7[%c0_16, %c0_17, %c0_18] : memref<1x1x384xf32, #tpu.memory_space<vmem>>, vector<1x1x384xf32>
    %23 = vector.shape_cast %22 : vector<1x1x384xf32> to vector<1x384xf32>
    %24 = vector.broadcast %23 : vector<1x384xf32> to vector<8x384xf32>
    %25 = arith.addf %21, %24 : vector<8x384xf32>
    %26 = vector.extract_strided_slice %25 {offsets = [0, 0], sizes = [8, 128], strides = [1, 1]} : vector<8x384xf32> to vector<8x128xf32>
    %27 = vector.extract_strided_slice %25 {offsets = [0, 128], sizes = [8, 128], strides = [1, 1]} : vector<8x384xf32> to vector<8x128xf32>
    %28 = vector.extract_strided_slice %25 {offsets = [0, 256], sizes = [8, 128], strides = [1, 1]} : vector<8x384xf32> to vector<8x128xf32>
    %cst_19 = arith.constant 0.176776692 : f32
    %29 = vector.broadcast %cst_19 : f32 to vector<8x128xf32>
    %30 = arith.mulf %26, %29 : vector<8x128xf32>
    %31 = arith.truncf %30 : vector<8x128xf32> to vector<8x128xbf16>
    %32 = arith.truncf %27 : vector<8x128xf32> to vector<8x128xbf16>
    %33 = arith.truncf %28 : vector<8x128xf32> to vector<8x128xbf16>
    %34 = vector.extract_strided_slice %31 {offsets = [0, 0], sizes = [8, 32], strides = [1, 1]} : vector<8x128xbf16> to vector<8x32xbf16>
    %35 = vector.extract_strided_slice %32 {offsets = [0, 0], sizes = [8, 32], strides = [1, 1]} : vector<8x128xbf16> to vector<8x32xbf16>
    %cst_20 = arith.constant dense<0.000000e+00> : vector<8x8xf32>
    %36 = tpu.matmul %34, %35, %cst_20 {dimension_numbers = #tpu.dot_dimension_numbers<[1], [1], [0], [0], [0, 0, 1, 0], [], []>} : vector<8x32xbf16>, vector<8x32xbf16>, vector<8x8xf32> -> vector<8x8xf32>
    %37 = arith.addf %36, %15 : vector<8x8xf32>
    %cst_21 = arith.constant dense<0xFF800000> : vector<8xf32>
    %38 = vector.multi_reduction <maximumf>, %37, %cst_21 [1] : vector<8x8xf32> to vector<8xf32>
    %39 = vector.shape_cast %38 : vector<8xf32> to vector<8x1xf32>
    %40 = vector.broadcast %39 : vector<8x1xf32> to vector<8x8xf32>
    %41 = arith.subf %37, %40 : vector<8x8xf32>
    %42 = math.exp %41 : vector<8x8xf32>
    %cst_22 = arith.constant dense<0.000000e+00> : vector<8xf32>
    %43 = vector.multi_reduction <add>, %42, %cst_22 [1] : vector<8x8xf32> to vector<8xf32>
    %44 = vector.shape_cast %43 : vector<8xf32> to vector<8x1xf32>
    %45 = tpu.reciprocal %44 {approx = true} : vector<8x1xf32> -> vector<8x1xf32>
    %46 = vector.broadcast %45 : vector<8x1xf32> to vector<8x8xf32>
    %47 = arith.mulf %42, %46 : vector<8x8xf32>
    %48 = arith.truncf %47 : vector<8x8xf32> to vector<8x8xbf16>
    %49 = vector.extract_strided_slice %33 {offsets = [0, 0], sizes = [8, 32], strides = [1, 1]} : vector<8x128xbf16> to vector<8x32xbf16>
    %cst_23 = arith.constant dense<0.000000e+00> : vector<8x32xf32>
    %50 = tpu.matmul %48, %49, %cst_23 {dimension_numbers = #tpu.dot_dimension_numbers<[1], [0], [0], [1], [0, 0, 1, 1], [], []>} : vector<8x8xbf16>, vector<8x32xbf16>, vector<8x32xf32> -> vector<8x32xf32>
    %c0_24 = arith.constant 0 : index
    %c0_25 = arith.constant 0 : index
    %51 = vector.load %arg30[%c0_24, %c0_25] : memref<8x128xf32, #tpu.memory_space<vmem>>, vector<8x32xf32>
    tpu.vector_store %arg30[%c0_24, %c0_25], %50 {strides = array<i32>} : memref<8x128xf32, #tpu.memory_space<vmem>>, vector<8x32xf32>,
    %52 = vector.extract_strided_slice %31 {offsets = [0, 32], sizes = [8, 32], strides = [1, 1]} : vector<8x128xbf16> to vector<8x32xbf16>
    %53 = vector.extract_strided_slice %32 {offsets = [0, 32], sizes = [8, 32], strides = [1, 1]} : vector<8x128xbf16> to vector<8x32xbf16>
    %cst_26 = arith.constant dense<0.000000e+00> : vector<8x8xf32>
    %54 = tpu.matmul %52, %53, %cst_26 {dimension_numbers = #tpu.dot_dimension_numbers<[1], [1], [0], [0], [0, 0, 1, 0], [], []>} : vector<8x32xbf16>, vector<8x32xbf16>, vector<8x8xf32> -> vector<8x8xf32>
    %55 = arith.addf %54, %15 : vector<8x8xf32>
    %cst_27 = arith.constant dense<0xFF800000> : vector<8xf32>
    %56 = vector.multi_reduction <maximumf>, %55, %cst_27 [1] : vector<8x8xf32> to vector<8xf32>
    %57 = vector.shape_cast %56 : vector<8xf32> to vector<8x1xf32>
    %58 = vector.broadcast %57 : vector<8x1xf32> to vector<8x8xf32>
    %59 = arith.subf %55, %58 : vector<8x8xf32>
    %60 = math.exp %59 : vector<8x8xf32>
    %cst_28 = arith.constant dense<0.000000e+00> : vector<8xf32>
    %61 = vector.multi_reduction <add>, %60, %cst_28 [1] : vector<8x8xf32> to vector<8xf32>
    %62 = vector.shape_cast %61 : vector<8xf32> to vector<8x1xf32>
    %63 = tpu.reciprocal %62 {approx = true} : vector<8x1xf32> -> vector<8x1xf32>
    %64 = vector.broadcast %63 : vector<8x1xf32> to vector<8x8xf32>
    %65 = arith.mulf %60, %64 : vector<8x8xf32>
    %66 = arith.truncf %65 : vector<8x8xf32> to vector<8x8xbf16>
    %67 = vector.extract_strided_slice %33 {offsets = [0, 32], sizes = [8, 32], strides = [1, 1]} : vector<8x128xbf16> to vector<8x32xbf16>
    %cst_29 = arith.constant dense<0.000000e+00> : vector<8x32xf32>
    %68 = tpu.matmul %66, %67, %cst_29 {dimension_numbers = #tpu.dot_dimension_numbers<[1], [0], [0], [1], [0, 0, 1, 1], [], []>} : vector<8x8xbf16>, vector<8x32xbf16>, vector<8x32xf32> -> vector<8x32xf32>
    %c0_30 = arith.constant 0 : index
    %c32 = arith.constant 32 : index
    %69 = vector.load %arg30[%c0_30, %c32] : memref<8x128xf32, #tpu.memory_space<vmem>>, vector<8x32xf32>
    tpu.vector_store %arg30[%c0_30, %c32], %68 {strides = array<i32>} : memref<8x128xf32, #tpu.memory_space<vmem>>, vector<8x32xf32>,
    %70 = vector.extract_strided_slice %31 {offsets = [0, 64], sizes = [8, 32], strides = [1, 1]} : vector<8x128xbf16> to vector<8x32xbf16>
    %71 = vector.extract_strided_slice %32 {offsets = [0, 64], sizes = [8, 32], strides = [1, 1]} : vector<8x128xbf16> to vector<8x32xbf16>
    %cst_31 = arith.constant dense<0.000000e+00> : vector<8x8xf32>
    %72 = tpu.matmul %70, %71, %cst_31 {dimension_numbers = #tpu.dot_dimension_numbers<[1], [1], [0], [0], [0, 0, 1, 0], [], []>} : vector<8x32xbf16>, vector<8x32xbf16>, vector<8x8xf32> -> vector<8x8xf32>
    %73 = arith.addf %72, %15 : vector<8x8xf32>
    %cst_32 = arith.constant dense<0xFF800000> : vector<8xf32>
    %74 = vector.multi_reduction <maximumf>, %73, %cst_32 [1] : vector<8x8xf32> to vector<8xf32>
    %75 = vector.shape_cast %74 : vector<8xf32> to vector<8x1xf32>
    %76 = vector.broadcast %75 : vector<8x1xf32> to vector<8x8xf32>
    %77 = arith.subf %73, %76 : vector<8x8xf32>
    %78 = math.exp %77 : vector<8x8xf32>
    %cst_33 = arith.constant dense<0.000000e+00> : vector<8xf32>
    %79 = vector.multi_reduction <add>, %78, %cst_33 [1] : vector<8x8xf32> to vector<8xf32>
    %80 = vector.shape_cast %79 : vector<8xf32> to vector<8x1xf32>
    %81 = tpu.reciprocal %80 {approx = true} : vector<8x1xf32> -> vector<8x1xf32>
    %82 = vector.broadcast %81 : vector<8x1xf32> to vector<8x8xf32>
    %83 = arith.mulf %78, %82 : vector<8x8xf32>
    %84 = arith.truncf %83 : vector<8x8xf32> to vector<8x8xbf16>
    %85 = vector.extract_strided_slice %33 {offsets = [0, 64], sizes = [8, 32], strides = [1, 1]} : vector<8x128xbf16> to vector<8x32xbf16>
    %cst_34 = arith.constant dense<0.000000e+00> : vector<8x32xf32>
    %86 = tpu.matmul %84, %85, %cst_34 {dimension_numbers = #tpu.dot_dimension_numbers<[1], [0], [0], [1], [0, 0, 1, 1], [], []>} : vector<8x8xbf16>, vector<8x32xbf16>, vector<8x32xf32> -> vector<8x32xf32>
    %c0_35 = arith.constant 0 : index
    %c64 = arith.constant 64 : index
    %87 = vector.load %arg30[%c0_35, %c64] : memref<8x128xf32, #tpu.memory_space<vmem>>, vector<8x32xf32>
    tpu.vector_store %arg30[%c0_35, %c64], %86 {strides = array<i32>} : memref<8x128xf32, #tpu.memory_space<vmem>>, vector<8x32xf32>,
    %88 = vector.extract_strided_slice %31 {offsets = [0, 96], sizes = [8, 32], strides = [1, 1]} : vector<8x128xbf16> to vector<8x32xbf16>
    %89 = vector.extract_strided_slice %32 {offsets = [0, 96], sizes = [8, 32], strides = [1, 1]} : vector<8x128xbf16> to vector<8x32xbf16>
    %cst_36 = arith.constant dense<0.000000e+00> : vector<8x8xf32>
    %90 = tpu.matmul %88, %89, %cst_36 {dimension_numbers = #tpu.dot_dimension_numbers<[1], [1], [0], [0], [0, 0, 1, 0], [], []>} : vector<8x32xbf16>, vector<8x32xbf16>, vector<8x8xf32> -> vector<8x8xf32>
    %91 = arith.addf %90, %15 : vector<8x8xf32>
    %cst_37 = arith.constant dense<0xFF800000> : vector<8xf32>
    %92 = vector.multi_reduction <maximumf>, %91, %cst_37 [1] : vector<8x8xf32> to vector<8xf32>
    %93 = vector.shape_cast %92 : vector<8xf32> to vector<8x1xf32>
    %94 = vector.broadcast %93 : vector<8x1xf32> to vector<8x8xf32>
    %95 = arith.subf %91, %94 : vector<8x8xf32>
    %96 = math.exp %95 : vector<8x8xf32>
    %cst_38 = arith.constant dense<0.000000e+00> : vector<8xf32>
    %97 = vector.multi_reduction <add>, %96, %cst_38 [1] : vector<8x8xf32> to vector<8xf32>
    %98 = vector.shape_cast %97 : vector<8xf32> to vector<8x1xf32>
    %99 = tpu.reciprocal %98 {approx = true} : vector<8x1xf32> -> vector<8x1xf32>
    %100 = vector.broadcast %99 : vector<8x1xf32> to vector<8x8xf32>
    %101 = arith.mulf %96, %100 : vector<8x8xf32>
    %102 = arith.truncf %101 : vector<8x8xf32> to vector<8x8xbf16>
    %103 = vector.extract_strided_slice %33 {offsets = [0, 96], sizes = [8, 32], strides = [1, 1]} : vector<8x128xbf16> to vector<8x32xbf16>
    %cst_39 = arith.constant dense<0.000000e+00> : vector<8x32xf32>
    %104 = tpu.matmul %102, %103, %cst_39 {dimension_numbers = #tpu.dot_dimension_numbers<[1], [0], [0], [1], [0, 0, 1, 1], [], []>} : vector<8x8xbf16>, vector<8x32xbf16>, vector<8x32xf32> -> vector<8x32xf32>
    %c0_40 = arith.constant 0 : index
    %c96 = arith.constant 96 : index
    %105 = vector.load %arg30[%c0_40, %c96] : memref<8x128xf32, #tpu.memory_space<vmem>>, vector<8x32xf32>
    tpu.vector_store %arg30[%c0_40, %c96], %104 {strides = array<i32>} : memref<8x128xf32, #tpu.memory_space<vmem>>, vector<8x32xf32>,
    %c0_41 = arith.constant 0 : index
    %c0_42 = arith.constant 0 : index
    %106 = vector.load %arg30[%c0_41, %c0_42] : memref<8x128xf32, #tpu.memory_space<vmem>>, vector<8x128xf32>
    %107 = arith.truncf %106 : vector<8x128xf32> to vector<8x128xbf16>
    %c0_43 = arith.constant 0 : index
    %c0_44 = arith.constant 0 : index
    %c0_45 = arith.constant 0 : index
    %108 = vector.load %arg8[%c0_43, %c0_44, %c0_45] : memref<1x128x128xbf16, #tpu.memory_space<vmem>>, vector<1x128x128xbf16>
    %109 = vector.shape_cast %108 : vector<1x128x128xbf16> to vector<128x128xbf16>
    %cst_46 = arith.constant dense<0.000000e+00> : vector<8x128xf32>
    %110 = tpu.matmul %107, %109, %cst_46 {dimension_numbers = #tpu.dot_dimension_numbers<[1], [0], [0], [1], [0, 0, 1, 1], [], []>} : vector<8x128xbf16>, vector<128x128xbf16>, vector<8x128xf32> -> vector<8x128xf32>
    %c0_47 = arith.constant 0 : index
    %c0_48 = arith.constant 0 : index
    %c0_49 = arith.constant 0 : index
    %111 = vector.load %arg9[%c0_47, %c0_48, %c0_49] : memref<1x1x128xf32, #tpu.memory_space<vmem>>, vector<1x1x128xf32>
    %112 = vector.shape_cast %111 : vector<1x1x128xf32> to vector<1x128xf32>
    %113 = vector.broadcast %112 : vector<1x128xf32> to vector<8x128xf32>
    %114 = arith.addf %110, %113 : vector<8x128xf32>
    %115 = arith.addf %3, %114 : vector<8x128xf32>
    %c0_50 = arith.constant 0 : index
    %c0_51 = arith.constant 0 : index
    %c0_52 = arith.constant 0 : index
    %116 = vector.load %arg10[%c0_50, %c0_51, %c0_52] : memref<1x1x128xf32, #tpu.memory_space<vmem>>, vector<1x1x128xf32>
    %117 = vector.shape_cast %116 : vector<1x1x128xf32> to vector<1x128xf32>
    %c0_53 = arith.constant 0 : index
    %c0_54 = arith.constant 0 : index
    %c0_55 = arith.constant 0 : index
    %118 = vector.load %arg11[%c0_53, %c0_54, %c0_55] : memref<1x1x128xf32, #tpu.memory_space<vmem>>, vector<1x1x128xf32>
    %119 = vector.shape_cast %118 : vector<1x1x128xf32> to vector<1x128xf32>
    %cst_56 = arith.constant dense<0.000000e+00> : vector<8xf32>
    %120 = vector.multi_reduction <add>, %115, %cst_56 [1] : vector<8x128xf32> to vector<8xf32>
    %121 = vector.shape_cast %120 : vector<8xf32> to vector<8x1xf32>
    %cst_57 = arith.constant 1.280000e+02 : f32
    %122 = vector.broadcast %cst_57 : f32 to vector<8x1xf32>
    %123 = arith.divf %121, %122 : vector<8x1xf32>
    %124 = vector.broadcast %123 : vector<8x1xf32> to vector<8x128xf32>
    %125 = arith.subf %115, %124 : vector<8x128xf32>
    %126 = arith.mulf %125, %125 : vector<8x128xf32>
    %cst_58 = arith.constant dense<0.000000e+00> : vector<8xf32>
    %127 = vector.multi_reduction <add>, %126, %cst_58 [1] : vector<8x128xf32> to vector<8xf32>
    %128 = vector.shape_cast %127 : vector<8xf32> to vector<8x1xf32>
    %cst_59 = arith.constant 1.280000e+02 : f32
    %129 = vector.broadcast %cst_59 : f32 to vector<8x1xf32>
    %130 = arith.divf %128, %129 : vector<8x1xf32>
    %cst_60 = arith.constant 9.99999974E-6 : f32
    %131 = vector.broadcast %cst_60 : f32 to vector<8x1xf32>
    %132 = arith.addf %130, %131 : vector<8x1xf32>
    %133 = math.rsqrt %132 : vector<8x1xf32>
    %134 = vector.broadcast %133 : vector<8x1xf32> to vector<8x128xf32>
    %135 = arith.mulf %125, %134 : vector<8x128xf32>
    %136 = vector.broadcast %117 : vector<1x128xf32> to vector<8x128xf32>
    %137 = arith.mulf %135, %136 : vector<8x128xf32>
    %138 = vector.broadcast %119 : vector<1x128xf32> to vector<8x128xf32>
    %139 = arith.addf %137, %138 : vector<8x128xf32>
    %140 = arith.truncf %139 : vector<8x128xf32> to vector<8x128xbf16>
    %c0_61 = arith.constant 0 : index
    %c0_62 = arith.constant 0 : index
    %c0_63 = arith.constant 0 : index
    %141 = vector.load %arg12[%c0_61, %c0_62, %c0_63] : memref<1x128x128xbf16, #tpu.memory_space<vmem>>, vector<1x128x128xbf16>
    %142 = vector.shape_cast %141 : vector<1x128x128xbf16> to vector<128x128xbf16>
    %cst_64 = arith.constant dense<0.000000e+00> : vector<8x128xf32>
    %143 = tpu.matmul %140, %142, %cst_64 {dimension_numbers = #tpu.dot_dimension_numbers<[1], [0], [0], [1], [0, 0, 1, 1], [], []>} : vector<8x128xbf16>, vector<128x128xbf16>, vector<8x128xf32> -> vector<8x128xf32>
    %c0_65 = arith.constant 0 : index
    %c0_66 = arith.constant 0 : index
    %c0_67 = arith.constant 0 : index
    %144 = vector.load %arg13[%c0_65, %c0_66, %c0_67] : memref<1x1x128xf32, #tpu.memory_space<vmem>>, vector<1x1x128xf32>
    %145 = vector.shape_cast %144 : vector<1x1x128xf32> to vector<1x128xf32>
    %146 = vector.broadcast %145 : vector<1x128xf32> to vector<8x128xf32>
    %147 = arith.addf %143, %146 : vector<8x128xf32>
    %148 = arith.truncf %5 : vector<8x128xf32> to vector<8x128xbf16>
    %c0_68 = arith.constant 0 : index
    %c0_69 = arith.constant 0 : index
    %c0_70 = arith.constant 0 : index
    %149 = vector.load %arg14[%c0_68, %c0_69, %c0_70] : memref<1x128x256xbf16, #tpu.memory_space<vmem>>, vector<1x128x256xbf16>
    %150 = vector.shape_cast %149 : vector<1x128x256xbf16> to vector<128x256xbf16>
    %cst_71 = arith.constant dense<0.000000e+00> : vector<8x256xf32>
    %151 = tpu.matmul %148, %150, %cst_71 {dimension_numbers = #tpu.dot_dimension_numbers<[1], [0], [0], [1], [0, 0, 1, 1], [], []>} : vector<8x128xbf16>, vector<128x256xbf16>, vector<8x256xf32> -> vector<8x256xf32>
    %c0_72 = arith.constant 0 : index
    %c0_73 = arith.constant 0 : index
    %c0_74 = arith.constant 0 : index
    %152 = vector.load %arg15[%c0_72, %c0_73, %c0_74] : memref<1x1x256xf32, #tpu.memory_space<vmem>>, vector<1x1x256xf32>
    %153 = vector.shape_cast %152 : vector<1x1x256xf32> to vector<1x256xf32>
    %154 = vector.broadcast %153 : vector<1x256xf32> to vector<8x256xf32>
    %155 = arith.addf %151, %154 : vector<8x256xf32>
    %156 = vector.extract_strided_slice %155 {offsets = [0, 0], sizes = [8, 128], strides = [1, 1]} : vector<8x256xf32> to vector<8x128xf32>
    %157 = vector.extract_strided_slice %155 {offsets = [0, 128], sizes = [8, 128], strides = [1, 1]} : vector<8x256xf32> to vector<8x128xf32>
    %cst_75 = arith.constant 0.176776692 : f32
    %158 = vector.broadcast %cst_75 : f32 to vector<8x128xf32>
    %159 = arith.mulf %147, %158 : vector<8x128xf32>
    %160 = arith.truncf %159 : vector<8x128xf32> to vector<8x128xbf16>
    %161 = arith.truncf %156 : vector<8x128xf32> to vector<8x128xbf16>
    %162 = arith.truncf %157 : vector<8x128xf32> to vector<8x128xbf16>
    %163 = vector.extract_strided_slice %160 {offsets = [0, 0], sizes = [8, 32], strides = [1, 1]} : vector<8x128xbf16> to vector<8x32xbf16>
    %164 = vector.extract_strided_slice %161 {offsets = [0, 0], sizes = [8, 32], strides = [1, 1]} : vector<8x128xbf16> to vector<8x32xbf16>
    %cst_76 = arith.constant dense<0.000000e+00> : vector<8x8xf32>
    %165 = tpu.matmul %163, %164, %cst_76 {dimension_numbers = #tpu.dot_dimension_numbers<[1], [1], [0], [0], [0, 0, 1, 0], [], []>} : vector<8x32xbf16>, vector<8x32xbf16>, vector<8x8xf32> -> vector<8x8xf32>
    %166 = vector.broadcast %17 : vector<1x8xf32> to vector<8x8xf32>
    %167 = arith.addf %165, %166 : vector<8x8xf32>
    %cst_77 = arith.constant dense<0xFF800000> : vector<8xf32>
    %168 = vector.multi_reduction <maximumf>, %167, %cst_77 [1] : vector<8x8xf32> to vector<8xf32>
    %169 = vector.shape_cast %168 : vector<8xf32> to vector<8x1xf32>
    %170 = vector.broadcast %169 : vector<8x1xf32> to vector<8x8xf32>
    %171 = arith.subf %167, %170 : vector<8x8xf32>
    %172 = math.exp %171 : vector<8x8xf32>
    %cst_78 = arith.constant dense<0.000000e+00> : vector<8xf32>
    %173 = vector.multi_reduction <add>, %172, %cst_78 [1] : vector<8x8xf32> to vector<8xf32>
    %174 = vector.shape_cast %173 : vector<8xf32> to vector<8x1xf32>
    %175 = tpu.reciprocal %174 {approx = true} : vector<8x1xf32> -> vector<8x1xf32>
    %176 = vector.broadcast %175 : vector<8x1xf32> to vector<8x8xf32>
    %177 = arith.mulf %172, %176 : vector<8x8xf32>
    %178 = arith.truncf %177 : vector<8x8xf32> to vector<8x8xbf16>
    %179 = vector.extract_strided_slice %162 {offsets = [0, 0], sizes = [8, 32], strides = [1, 1]} : vector<8x128xbf16> to vector<8x32xbf16>
    %cst_79 = arith.constant dense<0.000000e+00> : vector<8x32xf32>
    %180 = tpu.matmul %178, %179, %cst_79 {dimension_numbers = #tpu.dot_dimension_numbers<[1], [0], [0], [1], [0, 0, 1, 1], [], []>} : vector<8x8xbf16>, vector<8x32xbf16>, vector<8x32xf32> -> vector<8x32xf32>
    %c0_80 = arith.constant 0 : index
    %c0_81 = arith.constant 0 : index
    %181 = vector.load %arg30[%c0_80, %c0_81] : memref<8x128xf32, #tpu.memory_space<vmem>>, vector<8x32xf32>
    tpu.vector_store %arg30[%c0_80, %c0_81], %180 {strides = array<i32>} : memref<8x128xf32, #tpu.memory_space<vmem>>, vector<8x32xf32>,
    %182 = vector.extract_strided_slice %160 {offsets = [0, 32], sizes = [8, 32], strides = [1, 1]} : vector<8x128xbf16> to vector<8x32xbf16>
    %183 = vector.extract_strided_slice %161 {offsets = [0, 32], sizes = [8, 32], strides = [1, 1]} : vector<8x128xbf16> to vector<8x32xbf16>
    %cst_82 = arith.constant dense<0.000000e+00> : vector<8x8xf32>
    %184 = tpu.matmul %182, %183, %cst_82 {dimension_numbers = #tpu.dot_dimension_numbers<[1], [1], [0], [0], [0, 0, 1, 0], [], []>} : vector<8x32xbf16>, vector<8x32xbf16>, vector<8x8xf32> -> vector<8x8xf32>
    %185 = vector.broadcast %17 : vector<1x8xf32> to vector<8x8xf32>
    %186 = arith.addf %184, %185 : vector<8x8xf32>
    %cst_83 = arith.constant dense<0xFF800000> : vector<8xf32>
    %187 = vector.multi_reduction <maximumf>, %186, %cst_83 [1] : vector<8x8xf32> to vector<8xf32>
    %188 = vector.shape_cast %187 : vector<8xf32> to vector<8x1xf32>
    %189 = vector.broadcast %188 : vector<8x1xf32> to vector<8x8xf32>
    %190 = arith.subf %186, %189 : vector<8x8xf32>
    %191 = math.exp %190 : vector<8x8xf32>
    %cst_84 = arith.constant dense<0.000000e+00> : vector<8xf32>
    %192 = vector.multi_reduction <add>, %191, %cst_84 [1] : vector<8x8xf32> to vector<8xf32>
    %193 = vector.shape_cast %192 : vector<8xf32> to vector<8x1xf32>
    %194 = tpu.reciprocal %193 {approx = true} : vector<8x1xf32> -> vector<8x1xf32>
    %195 = vector.broadcast %194 : vector<8x1xf32> to vector<8x8xf32>
    %196 = arith.mulf %191, %195 : vector<8x8xf32>
    %197 = arith.truncf %196 : vector<8x8xf32> to vector<8x8xbf16>
    %198 = vector.extract_strided_slice %162 {offsets = [0, 32], sizes = [8, 32], strides = [1, 1]} : vector<8x128xbf16> to vector<8x32xbf16>
    %cst_85 = arith.constant dense<0.000000e+00> : vector<8x32xf32>
    %199 = tpu.matmul %197, %198, %cst_85 {dimension_numbers = #tpu.dot_dimension_numbers<[1], [0], [0], [1], [0, 0, 1, 1], [], []>} : vector<8x8xbf16>, vector<8x32xbf16>, vector<8x32xf32> -> vector<8x32xf32>
    %c0_86 = arith.constant 0 : index
    %c32_87 = arith.constant 32 : index
    %200 = vector.load %arg30[%c0_86, %c32_87] : memref<8x128xf32, #tpu.memory_space<vmem>>, vector<8x32xf32>
    tpu.vector_store %arg30[%c0_86, %c32_87], %199 {strides = array<i32>} : memref<8x128xf32, #tpu.memory_space<vmem>>, vector<8x32xf32>,
    %201 = vector.extract_strided_slice %160 {offsets = [0, 64], sizes = [8, 32], strides = [1, 1]} : vector<8x128xbf16> to vector<8x32xbf16>
    %202 = vector.extract_strided_slice %161 {offsets = [0, 64], sizes = [8, 32], strides = [1, 1]} : vector<8x128xbf16> to vector<8x32xbf16>
    %cst_88 = arith.constant dense<0.000000e+00> : vector<8x8xf32>
    %203 = tpu.matmul %201, %202, %cst_88 {dimension_numbers = #tpu.dot_dimension_numbers<[1], [1], [0], [0], [0, 0, 1, 0], [], []>} : vector<8x32xbf16>, vector<8x32xbf16>, vector<8x8xf32> -> vector<8x8xf32>
    %204 = vector.broadcast %17 : vector<1x8xf32> to vector<8x8xf32>
    %205 = arith.addf %203, %204 : vector<8x8xf32>
    %cst_89 = arith.constant dense<0xFF800000> : vector<8xf32>
    %206 = vector.multi_reduction <maximumf>, %205, %cst_89 [1] : vector<8x8xf32> to vector<8xf32>
    %207 = vector.shape_cast %206 : vector<8xf32> to vector<8x1xf32>
    %208 = vector.broadcast %207 : vector<8x1xf32> to vector<8x8xf32>
    %209 = arith.subf %205, %208 : vector<8x8xf32>
    %210 = math.exp %209 : vector<8x8xf32>
    %cst_90 = arith.constant dense<0.000000e+00> : vector<8xf32>
    %211 = vector.multi_reduction <add>, %210, %cst_90 [1] : vector<8x8xf32> to vector<8xf32>
    %212 = vector.shape_cast %211 : vector<8xf32> to vector<8x1xf32>
    %213 = tpu.reciprocal %212 {approx = true} : vector<8x1xf32> -> vector<8x1xf32>
    %214 = vector.broadcast %213 : vector<8x1xf32> to vector<8x8xf32>
    %215 = arith.mulf %210, %214 : vector<8x8xf32>
    %216 = arith.truncf %215 : vector<8x8xf32> to vector<8x8xbf16>
    %217 = vector.extract_strided_slice %162 {offsets = [0, 64], sizes = [8, 32], strides = [1, 1]} : vector<8x128xbf16> to vector<8x32xbf16>
    %cst_91 = arith.constant dense<0.000000e+00> : vector<8x32xf32>
    %218 = tpu.matmul %216, %217, %cst_91 {dimension_numbers = #tpu.dot_dimension_numbers<[1], [0], [0], [1], [0, 0, 1, 1], [], []>} : vector<8x8xbf16>, vector<8x32xbf16>, vector<8x32xf32> -> vector<8x32xf32>
    %c0_92 = arith.constant 0 : index
    %c64_93 = arith.constant 64 : index
    %219 = vector.load %arg30[%c0_92, %c64_93] : memref<8x128xf32, #tpu.memory_space<vmem>>, vector<8x32xf32>
    tpu.vector_store %arg30[%c0_92, %c64_93], %218 {strides = array<i32>} : memref<8x128xf32, #tpu.memory_space<vmem>>, vector<8x32xf32>,
    %220 = vector.extract_strided_slice %160 {offsets = [0, 96], sizes = [8, 32], strides = [1, 1]} : vector<8x128xbf16> to vector<8x32xbf16>
    %221 = vector.extract_strided_slice %161 {offsets = [0, 96], sizes = [8, 32], strides = [1, 1]} : vector<8x128xbf16> to vector<8x32xbf16>
    %cst_94 = arith.constant dense<0.000000e+00> : vector<8x8xf32>
    %222 = tpu.matmul %220, %221, %cst_94 {dimension_numbers = #tpu.dot_dimension_numbers<[1], [1], [0], [0], [0, 0, 1, 0], [], []>} : vector<8x32xbf16>, vector<8x32xbf16>, vector<8x8xf32> -> vector<8x8xf32>
    %223 = vector.broadcast %17 : vector<1x8xf32> to vector<8x8xf32>
    %224 = arith.addf %222, %223 : vector<8x8xf32>
    %cst_95 = arith.constant dense<0xFF800000> : vector<8xf32>
    %225 = vector.multi_reduction <maximumf>, %224, %cst_95 [1] : vector<8x8xf32> to vector<8xf32>
    %226 = vector.shape_cast %225 : vector<8xf32> to vector<8x1xf32>
    %227 = vector.broadcast %226 : vector<8x1xf32> to vector<8x8xf32>
    %228 = arith.subf %224, %227 : vector<8x8xf32>
    %229 = math.exp %228 : vector<8x8xf32>
    %cst_96 = arith.constant dense<0.000000e+00> : vector<8xf32>
    %230 = vector.multi_reduction <add>, %229, %cst_96 [1] : vector<8x8xf32> to vector<8xf32>
    %231 = vector.shape_cast %230 : vector<8xf32> to vector<8x1xf32>
    %232 = tpu.reciprocal %231 {approx = true} : vector<8x1xf32> -> vector<8x1xf32>
    %233 = vector.broadcast %232 : vector<8x1xf32> to vector<8x8xf32>
    %234 = arith.mulf %229, %233 : vector<8x8xf32>
    %235 = arith.truncf %234 : vector<8x8xf32> to vector<8x8xbf16>
    %236 = vector.extract_strided_slice %162 {offsets = [0, 96], sizes = [8, 32], strides = [1, 1]} : vector<8x128xbf16> to vector<8x32xbf16>
    %cst_97 = arith.constant dense<0.000000e+00> : vector<8x32xf32>
    %237 = tpu.matmul %235, %236, %cst_97 {dimension_numbers = #tpu.dot_dimension_numbers<[1], [0], [0], [1], [0, 0, 1, 1], [], []>} : vector<8x8xbf16>, vector<8x32xbf16>, vector<8x32xf32> -> vector<8x32xf32>
    %c0_98 = arith.constant 0 : index
    %c96_99 = arith.constant 96 : index
    %238 = vector.load %arg30[%c0_98, %c96_99] : memref<8x128xf32, #tpu.memory_space<vmem>>, vector<8x32xf32>
    tpu.vector_store %arg30[%c0_98, %c96_99], %237 {strides = array<i32>} : memref<8x128xf32, #tpu.memory_space<vmem>>, vector<8x32xf32>,
    %c0_100 = arith.constant 0 : index
    %c0_101 = arith.constant 0 : index
    %239 = vector.load %arg30[%c0_100, %c0_101] : memref<8x128xf32, #tpu.memory_space<vmem>>, vector<8x128xf32>
    %240 = arith.truncf %239 : vector<8x128xf32> to vector<8x128xbf16>
    %c0_102 = arith.constant 0 : index
    %c0_103 = arith.constant 0 : index
    %c0_104 = arith.constant 0 : index
    %241 = vector.load %arg16[%c0_102, %c0_103, %c0_104] : memref<1x128x128xbf16, #tpu.memory_space<vmem>>, vector<1x128x128xbf16>
    %242 = vector.shape_cast %241 : vector<1x128x128xbf16> to vector<128x128xbf16>
    %cst_105 = arith.constant dense<0.000000e+00> : vector<8x128xf32>
    %243 = tpu.matmul %240, %242, %cst_105 {dimension_numbers = #tpu.dot_dimension_numbers<[1], [0], [0], [1], [0, 0, 1, 1], [], []>} : vector<8x128xbf16>, vector<128x128xbf16>, vector<8x128xf32> -> vector<8x128xf32>
    %c0_106 = arith.constant 0 : index
    %c0_107 = arith.constant 0 : index
    %c0_108 = arith.constant 0 : index
    %244 = vector.load %arg17[%c0_106, %c0_107, %c0_108] : memref<1x1x128xf32, #tpu.memory_space<vmem>>, vector<1x1x128xf32>
    %245 = vector.shape_cast %244 : vector<1x1x128xf32> to vector<1x128xf32>
    %246 = vector.broadcast %245 : vector<1x128xf32> to vector<8x128xf32>
    %247 = arith.addf %243, %246 : vector<8x128xf32>
    %248 = arith.addf %139, %247 : vector<8x128xf32>
    %c0_109 = arith.constant 0 : index
    %c0_110 = arith.constant 0 : index
    %c0_111 = arith.constant 0 : index
    %249 = vector.load %arg18[%c0_109, %c0_110, %c0_111] : memref<1x1x128xf32, #tpu.memory_space<vmem>>, vector<1x1x128xf32>
    %250 = vector.shape_cast %249 : vector<1x1x128xf32> to vector<1x128xf32>
    %c0_112 = arith.constant 0 : index
    %c0_113 = arith.constant 0 : index
    %c0_114 = arith.constant 0 : index
    %251 = vector.load %arg19[%c0_112, %c0_113, %c0_114] : memref<1x1x128xf32, #tpu.memory_space<vmem>>, vector<1x1x128xf32>
    %252 = vector.shape_cast %251 : vector<1x1x128xf32> to vector<1x128xf32>
    %cst_115 = arith.constant dense<0.000000e+00> : vector<8xf32>
    %253 = vector.multi_reduction <add>, %248, %cst_115 [1] : vector<8x128xf32> to vector<8xf32>
    %254 = vector.shape_cast %253 : vector<8xf32> to vector<8x1xf32>
    %cst_116 = arith.constant 1.280000e+02 : f32
    %255 = vector.broadcast %cst_116 : f32 to vector<8x1xf32>
    %256 = arith.divf %254, %255 : vector<8x1xf32>
    %257 = vector.broadcast %256 : vector<8x1xf32> to vector<8x128xf32>
    %258 = arith.subf %248, %257 : vector<8x128xf32>
    %259 = arith.mulf %258, %258 : vector<8x128xf32>
    %cst_117 = arith.constant dense<0.000000e+00> : vector<8xf32>
    %260 = vector.multi_reduction <add>, %259, %cst_117 [1] : vector<8x128xf32> to vector<8xf32>
    %261 = vector.shape_cast %260 : vector<8xf32> to vector<8x1xf32>
    %cst_118 = arith.constant 1.280000e+02 : f32
    %262 = vector.broadcast %cst_118 : f32 to vector<8x1xf32>
    %263 = arith.divf %261, %262 : vector<8x1xf32>
    %cst_119 = arith.constant 9.99999974E-6 : f32
    %264 = vector.broadcast %cst_119 : f32 to vector<8x1xf32>
    %265 = arith.addf %263, %264 : vector<8x1xf32>
    %266 = math.rsqrt %265 : vector<8x1xf32>
    %267 = vector.broadcast %266 : vector<8x1xf32> to vector<8x128xf32>
    %268 = arith.mulf %258, %267 : vector<8x128xf32>
    %269 = vector.broadcast %250 : vector<1x128xf32> to vector<8x128xf32>
    %270 = arith.mulf %268, %269 : vector<8x128xf32>
    %271 = vector.broadcast %252 : vector<1x128xf32> to vector<8x128xf32>
    %272 = arith.addf %270, %271 : vector<8x128xf32>
    %273 = arith.truncf %272 : vector<8x128xf32> to vector<8x128xbf16>
    %c0_120 = arith.constant 0 : index
    %c0_121 = arith.constant 0 : index
    %c0_122 = arith.constant 0 : index
    %274 = vector.load %arg20[%c0_120, %c0_121, %c0_122] : memref<1x128x256xbf16, #tpu.memory_space<vmem>>, vector<1x128x256xbf16>
    %275 = vector.shape_cast %274 : vector<1x128x256xbf16> to vector<128x256xbf16>
    %cst_123 = arith.constant dense<0.000000e+00> : vector<8x256xf32>
    %276 = tpu.matmul %273, %275, %cst_123 {dimension_numbers = #tpu.dot_dimension_numbers<[1], [0], [0], [1], [0, 0, 1, 1], [], []>} : vector<8x128xbf16>, vector<128x256xbf16>, vector<8x256xf32> -> vector<8x256xf32>
    %c0_124 = arith.constant 0 : index
    %c0_125 = arith.constant 0 : index
    %c0_126 = arith.constant 0 : index
    %277 = vector.load %arg21[%c0_124, %c0_125, %c0_126] : memref<1x1x256xf32, #tpu.memory_space<vmem>>, vector<1x1x256xf32>
    %278 = vector.shape_cast %277 : vector<1x1x256xf32> to vector<1x256xf32>
    %279 = vector.broadcast %278 : vector<1x256xf32> to vector<8x256xf32>
    %280 = arith.addf %276, %279 : vector<8x256xf32>
    %cst_127 = arith.constant 0.000000e+00 : f32
    %281 = vector.broadcast %cst_127 : f32 to vector<8x256xf32>
    %282 = arith.maximumf %280, %281 : vector<8x256xf32>
    %283 = arith.truncf %282 : vector<8x256xf32> to vector<8x256xbf16>
    %c0_128 = arith.constant 0 : index
    %c0_129 = arith.constant 0 : index
    %c0_130 = arith.constant 0 : index
    %284 = vector.load %arg22[%c0_128, %c0_129, %c0_130] : memref<1x256x128xbf16, #tpu.memory_space<vmem>>, vector<1x256x128xbf16>
    %285 = vector.shape_cast %284 : vector<1x256x128xbf16> to vector<256x128xbf16>
    %cst_131 = arith.constant dense<0.000000e+00> : vector<8x128xf32>
    %286 = tpu.matmul %283, %285, %cst_131 {dimension_numbers = #tpu.dot_dimension_numbers<[1], [0], [0], [1], [0, 0, 1, 1], [], []>} : vector<8x256xbf16>, vector<256x128xbf16>, vector<8x128xf32> -> vector<8x128xf32>
    %c0_132 = arith.constant 0 : index
    %c0_133 = arith.constant 0 : index
    %c0_134 = arith.constant 0 : index
    %287 = vector.load %arg23[%c0_132, %c0_133, %c0_134] : memref<1x1x128xf32, #tpu.memory_space<vmem>>, vector<1x1x128xf32>
    %288 = vector.shape_cast %287 : vector<1x1x128xf32> to vector<1x128xf32>
    %289 = vector.broadcast %288 : vector<1x128xf32> to vector<8x128xf32>
    %290 = arith.addf %286, %289 : vector<8x128xf32>
    %291 = arith.addf %272, %290 : vector<8x128xf32>
    %c0_135 = arith.constant 0 : index
    %c0_136 = arith.constant 0 : index
    %c0_137 = arith.constant 0 : index
    %292 = vector.load %arg24[%c0_135, %c0_136, %c0_137] : memref<1x1x128xf32, #tpu.memory_space<vmem>>, vector<1x1x128xf32>
    %293 = vector.shape_cast %292 : vector<1x1x128xf32> to vector<1x128xf32>
    %c0_138 = arith.constant 0 : index
    %c0_139 = arith.constant 0 : index
    %c0_140 = arith.constant 0 : index
    %294 = vector.load %arg25[%c0_138, %c0_139, %c0_140] : memref<1x1x128xf32, #tpu.memory_space<vmem>>, vector<1x1x128xf32>
    %295 = vector.shape_cast %294 : vector<1x1x128xf32> to vector<1x128xf32>
    %cst_141 = arith.constant dense<0.000000e+00> : vector<8xf32>
    %296 = vector.multi_reduction <add>, %291, %cst_141 [1] : vector<8x128xf32> to vector<8xf32>
    %297 = vector.shape_cast %296 : vector<8xf32> to vector<8x1xf32>
    %cst_142 = arith.constant 1.280000e+02 : f32
    %298 = vector.broadcast %cst_142 : f32 to vector<8x1xf32>
    %299 = arith.divf %297, %298 : vector<8x1xf32>
    %300 = vector.broadcast %299 : vector<8x1xf32> to vector<8x128xf32>
    %301 = arith.subf %291, %300 : vector<8x128xf32>
    %302 = arith.mulf %301, %301 : vector<8x128xf32>
    %cst_143 = arith.constant dense<0.000000e+00> : vector<8xf32>
    %303 = vector.multi_reduction <add>, %302, %cst_143 [1] : vector<8x128xf32> to vector<8xf32>
    %304 = vector.shape_cast %303 : vector<8xf32> to vector<8x1xf32>
    %cst_144 = arith.constant 1.280000e+02 : f32
    %305 = vector.broadcast %cst_144 : f32 to vector<8x1xf32>
    %306 = arith.divf %304, %305 : vector<8x1xf32>
    %cst_145 = arith.constant 9.99999974E-6 : f32
    %307 = vector.broadcast %cst_145 : f32 to vector<8x1xf32>
    %308 = arith.addf %306, %307 : vector<8x1xf32>
    %309 = math.rsqrt %308 : vector<8x1xf32>
    %310 = vector.broadcast %309 : vector<8x1xf32> to vector<8x128xf32>
    %311 = arith.mulf %301, %310 : vector<8x128xf32>
    %312 = vector.broadcast %293 : vector<1x128xf32> to vector<8x128xf32>
    %313 = arith.mulf %311, %312 : vector<8x128xf32>
    %314 = vector.broadcast %295 : vector<1x128xf32> to vector<8x128xf32>
    %315 = arith.addf %313, %314 : vector<8x128xf32>
    %c0_146 = arith.constant 0 : index
    %c0_147 = arith.constant 0 : index
    %316 = vector.load %arg29[%c0_146, %c0_147] : memref<8x128xf32, #tpu.memory_space<vmem>>, vector<8x128xf32>
    tpu.vector_store %arg29[%c0_146, %c0_147], %315 {strides = array<i32>} : memref<8x128xf32, #tpu.memory_space<vmem>>, vector<8x128xf32>,
    %c2_i32 = arith.constant 2 : i32
    %317 = arith.cmpi eq, %arg1, %c2_i32 : i32
    %318 = arith.extui %317 : i1 to i32
    %c0_i32_148 = arith.constant 0 : i32
    %319 = arith.cmpi ne, %318, %c0_i32_148 : i32
    scf.if %319 {
      %320 = arith.truncf %315 : vector<8x128xf32> to vector<8x128xbf16>
      %c0_149 = arith.constant 0 : index
      %c0_150 = arith.constant 0 : index
      %321 = vector.load %arg26[%c0_149, %c0_150] : memref<128x128xbf16, #tpu.memory_space<vmem>>, vector<128x128xbf16>
      %cst_151 = arith.constant dense<0.000000e+00> : vector<8x128xf32>
      %322 = tpu.matmul %320, %321, %cst_151 {dimension_numbers = #tpu.dot_dimension_numbers<[1], [0], [0], [1], [0, 0, 1, 1], [], []>} : vector<8x128xbf16>, vector<128x128xbf16>, vector<8x128xf32> -> vector<8x128xf32>
      %c0_152 = arith.constant 0 : index
      %c0_153 = arith.constant 0 : index
      %323 = vector.load %arg27[%c0_152, %c0_153] : memref<1x128xf32, #tpu.memory_space<vmem>>, vector<1x128xf32>
      %324 = vector.broadcast %323 : vector<1x128xf32> to vector<8x128xf32>
      %325 = arith.addf %322, %324 : vector<8x128xf32>
      %c0_154 = arith.constant 0 : index
      %c0_155 = arith.constant 0 : index
      %c0_156 = arith.constant 0 : index
      %326 = vector.load %arg28[%c0_154, %c0_155, %c0_156] : memref<1x8x128xf32, #tpu.memory_space<vmem>>, vector<1x8x128xf32>
      %327 = vector.shape_cast %326 : vector<1x8x128xf32> to vector<8x128xf32>
      %328 = vector.shape_cast %325 : vector<8x128xf32> to vector<1x8x128xf32>
      tpu.vector_store %arg28[%c0_154, %c0_155, %c0_156], %328 {strides = array<i32>} : memref<1x8x128xf32, #tpu.memory_space<vmem>>, vector<1x8x128xf32>,
    } else {
    }
    return
  }
  func.func @transform_0(%arg0: i32, %arg1: i32) -> (i32, i32, i32) {
    %c0_i32 = arith.constant 0 : i32
    %c0_i32_0 = arith.constant 0 : i32
    %c0_i32_1 = arith.constant 0 : i32
    return %arg0, %c0_i32, %c0_i32_0 : i32, i32, i32
  }
  func.func @transform_1(%arg0: i32, %arg1: i32) -> (i32, i32, i32) {
    %c0_i32 = arith.constant 0 : i32
    %c0_i32_0 = arith.constant 0 : i32
    %c0_i32_1 = arith.constant 0 : i32
    return %arg0, %c0_i32, %c0_i32_0 : i32, i32, i32
  }
  func.func @transform_2(%arg0: i32, %arg1: i32) -> (i32, i32, i32) {
    %c0_i32 = arith.constant 0 : i32
    %c0_i32_0 = arith.constant 0 : i32
    %c0_i32_1 = arith.constant 0 : i32
    return %arg0, %c0_i32, %c0_i32_0 : i32, i32, i32
  }
  func.func @transform_3(%arg0: i32, %arg1: i32) -> (i32, i32, i32) {
    %c0_i32 = arith.constant 0 : i32
    %c0_i32_0 = arith.constant 0 : i32
    %c0_i32_1 = arith.constant 0 : i32
    return %arg0, %c0_i32, %c0_i32_0 : i32, i32, i32
  }
  func.func @transform_4(%arg0: i32, %arg1: i32) -> (i32, i32, i32) {
    %c0_i32 = arith.constant 0 : i32
    %c0_i32_0 = arith.constant 0 : i32
    %c0_i32_1 = arith.constant 0 : i32
    return %arg1, %c0_i32, %c0_i32_0 : i32, i32, i32
  }
  func.func @transform_5(%arg0: i32, %arg1: i32) -> (i32, i32, i32) {
    %c0_i32 = arith.constant 0 : i32
    %c0_i32_0 = arith.constant 0 : i32
    %c0_i32_1 = arith.constant 0 : i32
    return %arg1, %c0_i32, %c0_i32_0 : i32, i32, i32
  }
  func.func @transform_6(%arg0: i32, %arg1: i32) -> (i32, i32, i32) {
    %c0_i32 = arith.constant 0 : i32
    %c0_i32_0 = arith.constant 0 : i32
    %c0_i32_1 = arith.constant 0 : i32
    return %arg1, %c0_i32, %c0_i32_0 : i32, i32, i32
  }
  func.func @transform_7(%arg0: i32, %arg1: i32) -> (i32, i32, i32) {
    %c0_i32 = arith.constant 0 : i32
    %c0_i32_0 = arith.constant 0 : i32
    %c0_i32_1 = arith.constant 0 : i32
    return %arg1, %c0_i32, %c0_i32_0 : i32, i32, i32
  }
  func.func @transform_8(%arg0: i32, %arg1: i32) -> (i32, i32, i32) {
    %c0_i32 = arith.constant 0 : i32
    %c0_i32_0 = arith.constant 0 : i32
    %c0_i32_1 = arith.constant 0 : i32
    return %arg1, %c0_i32, %c0_i32_0 : i32, i32, i32
  }
  func.func @transform_9(%arg0: i32, %arg1: i32) -> (i32, i32, i32) {
    %c0_i32 = arith.constant 0 : i32
    %c0_i32_0 = arith.constant 0 : i32
    %c0_i32_1 = arith.constant 0 : i32
    return %arg1, %c0_i32, %c0_i32_0 : i32, i32, i32
  }
  func.func @transform_10(%arg0: i32, %arg1: i32) -> (i32, i32, i32) {
    %c0_i32 = arith.constant 0 : i32
    %c0_i32_0 = arith.constant 0 : i32
    %c0_i32_1 = arith.constant 0 : i32
    return %arg1, %c0_i32, %c0_i32_0 : i32, i32, i32
  }
  func.func @transform_11(%arg0: i32, %arg1: i32) -> (i32, i32, i32) {
    %c0_i32 = arith.constant 0 : i32
    %c0_i32_0 = arith.constant 0 : i32
    %c0_i32_1 = arith.constant 0 : i32
    return %arg1, %c0_i32, %c0_i32_0 : i32, i32, i32
  }
  func.func @transform_12(%arg0: i32, %arg1: i32) -> (i32, i32, i32) {
    %c0_i32 = arith.constant 0 : i32
    %c0_i32_0 = arith.constant 0 : i32
    %c0_i32_1 = arith.constant 0 : i32
    return %arg1, %c0_i32, %c0_i32_0 : i32, i32, i32
  }
  func.func @transform_13(%arg0: i32, %arg1: i32) -> (i32, i32, i32) {
    %c0_i32 = arith.constant 0 : i32
    %c0_i32_0 = arith.constant 0 : i32
    %c0_i32_1 = arith.constant 0 : i32
    return %arg1, %c0_i32, %c0_i32_0 : i32, i32, i32
  }
  func.func @transform_14(%arg0: i32, %arg1: i32) -> (i32, i32, i32) {
    %c0_i32 = arith.constant 0 : i32
    %c0_i32_0 = arith.constant 0 : i32
    %c0_i32_1 = arith.constant 0 : i32
    return %arg1, %c0_i32, %c0_i32_0 : i32, i32, i32
  }
  func.func @transform_15(%arg0: i32, %arg1: i32) -> (i32, i32, i32) {
    %c0_i32 = arith.constant 0 : i32
    %c0_i32_0 = arith.constant 0 : i32
    %c0_i32_1 = arith.constant 0 : i32
    return %arg1, %c0_i32, %c0_i32_0 : i32, i32, i32
  }
  func.func @transform_16(%arg0: i32, %arg1: i32) -> (i32, i32, i32) {
    %c0_i32 = arith.constant 0 : i32
    %c0_i32_0 = arith.constant 0 : i32
    %c0_i32_1 = arith.constant 0 : i32
    return %arg1, %c0_i32, %c0_i32_0 : i32, i32, i32
  }
  func.func @transform_17(%arg0: i32, %arg1: i32) -> (i32, i32, i32) {
    %c0_i32 = arith.constant 0 : i32
    %c0_i32_0 = arith.constant 0 : i32
    %c0_i32_1 = arith.constant 0 : i32
    return %arg1, %c0_i32, %c0_i32_0 : i32, i32, i32
  }
  func.func @transform_18(%arg0: i32, %arg1: i32) -> (i32, i32, i32) {
    %c0_i32 = arith.constant 0 : i32
    %c0_i32_0 = arith.constant 0 : i32
    %c0_i32_1 = arith.constant 0 : i32
    return %arg1, %c0_i32, %c0_i32_0 : i32, i32, i32
  }
  func.func @transform_19(%arg0: i32, %arg1: i32) -> (i32, i32, i32) {
    %c0_i32 = arith.constant 0 : i32
    %c0_i32_0 = arith.constant 0 : i32
    %c0_i32_1 = arith.constant 0 : i32
    return %arg1, %c0_i32, %c0_i32_0 : i32, i32, i32
  }
  func.func @transform_20(%arg0: i32, %arg1: i32) -> (i32, i32, i32) {
    %c0_i32 = arith.constant 0 : i32
    %c0_i32_0 = arith.constant 0 : i32
    %c0_i32_1 = arith.constant 0 : i32
    return %arg1, %c0_i32, %c0_i32_0 : i32, i32, i32
  }
  func.func @transform_21(%arg0: i32, %arg1: i32) -> (i32, i32, i32) {
    %c0_i32 = arith.constant 0 : i32
    %c0_i32_0 = arith.constant 0 : i32
    %c0_i32_1 = arith.constant 0 : i32
    return %arg1, %c0_i32, %c0_i32_0 : i32, i32, i32
  }
  func.func @transform_22(%arg0: i32, %arg1: i32) -> (i32, i32, i32) {
    %c0_i32 = arith.constant 0 : i32
    %c0_i32_0 = arith.constant 0 : i32
    %c0_i32_1 = arith.constant 0 : i32
    return %arg1, %c0_i32, %c0_i32_0 : i32, i32, i32
  }
  func.func @transform_23(%arg0: i32, %arg1: i32) -> (i32, i32, i32) {
    %c0_i32 = arith.constant 0 : i32
    %c0_i32_0 = arith.constant 0 : i32
    %c0_i32_1 = arith.constant 0 : i32
    return %arg1, %c0_i32, %c0_i32_0 : i32, i32, i32
  }
  func.func @transform_24(%arg0: i32, %arg1: i32) -> (i32, i32) {
    %c0_i32 = arith.constant 0 : i32
    %c0_i32_0 = arith.constant 0 : i32
    %c0_i32_1 = arith.constant 0 : i32
    return %c0_i32, %c0_i32_0 : i32, i32
  }
  func.func @transform_25(%arg0: i32, %arg1: i32) -> (i32, i32) {
    %c0_i32 = arith.constant 0 : i32
    %c0_i32_0 = arith.constant 0 : i32
    %c0_i32_1 = arith.constant 0 : i32
    return %c0_i32, %c0_i32_0 : i32, i32
  }
  func.func @transform_26(%arg0: i32, %arg1: i32) -> (i32, i32, i32) {
    %c0_i32 = arith.constant 0 : i32
    %c0_i32_0 = arith.constant 0 : i32
    %c0_i32_1 = arith.constant 0 : i32
    return %arg0, %c0_i32, %c0_i32_0 : i32, i32, i32
  }
}

</mosaic_0001>

<llo_original>
// kernel: transformer_forward.2
$region0: #{transformer_forward.2}
  #allocation0 [shape = 'u32[]', space=smem, size = 0x4, offset = 0x4, fixed_abs, tag = 'smem constant byte address 0x4 - core index']
  #allocation1 [shape = 'u32[144,128]{1,0:T(1,128)}', space=vmem, size = 0x12000, scoped, tag = 'internal scratch']
  #allocation2 [shape = 'f32[8,128]{1,0:T(8,128)}', space=vmem, size = 0x1000, scoped, tag = 'scratch operand']
  #allocation3 [shape = 'f32[8,128]{1,0:T(8,128)}', space=vmem, size = 0x1000, scoped, tag = 'scratch operand']
  %s0 = inlined_call_operand.vmem [shape: f32[2,8,128], index: 0, kind: input, shape index: {}]
  %s1 = inlined_call_operand.vmem [shape: f32[2,1,8], index: 1, kind: input, shape index: {}]
  %s2 = inlined_call_operand.vmem [shape: bf16[3,128,384], index: 2, kind: input, shape index: {}]
  %s3 = inlined_call_operand.vmem [shape: f32[3,1,384], index: 3, kind: input, shape index: {}]
  %s4 = inlined_call_operand.vmem [shape: bf16[3,128,128], index: 4, kind: input, shape index: {}]
  %s5 = inlined_call_operand.vmem [shape: f32[3,1,128], index: 5, kind: input, shape index: {}]
  %s6 = inlined_call_operand.vmem [shape: f32[3,1,128], index: 6, kind: input, shape index: {}]
  %s7 = inlined_call_operand.vmem [shape: f32[3,1,128], index: 7, kind: input, shape index: {}]
  %s8 = inlined_call_operand.vmem [shape: bf16[3,128,256], index: 8, kind: input, shape index: {}]
  %s9 = inlined_call_operand.vmem [shape: f32[3,1,256], index: 9, kind: input, shape index: {}]
  %s10 = inlined_call_operand.vmem [shape: bf16[3,256,128], index: 10, kind: input, shape index: {}]
  %s11 = inlined_call_operand.vmem [shape: f32[3,1,128], index: 11, kind: input, shape index: {}]
  %s12 = inlined_call_operand.vmem [shape: f32[3,1,128], index: 12, kind: input, shape index: {}]
  %s13 = inlined_call_operand.vmem [shape: f32[3,1,128], index: 13, kind: input, shape index: {}]
  %s14 = inlined_call_operand.vmem [shape: f32[2,8,128], index: 14, kind: output, shape index: {}]
  %s15 = sld [smem:[#allocation0]]
  $region97: #{transformer_forward.2} parent=0
    _
  %s17 = ssub.s32 1, %s15
  %s18 = scalar_select 0, %s17, %s15
  loop: start=0, step=1, limit=8
  $region2: #{transformer_forward.2} parent=0 // loop_pre_header
    _
  $region3: #{transformer_forward.2} parent=0 // loop_header
    %s20 = sphi 0, %s24
    %p21 = scmp.ge.s32.totalorder %s20, 8
    %s27 = sphi 0, %s39
    %s28 = sphi 0, %s35
    %s29 = sphi 0, %s27
    %s30 = sphi 0, %s28
    %s31 = sphi 0, %s29
    %s32 = sphi 0, %s30
    %s42 = sphi 0, %s44
    %s45 = sphi 0, %s42
    %s46 = sphi 0, %s45
    %s62 = sphi 0, %s46
    %s68 = sphi 0, %s70
    %s71 = sphi 0, %s68
    %s72 = sphi 0, %s71
    %s88 = sphi 0, %s72
    %s94 = sphi 0, %s96
    %s97 = sphi 0, %s94
    %s98 = sphi 0, %s97
    %s114 = sphi 0, %s98
    %s120 = sphi 0, %s122
    %s123 = sphi 0, %s120
    %s124 = sphi 0, %s123
    %s140 = sphi 0, %s124
    %s146 = sphi 0, %s148
    %s149 = sphi 0, %s146
    %s150 = sphi 0, %s149
    %s166 = sphi 0, %s150
    %s172 = sphi 0, %s174
    %s175 = sphi 0, %s172
    %s176 = sphi 0, %s175
    %s192 = sphi 0, %s176
    %s198 = sphi 0, %s200
    %s201 = sphi 0, %s198
    %s202 = sphi 0, %s201
    %s218 = sphi 0, %s202
    %s224 = sphi 0, %s226
    %s227 = sphi 0, %s224
    %s228 = sphi 0, %s227
    %s244 = sphi 0, %s228
    %s250 = sphi 0, %s252
    %s253 = sphi 0, %s250
    %s254 = sphi 0, %s253
    %s270 = sphi 0, %s254
    %s276 = sphi 0, %s278
    %s279 = sphi 0, %s276
    %s280 = sphi 0, %s279
    %s296 = sphi 0, %s280
    %s302 = sphi 0, %s304
    %s305 = sphi 0, %s302
    %s306 = sphi 0, %s305
    %s322 = sphi 0, %s306
    %s328 = sphi 0, %s330
    %s331 = sphi 0, %s328
    %s332 = sphi 0, %s331
    %s348 = sphi 0, %s332
    %s354 = sphi 0, %s356
    %s357 = sphi 0, %s354
    %s358 = sphi 0, %s357
    %s374 = sphi 0, %s358
    %s380 = sphi 0, %s382
    %s383 = sphi 0, %s380
    %s384 = sphi 0, %s383
    %s400 = sphi 0, %s384
    %s406 = sphi 0, %s408
    %s409 = sphi 0, %s406
    %s410 = sphi 0, %s409
    %s426 = sphi 0, %s410
  $region4: #{transformer_forward.2} parent=0 // loop_header_branch
    %23 = sbr.rel (%p21) target = $region8
  $region5: #{transformer_forward.2} parent=0 // loop_body
    %s25 = ssub.s32 %s20, 1
    %s26 = ssub.s32 %s20, 2
    %s33 = sadd.s32 1, %s28
    %p34 = scmp.ge.s32.totalorder %s33, 3
    %s35 = scalar_select %p34, 0, %s33
    %s36 = sadd.s32 1, %s27
    %s37 = scalar_select %p34, %s36, %s27
    %p38 = scmp.ge.s32.totalorder %s37, 2
    %s39 = scalar_select %p38, 0, %s37
    %s40 = ssub.s32 %s27, %s39
    %p41 = scmp.eq.s32.totalorder %s40, 0
    %s43 = sadd.s32 %s42, 1
    %s44 = scalar_select %p41, %s42, %s43
    %p47 = pneg %p41
    %p48 = scmp.eq.s32.totalorder %s20, 5
    %p49 = por %p47, %p48
    %p50 = scmp.ne.s32.totalorder %s42, %s45
    %p51 = scmp.eq.s32.totalorder %s20, 0
    %p52 = por %p50, %p51
    %p53 = scmp.ne.s32.totalorder %s42, %s45
    %p54 = scmp.eq.s32.totalorder %s25, 5
    %p55 = por %p53, %p54
    %p56 = scmp.ne.s32.totalorder %s45, %s46
    %p57 = scmp.eq.s32.totalorder %s25, 0
    %p58 = por %p56, %p57
    %p59 = scmp.ne.s32.totalorder %s45, %s46
    %p60 = scmp.eq.s32.totalorder %s26, 5
    %p61 = por %p59, %p60
    %p63 = scmp.ne.s32.totalorder %s46, %s62
    %p64 = scmp.eq.s32.totalorder %s26, 0
    %p65 = por %p63, %p64
    %s66 = ssub.s32 %s27, %s39
    %p67 = scmp.eq.s32.totalorder %s66, 0
    %s69 = sadd.s32 %s68, 1
    %s70 = scalar_select %p67, %s68, %s69
    %p73 = pneg %p67
    %p74 = scmp.eq.s32.totalorder %s20, 5
    %p75 = por %p73, %p74
    %p76 = scmp.ne.s32.totalorder %s68, %s71
    %p77 = scmp.eq.s32.totalorder %s20, 0
    %p78 = por %p76, %p77
    %p79 = scmp.ne.s32.totalorder %s68, %s71
    %p80 = scmp.eq.s32.totalorder %s25, 5
    %p81 = por %p79, %p80
    %p82 = scmp.ne.s32.totalorder %s71, %s72
    %p83 = scmp.eq.s32.totalorder %s25, 0
    %p84 = por %p82, %p83
    %p85 = scmp.ne.s32.totalorder %s71, %s72
    %p86 = scmp.eq.s32.totalorder %s26, 5
    %p87 = por %p85, %p86
    %p89 = scmp.ne.s32.totalorder %s72, %s88
    %p90 = scmp.eq.s32.totalorder %s26, 0
    %p91 = por %p89, %p90
    %s92 = ssub.s32 %s28, %s35
    %p93 = scmp.eq.s32.totalorder %s92, 0
    %s95 = sadd.s32 %s94, 1
    %s96 = scalar_select %p93, %s94, %s95
    %p99 = pneg %p93
    %p100 = scmp.eq.s32.totalorder %s20, 5
    %p101 = por %p99, %p100
    %p102 = scmp.ne.s32.totalorder %s94, %s97
    %p103 = scmp.eq.s32.totalorder %s20, 0
    %p104 = por %p102, %p103
    %p105 = scmp.ne.s32.totalorder %s94, %s97
    %p106 = scmp.eq.s32.totalorder %s25, 5
    %p107 = por %p105, %p106
    %p108 = scmp.ne.s32.totalorder %s97, %s98
    %p109 = scmp.eq.s32.totalorder %s25, 0
    %p110 = por %p108, %p109
    %p111 = scmp.ne.s32.totalorder %s97, %s98
    %p112 = scmp.eq.s32.totalorder %s26, 5
    %p113 = por %p111, %p112
    %p115 = scmp.ne.s32.totalorder %s98, %s114
    %p116 = scmp.eq.s32.totalorder %s26, 0
    %p117 = por %p115, %p116
    %s118 = ssub.s32 %s28, %s35
    %p119 = scmp.eq.s32.totalorder %s118, 0
    %s121 = sadd.s32 %s120, 1
    %s122 = scalar_select %p119, %s120, %s121
    %p125 = pneg %p119
    %p126 = scmp.eq.s32.totalorder %s20, 5
    %p127 = por %p125, %p126
    %p128 = scmp.ne.s32.totalorder %s120, %s123
    %p129 = scmp.eq.s32.totalorder %s20, 0
    %p130 = por %p128, %p129
    %p131 = scmp.ne.s32.totalorder %s120, %s123
    %p132 = scmp.eq.s32.totalorder %s25, 5
    %p133 = por %p131, %p132
    %p134 = scmp.ne.s32.totalorder %s123, %s124
    %p135 = scmp.eq.s32.totalorder %s25, 0
    %p136 = por %p134, %p135
    %p137 = scmp.ne.s32.totalorder %s123, %s124
    %p138 = scmp.eq.s32.totalorder %s26, 5
    %p139 = por %p137, %p138
    %p141 = scmp.ne.s32.totalorder %s124, %s140
    %p142 = scmp.eq.s32.totalorder %s26, 0
    %p143 = por %p141, %p142
    %s144 = ssub.s32 %s28, %s35
    %p145 = scmp.eq.s32.totalorder %s144, 0
    %s147 = sadd.s32 %s146, 1
    %s148 = scalar_select %p145, %s146, %s147
    %p151 = pneg %p145
    %p152 = scmp.eq.s32.totalorder %s20, 5
    %p153 = por %p151, %p152
    %p154 = scmp.ne.s32.totalorder %s146, %s149
    %p155 = scmp.eq.s32.totalorder %s20, 0
    %p156 = por %p154, %p155
    %p157 = scmp.ne.s32.totalorder %s146, %s149
    %p158 = scmp.eq.s32.totalorder %s25, 5
    %p159 = por %p157, %p158
    %p160 = scmp.ne.s32.totalorder %s149, %s150
    %p161 = scmp.eq.s32.totalorder %s25, 0
    %p162 = por %p160, %p161
    %p163 = scmp.ne.s32.totalorder %s149, %s150
    %p164 = scmp.eq.s32.totalorder %s26, 5
    %p165 = por %p163, %p164
    %p167 = scmp.ne.s32.totalorder %s150, %s166
    %p168 = scmp.eq.s32.totalorder %s26, 0
    %p169 = por %p167, %p168
    %s170 = ssub.s32 %s28, %s35
    %p171 = scmp.eq.s32.totalorder %s170, 0
    %s173 = sadd.s32 %s172, 1
    %s174 = scalar_select %p171, %s172, %s173
    %p177 = pneg %p171
    %p178 = scmp.eq.s32.totalorder %s20, 5
    %p179 = por %p177, %p178
    %p180 = scmp.ne.s32.totalorder %s172, %s175
    %p181 = scmp.eq.s32.totalorder %s20, 0
    %p182 = por %p180, %p181
    %p183 = scmp.ne.s32.totalorder %s172, %s175
    %p184 = scmp.eq.s32.totalorder %s25, 5
    %p185 = por %p183, %p184
    %p186 = scmp.ne.s32.totalorder %s175, %s176
    %p187 = scmp.eq.s32.totalorder %s25, 0
    %p188 = por %p186, %p187
    %p189 = scmp.ne.s32.totalorder %s175, %s176
    %p190 = scmp.eq.s32.totalorder %s26, 5
    %p191 = por %p189, %p190
    %p193 = scmp.ne.s32.totalorder %s176, %s192
    %p194 = scmp.eq.s32.totalorder %s26, 0
    %p195 = por %p193, %p194
    %s196 = ssub.s32 %s28, %s35
    %p197 = scmp.eq.s32.totalorder %s196, 0
    %s199 = sadd.s32 %s198, 1
    %s200 = scalar_select %p197, %s198, %s199
    %p203 = pneg %p197
    %p204 = scmp.eq.s32.totalorder %s20, 5
    %p205 = por %p203, %p204
    %p206 = scmp.ne.s32.totalorder %s198, %s201
    %p207 = scmp.eq.s32.totalorder %s20, 0
    %p208 = por %p206, %p207
    %p209 = scmp.ne.s32.totalorder %s198, %s201
    %p210 = scmp.eq.s32.totalorder %s25, 5
    %p211 = por %p209, %p210
    %p212 = scmp.ne.s32.totalorder %s201, %s202
    %p213 = scmp.eq.s32.totalorder %s25, 0
    %p214 = por %p212, %p213
    %p215 = scmp.ne.s32.totalorder %s201, %s202
    %p216 = scmp.eq.s32.totalorder %s26, 5
    %p217 = por %p215, %p216
    %p219 = scmp.ne.s32.totalorder %s202, %s218
    %p220 = scmp.eq.s32.totalorder %s26, 0
    %p221 = por %p219, %p220
    %s222 = ssub.s32 %s28, %s35
    %p223 = scmp.eq.s32.totalorder %s222, 0
    %s225 = sadd.s32 %s224, 1
    %s226 = scalar_select %p223, %s224, %s225
    %p229 = pneg %p223
    %p230 = scmp.eq.s32.totalorder %s20, 5
    %p231 = por %p229, %p230
    %p232 = scmp.ne.s32.totalorder %s224, %s227
    %p233 = scmp.eq.s32.totalorder %s20, 0
    %p234 = por %p232, %p233
    %p235 = scmp.ne.s32.totalorder %s224, %s227
    %p236 = scmp.eq.s32.totalorder %s25, 5
    %p237 = por %p235, %p236
    %p238 = scmp.ne.s32.totalorder %s227, %s228
    %p239 = scmp.eq.s32.totalorder %s25, 0
    %p240 = por %p238, %p239
    %p241 = scmp.ne.s32.totalorder %s227, %s228
    %p242 = scmp.eq.s32.totalorder %s26, 5
    %p243 = por %p241, %p242
    %p245 = scmp.ne.s32.totalorder %s228, %s244
    %p246 = scmp.eq.s32.totalorder %s26, 0
    %p247 = por %p245, %p246
    %s248 = ssub.s32 %s28, %s35
    %p249 = scmp.eq.s32.totalorder %s248, 0
    %s251 = sadd.s32 %s250, 1
    %s252 = scalar_select %p249, %s250, %s251
    %p255 = pneg %p249
    %p256 = scmp.eq.s32.totalorder %s20, 5
    %p257 = por %p255, %p256
    %p258 = scmp.ne.s32.totalorder %s250, %s253
    %p259 = scmp.eq.s32.totalorder %s20, 0
    %p260 = por %p258, %p259
    %p261 = scmp.ne.s32.totalorder %s250, %s253
    %p262 = scmp.eq.s32.totalorder %s25, 5
    %p263 = por %p261, %p262
    %p264 = scmp.ne.s32.totalorder %s253, %s254
    %p265 = scmp.eq.s32.totalorder %s25, 0
    %p266 = por %p264, %p265
    %p267 = scmp.ne.s32.totalorder %s253, %s254
    %p268 = scmp.eq.s32.totalorder %s26, 5
    %p269 = por %p267, %p268
    %p271 = scmp.ne.s32.totalorder %s254, %s270
    %p272 = scmp.eq.s32.totalorder %s26, 0
    %p273 = por %p271, %p272
    %s274 = ssub.s32 %s28, %s35
    %p275 = scmp.eq.s32.totalorder %s274, 0
    %s277 = sadd.s32 %s276, 1
    %s278 = scalar_select %p275, %s276, %s277
    %p281 = pneg %p275
    %p282 = scmp.eq.s32.totalorder %s20, 5
    %p283 = por %p281, %p282
    %p284 = scmp.ne.s32.totalorder %s276, %s279
    %p285 = scmp.eq.s32.totalorder %s20, 0
    %p286 = por %p284, %p285
    %p287 = scmp.ne.s32.totalorder %s276, %s279
    %p288 = scmp.eq.s32.totalorder %s25, 5
    %p289 = por %p287, %p288
    %p290 = scmp.ne.s32.totalorder %s279, %s280
    %p291 = scmp.eq.s32.totalorder %s25, 0
    %p292 = por %p290, %p291
    %p293 = scmp.ne.s32.totalorder %s279, %s280
    %p294 = scmp.eq.s32.totalorder %s26, 5
    %p295 = por %p293, %p294
    %p297 = scmp.ne.s32.totalorder %s280, %s296
    %p298 = scmp.eq.s32.totalorder %s26, 0
    %p299 = por %p297, %p298
    %s300 = ssub.s32 %s28, %s35
    %p301 = scmp.eq.s32.totalorder %s300, 0
    %s303 = sadd.s32 %s302, 1
    %s304 = scalar_select %p301, %s302, %s303
    %p307 = pneg %p301
    %p308 = scmp.eq.s32.totalorder %s20, 5
    %p309 = por %p307, %p308
    %p310 = scmp.ne.s32.totalorder %s302, %s305
    %p311 = scmp.eq.s32.totalorder %s20, 0
    %p312 = por %p310, %p311
    %p313 = scmp.ne.s32.totalorder %s302, %s305
    %p314 = scmp.eq.s32.totalorder %s25, 5
    %p315 = por %p313, %p314
    %p316 = scmp.ne.s32.totalorder %s305, %s306
    %p317 = scmp.eq.s32.totalorder %s25, 0
    %p318 = por %p316, %p317
    %p319 = scmp.ne.s32.totalorder %s305, %s306
    %p320 = scmp.eq.s32.totalorder %s26, 5
    %p321 = por %p319, %p320
    %p323 = scmp.ne.s32.totalorder %s306, %s322
    %p324 = scmp.eq.s32.totalorder %s26, 0
    %p325 = por %p323, %p324
    %s326 = ssub.s32 %s28, %s35
    %p327 = scmp.eq.s32.totalorder %s326, 0
    %s329 = sadd.s32 %s328, 1
    %s330 = scalar_select %p327, %s328, %s329
    %p333 = pneg %p327
    %p334 = scmp.eq.s32.totalorder %s20, 5
    %p335 = por %p333, %p334
    %p336 = scmp.ne.s32.totalorder %s328, %s331
    %p337 = scmp.eq.s32.totalorder %s20, 0
    %p338 = por %p336, %p337
    %p339 = scmp.ne.s32.totalorder %s328, %s331
    %p340 = scmp.eq.s32.totalorder %s25, 5
    %p341 = por %p339, %p340
    %p342 = scmp.ne.s32.totalorder %s331, %s332
    %p343 = scmp.eq.s32.totalorder %s25, 0
    %p344 = por %p342, %p343
    %p345 = scmp.ne.s32.totalorder %s331, %s332
    %p346 = scmp.eq.s32.totalorder %s26, 5
    %p347 = por %p345, %p346
    %p349 = scmp.ne.s32.totalorder %s332, %s348
    %p350 = scmp.eq.s32.totalorder %s26, 0
    %p351 = por %p349, %p350
    %s352 = ssub.s32 %s28, %s35
    %p353 = scmp.eq.s32.totalorder %s352, 0
    %s355 = sadd.s32 %s354, 1
    %s356 = scalar_select %p353, %s354, %s355
    %p359 = pneg %p353
    %p360 = scmp.eq.s32.totalorder %s20, 5
    %p361 = por %p359, %p360
    %p362 = scmp.ne.s32.totalorder %s354, %s357
    %p363 = scmp.eq.s32.totalorder %s20, 0
    %p364 = por %p362, %p363
    %p365 = scmp.ne.s32.totalorder %s354, %s357
    %p366 = scmp.eq.s32.totalorder %s25, 5
    %p367 = por %p365, %p366
    %p368 = scmp.ne.s32.totalorder %s357, %s358
    %p369 = scmp.eq.s32.totalorder %s25, 0
    %p370 = por %p368, %p369
    %p371 = scmp.ne.s32.totalorder %s357, %s358
    %p372 = scmp.eq.s32.totalorder %s26, 5
    %p373 = por %p371, %p372
    %p375 = scmp.ne.s32.totalorder %s358, %s374
    %p376 = scmp.eq.s32.totalorder %s26, 0
    %p377 = por %p375, %p376
    %s378 = ssub.s32 %s28, %s35
    %p379 = scmp.eq.s32.totalorder %s378, 0
    %s381 = sadd.s32 %s380, 1
    %s382 = scalar_select %p379, %s380, %s381
    %p385 = pneg %p379
    %p386 = scmp.eq.s32.totalorder %s20, 5
    %p387 = por %p385, %p386
    %p388 = scmp.ne.s32.totalorder %s380, %s383
    %p389 = scmp.eq.s32.totalorder %s20, 0
    %p390 = por %p388, %p389
    %p391 = scmp.ne.s32.totalorder %s380, %s383
    %p392 = scmp.eq.s32.totalorder %s25, 5
    %p393 = por %p391, %p392
    %p394 = scmp.ne.s32.totalorder %s383, %s384
    %p395 = scmp.eq.s32.totalorder %s25, 0
    %p396 = por %p394, %p395
    %p397 = scmp.ne.s32.totalorder %s383, %s384
    %p398 = scmp.eq.s32.totalorder %s26, 5
    %p399 = por %p397, %p398
    %p401 = scmp.ne.s32.totalorder %s384, %s400
    %p402 = scmp.eq.s32.totalorder %s26, 0
    %p403 = por %p401, %p402
    %s404 = ssub.s32 %s27, %s39
    %p405 = scmp.eq.s32.totalorder %s404, 0
    %s407 = sadd.s32 %s406, 1
    %s408 = scalar_select %p405, %s406, %s407
    %p411 = pneg %p405
    %p412 = scmp.eq.s32.totalorder %s20, 5
    %p413 = por %p411, %p412
    %p414 = scmp.ne.s32.totalorder %s406, %s409
    %p415 = scmp.eq.s32.totalorder %s20, 0
    %p416 = por %p414, %p415
    %p417 = scmp.ne.s32.totalorder %s406, %s409
    %p418 = scmp.eq.s32.totalorder %s25, 5
    %p419 = por %p417, %p418
    %p420 = scmp.ne.s32.totalorder %s409, %s410
    %p421 = scmp.eq.s32.totalorder %s25, 0
    %p422 = por %p420, %p421
    %p423 = scmp.ne.s32.totalorder %s409, %s410
    %p424 = scmp.eq.s32.totalorder %s26, 5
    %p425 = por %p423, %p424
    %p427 = scmp.ne.s32.totalorder %s410, %s426
    %p428 = scmp.eq.s32.totalorder %s26, 0
    %p429 = por %p427, %p428
    %p430 = scmp.le.s32.totalorder 1, %s20
    %p431 = scmp.lt.s32.totalorder %s20, 7
    %p432 = pnand %p430, %p431
    %p433 = pneg %p432
    // Predicated region
    $region9: #{transformer_forward.2} parent=5 // pred_check
      _
    $region10: #{transformer_forward.2} parent=5 // pred_check_branch
      %435 = sbr.rel (%p432) target = $region12
    $region11: #{transformer_forward.2} parent=5 // pred_region
      %s436 = ssub.s32 %s20, 1
    $region12: #{transformer_forward.2} parent=5 // pred_fallthru
      _
    %p437 = scmp.lt.s32.totalorder %s20, 6
    // Predicated region
    $region13: #{transformer_forward.2} parent=5 // pred_check
      %p438 = pneg %p437
    $region14: #{transformer_forward.2} parent=5 // pred_check_branch
      %440 = sbr.rel (%p438) target = $region16
    $region15: #{transformer_forward.2} parent=5 // pred_region
      // Predicated region
      $region17: #{transformer_forward.2} parent=15 // pred_check
        %p441 = pneg %p52
      $region18: #{transformer_forward.2} parent=15 // pred_check_branch
        %443 = sbr.rel (%p441) target = $region20
      $region19: #{transformer_forward.2} parent=15 // pred_region
        %p444 = scmp.lt.s32.totalorder %s27, 1
        %s445 = scalar_select %p444, %s27, 1
        %s446 = smul.addr %s445, 8
        %s447 = scalar_lea.vmem %s0, %s446
      $region20: #{transformer_forward.2} parent=15 // pred_fallthru
        _
      // Predicated region
      $region21: #{transformer_forward.2} parent=15 // pred_check
        %p448 = pneg %p78
      $region22: #{transformer_forward.2} parent=15 // pred_check_branch
        %450 = sbr.rel (%p448) target = $region24
      $region23: #{transformer_forward.2} parent=15 // pred_region
        %p451 = scmp.lt.s32.totalorder %s27, 1
        %s452 = scalar_select %p451, %s27, 1
        %s453 = scalar_lea.vmem %s1, %s452
      $region24: #{transformer_forward.2} parent=15 // pred_fallthru
        _
      // Predicated region
      $region25: #{transformer_forward.2} parent=15 // pred_check
        %p454 = pneg %p104
      $region26: #{transformer_forward.2} parent=15 // pred_check_branch
        %456 = sbr.rel (%p454) target = $region28
      $region27: #{transformer_forward.2} parent=15 // pred_region
        %p457 = scmp.lt.s32.totalorder %s28, 2
        %s458 = scalar_select %p457, %s28, 2
        %s459 = smul.addr %s458, 48
        %s460 = smul.addr %s459, 4
        %s461 = scalar_lea.vmem %s2, %s460
      $region28: #{transformer_forward.2} parent=15 // pred_fallthru
        _
      // Predicated region
      $region29: #{transformer_forward.2} parent=15 // pred_check
        %p462 = pneg %p130
      $region30: #{transformer_forward.2} parent=15 // pred_check_branch
        %464 = sbr.rel (%p462) target = $region32
      $region31: #{transformer_forward.2} parent=15 // pred_region
        %p465 = scmp.lt.s32.totalorder %s28, 2
        %s466 = scalar_select %p465, %s28, 2
        %s467 = smul.addr %s466, 3
        %s468 = scalar_lea.vmem %s3, %s467
      $region32: #{transformer_forward.2} parent=15 // pred_fallthru
        _
      // Predicated region
      $region33: #{transformer_forward.2} parent=15 // pred_check
        %p469 = pneg %p156
      $region34: #{transformer_forward.2} parent=15 // pred_check_branch
        %471 = sbr.rel (%p469) target = $region36
      $region35: #{transformer_forward.2} parent=15 // pred_region
        %p472 = scmp.lt.s32.totalorder %s28, 2
        %s473 = scalar_select %p472, %s28, 2
        %s474 = smul.addr %s473, 16
        %s475 = smul.addr %s474, 4
        %s476 = scalar_lea.vmem %s4, %s475
      $region36: #{transformer_forward.2} parent=15 // pred_fallthru
        _
      // Predicated region
      $region37: #{transformer_forward.2} parent=15 // pred_check
        %p477 = pneg %p182
      $region38: #{transformer_forward.2} parent=15 // pred_check_branch
        %479 = sbr.rel (%p477) target = $region40
      $region39: #{transformer_forward.2} parent=15 // pred_region
        %p480 = scmp.lt.s32.totalorder %s28, 2
        %s481 = scalar_select %p480, %s28, 2
        %s482 = scalar_lea.vmem %s5, %s481
      $region40: #{transformer_forward.2} parent=15 // pred_fallthru
        _
      // Predicated region
      $region41: #{transformer_forward.2} parent=15 // pred_check
        %p483 = pneg %p208
      $region42: #{transformer_forward.2} parent=15 // pred_check_branch
        %485 = sbr.rel (%p483) target = $region44
      $region43: #{transformer_forward.2} parent=15 // pred_region
        %p486 = scmp.lt.s32.totalorder %s28, 2
        %s487 = scalar_select %p486, %s28, 2
        %s488 = scalar_lea.vmem %s6, %s487
      $region44: #{transformer_forward.2} parent=15 // pred_fallthru
        _
      // Predicated region
      $region45: #{transformer_forward.2} parent=15 // pred_check
        %p489 = pneg %p234
      $region46: #{transformer_forward.2} parent=15 // pred_check_branch
        %491 = sbr.rel (%p489) target = $region48
      $region47: #{transformer_forward.2} parent=15 // pred_region
        %p492 = scmp.lt.s32.totalorder %s28, 2
        %s493 = scalar_select %p492, %s28, 2
        %s494 = scalar_lea.vmem %s7, %s493
      $region48: #{transformer_forward.2} parent=15 // pred_fallthru
        _
      // Predicated region
      $region49: #{transformer_forward.2} parent=15 // pred_check
        %p495 = pneg %p260
      $region50: #{transformer_forward.2} parent=15 // pred_check_branch
        %497 = sbr.rel (%p495) target = $region52
      $region51: #{transformer_forward.2} parent=15 // pred_region
        %p498 = scmp.lt.s32.totalorder %s28, 2
        %s499 = scalar_select %p498, %s28, 2
        %s500 = smul.addr %s499, 32
        %s501 = smul.addr %s500, 4
        %s502 = scalar_lea.vmem %s8, %s501
      $region52: #{transformer_forward.2} parent=15 // pred_fallthru
        _
      // Predicated region
      $region53: #{transformer_forward.2} parent=15 // pred_check
        %p503 = pneg %p286
      $region54: #{transformer_forward.2} parent=15 // pred_check_branch
        %505 = sbr.rel (%p503) target = $region56
      $region55: #{transformer_forward.2} parent=15 // pred_region
        %p506 = scmp.lt.s32.totalorder %s28, 2
        %s507 = scalar_select %p506, %s28, 2
        %s508 = smul.addr %s507, 2
        %s509 = scalar_lea.vmem %s9, %s508
      $region56: #{transformer_forward.2} parent=15 // pred_fallthru
        _
      // Predicated region
      $region57: #{transformer_forward.2} parent=15 // pred_check
        %p510 = pneg %p312
      $region58: #{transformer_forward.2} parent=15 // pred_check_branch
        %512 = sbr.rel (%p510) target = $region60
      $region59: #{transformer_forward.2} parent=15 // pred_region
        %p513 = scmp.lt.s32.totalorder %s28, 2
        %s514 = scalar_select %p513, %s28, 2
        %s515 = smul.addr %s514, 32
        %s516 = smul.addr %s515, 4
        %s517 = scalar_lea.vmem %s10, %s516
      $region60: #{transformer_forward.2} parent=15 // pred_fallthru
        _
      // Predicated region
      $region61: #{transformer_forward.2} parent=15 // pred_check
        %p518 = pneg %p338
      $region62: #{transformer_forward.2} parent=15 // pred_check_branch
        %520 = sbr.rel (%p518) target = $region64
      $region63: #{transformer_forward.2} parent=15 // pred_region
        %p521 = scmp.lt.s32.totalorder %s28, 2
        %s522 = scalar_select %p521, %s28, 2
        %s523 = scalar_lea.vmem %s11, %s522
      $region64: #{transformer_forward.2} parent=15 // pred_fallthru
        _
      // Predicated region
      $region65: #{transformer_forward.2} parent=15 // pred_check
        %p524 = pneg %p364
      $region66: #{transformer_forward.2} parent=15 // pred_check_branch
        %526 = sbr.rel (%p524) target = $region68
      $region67: #{transformer_forward.2} parent=15 // pred_region
        %p527 = scmp.lt.s32.totalorder %s28, 2
        %s528 = scalar_select %p527, %s28, 2
        %s529 = scalar_lea.vmem %s12, %s528
      $region68: #{transformer_forward.2} parent=15 // pred_fallthru
        _
      // Predicated region
      $region69: #{transformer_forward.2} parent=15 // pred_check
        %p530 = pneg %p390
      $region70: #{transformer_forward.2} parent=15 // pred_check_branch
        %532 = sbr.rel (%p530) target = $region72
      $region71: #{transformer_forward.2} parent=15 // pred_region
        %p533 = scmp.lt.s32.totalorder %s28, 2
        %s534 = scalar_select %p533, %s28, 2
        %s535 = scalar_lea.vmem %s13, %s534
      $region72: #{transformer_forward.2} parent=15 // pred_fallthru
        _
    $region16: #{transformer_forward.2} parent=5 // pred_fallthru
      _
    %p536 = scmp.le.s32.totalorder 1, %s20
    %p537 = scmp.lt.s32.totalorder %s20, 7
    %p538 = pnand %p536, %p537
    %p539 = pneg %p538
    // Predicated region
    $region73: #{transformer_forward.2} parent=5 // pred_check
      _
    $region74: #{transformer_forward.2} parent=5 // pred_check_branch
      %541 = sbr.rel (%p538) target = $region76
    $region75: #{transformer_forward.2} parent=5 // pred_region
      %s542 = ssub.s32 %s20, 1
      %p543 = scmp.lt.s32.totalorder %s29, 1
      %s544 = scalar_select %p543, %s29, 1
      %s545 = smul.addr %s544, 8
      %s546 = scalar_lea.vmem %s0, %s545
      %p547 = pneg %p58
      %p548 = pneg %p55
      %p549 = scmp.lt.s32.totalorder %s29, 1
      %s550 = scalar_select %p549, %s29, 1
      %s551 = scalar_lea.vmem %s1, %s550
      %p552 = pneg %p84
      %p553 = pneg %p81
      %p554 = scmp.lt.s32.totalorder %s30, 2
      %s555 = scalar_select %p554, %s30, 2
      %s556 = smul.addr %s555, 48
      %s557 = smul.addr %s556, 4
      %s558 = scalar_lea.vmem %s2, %s557
      %p559 = pneg %p110
      %p560 = pneg %p107
      %p561 = scmp.lt.s32.totalorder %s30, 2
      %s562 = scalar_select %p561, %s30, 2
      %s563 = smul.addr %s562, 3
      %s564 = scalar_lea.vmem %s3, %s563
      %p565 = pneg %p136
      %p566 = pneg %p133
      %p567 = scmp.lt.s32.totalorder %s30, 2
      %s568 = scalar_select %p567, %s30, 2
      %s569 = smul.addr %s568, 16
      %s570 = smul.addr %s569, 4
      %s571 = scalar_lea.vmem %s4, %s570
      %p572 = pneg %p162
      %p573 = pneg %p159
      %p574 = scmp.lt.s32.totalorder %s30, 2
      %s575 = scalar_select %p574, %s30, 2
      %s576 = scalar_lea.vmem %s5, %s575
      %p577 = pneg %p188
      %p578 = pneg %p185
      %p579 = scmp.lt.s32.totalorder %s30, 2
      %s580 = scalar_select %p579, %s30, 2
      %s581 = scalar_lea.vmem %s6, %s580
      %p582 = pneg %p214
      %p583 = pneg %p211
      %p584 = scmp.lt.s32.totalorder %s30, 2
      %s585 = scalar_select %p584, %s30, 2
      %s586 = scalar_lea.vmem %s7, %s585
      %p587 = pneg %p240
      %p588 = pneg %p237
      %p589 = scmp.lt.s32.totalorder %s30, 2
      %s590 = scalar_select %p589, %s30, 2
      %s591 = smul.addr %s590, 32
      %s592 = smul.addr %s591, 4
      %s593 = scalar_lea.vmem %s8, %s592
      %p594 = pneg %p266
      %p595 = pneg %p263
      %p596 = scmp.lt.s32.totalorder %s30, 2
      %s597 = scalar_select %p596, %s30, 2
      %s598 = smul.addr %s597, 2
      %s599 = scalar_lea.vmem %s9, %s598
      %p600 = pneg %p292
      %p601 = pneg %p289
      %p602 = scmp.lt.s32.totalorder %s30, 2
      %s603 = scalar_select %p602, %s30, 2
      %s604 = smul.addr %s603, 32
      %s605 = smul.addr %s604, 4
      %s606 = scalar_lea.vmem %s10, %s605
      %p607 = pneg %p318
      %p608 = pneg %p315
      %p609 = scmp.lt.s32.totalorder %s30, 2
      %s610 = scalar_select %p609, %s30, 2
      %s611 = scalar_lea.vmem %s11, %s610
      %p612 = pneg %p344
      %p613 = pneg %p341
      %p614 = scmp.lt.s32.totalorder %s30, 2
      %s615 = scalar_select %p614, %s30, 2
      %s616 = scalar_lea.vmem %s12, %s615
      %p617 = pneg %p370
      %p618 = pneg %p367
      %p619 = scmp.lt.s32.totalorder %s30, 2
      %s620 = scalar_select %p619, %s30, 2
      %s621 = scalar_lea.vmem %s13, %s620
      %p622 = pneg %p396
      %p623 = pneg %p393
      %p624 = pneg %p422
      %p625 = pneg %p419
      %p626 = scmp.lt.s32.totalorder %s29, 1
      %s627 = scalar_select %p626, %s29, 1
      %s628 = smul.addr %s627, 8
      %s629 = scalar_lea.vmem %s14, %s628
      %p630 = scmp.lt.s32.totalorder %s29, 1
      %s631 = scalar_select %p630, %s29, 1
      %s632 = smul.addr %s631, 8
      %s633 = scalar_lea.vmem %s0, %s632
      %p634 = scmp.lt.s32.totalorder %s29, 1
      %s635 = scalar_select %p634, %s29, 1
      %s636 = scalar_lea.vmem %s1, %s635
      %p637 = scmp.lt.s32.totalorder %s30, 2
      %s638 = scalar_select %p637, %s30, 2
      %s639 = smul.addr %s638, 48
      %s640 = smul.addr %s639, 4
      %s641 = scalar_lea.vmem %s2, %s640
      %p642 = scmp.lt.s32.totalorder %s30, 2
      %s643 = scalar_select %p642, %s30, 2
      %s644 = smul.addr %s643, 3
      %s645 = scalar_lea.vmem %s3, %s644
      %p646 = scmp.lt.s32.totalorder %s30, 2
      %s647 = scalar_select %p646, %s30, 2
      %s648 = smul.addr %s647, 16
      %s649 = smul.addr %s648, 4
      %s650 = scalar_lea.vmem %s4, %s649
      %p651 = scmp.lt.s32.totalorder %s30, 2
      %s652 = scalar_select %p651, %s30, 2
      %s653 = scalar_lea.vmem %s5, %s652
      %p654 = scmp.lt.s32.totalorder %s30, 2
      %s655 = scalar_select %p654, %s30, 2
      %s656 = scalar_lea.vmem %s6, %s655
      %p657 = scmp.lt.s32.totalorder %s30, 2
      %s658 = scalar_select %p657, %s30, 2
      %s659 = scalar_lea.vmem %s7, %s658
      %p660 = scmp.lt.s32.totalorder %s30, 2
      %s661 = scalar_select %p660, %s30, 2
      %s662 = smul.addr %s661, 32
      %s663 = smul.addr %s662, 4
      %s664 = scalar_lea.vmem %s8, %s663
      %p665 = scmp.lt.s32.totalorder %s30, 2
      %s666 = scalar_select %p665, %s30, 2
      %s667 = smul.addr %s666, 2
      %s668 = scalar_lea.vmem %s9, %s667
      %p669 = scmp.lt.s32.totalorder %s30, 2
      %s670 = scalar_select %p669, %s30, 2
      %s671 = smul.addr %s670, 32
      %s672 = smul.addr %s671, 4
      %s673 = scalar_lea.vmem %s10, %s672
      %p674 = scmp.lt.s32.totalorder %s30, 2
      %s675 = scalar_select %p674, %s30, 2
      %s676 = scalar_lea.vmem %s11, %s675
      %p677 = scmp.lt.s32.totalorder %s30, 2
      %s678 = scalar_select %p677, %s30, 2
      %s679 = scalar_lea.vmem %s12, %s678
      %p680 = scmp.lt.s32.totalorder %s30, 2
      %s681 = scalar_select %p680, %s30, 2
      %s682 = scalar_lea.vmem %s13, %s681
      %p683 = scmp.lt.s32.totalorder %s29, 1
      %s684 = scalar_select %p683, %s29, 1
      %s685 = smul.addr %s684, 8
      %s686 = scalar_lea.vmem %s14, %s685
      %p688 = scmp.eq.s32.totalorder %s30, 0
      // Predicated region
      $region77: #{transformer_forward.2} parent=75 // pred_check
        %p689 = pneg %p688
      $region78: #{transformer_forward.2} parent=75 // pred_check_branch
        %691 = sbr.rel (%p689) target = $region80
      $region79: #{transformer_forward.2} parent=75 // pred_region
        %v692 = vld [vmem:[%s633] sm:$0xff]
        %693 = vst [vmem:[#allocation2] sm:$0xff] %v692
      $region80: #{transformer_forward.2} parent=75 // pred_fallthru
        _
      %v694 = vld [vmem:[#allocation2] sm:$0xff]
      %v695 = vld [vmem:[%s636] sm:$0x1]
      %v696 = vpack.c.bf16 %v694, %v694
      %v697 = vld [vmem:[%s641] sm:$0xff]
      %v698 = vld [vmem:[%s641 + $0x8] sm:$0xf]
      %v699 = vld [vmem:[%s641 + $0xc] sm:$0xff]
      %v700 = vld [vmem:[%s641 + $0x14] sm:$0xf]
      %v701 = vld [vmem:[%s641 + $0x18] sm:$0xff]
      %v702 = vld [vmem:[%s641 + $0x20] sm:$0xf]
      %v703 = vld [vmem:[%s641 + $0x24] sm:$0xff]
      %v704 = vld [vmem:[%s641 + $0x2c] sm:$0xf]
      %v705 = vld [vmem:[%s641 + $0x30] sm:$0xff]
      %v706 = vld [vmem:[%s641 + $0x38] sm:$0xf]
      %v707 = vld [vmem:[%s641 + $0x3c] sm:$0xff]
      %v708 = vld [vmem:[%s641 + $0x44] sm:$0xf]
      %v709 = vld [vmem:[%s641 + $0x48] sm:$0xff]
      %v710 = vld [vmem:[%s641 + $0x50] sm:$0xf]
      %v711 = vld [vmem:[%s641 + $0x54] sm:$0xff]
      %v712 = vld [vmem:[%s641 + $0x5c] sm:$0xf]
      %v713 = vld [vmem:[%s641 + $0x60] sm:$0xff]
      %v714 = vld [vmem:[%s641 + $0x68] sm:$0xf]
      %v715 = vld [vmem:[%s641 + $0x6c] sm:$0xff]
      %v716 = vld [vmem:[%s641 + $0x74] sm:$0xf]
      %v717 = vld [vmem:[%s641 + $0x78] sm:$0xff]
      %v718 = vld [vmem:[%s641 + $0x80] sm:$0xf]
      %v719 = vld [vmem:[%s641 + $0x84] sm:$0xff]
      %v720 = vld [vmem:[%s641 + $0x8c] sm:$0xf]
      %v721 = vld [vmem:[%s641 + $0x90] sm:$0xff]
      %v722 = vld [vmem:[%s641 + $0x98] sm:$0xf]
      %v723 = vld [vmem:[%s641 + $0x9c] sm:$0xff]
      %v724 = vld [vmem:[%s641 + $0xa4] sm:$0xf]
      %v725 = vld [vmem:[%s641 + $0xa8] sm:$0xff]
      %v726 = vld [vmem:[%s641 + $0xb0] sm:$0xf]
      %v727 = vld [vmem:[%s641 + $0xb4] sm:$0xff]
      %v728 = vld [vmem:[%s641 + $0xbc] sm:$0xf]
      %v729 = vld [vmem:[%s645] sm:$0x7]
      %v731 = vlaneseq
      %v732 = vshrl.u32 %v731, 7
      %v733 = vsub.s32 0, %v732
      %v734 = vrot.slane %v729, %v733
      %v735 = vlaneseq
      %v736 = vshrl.u32 %v735, 7
      %v737 = vsub.s32 1, %v736
      %v738 = vrot.slane %v729, %v737
      %v739 = vlaneseq
      %v740 = vshrl.u32 %v739, 7
      %v741 = vsub.s32 2, %v740
      %v742 = vrot.slane %v729, %v741
      %v778 = vunpack.c.l.b16 %v697
      %v779 = vunpack.c.h.b16 %v697
      %v780 = vunpack.c.l.b16 %v698
      %v781 = vunpack.c.l.b16 %v699
      %v782 = vunpack.c.h.b16 %v699
      %v783 = vunpack.c.l.b16 %v700
      %v784 = vunpack.c.l.b16 %v701
      %v785 = vunpack.c.h.b16 %v701
      %v786 = vunpack.c.l.b16 %v702
      %v787 = vunpack.c.l.b16 %v703
      %v788 = vunpack.c.h.b16 %v703
      %v789 = vunpack.c.l.b16 %v704
      %v790 = vunpack.c.l.b16 %v705
      %v791 = vunpack.c.h.b16 %v705
      %v792 = vunpack.c.l.b16 %v706
      %v793 = vunpack.c.l.b16 %v707
      %v794 = vunpack.c.h.b16 %v707
      %v795 = vunpack.c.l.b16 %v708
      %v796 = vunpack.c.l.b16 %v709
      %v797 = vunpack.c.h.b16 %v709
      %v798 = vunpack.c.l.b16 %v710
      %v799 = vunpack.c.l.b16 %v711
      %v800 = vunpack.c.h.b16 %v711
      %v801 = vunpack.c.l.b16 %v712
      %v802 = vunpack.c.l.b16 %v713
      %v803 = vunpack.c.h.b16 %v713
      %v804 = vunpack.c.l.b16 %v714
      %v805 = vunpack.c.l.b16 %v715
      %v806 = vunpack.c.h.b16 %v715
      %v807 = vunpack.c.l.b16 %v716
      %v808 = vunpack.c.l.b16 %v717
      %v809 = vunpack.c.h.b16 %v717
      %v810 = vunpack.c.l.b16 %v718
      %v811 = vunpack.c.l.b16 %v719
      %v812 = vunpack.c.h.b16 %v719
      %v813 = vunpack.c.l.b16 %v720
      %v814 = vunpack.c.l.b16 %v721
      %v815 = vunpack.c.h.b16 %v721
      %v816 = vunpack.c.l.b16 %v722
      %v817 = vunpack.c.l.b16 %v723
      %v818 = vunpack.c.h.b16 %v723
      %v819 = vunpack.c.l.b16 %v724
      %v820 = vunpack.c.l.b16 %v725
      %v821 = vunpack.c.h.b16 %v725
      %v822 = vunpack.c.l.b16 %v726
      %v823 = vunpack.c.l.b16 %v727
      %v824 = vunpack.c.h.b16 %v727
      %v825 = vunpack.c.l.b16 %v728
      %v826 = vpack.c.b16 %v781, %v778
      %v827 = vpack.c.b16 %v782, %v779
      %v828 = vpack.c.b16 %v783, %v780
      %v829 = vpack.c.b16 %v787, %v784
      %v830 = vpack.c.b16 %v788, %v785
      %v831 = vpack.c.b16 %v789, %v786
      %v832 = vpack.c.b16 %v793, %v790
      %v833 = vpack.c.b16 %v794, %v791
      %v834 = vpack.c.b16 %v795, %v792
      %v835 = vpack.c.b16 %v799, %v796
      %v836 = vpack.c.b16 %v800, %v797
      %v837 = vpack.c.b16 %v801, %v798
      %v838 = vpack.c.b16 %v805, %v802
      %v839 = vpack.c.b16 %v806, %v803
      %v840 = vpack.c.b16 %v807, %v804
      %v841 = vpack.c.b16 %v811, %v808
      %v842 = vpack.c.b16 %v812, %v809
      %v843 = vpack.c.b16 %v813, %v810
      %v844 = vpack.c.b16 %v817, %v814
      %v845 = vpack.c.b16 %v818, %v815
      %v846 = vpack.c.b16 %v819, %v816
      %v847 = vpack.c.b16 %v823, %v820
      %v848 = vpack.c.b16 %v824, %v821
      %v849 = vpack.c.b16 %v825, %v822
      %874 = vmatprep.subr.bf16.mxu0 %v848
      %875 = vmatpush1.bf16.msra.mxu0 %v847
      %876 = vmatprep.subr.bf16.mxu0 %v845
      %877 = vmatpush1.bf16.msra.mxu0 %v844
      %878 = vmatprep.subr.bf16.mxu0 %v842
      %879 = vmatpush1.bf16.msra.mxu0 %v841
      %880 = vmatprep.subr.bf16.mxu0 %v839
      %881 = vmatpush1.bf16.msra.mxu0 %v838
      %882 = vmatprep.subr.bf16.mxu0 %v836
      %883 = vmatpush1.bf16.msra.mxu0 %v835
      %884 = vmatprep.subr.bf16.mxu0 %v833
      %885 = vmatpush1.bf16.msra.mxu0 %v832
      %886 = vmatprep.subr.bf16.mxu0 %v830
      %887 = vmatpush1.bf16.msra.mxu0 %v829
      %888 = vmatprep.subr.bf16.mxu0 %v827
      %889 = vmatpush1.bf16.msra.mxu0 %v826
      %890 = vmatprep.subr.bf16.mxu0 0
      %891 = vmatpush2.bf16.msra.mxu0 0
      %892 = vmatprep.subr.bf16.mxu0 0
      %893 = vmatpush2.bf16.msra.mxu0 0
      %894 = vmatprep.subr.bf16.mxu0 0
      %895 = vmatpush2.bf16.msra.mxu0 0
      %896 = vmatprep.subr.bf16.mxu0 0
      %897 = vmatpush2.bf16.msra.mxu0 0
      %898 = vmatprep.subr.bf16.mxu0 0
      %899 = vmatpush2.bf16.msra.mxu0 0
      %900 = vmatprep.subr.bf16.mxu0 0
      %901 = vmatpush2.bf16.msra.mxu0 0
      %902 = vmatprep.subr.bf16.mxu0 0
      %903 = vmatpush2.bf16.msra.mxu0 0
      %904 = vmatprep.subr.bf16.mxu0 0
      %905 = vmatpush2.bf16.msra.mxu0 0
      %906 = vmatprep.mubr.bf16.mxu0 0
      %907 = vmatmul.mubr.bf16.gmra.mxu0 %v696
      %v908 = vpop.f32.mrf.mxu0
      %v909 = vadd.f32 %v734, %v908
      %v910 = vpop.f32.mrf.mxu0
      %v911 = vadd.f32 %v738, %v910
      %v912 = vpop.f32.mrf.mxu0
      %v913 = vpop.f32.mrf.mxu0
      %914 = vdwg.mxu0
      %915 = vmatprep.subr.bf16.mxu0 0
      %916 = vmatpush1.bf16.msra.mxu0 %v849
      %917 = vmatprep.subr.bf16.mxu0 0
      %918 = vmatpush1.bf16.msra.mxu0 %v846
      %919 = vmatprep.subr.bf16.mxu0 0
      %920 = vmatpush1.bf16.msra.mxu0 %v843
      %921 = vmatprep.subr.bf16.mxu0 0
      %922 = vmatpush1.bf16.msra.mxu0 %v840
      %923 = vmatprep.subr.bf16.mxu0 0
      %924 = vmatpush1.bf16.msra.mxu0 %v837
      %925 = vmatprep.subr.bf16.mxu0 0
      %926 = vmatpush1.bf16.msra.mxu0 %v834
      %927 = vmatprep.subr.bf16.mxu0 0
      %928 = vmatpush1.bf16.msra.mxu0 %v831
      %929 = vmatprep.subr.bf16.mxu0 0
      %930 = vmatpush1.bf16.msra.mxu0 %v828
      %931 = vmatprep.subr.bf16.mxu0 0
      %932 = vmatpush2.bf16.msra.mxu0 0
      %933 = vmatprep.subr.bf16.mxu0 0
      %934 = vmatpush2.bf16.msra.mxu0 0
      %935 = vmatprep.subr.bf16.mxu0 0
      %936 = vmatpush2.bf16.msra.mxu0 0
      %937 = vmatprep.subr.bf16.mxu0 0
      %938 = vmatpush2.bf16.msra.mxu0 0
      %939 = vmatprep.subr.bf16.mxu0 0
      %940 = vmatpush2.bf16.msra.mxu0 0
      %941 = vmatprep.subr.bf16.mxu0 0
      %942 = vmatpush2.bf16.msra.mxu0 0
      %943 = vmatprep.subr.bf16.mxu0 0
      %944 = vmatpush2.bf16.msra.mxu0 0
      %945 = vmatprep.subr.bf16.mxu0 0
      %946 = vmatpush2.bf16.msra.mxu0 0
      %947 = vmatprep.mubr.bf16.mxu0 0
      %948 = vmatmul.mubr.bf16.gmra.mxu0 %v696
      %v949 = vpop.f32.mrf.mxu0
      %v950 = vadd.f32 %v742, %v949
      %v951 = vpop.f32.mrf.mxu0
      %v952 = vpop.f32.mrf.mxu0
      %v953 = vpop.f32.mrf.mxu0
      %954 = vdwg.mxu0
      %v955 = vmul.f32 %v909, 0.17677669
      %v956 = vpack.c.bf16 %v955, %v955
      %v957 = vpack.c.bf16 %v911, %v911
      %v958 = vpack.c.bf16 %v950, %v950
      %v960 = vlaneseq
      %v961 = vshrl.u32 %v960, 7
      %v962 = vsub.s32 0, %v961
      %v963 = vrot.slane %v695, %v962
      %vm965 = vcmask 261120
      %v967 = vsel %vm965, %v956, 0
      %v970 = vsel %vm965, %v957, 0
      %972 = vmatprep.subr.bf16.mxu0 0
      %973 = vmatpush1.bf16.xpose.msra.mxu0 0
      %974 = vmatprep.subr.bf16.mxu0 0
      %975 = vmatpush1.bf16.xpose.msra.mxu0 0
      %976 = vmatprep.subr.bf16.mxu0 0
      %977 = vmatpush1.bf16.xpose.msra.mxu0 0
      %978 = vmatprep.subr.bf16.mxu0 0
      %979 = vmatpush1.bf16.xpose.msra.mxu0 0
      %980 = vmatprep.subr.bf16.mxu0 0
      %981 = vmatpush1.bf16.xpose.msra.mxu0 0
      %982 = vmatprep.subr.bf16.mxu0 0
      %983 = vmatpush1.bf16.xpose.msra.mxu0 0
      %984 = vmatprep.subr.bf16.mxu0 0
      %985 = vmatpush1.bf16.xpose.msra.mxu0 0
      %986 = vmatprep.subr.bf16.mxu0 0
      %987 = vmatpush1.bf16.xpose.msra.mxu0 %v970
      %988 = vmatprep.subr.bf16.mxu0 0
      %989 = vmatpush2.bf16.xpose.msra.mxu0 0
      %990 = vmatprep.subr.bf16.mxu0 0
      %991 = vmatpush2.bf16.xpose.msra.mxu0 0
      %992 = vmatprep.subr.bf16.mxu0 0
      %993 = vmatpush2.bf16.xpose.msra.mxu0 0
      %994 = vmatprep.subr.bf16.mxu0 0
      %995 = vmatpush2.bf16.xpose.msra.mxu0 0
      %996 = vmatprep.subr.bf16.mxu0 0
      %997 = vmatpush2.bf16.xpose.msra.mxu0 0
      %998 = vmatprep.subr.bf16.mxu0 0
      %999 = vmatpush2.bf16.xpose.msra.mxu0 0
      %1000 = vmatprep.subr.bf16.mxu0 0
      %1001 = vmatpush2.bf16.xpose.msra.mxu0 0
      %1002 = vmatprep.subr.bf16.mxu0 0
      %1003 = vmatpush2.bf16.xpose.msra.mxu0 0
      %1004 = vmatprep.mubr.bf16.mxu0 0
      %1005 = vmatmul.mubr.bf16.gmra.mxu0 %v967
      %v1006 = vpop.f32.mrf.mxu0
      %v1007 = vadd.f32 %v963, %v1006
      %v1008 = vpop.f32.mrf.mxu0
      %v1009 = vpop.f32.mrf.mxu0
      %v1010 = vpop.f32.mrf.mxu0
      %1011 = vdwg.mxu0
      %vm1012 = vcmask 64512
      %v1013 = vsel %vm1012, %v1007, -inf
      %1014 = vmax.xlane.f32.xlu0 %v1013
      %v1015 = vpop.xlane.xlu0 %1014
      %v1016 = vsub.f32 %v1007, %v1015
      %v1017 = vmul.f32 %v1016, 1.442695
      %v1018 = vpow.pop %v1017
      %v1019 = vsel %vm1012, %v1018, 0.0
      %1020 = vadd.xlane.f32.xlu0 %v1019
      %v1021 = vpop.xlane.xlu0 %1020
      %v1022 = vrcp.pop %v1021
      %v1023 = vmul.f32 %v1018, %v1022
      %v1024 = vpack.c.bf16 %v1023, %v1023
      %v1026 = vsel %vm1012, %v1024, 0
      %vm1028 = vcmask 1043456
      %v1030 = vsel %vm1028, %v958, 0
      %1032 = vmatprep.subr.bf16.mxu0 0
      %1033 = vmatpush1.bf16.msra.mxu0 0
      %1034 = vmatprep.subr.bf16.mxu0 0
      %1035 = vmatpush1.bf16.msra.mxu0 0
      %1036 = vmatprep.subr.bf16.mxu0 0
      %1037 = vmatpush1.bf16.msra.mxu0 0
      %1038 = vmatprep.subr.bf16.mxu0 0
      %1039 = vmatpush1.bf16.msra.mxu0 0
      %1040 = vmatprep.subr.bf16.mxu0 0
      %1041 = vmatpush1.bf16.msra.mxu0 0
      %1042 = vmatprep.subr.bf16.mxu0 0
      %1043 = vmatpush1.bf16.msra.mxu0 0
      %1044 = vmatprep.subr.bf16.mxu0 0
      %1045 = vmatpush1.bf16.msra.mxu0 0
      %1046 = vmatprep.subr.bf16.mxu0 0
      %1047 = vmatpush1.bf16.msra.mxu0 %v1030
      %1048 = vmatprep.subr.bf16.mxu0 0
      %1049 = vmatpush2.bf16.msra.mxu0 0
      %1050 = vmatprep.subr.bf16.mxu0 0
      %1051 = vmatpush2.bf16.msra.mxu0 0
      %1052 = vmatprep.subr.bf16.mxu0 0
      %1053 = vmatpush2.bf16.msra.mxu0 0
      %1054 = vmatprep.subr.bf16.mxu0 0
      %1055 = vmatpush2.bf16.msra.mxu0 0
      %1056 = vmatprep.subr.bf16.mxu0 0
      %1057 = vmatpush2.bf16.msra.mxu0 0
      %1058 = vmatprep.subr.bf16.mxu0 0
      %1059 = vmatpush2.bf16.msra.mxu0 0
      %1060 = vmatprep.subr.bf16.mxu0 0
      %1061 = vmatpush2.bf16.msra.mxu0 0
      %1062 = vmatprep.subr.bf16.mxu0 0
      %1063 = vmatpush2.bf16.msra.mxu0 0
      %1064 = vmatprep.mubr.bf16.mxu0 0
      %1065 = vmatmul.mubr.bf16.gmra.mxu0 %v1026
      %v1066 = vpop.f32.mrf.mxu0
      %v1067 = vadd.f32 0.0, %v1066
      %v1068 = vpop.f32.mrf.mxu0
      %v1069 = vpop.f32.mrf.mxu0
      %v1070 = vpop.f32.mrf.mxu0
      %1071 = vdwg.mxu0
      %1072 = vst.msk [vmem:[#allocation3] sm:$0xff] %vm965, %v1067
      %1074 = vrot.lane.b32.xlu0 %v956, 96
      %v1075 = vpop.permute.xlu0 %1074
      %1077 = vrot.lane.b32.xlu0 %v957, 96
      %v1078 = vpop.permute.xlu0 %1077
      %v1080 = vsel %vm965, %v1075, 0
      %v1083 = vsel %vm965, %v1078, 0
      %1085 = vmatprep.subr.bf16.mxu0 0
      %1086 = vmatpush1.bf16.xpose.msra.mxu0 0
      %1087 = vmatprep.subr.bf16.mxu0 0
      %1088 = vmatpush1.bf16.xpose.msra.mxu0 0
      %1089 = vmatprep.subr.bf16.mxu0 0
      %1090 = vmatpush1.bf16.xpose.msra.mxu0 0
      %1091 = vmatprep.subr.bf16.mxu0 0
      %1092 = vmatpush1.bf16.xpose.msra.mxu0 0
      %1093 = vmatprep.subr.bf16.mxu0 0
      %1094 = vmatpush1.bf16.xpose.msra.mxu0 0
      %1095 = vmatprep.subr.bf16.mxu0 0
      %1096 = vmatpush1.bf16.xpose.msra.mxu0 0
      %1097 = vmatprep.subr.bf16.mxu0 0
      %1098 = vmatpush1.bf16.xpose.msra.mxu0 0
      %1099 = vmatprep.subr.bf16.mxu0 0
      %1100 = vmatpush1.bf16.xpose.msra.mxu0 %v1083
      %1101 = vmatprep.subr.bf16.mxu0 0
      %1102 = vmatpush2.bf16.xpose.msra.mxu0 0
      %1103 = vmatprep.subr.bf16.mxu0 0
      %1104 = vmatpush2.bf16.xpose.msra.mxu0 0
      %1105 = vmatprep.subr.bf16.mxu0 0
      %1106 = vmatpush2.bf16.xpose.msra.mxu0 0
      %1107 = vmatprep.subr.bf16.mxu0 0
      %1108 = vmatpush2.bf16.xpose.msra.mxu0 0
      %1109 = vmatprep.subr.bf16.mxu0 0
      %1110 = vmatpush2.bf16.xpose.msra.mxu0 0
      %1111 = vmatprep.subr.bf16.mxu0 0
      %1112 = vmatpush2.bf16.xpose.msra.mxu0 0
      %1113 = vmatprep.subr.bf16.mxu0 0
      %1114 = vmatpush2.bf16.xpose.msra.mxu0 0
      %1115 = vmatprep.subr.bf16.mxu0 0
      %1116 = vmatpush2.bf16.xpose.msra.mxu0 0
      %1117 = vmatprep.mubr.bf16.mxu0 0
      %1118 = vmatmul.mubr.bf16.gmra.mxu0 %v1080
      %v1119 = vpop.f32.mrf.mxu0
      %v1120 = vadd.f32 %v963, %v1119
      %v1121 = vpop.f32.mrf.mxu0
      %v1122 = vpop.f32.mrf.mxu0
      %v1123 = vpop.f32.mrf.mxu0
      %1124 = vdwg.mxu0
      %v1125 = vsel %vm1012, %v1120, -inf
      %1126 = vmax.xlane.f32.xlu0 %v1125
      %v1127 = vpop.xlane.xlu0 %1126
      %v1128 = vsub.f32 %v1120, %v1127
      %v1129 = vmul.f32 %v1128, 1.442695
      %v1130 = vpow.pop %v1129
      %v1131 = vsel %vm1012, %v1130, 0.0
      %1132 = vadd.xlane.f32.xlu0 %v1131
      %v1133 = vpop.xlane.xlu0 %1132
      %v1134 = vrcp.pop %v1133
      %v1135 = vmul.f32 %v1130, %v1134
      %v1136 = vpack.c.bf16 %v1135, %v1135
      %1138 = vrot.lane.b32.xlu0 %v958, 96
      %v1139 = vpop.permute.xlu0 %1138
      %v1141 = vsel %vm1012, %v1136, 0
      %v1144 = vsel %vm1028, %v1139, 0
      %1146 = vmatprep.subr.bf16.mxu0 0
      %1147 = vmatpush1.bf16.msra.mxu0 0
      %1148 = vmatprep.subr.bf16.mxu0 0
      %1149 = vmatpush1.bf16.msra.mxu0 0
      %1150 = vmatprep.subr.bf16.mxu0 0
      %1151 = vmatpush1.bf16.msra.mxu0 0
      %1152 = vmatprep.subr.bf16.mxu0 0
      %1153 = vmatpush1.bf16.msra.mxu0 0
      %1154 = vmatprep.subr.bf16.mxu0 0
      %1155 = vmatpush1.bf16.msra.mxu0 0
      %1156 = vmatprep.subr.bf16.mxu0 0
      %1157 = vmatpush1.bf16.msra.mxu0 0
      %1158 = vmatprep.subr.bf16.mxu0 0
      %1159 = vmatpush1.bf16.msra.mxu0 0
      %1160 = vmatprep.subr.bf16.mxu0 0
      %1161 = vmatpush1.bf16.msra.mxu0 %v1144
      %1162 = vmatprep.subr.bf16.mxu0 0
      %1163 = vmatpush2.bf16.msra.mxu0 0
      %1164 = vmatprep.subr.bf16.mxu0 0
      %1165 = vmatpush2.bf16.msra.mxu0 0
      %1166 = vmatprep.subr.bf16.mxu0 0
      %1167 = vmatpush2.bf16.msra.mxu0 0
      %1168 = vmatprep.subr.bf16.mxu0 0
      %1169 = vmatpush2.bf16.msra.mxu0 0
      %1170 = vmatprep.subr.bf16.mxu0 0
      %1171 = vmatpush2.bf16.msra.mxu0 0
      %1172 = vmatprep.subr.bf16.mxu0 0
      %1173 = vmatpush2.bf16.msra.mxu0 0
      %1174 = vmatprep.subr.bf16.mxu0 0
      %1175 = vmatpush2.bf16.msra.mxu0 0
      %1176 = vmatprep.subr.bf16.mxu0 0
      %1177 = vmatpush2.bf16.msra.mxu0 0
      %1178 = vmatprep.mubr.bf16.mxu0 0
      %1179 = vmatmul.mubr.bf16.gmra.mxu0 %v1141
      %v1180 = vpop.f32.mrf.mxu0
      %v1181 = vadd.f32 0.0, %v1180
      %v1182 = vpop.f32.mrf.mxu0
      %v1183 = vpop.f32.mrf.mxu0
      %v1184 = vpop.f32.mrf.mxu0
      %1185 = vdwg.mxu0
      %1187 = vrot.lane.b32.xlu0 %v1181, 32
      %v1188 = vpop.permute.xlu0 %1187
      %vm1190 = vcmask 523520
      %1191 = vst.msk [vmem:[#allocation3] sm:$0xff] %vm1190, %v1188
      %1192 = vrot.lane.b32.xlu0 %v956, 64
      %v1193 = vpop.permute.xlu0 %1192
      %1194 = vrot.lane.b32.xlu0 %v957, 64
      %v1195 = vpop.permute.xlu0 %1194
      %v1197 = vsel %vm965, %v1193, 0
      %v1200 = vsel %vm965, %v1195, 0
      %1202 = vmatprep.subr.bf16.mxu0 0
      %1203 = vmatpush1.bf16.xpose.msra.mxu0 0
      %1204 = vmatprep.subr.bf16.mxu0 0
      %1205 = vmatpush1.bf16.xpose.msra.mxu0 0
      %1206 = vmatprep.subr.bf16.mxu0 0
      %1207 = vmatpush1.bf16.xpose.msra.mxu0 0
      %1208 = vmatprep.subr.bf16.mxu0 0
      %1209 = vmatpush1.bf16.xpose.msra.mxu0 0
      %1210 = vmatprep.subr.bf16.mxu0 0
      %1211 = vmatpush1.bf16.xpose.msra.mxu0 0
      %1212 = vmatprep.subr.bf16.mxu0 0
      %1213 = vmatpush1.bf16.xpose.msra.mxu0 0
      %1214 = vmatprep.subr.bf16.mxu0 0
      %1215 = vmatpush1.bf16.xpose.msra.mxu0 0
      %1216 = vmatprep.subr.bf16.mxu0 0
      %1217 = vmatpush1.bf16.xpose.msra.mxu0 %v1200
      %1218 = vmatprep.subr.bf16.mxu0 0
      %1219 = vmatpush2.bf16.xpose.msra.mxu0 0
      %1220 = vmatprep.subr.bf16.mxu0 0
      %1221 = vmatpush2.bf16.xpose.msra.mxu0 0
      %1222 = vmatprep.subr.bf16.mxu0 0
      %1223 = vmatpush2.bf16.xpose.msra.mxu0 0
      %1224 = vmatprep.subr.bf16.mxu0 0
      %1225 = vmatpush2.bf16.xpose.msra.mxu0 0
      %1226 = vmatprep.subr.bf16.mxu0 0
      %1227 = vmatpush2.bf16.xpose.msra.mxu0 0
      %1228 = vmatprep.subr.bf16.mxu0 0
      %1229 = vmatpush2.bf16.xpose.msra.mxu0 0
      %1230 = vmatprep.subr.bf16.mxu0 0
      %1231 = vmatpush2.bf16.xpose.msra.mxu0 0
      %1232 = vmatprep.subr.bf16.mxu0 0
      %1233 = vmatpush2.bf16.xpose.msra.mxu0 0
      %1234 = vmatprep.mubr.bf16.mxu0 0
      %1235 = vmatmul.mubr.bf16.gmra.mxu0 %v1197
      %v1236 = vpop.f32.mrf.mxu0
      %v1237 = vadd.f32 %v963, %v1236
      %v1238 = vpop.f32.mrf.mxu0
      %v1239 = vpop.f32.mrf.mxu0
      %v1240 = vpop.f32.mrf.mxu0
      %1241 = vdwg.mxu0
      %v1242 = vsel %vm1012, %v1237, -inf
      %1243 = vmax.xlane.f32.xlu0 %v1242
      %v1244 = vpop.xlane.xlu0 %1243
      %v1245 = vsub.f32 %v1237, %v1244
      %v1246 = vmul.f32 %v1245, 1.442695
      %v1247 = vpow.pop %v1246
      %v1248 = vsel %vm1012, %v1247, 0.0
      %1249 = vadd.xlane.f32.xlu0 %v1248
      %v1250 = vpop.xlane.xlu0 %1249
      %v1251 = vrcp.pop %v1250
      %v1252 = vmul.f32 %v1247, %v1251
      %v1253 = vpack.c.bf16 %v1252, %v1252
      %1254 = vrot.lane.b32.xlu0 %v958, 64
      %v1255 = vpop.permute.xlu0 %1254
      %v1257 = vsel %vm1012, %v1253, 0
      %v1260 = vsel %vm1028, %v1255, 0
      %1262 = vmatprep.subr.bf16.mxu0 0
      %1263 = vmatpush1.bf16.msra.mxu0 0
      %1264 = vmatprep.subr.bf16.mxu0 0
      %1265 = vmatpush1.bf16.msra.mxu0 0
      %1266 = vmatprep.subr.bf16.mxu0 0
      %1267 = vmatpush1.bf16.msra.mxu0 0
      %1268 = vmatprep.subr.bf16.mxu0 0
      %1269 = vmatpush1.bf16.msra.mxu0 0
      %1270 = vmatprep.subr.bf16.mxu0 0
      %1271 = vmatpush1.bf16.msra.mxu0 0
      %1272 = vmatprep.subr.bf16.mxu0 0
      %1273 = vmatpush1.bf16.msra.mxu0 0
      %1274 = vmatprep.subr.bf16.mxu0 0
      %1275 = vmatpush1.bf16.msra.mxu0 0
      %1276 = vmatprep.subr.bf16.mxu0 0
      %1277 = vmatpush1.bf16.msra.mxu0 %v1260
      %1278 = vmatprep.subr.bf16.mxu0 0
      %1279 = vmatpush2.bf16.msra.mxu0 0
      %1280 = vmatprep.subr.bf16.mxu0 0
      %1281 = vmatpush2.bf16.msra.mxu0 0
      %1282 = vmatprep.subr.bf16.mxu0 0
      %1283 = vmatpush2.bf16.msra.mxu0 0
      %1284 = vmatprep.subr.bf16.mxu0 0
      %1285 = vmatpush2.bf16.msra.mxu0 0
      %1286 = vmatprep.subr.bf16.mxu0 0
      %1287 = vmatpush2.bf16.msra.mxu0 0
      %1288 = vmatprep.subr.bf16.mxu0 0
      %1289 = vmatpush2.bf16.msra.mxu0 0
      %1290 = vmatprep.subr.bf16.mxu0 0
      %1291 = vmatpush2.bf16.msra.mxu0 0
      %1292 = vmatprep.subr.bf16.mxu0 0
      %1293 = vmatpush2.bf16.msra.mxu0 0
      %1294 = vmatprep.mubr.bf16.mxu0 0
      %1295 = vmatmul.mubr.bf16.gmra.mxu0 %v1257
      %v1296 = vpop.f32.mrf.mxu0
      %v1297 = vadd.f32 0.0, %v1296
      %v1298 = vpop.f32.mrf.mxu0
      %v1299 = vpop.f32.mrf.mxu0
      %v1300 = vpop.f32.mrf.mxu0
      %1301 = vdwg.mxu0
      %1303 = vrot.lane.b32.xlu0 %v1297, 64
      %v1304 = vpop.permute.xlu0 %1303
      %vm1306 = vcmask 785920
      %1307 = vst.msk [vmem:[#allocation3] sm:$0xff] %vm1306, %v1304
      %1308 = vrot.lane.b32.xlu0 %v956, 32
      %v1309 = vpop.permute.xlu0 %1308
      %1310 = vrot.lane.b32.xlu0 %v957, 32
      %v1311 = vpop.permute.xlu0 %1310
      %v1313 = vsel %vm965, %v1309, 0
      %v1316 = vsel %vm965, %v1311, 0
      %1318 = vmatprep.subr.bf16.mxu0 0
      %1319 = vmatpush1.bf16.xpose.msra.mxu0 0
      %1320 = vmatprep.subr.bf16.mxu0 0
      %1321 = vmatpush1.bf16.xpose.msra.mxu0 0
      %1322 = vmatprep.subr.bf16.mxu0 0
      %1323 = vmatpush1.bf16.xpose.msra.mxu0 0
      %1324 = vmatprep.subr.bf16.mxu0 0
      %1325 = vmatpush1.bf16.xpose.msra.mxu0 0
      %1326 = vmatprep.subr.bf16.mxu0 0
      %1327 = vmatpush1.bf16.xpose.msra.mxu0 0
      %1328 = vmatprep.subr.bf16.mxu0 0
      %1329 = vmatpush1.bf16.xpose.msra.mxu0 0
      %1330 = vmatprep.subr.bf16.mxu0 0
      %1331 = vmatpush1.bf16.xpose.msra.mxu0 0
      %1332 = vmatprep.subr.bf16.mxu0 0
      %1333 = vmatpush1.bf16.xpose.msra.mxu0 %v1316
      %1334 = vmatprep.subr.bf16.mxu0 0
      %1335 = vmatpush2.bf16.xpose.msra.mxu0 0
      %1336 = vmatprep.subr.bf16.mxu0 0
      %1337 = vmatpush2.bf16.xpose.msra.mxu0 0
      %1338 = vmatprep.subr.bf16.mxu0 0
      %1339 = vmatpush2.bf16.xpose.msra.mxu0 0
      %1340 = vmatprep.subr.bf16.mxu0 0
      %1341 = vmatpush2.bf16.xpose.msra.mxu0 0
      %1342 = vmatprep.subr.bf16.mxu0 0
      %1343 = vmatpush2.bf16.xpose.msra.mxu0 0
      %1344 = vmatprep.subr.bf16.mxu0 0
      %1345 = vmatpush2.bf16.xpose.msra.mxu0 0
      %1346 = vmatprep.subr.bf16.mxu0 0
      %1347 = vmatpush2.bf16.xpose.msra.mxu0 0
      %1348 = vmatprep.subr.bf16.mxu0 0
      %1349 = vmatpush2.bf16.xpose.msra.mxu0 0
      %1350 = vmatprep.mubr.bf16.mxu0 0
      %1351 = vmatmul.mubr.bf16.gmra.mxu0 %v1313
      %v1352 = vpop.f32.mrf.mxu0
      %v1353 = vadd.f32 %v963, %v1352
      %v1354 = vpop.f32.mrf.mxu0
      %v1355 = vpop.f32.mrf.mxu0
      %v1356 = vpop.f32.mrf.mxu0
      %1357 = vdwg.mxu0
      %v1358 = vsel %vm1012, %v1353, -inf
      %1359 = vmax.xlane.f32.xlu0 %v1358
      %v1360 = vpop.xlane.xlu0 %1359
      %v1361 = vsub.f32 %v1353, %v1360
      %v1362 = vmul.f32 %v1361, 1.442695
      %v1363 = vpow.pop %v1362
      %v1364 = vsel %vm1012, %v1363, 0.0
      %1365 = vadd.xlane.f32.xlu0 %v1364
      %v1366 = vpop.xlane.xlu0 %1365
      %v1367 = vrcp.pop %v1366
      %v1368 = vmul.f32 %v1363, %v1367
      %v1369 = vpack.c.bf16 %v1368, %v1368
      %1370 = vrot.lane.b32.xlu0 %v958, 32
      %v1371 = vpop.permute.xlu0 %1370
      %v1373 = vsel %vm1012, %v1369, 0
      %v1376 = vsel %vm1028, %v1371, 0
      %1378 = vmatprep.subr.bf16.mxu0 0
      %1379 = vmatpush1.bf16.msra.mxu0 0
      %1380 = vmatprep.subr.bf16.mxu0 0
      %1381 = vmatpush1.bf16.msra.mxu0 0
      %1382 = vmatprep.subr.bf16.mxu0 0
      %1383 = vmatpush1.bf16.msra.mxu0 0
      %1384 = vmatprep.subr.bf16.mxu0 0
      %1385 = vmatpush1.bf16.msra.mxu0 0
      %1386 = vmatprep.subr.bf16.mxu0 0
      %1387 = vmatpush1.bf16.msra.mxu0 0
      %1388 = vmatprep.subr.bf16.mxu0 0
      %1389 = vmatpush1.bf16.msra.mxu0 0
      %1390 = vmatprep.subr.bf16.mxu0 0
      %1391 = vmatpush1.bf16.msra.mxu0 0
      %1392 = vmatprep.subr.bf16.mxu0 0
      %1393 = vmatpush1.bf16.msra.mxu0 %v1376
      %1394 = vmatprep.subr.bf16.mxu0 0
      %1395 = vmatpush2.bf16.msra.mxu0 0
      %1396 = vmatprep.subr.bf16.mxu0 0
      %1397 = vmatpush2.bf16.msra.mxu0 0
      %1398 = vmatprep.subr.bf16.mxu0 0
      %1399 = vmatpush2.bf16.msra.mxu0 0
      %1400 = vmatprep.subr.bf16.mxu0 0
      %1401 = vmatpush2.bf16.msra.mxu0 0
      %1402 = vmatprep.subr.bf16.mxu0 0
      %1403 = vmatpush2.bf16.msra.mxu0 0
      %1404 = vmatprep.subr.bf16.mxu0 0
      %1405 = vmatpush2.bf16.msra.mxu0 0
      %1406 = vmatprep.subr.bf16.mxu0 0
      %1407 = vmatpush2.bf16.msra.mxu0 0
      %1408 = vmatprep.subr.bf16.mxu0 0
      %1409 = vmatpush2.bf16.msra.mxu0 0
      %1410 = vmatprep.mubr.bf16.mxu0 0
      %1411 = vmatmul.mubr.bf16.gmra.mxu0 %v1373
      %v1412 = vpop.f32.mrf.mxu0
      %v1413 = vadd.f32 0.0, %v1412
      %v1414 = vpop.f32.mrf.mxu0
      %v1415 = vpop.f32.mrf.mxu0
      %v1416 = vpop.f32.mrf.mxu0
      %1417 = vdwg.mxu0
      %1419 = vrot.lane.b32.xlu0 %v1413, 96
      %v1420 = vpop.permute.xlu0 %1419
      %vm1422 = vcmask 1048320
      %1423 = vst.msk [vmem:[#allocation3] sm:$0xff] %vm1422, %v1420
      %v1424 = vld [vmem:[#allocation3] sm:$0xff]
      %v1425 = vpack.c.bf16 %v1424, %v1424
      %v1426 = vld [vmem:[%s650] sm:$0xf]
      %v1427 = vld [vmem:[%s650 + $0x4] sm:$0xf]
      %v1428 = vld [vmem:[%s650 + $0x8] sm:$0xf]
      %v1429 = vld [vmem:[%s650 + $0xc] sm:$0xf]
      %v1430 = vld [vmem:[%s650 + $0x10] sm:$0xf]
      %v1431 = vld [vmem:[%s650 + $0x14] sm:$0xf]
      %v1432 = vld [vmem:[%s650 + $0x18] sm:$0xf]
      %v1433 = vld [vmem:[%s650 + $0x1c] sm:$0xf]
      %v1434 = vld [vmem:[%s650 + $0x20] sm:$0xf]
      %v1435 = vld [vmem:[%s650 + $0x24] sm:$0xf]
      %v1436 = vld [vmem:[%s650 + $0x28] sm:$0xf]
      %v1437 = vld [vmem:[%s650 + $0x2c] sm:$0xf]
      %v1438 = vld [vmem:[%s650 + $0x30] sm:$0xf]
      %v1439 = vld [vmem:[%s650 + $0x34] sm:$0xf]
      %v1440 = vld [vmem:[%s650 + $0x38] sm:$0xf]
      %v1441 = vld [vmem:[%s650 + $0x3c] sm:$0xf]
      %v1442 = vld [vmem:[%s653] sm:$0x1]
      %v1444 = vlaneseq
      %v1445 = vshrl.u32 %v1444, 7
      %v1446 = vsub.s32 0, %v1445
      %v1447 = vrot.slane %v1442, %v1446
      %v1465 = vunpack.c.l.b16 %v1426
      %v1466 = vunpack.c.l.b16 %v1427
      %v1467 = vunpack.c.l.b16 %v1428
      %v1468 = vunpack.c.l.b16 %v1429
      %v1469 = vunpack.c.l.b16 %v1430
      %v1470 = vunpack.c.l.b16 %v1431
      %v1471 = vunpack.c.l.b16 %v1432
      %v1472 = vunpack.c.l.b16 %v1433
      %v1473 = vunpack.c.l.b16 %v1434
      %v1474 = vunpack.c.l.b16 %v1435
      %v1475 = vunpack.c.l.b16 %v1436
      %v1476 = vunpack.c.l.b16 %v1437
      %v1477 = vunpack.c.l.b16 %v1438
      %v1478 = vunpack.c.l.b16 %v1439
      %v1479 = vunpack.c.l.b16 %v1440
      %v1480 = vunpack.c.l.b16 %v1441
      %v1481 = vpack.c.b16 %v1466, %v1465
      %v1482 = vpack.c.b16 %v1468, %v1467
      %v1483 = vpack.c.b16 %v1470, %v1469
      %v1484 = vpack.c.b16 %v1472, %v1471
      %v1485 = vpack.c.b16 %v1474, %v1473
      %v1486 = vpack.c.b16 %v1476, %v1475
      %v1487 = vpack.c.b16 %v1478, %v1477
      %v1488 = vpack.c.b16 %v1480, %v1479
      %1497 = vmatprep.subr.bf16.mxu0 0
      %1498 = vmatpush1.bf16.msra.mxu0 %v1488
      %1499 = vmatprep.subr.bf16.mxu0 0
      %1500 = vmatpush1.bf16.msra.mxu0 %v1487
      %1501 = vmatprep.subr.bf16.mxu0 0
      %1502 = vmatpush1.bf16.msra.mxu0 %v1486
      %1503 = vmatprep.subr.bf16.mxu0 0
      %1504 = vmatpush1.bf16.msra.mxu0 %v1485
      %1505 = vmatprep.subr.bf16.mxu0 0
      %1506 = vmatpush1.bf16.msra.mxu0 %v1484
      %1507 = vmatprep.subr.bf16.mxu0 0
      %1508 = vmatpush1.bf16.msra.mxu0 %v1483
      %1509 = vmatprep.subr.bf16.mxu0 0
      %1510 = vmatpush1.bf16.msra.mxu0 %v1482
      %1511 = vmatprep.subr.bf16.mxu0 0
      %1512 = vmatpush1.bf16.msra.mxu0 %v1481
      %1513 = vmatprep.subr.bf16.mxu0 0
      %1514 = vmatpush2.bf16.msra.mxu0 0
      %1515 = vmatprep.subr.bf16.mxu0 0
      %1516 = vmatpush2.bf16.msra.mxu0 0
      %1517 = vmatprep.subr.bf16.mxu0 0
      %1518 = vmatpush2.bf16.msra.mxu0 0
      %1519 = vmatprep.subr.bf16.mxu0 0
      %1520 = vmatpush2.bf16.msra.mxu0 0
      %1521 = vmatprep.subr.bf16.mxu0 0
      %1522 = vmatpush2.bf16.msra.mxu0 0
      %1523 = vmatprep.subr.bf16.mxu0 0
      %1524 = vmatpush2.bf16.msra.mxu0 0
      %1525 = vmatprep.subr.bf16.mxu0 0
      %1526 = vmatpush2.bf16.msra.mxu0 0
      %1527 = vmatprep.subr.bf16.mxu0 0
      %1528 = vmatpush2.bf16.msra.mxu0 0
      %1529 = vmatprep.mubr.bf16.mxu0 0
      %1530 = vmatmul.mubr.bf16.gmra.mxu0 %v1425
      %v1531 = vpop.f32.mrf.mxu0
      %v1532 = vadd.f32 %v1447, %v1531
      %v1533 = vpop.f32.mrf.mxu0
      %v1534 = vpop.f32.mrf.mxu0
      %v1535 = vpop.f32.mrf.mxu0
      %1536 = vdwg.mxu0
      %v1537 = vadd.f32 %v694, %v1532
      %v1538 = vld [vmem:[%s656] sm:$0x1]
      %v1539 = vld [vmem:[%s659] sm:$0x1]
      %1540 = vadd.xlane.f32.xlu0 %v1537
      %v1541 = vpop.xlane.xlu0 %1540
      %v1542 = vrcp.pop 128.0
      %v1543 = vmul.f32 %v1541, %v1542
      %v1544 = vsub.f32 %v1537, %v1543
      %v1545 = vmul.f32 %v1544, %v1544
      %1546 = vadd.xlane.f32.xlu0 %v1545
      %v1547 = vpop.xlane.xlu0 %1546
      %v1548 = vmul.f32 %v1547, %v1542
      %v1549 = vadd.f32 %v1548, 1e-05
      %v1550 = vrsqrt.pop %v1549
      %v1551 = vmul.f32 %v1544, %v1550
      %v1553 = vlaneseq
      %v1554 = vshrl.u32 %v1553, 7
      %v1555 = vsub.s32 0, %v1554
      %v1556 = vrot.slane %v1538, %v1555
      %v1558 = vmul.f32 %v1551, %v1556
      %v1560 = vlaneseq
      %v1561 = vshrl.u32 %v1560, 7
      %v1562 = vsub.s32 0, %v1561
      %v1563 = vrot.slane %v1539, %v1562
      %v1565 = vadd.f32 %v1558, %v1563
      %v1566 = vpack.c.bf16 %v1565, %v1565
      %v1567 = vld [vmem:[%s664] sm:$0xff]
      %v1568 = vld [vmem:[%s664 + $0x8] sm:$0xff]
      %v1569 = vld [vmem:[%s664 + $0x10] sm:$0xff]
      %v1570 = vld [vmem:[%s664 + $0x18] sm:$0xff]
      %v1571 = vld [vmem:[%s664 + $0x20] sm:$0xff]
      %v1572 = vld [vmem:[%s664 + $0x28] sm:$0xff]
      %v1573 = vld [vmem:[%s664 + $0x30] sm:$0xff]
      %v1574 = vld [vmem:[%s664 + $0x38] sm:$0xff]
      %v1575 = vld [vmem:[%s664 + $0x40] sm:$0xff]
      %v1576 = vld [vmem:[%s664 + $0x48] sm:$0xff]
      %v1577 = vld [vmem:[%s664 + $0x50] sm:$0xff]
      %v1578 = vld [vmem:[%s664 + $0x58] sm:$0xff]
      %v1579 = vld [vmem:[%s664 + $0x60] sm:$0xff]
      %v1580 = vld [vmem:[%s664 + $0x68] sm:$0xff]
      %v1581 = vld [vmem:[%s664 + $0x70] sm:$0xff]
      %v1582 = vld [vmem:[%s664 + $0x78] sm:$0xff]
      %v1583 = vld [vmem:[%s668] sm:$0x3]
      %v1585 = vlaneseq
      %v1586 = vshrl.u32 %v1585, 7
      %v1587 = vsub.s32 0, %v1586
      %v1588 = vrot.slane %v1583, %v1587
      %v1589 = vlaneseq
      %v1590 = vshrl.u32 %v1589, 7
      %v1591 = vsub.s32 1, %v1590
      %v1592 = vrot.slane %v1583, %v1591
      %v1611 = vunpack.c.l.b16 %v1567
      %v1612 = vunpack.c.h.b16 %v1567
      %v1613 = vunpack.c.l.b16 %v1568
      %v1614 = vunpack.c.h.b16 %v1568
      %v1615 = vunpack.c.l.b16 %v1569
      %v1616 = vunpack.c.h.b16 %v1569
      %v1617 = vunpack.c.l.b16 %v1570
      %v1618 = vunpack.c.h.b16 %v1570
      %v1619 = vunpack.c.l.b16 %v1571
      %v1620 = vunpack.c.h.b16 %v1571
      %v1621 = vunpack.c.l.b16 %v1572
      %v1622 = vunpack.c.h.b16 %v1572
      %v1623 = vunpack.c.l.b16 %v1573
      %v1624 = vunpack.c.h.b16 %v1573
      %v1625 = vunpack.c.l.b16 %v1574
      %v1626 = vunpack.c.h.b16 %v1574
      %v1627 = vunpack.c.l.b16 %v1575
      %v1628 = vunpack.c.h.b16 %v1575
      %v1629 = vunpack.c.l.b16 %v1576
      %v1630 = vunpack.c.h.b16 %v1576
      %v1631 = vunpack.c.l.b16 %v1577
      %v1632 = vunpack.c.h.b16 %v1577
      %v1633 = vunpack.c.l.b16 %v1578
      %v1634 = vunpack.c.h.b16 %v1578
      %v1635 = vunpack.c.l.b16 %v1579
      %v1636 = vunpack.c.h.b16 %v1579
      %v1637 = vunpack.c.l.b16 %v1580
      %v1638 = vunpack.c.h.b16 %v1580
      %v1639 = vunpack.c.l.b16 %v1581
      %v1640 = vunpack.c.h.b16 %v1581
      %v1641 = vunpack.c.l.b16 %v1582
      %v1642 = vunpack.c.h.b16 %v1582
      %v1643 = vpack.c.b16 %v1613, %v1611
      %v1644 = vpack.c.b16 %v1614, %v1612
      %v1645 = vpack.c.b16 %v1617, %v1615
      %v1646 = vpack.c.b16 %v1618, %v1616
      %v1647 = vpack.c.b16 %v1621, %v1619
      %v1648 = vpack.c.b16 %v1622, %v1620
      %v1649 = vpack.c.b16 %v1625, %v1623
      %v1650 = vpack.c.b16 %v1626, %v1624
      %v1651 = vpack.c.b16 %v1629, %v1627
      %v1652 = vpack.c.b16 %v1630, %v1628
      %v1653 = vpack.c.b16 %v1633, %v1631
      %v1654 = vpack.c.b16 %v1634, %v1632
      %v1655 = vpack.c.b16 %v1637, %v1635
      %v1656 = vpack.c.b16 %v1638, %v1636
      %v1657 = vpack.c.b16 %v1641, %v1639
      %v1658 = vpack.c.b16 %v1642, %v1640
      %1675 = vmatprep.subr.bf16.mxu0 %v1658
      %1676 = vmatpush1.bf16.msra.mxu0 %v1657
      %1677 = vmatprep.subr.bf16.mxu0 %v1656
      %1678 = vmatpush1.bf16.msra.mxu0 %v1655
      %1679 = vmatprep.subr.bf16.mxu0 %v1654
      %1680 = vmatpush1.bf16.msra.mxu0 %v1653
      %1681 = vmatprep.subr.bf16.mxu0 %v1652
      %1682 = vmatpush1.bf16.msra.mxu0 %v1651
      %1683 = vmatprep.subr.bf16.mxu0 %v1650
      %1684 = vmatpush1.bf16.msra.mxu0 %v1649
      %1685 = vmatprep.subr.bf16.mxu0 %v1648
      %1686 = vmatpush1.bf16.msra.mxu0 %v1647
      %1687 = vmatprep.subr.bf16.mxu0 %v1646
      %1688 = vmatpush1.bf16.msra.mxu0 %v1645
      %1689 = vmatprep.subr.bf16.mxu0 %v1644
      %1690 = vmatpush1.bf16.msra.mxu0 %v1643
      %1691 = vmatprep.subr.bf16.mxu0 0
      %1692 = vmatpush2.bf16.msra.mxu0 0
      %1693 = vmatprep.subr.bf16.mxu0 0
      %1694 = vmatpush2.bf16.msra.mxu0 0
      %1695 = vmatprep.subr.bf16.mxu0 0
      %1696 = vmatpush2.bf16.msra.mxu0 0
      %1697 = vmatprep.subr.bf16.mxu0 0
      %1698 = vmatpush2.bf16.msra.mxu0 0
      %1699 = vmatprep.subr.bf16.mxu0 0
      %1700 = vmatpush2.bf16.msra.mxu0 0
      %1701 = vmatprep.subr.bf16.mxu0 0
      %1702 = vmatpush2.bf16.msra.mxu0 0
      %1703 = vmatprep.subr.bf16.mxu0 0
      %1704 = vmatpush2.bf16.msra.mxu0 0
      %1705 = vmatprep.subr.bf16.mxu0 0
      %1706 = vmatpush2.bf16.msra.mxu0 0
      %1707 = vmatprep.mubr.bf16.mxu0 0
      %1708 = vmatmul.mubr.bf16.gmra.mxu0 %v1566
      %v1709 = vpop.f32.mrf.mxu0
      %v1710 = vadd.f32 %v1588, %v1709
      %v1711 = vpop.f32.mrf.mxu0
      %v1712 = vadd.f32 %v1592, %v1711
      %v1713 = vpop.f32.mrf.mxu0
      %v1714 = vpop.f32.mrf.mxu0
      %1715 = vdwg.mxu0
      %v1716 = vmax.f32 %v1710, 0.0
      %v1717 = vmax.f32 %v1712, 0.0
      %v1718 = vpack.c.bf16 %v1716, %v1716
      %v1719 = vpack.c.bf16 %v1717, %v1717
      %v1720 = vld [vmem:[%s673] sm:$0xf]
      %v1721 = vld [vmem:[%s673 + $0x4] sm:$0xf]
      %v1722 = vld [vmem:[%s673 + $0x8] sm:$0xf]
      %v1723 = vld [vmem:[%s673 + $0xc] sm:$0xf]
      %v1724 = vld [vmem:[%s673 + $0x10] sm:$0xf]
      %v1725 = vld [vmem:[%s673 + $0x14] sm:$0xf]
      %v1726 = vld [vmem:[%s673 + $0x18] sm:$0xf]
      %v1727 = vld [vmem:[%s673 + $0x1c] sm:$0xf]
      %v1728 = vld [vmem:[%s673 + $0x20] sm:$0xf]
      %v1729 = vld [vmem:[%s673 + $0x24] sm:$0xf]
      %v1730 = vld [vmem:[%s673 + $0x28] sm:$0xf]
      %v1731 = vld [vmem:[%s673 + $0x2c] sm:$0xf]
      %v1732 = vld [vmem:[%s673 + $0x30] sm:$0xf]
      %v1733 = vld [vmem:[%s673 + $0x34] sm:$0xf]
      %v1734 = vld [vmem:[%s673 + $0x38] sm:$0xf]
      %v1735 = vld [vmem:[%s673 + $0x3c] sm:$0xf]
      %v1736 = vld [vmem:[%s673 + $0x40] sm:$0xf]
      %v1737 = vld [vmem:[%s673 + $0x44] sm:$0xf]
      %v1738 = vld [vmem:[%s673 + $0x48] sm:$0xf]
      %v1739 = vld [vmem:[%s673 + $0x4c] sm:$0xf]
      %v1740 = vld [vmem:[%s673 + $0x50] sm:$0xf]
      %v1741 = vld [vmem:[%s673 + $0x54] sm:$0xf]
      %v1742 = vld [vmem:[%s673 + $0x58] sm:$0xf]
      %v1743 = vld [vmem:[%s673 + $0x5c] sm:$0xf]
      %v1744 = vld [vmem:[%s673 + $0x60] sm:$0xf]
      %v1745 = vld [vmem:[%s673 + $0x64] sm:$0xf]
      %v1746 = vld [vmem:[%s673 + $0x68] sm:$0xf]
      %v1747 = vld [vmem:[%s673 + $0x6c] sm:$0xf]
      %v1748 = vld [vmem:[%s673 + $0x70] sm:$0xf]
      %v1749 = vld [vmem:[%s673 + $0x74] sm:$0xf]
      %v1750 = vld [vmem:[%s673 + $0x78] sm:$0xf]
      %v1751 = vld [vmem:[%s673 + $0x7c] sm:$0xf]
      %v1752 = vld [vmem:[%s676] sm:$0x1]
      %v1754 = vlaneseq
      %v1755 = vshrl.u32 %v1754, 7
      %v1756 = vsub.s32 0, %v1755
      %v1757 = vrot.slane %v1752, %v1756
      %v1791 = vunpack.c.l.b16 %v1720
      %v1792 = vunpack.c.l.b16 %v1721
      %v1793 = vunpack.c.l.b16 %v1722
      %v1794 = vunpack.c.l.b16 %v1723
      %v1795 = vunpack.c.l.b16 %v1724
      %v1796 = vunpack.c.l.b16 %v1725
      %v1797 = vunpack.c.l.b16 %v1726
      %v1798 = vunpack.c.l.b16 %v1727
      %v1799 = vunpack.c.l.b16 %v1728
      %v1800 = vunpack.c.l.b16 %v1729
      %v1801 = vunpack.c.l.b16 %v1730
      %v1802 = vunpack.c.l.b16 %v1731
      %v1803 = vunpack.c.l.b16 %v1732
      %v1804 = vunpack.c.l.b16 %v1733
      %v1805 = vunpack.c.l.b16 %v1734
      %v1806 = vunpack.c.l.b16 %v1735
      %v1807 = vunpack.c.l.b16 %v1736
      %v1808 = vunpack.c.l.b16 %v1737
      %v1809 = vunpack.c.l.b16 %v1738
      %v1810 = vunpack.c.l.b16 %v1739
      %v1811 = vunpack.c.l.b16 %v1740
      %v1812 = vunpack.c.l.b16 %v1741
      %v1813 = vunpack.c.l.b16 %v1742
      %v1814 = vunpack.c.l.b16 %v1743
      %v1815 = vunpack.c.l.b16 %v1744
      %v1816 = vunpack.c.l.b16 %v1745
      %v1817 = vunpack.c.l.b16 %v1746
      %v1818 = vunpack.c.l.b16 %v1747
      %v1819 = vunpack.c.l.b16 %v1748
      %v1820 = vunpack.c.l.b16 %v1749
      %v1821 = vunpack.c.l.b16 %v1750
      %v1822 = vunpack.c.l.b16 %v1751
      %v1823 = vpack.c.b16 %v1792, %v1791
      %v1824 = vpack.c.b16 %v1794, %v1793
      %v1825 = vpack.c.b16 %v1796, %v1795
      %v1826 = vpack.c.b16 %v1798, %v1797
      %v1827 = vpack.c.b16 %v1800, %v1799
      %v1828 = vpack.c.b16 %v1802, %v1801
      %v1829 = vpack.c.b16 %v1804, %v1803
      %v1830 = vpack.c.b16 %v1806, %v1805
      %v1831 = vpack.c.b16 %v1808, %v1807
      %v1832 = vpack.c.b16 %v1810, %v1809
      %v1833 = vpack.c.b16 %v1812, %v1811
      %v1834 = vpack.c.b16 %v1814, %v1813
      %v1835 = vpack.c.b16 %v1816, %v1815
      %v1836 = vpack.c.b16 %v1818, %v1817
      %v1837 = vpack.c.b16 %v1820, %v1819
      %v1838 = vpack.c.b16 %v1822, %v1821
      %1855 = vmatprep.subr.bf16.mxu0 0
      %1856 = vmatpush1.bf16.msra.mxu0 %v1830
      %1857 = vmatprep.subr.bf16.mxu0 0
      %1858 = vmatpush1.bf16.msra.mxu0 %v1829
      %1859 = vmatprep.subr.bf16.mxu0 0
      %1860 = vmatpush1.bf16.msra.mxu0 %v1828
      %1861 = vmatprep.subr.bf16.mxu0 0
      %1862 = vmatpush1.bf16.msra.mxu0 %v1827
      %1863 = vmatprep.subr.bf16.mxu0 0
      %1864 = vmatpush1.bf16.msra.mxu0 %v1826
      %1865 = vmatprep.subr.bf16.mxu0 0
      %1866 = vmatpush1.bf16.msra.mxu0 %v1825
      %1867 = vmatprep.subr.bf16.mxu0 0
      %1868 = vmatpush1.bf16.msra.mxu0 %v1824
      %1869 = vmatprep.subr.bf16.mxu0 0
      %1870 = vmatpush1.bf16.msra.mxu0 %v1823
      %1871 = vmatprep.subr.bf16.mxu0 0
      %1872 = vmatpush2.bf16.msra.mxu0 %v1838
      %1873 = vmatprep.subr.bf16.mxu0 0
      %1874 = vmatpush2.bf16.msra.mxu0 %v1837
      %1875 = vmatprep.subr.bf16.mxu0 0
      %1876 = vmatpush2.bf16.msra.mxu0 %v1836
      %1877 = vmatprep.subr.bf16.mxu0 0
      %1878 = vmatpush2.bf16.msra.mxu0 %v1835
      %1879 = vmatprep.subr.bf16.mxu0 0
      %1880 = vmatpush2.bf16.msra.mxu0 %v1834
      %1881 = vmatprep.subr.bf16.mxu0 0
      %1882 = vmatpush2.bf16.msra.mxu0 %v1833
      %1883 = vmatprep.subr.bf16.mxu0 0
      %1884 = vmatpush2.bf16.msra.mxu0 %v1832
      %1885 = vmatprep.subr.bf16.mxu0 0
      %1886 = vmatpush2.bf16.msra.mxu0 %v1831
      %1887 = vmatprep.mubr.bf16.mxu0 %v1719
      %1888 = vmatmul.mubr.bf16.gmra.mxu0 %v1718
      %v1889 = vpop.f32.mrf.mxu0
      %v1890 = vadd.f32 %v1757, %v1889
      %v1891 = vpop.f32.mrf.mxu0
      %v1892 = vpop.f32.mrf.mxu0
      %v1893 = vpop.f32.mrf.mxu0
      %1894 = vdwg.mxu0
      %v1895 = vadd.f32 %v1565, %v1890
      %v1896 = vld [vmem:[%s679] sm:$0x1]
      %v1897 = vld [vmem:[%s682] sm:$0x1]
      %1898 = vadd.xlane.f32.xlu0 %v1895
      %v1899 = vpop.xlane.xlu0 %1898
      %v1900 = vmul.f32 %v1899, %v1542
      %v1901 = vsub.f32 %v1895, %v1900
      %v1902 = vmul.f32 %v1901, %v1901
      %1903 = vadd.xlane.f32.xlu0 %v1902
      %v1904 = vpop.xlane.xlu0 %1903
      %v1905 = vmul.f32 %v1904, %v1542
      %v1906 = vadd.f32 %v1905, 1e-05
      %v1907 = vrsqrt.pop %v1906
      %v1908 = vmul.f32 %v1901, %v1907
      %v1910 = vlaneseq
      %v1911 = vshrl.u32 %v1910, 7
      %v1912 = vsub.s32 0, %v1911
      %v1913 = vrot.slane %v1896, %v1912
      %v1915 = vmul.f32 %v1908, %v1913
      %v1917 = vlaneseq
      %v1918 = vshrl.u32 %v1917, 7
      %v1919 = vsub.s32 0, %v1918
      %v1920 = vrot.slane %v1897, %v1919
      %v1922 = vadd.f32 %v1915, %v1920
      %1923 = vst [vmem:[#allocation2] sm:$0xff] %v1922
      %p1924 = scmp.eq.s32.totalorder %s30, 2
      // Predicated region
      $region81: #{transformer_forward.2} parent=75 // pred_check
        %p1925 = pneg %p1924
      $region82: #{transformer_forward.2} parent=75 // pred_check_branch
        %1927 = sbr.rel (%p1925) target = $region84
      $region83: #{transformer_forward.2} parent=75 // pred_region
        %1928 = vst [vmem:[%s686] sm:$0xff] %v1922
      $region84: #{transformer_forward.2} parent=75 // pred_fallthru
        _
      %p1929 = scmp.lt.s32.totalorder %s29, 1
      %s1930 = scalar_select %p1929, %s29, 1
      %s1931 = smul.addr %s1930, 8
      %s1932 = scalar_lea.vmem %s14, %s1931
      // Predicated region
      $region85: #{transformer_forward.2} parent=75 // pred_check
        %p1933 = pneg %p419
      $region86: #{transformer_forward.2} parent=75 // pred_check_branch
        %1935 = sbr.rel (%p1933) target = $region88
      $region87: #{transformer_forward.2} parent=75 // pred_region
        _
      $region88: #{transformer_forward.2} parent=75 // pred_fallthru
        _
    $region76: #{transformer_forward.2} parent=5 // pred_fallthru
      _
    %p1936 = scmp.le.s32.totalorder 2, %s20
    // Predicated region
    $region89: #{transformer_forward.2} parent=5 // pred_check
      %p1937 = pneg %p1936
    $region90: #{transformer_forward.2} parent=5 // pred_check_branch
      %1939 = sbr.rel (%p1937) target = $region92
    $region91: #{transformer_forward.2} parent=5 // pred_region
      %s1940 = ssub.s32 %s20, 2
      // Predicated region
      $region93: #{transformer_forward.2} parent=91 // pred_check
        %p1941 = pneg %p425
      $region94: #{transformer_forward.2} parent=91 // pred_check_branch
        %1943 = sbr.rel (%p1941) target = $region96
      $region95: #{transformer_forward.2} parent=91 // pred_region
        %p1944 = scmp.lt.s32.totalorder %s31, 1
        %s1945 = scalar_select %p1944, %s31, 1
        %s1946 = smul.addr %s1945, 8
        %s1947 = scalar_lea.vmem %s14, %s1946
      $region96: #{transformer_forward.2} parent=91 // pred_fallthru
        _
    $region92: #{transformer_forward.2} parent=5 // pred_fallthru
      _
  $region6: #{transformer_forward.2} parent=0 // loop_footer
    %s24 = sadd.s32 1, %s20
  $region7: #{transformer_forward.2} parent=0 // loop_footer_branch
    %19 = sbr.rel target = $region3
  $region8: #{transformer_forward.2} parent=0 // loop_exit
    _

// kernel: transformer_forward.3
$region0: #{transformer_forward.3}
  #allocation0 [shape = 'u32[]', space=smem, size = 0x4, offset = 0x4, fixed_abs, tag = 'smem constant byte address 0x4 - core index']
  #allocation1 [shape = 'u32[144,128]{1,0:T(1,128)}', space=vmem, size = 0x12000, scoped, tag = 'internal scratch']
  #allocation2 [shape = 'f32[8,128]{1,0:T(8,128)}', space=vmem, size = 0x1000, scoped, tag = 'scratch operand']
  #allocation3 [shape = 'f32[8,128]{1,0:T(8,128)}', space=vmem, size = 0x1000, scoped, tag = 'scratch operand']
  %s0 = inlined_call_operand.vmem [shape: f32[2,8,128], index: 0, kind: input, shape index: {}]
  %s1 = inlined_call_operand.vmem [shape: f32[2,8,128], index: 1, kind: input, shape index: {}]
  %s2 = inlined_call_operand.vmem [shape: f32[2,1,8], index: 2, kind: input, shape index: {}]
  %s3 = inlined_call_operand.vmem [shape: f32[2,1,8], index: 3, kind: input, shape index: {}]
  %s4 = inlined_call_operand.vmem [shape: bf16[3,128,384], index: 4, kind: input, shape index: {}]
  %s5 = inlined_call_operand.vmem [shape: f32[3,1,384], index: 5, kind: input, shape index: {}]
  %s6 = inlined_call_operand.hbm [shape: bf16[3,128,128], index: 6, kind: input, shape index: {}]
  %s7 = inlined_call_operand.hbm [shape: f32[3,1,128], index: 7, kind: input, shape index: {}]
  %s8 = inlined_call_operand.hbm [shape: f32[3,1,128], index: 8, kind: input, shape index: {}]
  %s9 = inlined_call_operand.hbm [shape: f32[3,1,128], index: 9, kind: input, shape index: {}]
  %s10 = inlined_call_operand.hbm [shape: bf16[3,128,128], index: 10, kind: input, shape index: {}]
  %s11 = inlined_call_operand.vmem [shape: f32[3,1,128], index: 11, kind: input, shape index: {}]
  %s12 = inlined_call_operand.vmem [shape: bf16[3,128,256], index: 12, kind: input, shape index: {}]
  %s13 = inlined_call_operand.vmem [shape: f32[3,1,256], index: 13, kind: input, shape index: {}]
  %s14 = inlined_call_operand.hbm [shape: bf16[3,128,128], index: 14, kind: input, shape index: {}]
  %s15 = inlined_call_operand.vmem [shape: f32[3,1,128], index: 15, kind: input, shape index: {}]
  %s16 = inlined_call_operand.hbm [shape: f32[3,1,128], index: 16, kind: input, shape index: {}]
  %s17 = inlined_call_operand.hbm [shape: f32[3,1,128], index: 17, kind: input, shape index: {}]
  %s18 = inlined_call_operand.vmem [shape: bf16[3,128,256], index: 18, kind: input, shape index: {}]
  %s19 = inlined_call_operand.vmem [shape: f32[3,1,256], index: 19, kind: input, shape index: {}]
  %s20 = inlined_call_operand.vmem [shape: bf16[3,256,128], index: 20, kind: input, shape index: {}]
  %s21 = inlined_call_operand.vmem [shape: f32[3,1,128], index: 21, kind: input, shape index: {}]
  %s22 = inlined_call_operand.hbm [shape: f32[3,1,128], index: 22, kind: input, shape index: {}]
  %s23 = inlined_call_operand.hbm [shape: f32[3,1,128], index: 23, kind: input, shape index: {}]
  %s24 = inlined_call_operand.hbm [shape: bf16[128,128], index: 24, kind: input, shape index: {}]
  %s25 = inlined_call_operand.vmem [shape: f32[1,128], index: 25, kind: input, shape index: {}]
  %s26 = inlined_call_operand.hbm [shape: f32[2,8,128], index: 26, kind: output, shape index: {}]
  %s27 = sld [smem:[#allocation0]]
  $region189: #{transformer_forward.3} parent=0
    _
  %s29 = ssub.s32 1, %s27
  %s30 = scalar_select 0, %s29, %s27
  $region1: #{transformer_forward.3} parent=0
    #allocation4 [shape = 'u8[65536]{0}', space=vmem, size = 0x10000, scoped, tag = 'input window, operand 6']
    #allocation5 [shape = 's32[2]{0}', space=sflag, size = 0x8, scoped, tag = 'scoped memory for transformer_forward.3']
    #allocation6 [shape = 's32[2]{0}', space=sflag, size = 0x8, scoped, tag = 'scoped memory for transformer_forward.3']
    #allocation7 [shape = 'u8[1024]{0}', space=vmem, size = 0x400, scoped, tag = 'input window, operand 7']
    #allocation8 [shape = 's32[2]{0}', space=sflag, size = 0x8, scoped, tag = 'scoped memory for transformer_forward.3']
    #allocation9 [shape = 'u8[1024]{0}', space=vmem, size = 0x400, scoped, tag = 'input window, operand 8']
    #allocation10 [shape = 'u8[1024]{0}', space=vmem, size = 0x400, scoped, tag = 'input window, operand 9']
    #allocation11 [shape = 's32[2]{0}', space=sflag, size = 0x8, scoped, tag = 'scoped memory for transformer_forward.3']
    #allocation12 [shape = 'u8[65536]{0}', space=vmem, size = 0x10000, scoped, tag = 'input window, operand 10']
    #allocation13 [shape = 'u8[65536]{0}', space=vmem, size = 0x10000, scoped, tag = 'input window, operand 14']
    #allocation14 [shape = 's32[2]{0}', space=sflag, size = 0x8, scoped, tag = 'scoped memory for transformer_forward.3']
    #allocation15 [shape = 'u8[1024]{0}', space=vmem, size = 0x400, scoped, tag = 'input window, operand 16']
    #allocation16 [shape = 'u8[1024]{0}', space=vmem, size = 0x400, scoped, tag = 'input window, operand 17']
    #allocation17 [shape = 's32[2]{0}', space=sflag, size = 0x8, scoped, tag = 'scoped memory for transformer_forward.3']
    #allocation18 [shape = 'u8[1024]{0}', space=vmem, size = 0x400, scoped, tag = 'input window, operand 22']
    #allocation19 [shape = 'u8[1024]{0}', space=vmem, size = 0x400, scoped, tag = 'input window, operand 23']
    #allocation20 [shape = 's32[2]{0}', space=sflag, size = 0x8, scoped, tag = 'scoped memory for transformer_forward.3']
    #allocation21 [shape = 'u8[32768]{0}', space=vmem, size = 0x8000, scoped, tag = 'input window, operand 24, single buffered']
    #allocation22 [shape = 'u8[8192]{0}', space=vmem, size = 0x2000, scoped, tag = 'output window, operand 0']
    %31 = vsyncpa [#allocation5], 0
    %s32 = scalar_lea.sflag [#allocation5], 1
    %33 = vsyncpa %s32, 0
    %34 = vsyncpa [#allocation8], 0
    %s35 = scalar_lea.sflag [#allocation8], 1
    %36 = vsyncpa %s35, 0
    %37 = vsyncpa [#allocation11], 0
    %s38 = scalar_lea.sflag [#allocation11], 1
    %39 = vsyncpa %s38, 0
    %40 = vsyncpa [#allocation14], 0
    %s41 = scalar_lea.sflag [#allocation14], 1
    %42 = vsyncpa %s41, 0
    %43 = vsyncpa [#allocation17], 0
    %s44 = scalar_lea.sflag [#allocation17], 1
    %45 = vsyncpa %s44, 0
    %46 = vsyncpa [#allocation20], 0
    %s47 = scalar_lea.sflag [#allocation20], 1
    %48 = vsyncpa %s47, 0
    %49 = vsyncpa [#allocation6], 0
    %s50 = scalar_lea.sflag [#allocation6], 1
    %51 = vsyncpa %s50, 0
    loop: start=0, step=1, limit=8
    $region2: #{transformer_forward.3} parent=1 // loop_pre_header
      _
    $region3: #{transformer_forward.3} parent=1 // loop_header
      %s53 = sphi 0, %s57
      %p54 = scmp.ge.s32.totalorder %s53, 8
      %s60 = sphi 0, %s72
      %s61 = sphi 0, %s68
      %s62 = sphi 0, %s60
      %s63 = sphi 0, %s61
      %s64 = sphi 0, %s62
      %s65 = sphi 0, %s63
      %s75 = sphi 0, %s77
      %s78 = sphi 0, %s75
      %s79 = sphi 0, %s78
      %s95 = sphi 0, %s79
      %s101 = sphi 0, %s103
      %s104 = sphi 0, %s101
      %s105 = sphi 0, %s104
      %s121 = sphi 0, %s105
      %s127 = sphi 0, %s129
      %s130 = sphi 0, %s127
      %s131 = sphi 0, %s130
      %s147 = sphi 0, %s131
      %s153 = sphi 0, %s155
      %s156 = sphi 0, %s153
      %s157 = sphi 0, %s156
      %s173 = sphi 0, %s157
      %s179 = sphi 0, %s181
      %s182 = sphi 0, %s179
      %s183 = sphi 0, %s182
      %s199 = sphi 0, %s183
      %s205 = sphi 0, %s207
      %s208 = sphi 0, %s205
      %s209 = sphi 0, %s208
      %s225 = sphi 0, %s209
      %s231 = sphi 0, %s233
      %s234 = sphi 0, %s231
      %s235 = sphi 0, %s234
      %s251 = sphi 0, %s235
      %s257 = sphi 0, %s259
      %s260 = sphi 0, %s257
      %s261 = sphi 0, %s260
      %s277 = sphi 0, %s261
      %s283 = sphi 0, %s285
      %s286 = sphi 0, %s283
      %s287 = sphi 0, %s286
      %s303 = sphi 0, %s287
      %s309 = sphi 0, %s311
      %s312 = sphi 0, %s309
      %s313 = sphi 0, %s312
      %s329 = sphi 0, %s313
      %s335 = sphi 0, %s337
      %s338 = sphi 0, %s335
      %s339 = sphi 0, %s338
      %s355 = sphi 0, %s339
      %s361 = sphi 0, %s363
      %s364 = sphi 0, %s361
      %s365 = sphi 0, %s364
      %s381 = sphi 0, %s365
      %s387 = sphi 0, %s389
      %s390 = sphi 0, %s387
      %s391 = sphi 0, %s390
      %s407 = sphi 0, %s391
      %s413 = sphi 0, %s415
      %s416 = sphi 0, %s413
      %s417 = sphi 0, %s416
      %s433 = sphi 0, %s417
      %s439 = sphi 0, %s441
      %s442 = sphi 0, %s439
      %s443 = sphi 0, %s442
      %s459 = sphi 0, %s443
      %s465 = sphi 0, %s467
      %s468 = sphi 0, %s465
      %s469 = sphi 0, %s468
      %s485 = sphi 0, %s469
      %s491 = sphi 0, %s493
      %s494 = sphi 0, %s491
      %s495 = sphi 0, %s494
      %s511 = sphi 0, %s495
      %s517 = sphi 0, %s519
      %s520 = sphi 0, %s517
      %s521 = sphi 0, %s520
      %s537 = sphi 0, %s521
      %s543 = sphi 0, %s545
      %s546 = sphi 0, %s543
      %s547 = sphi 0, %s546
      %s563 = sphi 0, %s547
      %s569 = sphi 0, %s571
      %s572 = sphi 0, %s569
      %s573 = sphi 0, %s572
      %s589 = sphi 0, %s573
      %s595 = sphi 0, %s597
      %s598 = sphi 0, %s595
      %s599 = sphi 0, %s598
      %s615 = sphi 0, %s599
      %s621 = sphi 0, %s623
      %s624 = sphi 0, %s621
      %s625 = sphi 0, %s624
      %s641 = sphi 0, %s625
      %s647 = sphi 0, %s649
      %s650 = sphi 0, %s647
      %s651 = sphi 0, %s650
      %s667 = sphi 0, %s651
      %s673 = sphi 0, %s675
      %s676 = sphi 0, %s673
      %s677 = sphi 0, %s676
      %s693 = sphi 0, %s677
      %s697 = sphi 0, %s697
      %s699 = sphi 0, %s697
      %s700 = sphi 0, %s699
      %s714 = sphi 0, %s700
      %s718 = sphi 0, %s718
      %s720 = sphi 0, %s718
      %s721 = sphi 0, %s720
      %s735 = sphi 0, %s721
      %s741 = sphi 0, %s743
      %s744 = sphi 0, %s741
      %s745 = sphi 0, %s744
      %s761 = sphi 0, %s745
    $region4: #{transformer_forward.3} parent=1 // loop_header_branch
      %56 = sbr.rel (%p54) target = $region8
    $region5: #{transformer_forward.3} parent=1 // loop_body
      %s58 = ssub.s32 %s53, 1
      %s59 = ssub.s32 %s53, 2
      %s66 = sadd.s32 1, %s61
      %p67 = scmp.ge.s32.totalorder %s66, 3
      %s68 = scalar_select %p67, 0, %s66
      %s69 = sadd.s32 1, %s60
      %s70 = scalar_select %p67, %s69, %s60
      %p71 = scmp.ge.s32.totalorder %s70, 2
      %s72 = scalar_select %p71, 0, %s70
      %s73 = ssub.s32 %s60, %s72
      %p74 = scmp.eq.s32.totalorder %s73, 0
      %s76 = sadd.s32 %s75, 1
      %s77 = scalar_select %p74, %s75, %s76
      %p80 = pneg %p74
      %p81 = scmp.eq.s32.totalorder %s53, 5
      %p82 = por %p80, %p81
      %p83 = scmp.ne.s32.totalorder %s75, %s78
      %p84 = scmp.eq.s32.totalorder %s53, 0
      %p85 = por %p83, %p84
      %p86 = scmp.ne.s32.totalorder %s75, %s78
      %p87 = scmp.eq.s32.totalorder %s58, 5
      %p88 = por %p86, %p87
      %p89 = scmp.ne.s32.totalorder %s78, %s79
      %p90 = scmp.eq.s32.totalorder %s58, 0
      %p91 = por %p89, %p90
      %p92 = scmp.ne.s32.totalorder %s78, %s79
      %p93 = scmp.eq.s32.totalorder %s59, 5
      %p94 = por %p92, %p93
      %p96 = scmp.ne.s32.totalorder %s79, %s95
      %p97 = scmp.eq.s32.totalorder %s59, 0
      %p98 = por %p96, %p97
      %s99 = ssub.s32 %s60, %s72
      %p100 = scmp.eq.s32.totalorder %s99, 0
      %s102 = sadd.s32 %s101, 1
      %s103 = scalar_select %p100, %s101, %s102
      %p106 = pneg %p100
      %p107 = scmp.eq.s32.totalorder %s53, 5
      %p108 = por %p106, %p107
      %p109 = scmp.ne.s32.totalorder %s101, %s104
      %p110 = scmp.eq.s32.totalorder %s53, 0
      %p111 = por %p109, %p110
      %p112 = scmp.ne.s32.totalorder %s101, %s104
      %p113 = scmp.eq.s32.totalorder %s58, 5
      %p114 = por %p112, %p113
      %p115 = scmp.ne.s32.totalorder %s104, %s105
      %p116 = scmp.eq.s32.totalorder %s58, 0
      %p117 = por %p115, %p116
      %p118 = scmp.ne.s32.totalorder %s104, %s105
      %p119 = scmp.eq.s32.totalorder %s59, 5
      %p120 = por %p118, %p119
      %p122 = scmp.ne.s32.totalorder %s105, %s121
      %p123 = scmp.eq.s32.totalorder %s59, 0
      %p124 = por %p122, %p123
      %s125 = ssub.s32 %s60, %s72
      %p126 = scmp.eq.s32.totalorder %s125, 0
      %s128 = sadd.s32 %s127, 1
      %s129 = scalar_select %p126, %s127, %s128
      %p132 = pneg %p126
      %p133 = scmp.eq.s32.totalorder %s53, 5
      %p134 = por %p132, %p133
      %p135 = scmp.ne.s32.totalorder %s127, %s130
      %p136 = scmp.eq.s32.totalorder %s53, 0
      %p137 = por %p135, %p136
      %p138 = scmp.ne.s32.totalorder %s127, %s130
      %p139 = scmp.eq.s32.totalorder %s58, 5
      %p140 = por %p138, %p139
      %p141 = scmp.ne.s32.totalorder %s130, %s131
      %p142 = scmp.eq.s32.totalorder %s58, 0
      %p143 = por %p141, %p142
      %p144 = scmp.ne.s32.totalorder %s130, %s131
      %p145 = scmp.eq.s32.totalorder %s59, 5
      %p146 = por %p144, %p145
      %p148 = scmp.ne.s32.totalorder %s131, %s147
      %p149 = scmp.eq.s32.totalorder %s59, 0
      %p150 = por %p148, %p149
      %s151 = ssub.s32 %s60, %s72
      %p152 = scmp.eq.s32.totalorder %s151, 0
      %s154 = sadd.s32 %s153, 1
      %s155 = scalar_select %p152, %s153, %s154
      %p158 = pneg %p152
      %p159 = scmp.eq.s32.totalorder %s53, 5
      %p160 = por %p158, %p159
      %p161 = scmp.ne.s32.totalorder %s153, %s156
      %p162 = scmp.eq.s32.totalorder %s53, 0
      %p163 = por %p161, %p162
      %p164 = scmp.ne.s32.totalorder %s153, %s156
      %p165 = scmp.eq.s32.totalorder %s58, 5
      %p166 = por %p164, %p165
      %p167 = scmp.ne.s32.totalorder %s156, %s157
      %p168 = scmp.eq.s32.totalorder %s58, 0
      %p169 = por %p167, %p168
      %p170 = scmp.ne.s32.totalorder %s156, %s157
      %p171 = scmp.eq.s32.totalorder %s59, 5
      %p172 = por %p170, %p171
      %p174 = scmp.ne.s32.totalorder %s157, %s173
      %p175 = scmp.eq.s32.totalorder %s59, 0
      %p176 = por %p174, %p175
      %s177 = ssub.s32 %s61, %s68
      %p178 = scmp.eq.s32.totalorder %s177, 0
      %s180 = sadd.s32 %s179, 1
      %s181 = scalar_select %p178, %s179, %s180
      %p184 = pneg %p178
      %p185 = scmp.eq.s32.totalorder %s53, 5
      %p186 = por %p184, %p185
      %p187 = scmp.ne.s32.totalorder %s179, %s182
      %p188 = scmp.eq.s32.totalorder %s53, 0
      %p189 = por %p187, %p188
      %p190 = scmp.ne.s32.totalorder %s179, %s182
      %p191 = scmp.eq.s32.totalorder %s58, 5
      %p192 = por %p190, %p191
      %p193 = scmp.ne.s32.totalorder %s182, %s183
      %p194 = scmp.eq.s32.totalorder %s58, 0
      %p195 = por %p193, %p194
      %p196 = scmp.ne.s32.totalorder %s182, %s183
      %p197 = scmp.eq.s32.totalorder %s59, 5
      %p198 = por %p196, %p197
      %p200 = scmp.ne.s32.totalorder %s183, %s199
      %p201 = scmp.eq.s32.totalorder %s59, 0
      %p202 = por %p200, %p201
      %s203 = ssub.s32 %s61, %s68
      %p204 = scmp.eq.s32.totalorder %s203, 0
      %s206 = sadd.s32 %s205, 1
      %s207 = scalar_select %p204, %s205, %s206
      %p210 = pneg %p204
      %p211 = scmp.eq.s32.totalorder %s53, 5
      %p212 = por %p210, %p211
      %p213 = scmp.ne.s32.totalorder %s205, %s208
      %p214 = scmp.eq.s32.totalorder %s53, 0
      %p215 = por %p213, %p214
      %p216 = scmp.ne.s32.totalorder %s205, %s208
      %p217 = scmp.eq.s32.totalorder %s58, 5
      %p218 = por %p216, %p217
      %p219 = scmp.ne.s32.totalorder %s208, %s209
      %p220 = scmp.eq.s32.totalorder %s58, 0
      %p221 = por %p219, %p220
      %p222 = scmp.ne.s32.totalorder %s208, %s209
      %p223 = scmp.eq.s32.totalorder %s59, 5
      %p224 = por %p222, %p223
      %p226 = scmp.ne.s32.totalorder %s209, %s225
      %p227 = scmp.eq.s32.totalorder %s59, 0
      %p228 = por %p226, %p227
      %s229 = ssub.s32 %s61, %s68
      %p230 = scmp.eq.s32.totalorder %s229, 0
      %s232 = sadd.s32 %s231, 1
      %s233 = scalar_select %p230, %s231, %s232
      %p236 = pneg %p230
      %p237 = scmp.eq.s32.totalorder %s53, 5
      %p238 = por %p236, %p237
      %p239 = scmp.ne.s32.totalorder %s231, %s234
      %p240 = scmp.eq.s32.totalorder %s53, 0
      %p241 = por %p239, %p240
      %p242 = scmp.ne.s32.totalorder %s231, %s234
      %p243 = scmp.eq.s32.totalorder %s58, 5
      %p244 = por %p242, %p243
      %p245 = scmp.ne.s32.totalorder %s234, %s235
      %p246 = scmp.eq.s32.totalorder %s58, 0
      %p247 = por %p245, %p246
      %p248 = scmp.ne.s32.totalorder %s234, %s235
      %p249 = scmp.eq.s32.totalorder %s59, 5
      %p250 = por %p248, %p249
      %p252 = scmp.ne.s32.totalorder %s235, %s251
      %p253 = scmp.eq.s32.totalorder %s59, 0
      %p254 = por %p252, %p253
      %s255 = ssub.s32 %s61, %s68
      %p256 = scmp.eq.s32.totalorder %s255, 0
      %s258 = sadd.s32 %s257, 1
      %s259 = scalar_select %p256, %s257, %s258
      %p262 = pneg %p256
      %p263 = scmp.eq.s32.totalorder %s53, 5
      %p264 = por %p262, %p263
      %p265 = scmp.ne.s32.totalorder %s257, %s260
      %p266 = scmp.eq.s32.totalorder %s53, 0
      %p267 = por %p265, %p266
      %p268 = scmp.ne.s32.totalorder %s257, %s260
      %p269 = scmp.eq.s32.totalorder %s58, 5
      %p270 = por %p268, %p269
      %p271 = scmp.ne.s32.totalorder %s260, %s261
      %p272 = scmp.eq.s32.totalorder %s58, 0
      %p273 = por %p271, %p272
      %p274 = scmp.ne.s32.totalorder %s260, %s261
      %p275 = scmp.eq.s32.totalorder %s59, 5
      %p276 = por %p274, %p275
      %p278 = scmp.ne.s32.totalorder %s261, %s277
      %p279 = scmp.eq.s32.totalorder %s59, 0
      %p280 = por %p278, %p279
      %s281 = ssub.s32 %s61, %s68
      %p282 = scmp.eq.s32.totalorder %s281, 0
      %s284 = sadd.s32 %s283, 1
      %s285 = scalar_select %p282, %s283, %s284
      %p288 = pneg %p282
      %p289 = scmp.eq.s32.totalorder %s53, 5
      %p290 = por %p288, %p289
      %p291 = scmp.ne.s32.totalorder %s283, %s286
      %p292 = scmp.eq.s32.totalorder %s53, 0
      %p293 = por %p291, %p292
      %p294 = scmp.ne.s32.totalorder %s283, %s286
      %p295 = scmp.eq.s32.totalorder %s58, 5
      %p296 = por %p294, %p295
      %p297 = scmp.ne.s32.totalorder %s286, %s287
      %p298 = scmp.eq.s32.totalorder %s58, 0
      %p299 = por %p297, %p298
      %p300 = scmp.ne.s32.totalorder %s286, %s287
      %p301 = scmp.eq.s32.totalorder %s59, 5
      %p302 = por %p300, %p301
      %p304 = scmp.ne.s32.totalorder %s287, %s303
      %p305 = scmp.eq.s32.totalorder %s59, 0
      %p306 = por %p304, %p305
      %s307 = ssub.s32 %s61, %s68
      %p308 = scmp.eq.s32.totalorder %s307, 0
      %s310 = sadd.s32 %s309, 1
      %s311 = scalar_select %p308, %s309, %s310
      %p314 = pneg %p308
      %p315 = scmp.eq.s32.totalorder %s53, 5
      %p316 = por %p314, %p315
      %p317 = scmp.ne.s32.totalorder %s309, %s312
      %p318 = scmp.eq.s32.totalorder %s53, 0
      %p319 = por %p317, %p318
      %p320 = scmp.ne.s32.totalorder %s309, %s312
      %p321 = scmp.eq.s32.totalorder %s58, 5
      %p322 = por %p320, %p321
      %p323 = scmp.ne.s32.totalorder %s312, %s313
      %p324 = scmp.eq.s32.totalorder %s58, 0
      %p325 = por %p323, %p324
      %p326 = scmp.ne.s32.totalorder %s312, %s313
      %p327 = scmp.eq.s32.totalorder %s59, 5
      %p328 = por %p326, %p327
      %p330 = scmp.ne.s32.totalorder %s313, %s329
      %p331 = scmp.eq.s32.totalorder %s59, 0
      %p332 = por %p330, %p331
      %s333 = ssub.s32 %s61, %s68
      %p334 = scmp.eq.s32.totalorder %s333, 0
      %s336 = sadd.s32 %s335, 1
      %s337 = scalar_select %p334, %s335, %s336
      %p340 = pneg %p334
      %p341 = scmp.eq.s32.totalorder %s53, 5
      %p342 = por %p340, %p341
      %p343 = scmp.ne.s32.totalorder %s335, %s338
      %p344 = scmp.eq.s32.totalorder %s53, 0
      %p345 = por %p343, %p344
      %p346 = scmp.ne.s32.totalorder %s335, %s338
      %p347 = scmp.eq.s32.totalorder %s58, 5
      %p348 = por %p346, %p347
      %p349 = scmp.ne.s32.totalorder %s338, %s339
      %p350 = scmp.eq.s32.totalorder %s58, 0
      %p351 = por %p349, %p350
      %p352 = scmp.ne.s32.totalorder %s338, %s339
      %p353 = scmp.eq.s32.totalorder %s59, 5
      %p354 = por %p352, %p353
      %p356 = scmp.ne.s32.totalorder %s339, %s355
      %p357 = scmp.eq.s32.totalorder %s59, 0
      %p358 = por %p356, %p357
      %s359 = ssub.s32 %s61, %s68
      %p360 = scmp.eq.s32.totalorder %s359, 0
      %s362 = sadd.s32 %s361, 1
      %s363 = scalar_select %p360, %s361, %s362
      %p366 = pneg %p360
      %p367 = scmp.eq.s32.totalorder %s53, 5
      %p368 = por %p366, %p367
      %p369 = scmp.ne.s32.totalorder %s361, %s364
      %p370 = scmp.eq.s32.totalorder %s53, 0
      %p371 = por %p369, %p370
      %p372 = scmp.ne.s32.totalorder %s361, %s364
      %p373 = scmp.eq.s32.totalorder %s58, 5
      %p374 = por %p372, %p373
      %p375 = scmp.ne.s32.totalorder %s364, %s365
      %p376 = scmp.eq.s32.totalorder %s58, 0
      %p377 = por %p375, %p376
      %p378 = scmp.ne.s32.totalorder %s364, %s365
      %p379 = scmp.eq.s32.totalorder %s59, 5
      %p380 = por %p378, %p379
      %p382 = scmp.ne.s32.totalorder %s365, %s381
      %p383 = scmp.eq.s32.totalorder %s59, 0
      %p384 = por %p382, %p383
      %s385 = ssub.s32 %s61, %s68
      %p386 = scmp.eq.s32.totalorder %s385, 0
      %s388 = sadd.s32 %s387, 1
      %s389 = scalar_select %p386, %s387, %s388
      %p392 = pneg %p386
      %p393 = scmp.eq.s32.totalorder %s53, 5
      %p394 = por %p392, %p393
      %p395 = scmp.ne.s32.totalorder %s387, %s390
      %p396 = scmp.eq.s32.totalorder %s53, 0
      %p397 = por %p395, %p396
      %p398 = scmp.ne.s32.totalorder %s387, %s390
      %p399 = scmp.eq.s32.totalorder %s58, 5
      %p400 = por %p398, %p399
      %p401 = scmp.ne.s32.totalorder %s390, %s391
      %p402 = scmp.eq.s32.totalorder %s58, 0
      %p403 = por %p401, %p402
      %p404 = scmp.ne.s32.totalorder %s390, %s391
      %p405 = scmp.eq.s32.totalorder %s59, 5
      %p406 = por %p404, %p405
      %p408 = scmp.ne.s32.totalorder %s391, %s407
      %p409 = scmp.eq.s32.totalorder %s59, 0
      %p410 = por %p408, %p409
      %s411 = ssub.s32 %s61, %s68
      %p412 = scmp.eq.s32.totalorder %s411, 0
      %s414 = sadd.s32 %s413, 1
      %s415 = scalar_select %p412, %s413, %s414
      %p418 = pneg %p412
      %p419 = scmp.eq.s32.totalorder %s53, 5
      %p420 = por %p418, %p419
      %p421 = scmp.ne.s32.totalorder %s413, %s416
      %p422 = scmp.eq.s32.totalorder %s53, 0
      %p423 = por %p421, %p422
      %p424 = scmp.ne.s32.totalorder %s413, %s416
      %p425 = scmp.eq.s32.totalorder %s58, 5
      %p426 = por %p424, %p425
      %p427 = scmp.ne.s32.totalorder %s416, %s417
      %p428 = scmp.eq.s32.totalorder %s58, 0
      %p429 = por %p427, %p428
      %p430 = scmp.ne.s32.totalorder %s416, %s417
      %p431 = scmp.eq.s32.totalorder %s59, 5
      %p432 = por %p430, %p431
      %p434 = scmp.ne.s32.totalorder %s417, %s433
      %p435 = scmp.eq.s32.totalorder %s59, 0
      %p436 = por %p434, %p435
      %s437 = ssub.s32 %s61, %s68
      %p438 = scmp.eq.s32.totalorder %s437, 0
      %s440 = sadd.s32 %s439, 1
      %s441 = scalar_select %p438, %s439, %s440
      %p444 = pneg %p438
      %p445 = scmp.eq.s32.totalorder %s53, 5
      %p446 = por %p444, %p445
      %p447 = scmp.ne.s32.totalorder %s439, %s442
      %p448 = scmp.eq.s32.totalorder %s53, 0
      %p449 = por %p447, %p448
      %p450 = scmp.ne.s32.totalorder %s439, %s442
      %p451 = scmp.eq.s32.totalorder %s58, 5
      %p452 = por %p450, %p451
      %p453 = scmp.ne.s32.totalorder %s442, %s443
      %p454 = scmp.eq.s32.totalorder %s58, 0
      %p455 = por %p453, %p454
      %p456 = scmp.ne.s32.totalorder %s442, %s443
      %p457 = scmp.eq.s32.totalorder %s59, 5
      %p458 = por %p456, %p457
      %p460 = scmp.ne.s32.totalorder %s443, %s459
      %p461 = scmp.eq.s32.totalorder %s59, 0
      %p462 = por %p460, %p461
      %s463 = ssub.s32 %s61, %s68
      %p464 = scmp.eq.s32.totalorder %s463, 0
      %s466 = sadd.s32 %s465, 1
      %s467 = scalar_select %p464, %s465, %s466
      %p470 = pneg %p464
      %p471 = scmp.eq.s32.totalorder %s53, 5
      %p472 = por %p470, %p471
      %p473 = scmp.ne.s32.totalorder %s465, %s468
      %p474 = scmp.eq.s32.totalorder %s53, 0
      %p475 = por %p473, %p474
      %p476 = scmp.ne.s32.totalorder %s465, %s468
      %p477 = scmp.eq.s32.totalorder %s58, 5
      %p478 = por %p476, %p477
      %p479 = scmp.ne.s32.totalorder %s468, %s469
      %p480 = scmp.eq.s32.totalorder %s58, 0
      %p481 = por %p479, %p480
      %p482 = scmp.ne.s32.totalorder %s468, %s469
      %p483 = scmp.eq.s32.totalorder %s59, 5
      %p484 = por %p482, %p483
      %p486 = scmp.ne.s32.totalorder %s469, %s485
      %p487 = scmp.eq.s32.totalorder %s59, 0
      %p488 = por %p486, %p487
      %s489 = ssub.s32 %s61, %s68
      %p490 = scmp.eq.s32.totalorder %s489, 0
      %s492 = sadd.s32 %s491, 1
      %s493 = scalar_select %p490, %s491, %s492
      %p496 = pneg %p490
      %p497 = scmp.eq.s32.totalorder %s53, 5
      %p498 = por %p496, %p497
      %p499 = scmp.ne.s32.totalorder %s491, %s494
      %p500 = scmp.eq.s32.totalorder %s53, 0
      %p501 = por %p499, %p500
      %p502 = scmp.ne.s32.totalorder %s491, %s494
      %p503 = scmp.eq.s32.totalorder %s58, 5
      %p504 = por %p502, %p503
      %p505 = scmp.ne.s32.totalorder %s494, %s495
      %p506 = scmp.eq.s32.totalorder %s58, 0
      %p507 = por %p505, %p506
      %p508 = scmp.ne.s32.totalorder %s494, %s495
      %p509 = scmp.eq.s32.totalorder %s59, 5
      %p510 = por %p508, %p509
      %p512 = scmp.ne.s32.totalorder %s495, %s511
      %p513 = scmp.eq.s32.totalorder %s59, 0
      %p514 = por %p512, %p513
      %s515 = ssub.s32 %s61, %s68
      %p516 = scmp.eq.s32.totalorder %s515, 0
      %s518 = sadd.s32 %s517, 1
      %s519 = scalar_select %p516, %s517, %s518
      %p522 = pneg %p516
      %p523 = scmp.eq.s32.totalorder %s53, 5
      %p524 = por %p522, %p523
      %p525 = scmp.ne.s32.totalorder %s517, %s520
      %p526 = scmp.eq.s32.totalorder %s53, 0
      %p527 = por %p525, %p526
      %p528 = scmp.ne.s32.totalorder %s517, %s520
      %p529 = scmp.eq.s32.totalorder %s58, 5
      %p530 = por %p528, %p529
      %p531 = scmp.ne.s32.totalorder %s520, %s521
      %p532 = scmp.eq.s32.totalorder %s58, 0
      %p533 = por %p531, %p532
      %p534 = scmp.ne.s32.totalorder %s520, %s521
      %p535 = scmp.eq.s32.totalorder %s59, 5
      %p536 = por %p534, %p535
      %p538 = scmp.ne.s32.totalorder %s521, %s537
      %p539 = scmp.eq.s32.totalorder %s59, 0
      %p540 = por %p538, %p539
      %s541 = ssub.s32 %s61, %s68
      %p542 = scmp.eq.s32.totalorder %s541, 0
      %s544 = sadd.s32 %s543, 1
      %s545 = scalar_select %p542, %s543, %s544
      %p548 = pneg %p542
      %p549 = scmp.eq.s32.totalorder %s53, 5
      %p550 = por %p548, %p549
      %p551 = scmp.ne.s32.totalorder %s543, %s546
      %p552 = scmp.eq.s32.totalorder %s53, 0
      %p553 = por %p551, %p552
      %p554 = scmp.ne.s32.totalorder %s543, %s546
      %p555 = scmp.eq.s32.totalorder %s58, 5
      %p556 = por %p554, %p555
      %p557 = scmp.ne.s32.totalorder %s546, %s547
      %p558 = scmp.eq.s32.totalorder %s58, 0
      %p559 = por %p557, %p558
      %p560 = scmp.ne.s32.totalorder %s546, %s547
      %p561 = scmp.eq.s32.totalorder %s59, 5
      %p562 = por %p560, %p561
      %p564 = scmp.ne.s32.totalorder %s547, %s563
      %p565 = scmp.eq.s32.totalorder %s59, 0
      %p566 = por %p564, %p565
      %s567 = ssub.s32 %s61, %s68
      %p568 = scmp.eq.s32.totalorder %s567, 0
      %s570 = sadd.s32 %s569, 1
      %s571 = scalar_select %p568, %s569, %s570
      %p574 = pneg %p568
      %p575 = scmp.eq.s32.totalorder %s53, 5
      %p576 = por %p574, %p575
      %p577 = scmp.ne.s32.totalorder %s569, %s572
      %p578 = scmp.eq.s32.totalorder %s53, 0
      %p579 = por %p577, %p578
      %p580 = scmp.ne.s32.totalorder %s569, %s572
      %p581 = scmp.eq.s32.totalorder %s58, 5
      %p582 = por %p580, %p581
      %p583 = scmp.ne.s32.totalorder %s572, %s573
      %p584 = scmp.eq.s32.totalorder %s58, 0
      %p585 = por %p583, %p584
      %p586 = scmp.ne.s32.totalorder %s572, %s573
      %p587 = scmp.eq.s32.totalorder %s59, 5
      %p588 = por %p586, %p587
      %p590 = scmp.ne.s32.totalorder %s573, %s589
      %p591 = scmp.eq.s32.totalorder %s59, 0
      %p592 = por %p590, %p591
      %s593 = ssub.s32 %s61, %s68
      %p594 = scmp.eq.s32.totalorder %s593, 0
      %s596 = sadd.s32 %s595, 1
      %s597 = scalar_select %p594, %s595, %s596
      %p600 = pneg %p594
      %p601 = scmp.eq.s32.totalorder %s53, 5
      %p602 = por %p600, %p601
      %p603 = scmp.ne.s32.totalorder %s595, %s598
      %p604 = scmp.eq.s32.totalorder %s53, 0
      %p605 = por %p603, %p604
      %p606 = scmp.ne.s32.totalorder %s595, %s598
      %p607 = scmp.eq.s32.totalorder %s58, 5
      %p608 = por %p606, %p607
      %p609 = scmp.ne.s32.totalorder %s598, %s599
      %p610 = scmp.eq.s32.totalorder %s58, 0
      %p611 = por %p609, %p610
      %p612 = scmp.ne.s32.totalorder %s598, %s599
      %p613 = scmp.eq.s32.totalorder %s59, 5
      %p614 = por %p612, %p613
      %p616 = scmp.ne.s32.totalorder %s599, %s615
      %p617 = scmp.eq.s32.totalorder %s59, 0
      %p618 = por %p616, %p617
      %s619 = ssub.s32 %s61, %s68
      %p620 = scmp.eq.s32.totalorder %s619, 0
      %s622 = sadd.s32 %s621, 1
      %s623 = scalar_select %p620, %s621, %s622
      %p626 = pneg %p620
      %p627 = scmp.eq.s32.totalorder %s53, 5
      %p628 = por %p626, %p627
      %p629 = scmp.ne.s32.totalorder %s621, %s624
      %p630 = scmp.eq.s32.totalorder %s53, 0
      %p631 = por %p629, %p630
      %p632 = scmp.ne.s32.totalorder %s621, %s624
      %p633 = scmp.eq.s32.totalorder %s58, 5
      %p634 = por %p632, %p633
      %p635 = scmp.ne.s32.totalorder %s624, %s625
      %p636 = scmp.eq.s32.totalorder %s58, 0
      %p637 = por %p635, %p636
      %p638 = scmp.ne.s32.totalorder %s624, %s625
      %p639 = scmp.eq.s32.totalorder %s59, 5
      %p640 = por %p638, %p639
      %p642 = scmp.ne.s32.totalorder %s625, %s641
      %p643 = scmp.eq.s32.totalorder %s59, 0
      %p644 = por %p642, %p643
      %s645 = ssub.s32 %s61, %s68
      %p646 = scmp.eq.s32.totalorder %s645, 0
      %s648 = sadd.s32 %s647, 1
      %s649 = scalar_select %p646, %s647, %s648
      %p652 = pneg %p646
      %p653 = scmp.eq.s32.totalorder %s53, 5
      %p654 = por %p652, %p653
      %p655 = scmp.ne.s32.totalorder %s647, %s650
      %p656 = scmp.eq.s32.totalorder %s53, 0
      %p657 = por %p655, %p656
      %p658 = scmp.ne.s32.totalorder %s647, %s650
      %p659 = scmp.eq.s32.totalorder %s58, 5
      %p660 = por %p658, %p659
      %p661 = scmp.ne.s32.totalorder %s650, %s651
      %p662 = scmp.eq.s32.totalorder %s58, 0
      %p663 = por %p661, %p662
      %p664 = scmp.ne.s32.totalorder %s650, %s651
      %p665 = scmp.eq.s32.totalorder %s59, 5
      %p666 = por %p664, %p665
      %p668 = scmp.ne.s32.totalorder %s651, %s667
      %p669 = scmp.eq.s32.totalorder %s59, 0
      %p670 = por %p668, %p669
      %s671 = ssub.s32 %s61, %s68
      %p672 = scmp.eq.s32.totalorder %s671, 0
      %s674 = sadd.s32 %s673, 1
      %s675 = scalar_select %p672, %s673, %s674
      %p678 = pneg %p672
      %p679 = scmp.eq.s32.totalorder %s53, 5
      %p680 = por %p678, %p679
      %p681 = scmp.ne.s32.totalorder %s673, %s676
      %p682 = scmp.eq.s32.totalorder %s53, 0
      %p683 = por %p681, %p682
      %p684 = scmp.ne.s32.totalorder %s673, %s676
      %p685 = scmp.eq.s32.totalorder %s58, 5
      %p686 = por %p684, %p685
      %p687 = scmp.ne.s32.totalorder %s676, %s677
      %p688 = scmp.eq.s32.totalorder %s58, 0
      %p689 = por %p687, %p688
      %p690 = scmp.ne.s32.totalorder %s676, %s677
      %p691 = scmp.eq.s32.totalorder %s59, 5
      %p692 = por %p690, %p691
      %p694 = scmp.ne.s32.totalorder %s677, %s693
      %p695 = scmp.eq.s32.totalorder %s59, 0
      %p696 = por %p694, %p695
      %s698 = sadd.s32 %s697, 1
      %p701 = scmp.eq.s32.totalorder %s53, 5
      %p702 = scmp.ne.s32.totalorder %s697, %s699
      %p703 = scmp.eq.s32.totalorder %s53, 0
      %p704 = por %p702, %p703
      %p705 = scmp.ne.s32.totalorder %s697, %s699
      %p706 = scmp.eq.s32.totalorder %s58, 5
      %p707 = por %p705, %p706
      %p708 = scmp.ne.s32.totalorder %s699, %s700
      %p709 = scmp.eq.s32.totalorder %s58, 0
      %p710 = por %p708, %p709
      %p711 = scmp.ne.s32.totalorder %s699, %s700
      %p712 = scmp.eq.s32.totalorder %s59, 5
      %p713 = por %p711, %p712
      %p715 = scmp.ne.s32.totalorder %s700, %s714
      %p716 = scmp.eq.s32.totalorder %s59, 0
      %p717 = por %p715, %p716
      %s719 = sadd.s32 %s718, 1
      %p722 = scmp.eq.s32.totalorder %s53, 5
      %p723 = scmp.ne.s32.totalorder %s718, %s720
      %p724 = scmp.eq.s32.totalorder %s53, 0
      %p725 = por %p723, %p724
      %p726 = scmp.ne.s32.totalorder %s718, %s720
      %p727 = scmp.eq.s32.totalorder %s58, 5
      %p728 = por %p726, %p727
      %p729 = scmp.ne.s32.totalorder %s720, %s721
      %p730 = scmp.eq.s32.totalorder %s58, 0
      %p731 = por %p729, %p730
      %p732 = scmp.ne.s32.totalorder %s720, %s721
      %p733 = scmp.eq.s32.totalorder %s59, 5
      %p734 = por %p732, %p733
      %p736 = scmp.ne.s32.totalorder %s721, %s735
      %p737 = scmp.eq.s32.totalorder %s59, 0
      %p738 = por %p736, %p737
      %s739 = ssub.s32 %s60, %s72
      %p740 = scmp.eq.s32.totalorder %s739, 0
      %s742 = sadd.s32 %s741, 1
      %s743 = scalar_select %p740, %s741, %s742
      %p746 = pneg %p740
      %p747 = scmp.eq.s32.totalorder %s53, 5
      %p748 = por %p746, %p747
      %p749 = scmp.ne.s32.totalorder %s741, %s744
      %p750 = scmp.eq.s32.totalorder %s53, 0
      %p751 = por %p749, %p750
      %p752 = scmp.ne.s32.totalorder %s741, %s744
      %p753 = scmp.eq.s32.totalorder %s58, 5
      %p754 = por %p752, %p753
      %p755 = scmp.ne.s32.totalorder %s744, %s745
      %p756 = scmp.eq.s32.totalorder %s58, 0
      %p757 = por %p755, %p756
      %p758 = scmp.ne.s32.totalorder %s744, %s745
      %p759 = scmp.eq.s32.totalorder %s59, 5
      %p760 = por %p758, %p759
      %p762 = scmp.ne.s32.totalorder %s745, %s761
      %p763 = scmp.eq.s32.totalorder %s59, 0
      %p764 = por %p762, %p763
      %p765 = scmp.le.s32.totalorder 1, %s53
      %p766 = scmp.lt.s32.totalorder %s53, 7
      %p767 = pnand %p765, %p766
      %p768 = pneg %p767
      // Predicated region
      $region9: #{transformer_forward.3} parent=5 // pred_check
        _
      $region10: #{transformer_forward.3} parent=5 // pred_check_branch
        %770 = sbr.rel (%p767) target = $region12
      $region11: #{transformer_forward.3} parent=5 // pred_region
        %s771 = ssub.s32 %s53, 1
        // Predicated region
        $region13: #{transformer_forward.3} parent=11 // pred_check
          %p772 = pneg %p710
        $region14: #{transformer_forward.3} parent=11 // pred_check_branch
          %774 = sbr.rel (%p772) target = $region16
        $region15: #{transformer_forward.3} parent=11 // pred_region
          %s776 = ssub.s32 1024, 1024
          %777 = vsyncadd [#allocation20], %s776
          %s778 = sshll.u32 [#allocation21], 4
          %s779 = int_to_ptr.vmem [resolvable:$true] %s778
          %784 = dma.hbm_to_vmem [thread:$0]  %s24, 1024, %s779, [#allocation20], 64, 64, 4
        $region16: #{transformer_forward.3} parent=11 // pred_fallthru
          _
        // Predicated region
        $region17: #{transformer_forward.3} parent=11 // pred_check
          %p785 = pneg %p731
        $region18: #{transformer_forward.3} parent=11 // pred_check_branch
          %787 = sbr.rel (%p785) target = $region20
        $region19: #{transformer_forward.3} parent=11 // pred_region
          _
        $region20: #{transformer_forward.3} parent=11 // pred_fallthru
          _
      $region12: #{transformer_forward.3} parent=5 // pred_fallthru
        _
      %p788 = scmp.lt.s32.totalorder %s53, 6
      // Predicated region
      $region21: #{transformer_forward.3} parent=5 // pred_check
        %p789 = pneg %p788
      $region22: #{transformer_forward.3} parent=5 // pred_check_branch
        %791 = sbr.rel (%p789) target = $region24
      $region23: #{transformer_forward.3} parent=5 // pred_region
        // Predicated region
        $region25: #{transformer_forward.3} parent=23 // pred_check
          %p792 = pneg %p85
        $region26: #{transformer_forward.3} parent=23 // pred_check_branch
          %794 = sbr.rel (%p792) target = $region28
        $region27: #{transformer_forward.3} parent=23 // pred_region
          %p795 = scmp.lt.s32.totalorder %s60, 1
          %s796 = scalar_select %p795, %s60, 1
          %s797 = smul.addr %s796, 8
          %s798 = scalar_lea.vmem %s0, %s797
        $region28: #{transformer_forward.3} parent=23 // pred_fallthru
          _
        // Predicated region
        $region29: #{transformer_forward.3} parent=23 // pred_check
          %p799 = pneg %p111
        $region30: #{transformer_forward.3} parent=23 // pred_check_branch
          %801 = sbr.rel (%p799) target = $region32
        $region31: #{transformer_forward.3} parent=23 // pred_region
          %p802 = scmp.lt.s32.totalorder %s60, 1
          %s803 = scalar_select %p802, %s60, 1
          %s804 = smul.addr %s803, 8
          %s805 = scalar_lea.vmem %s1, %s804
        $region32: #{transformer_forward.3} parent=23 // pred_fallthru
          _
        // Predicated region
        $region33: #{transformer_forward.3} parent=23 // pred_check
          %p806 = pneg %p137
        $region34: #{transformer_forward.3} parent=23 // pred_check_branch
          %808 = sbr.rel (%p806) target = $region36
        $region35: #{transformer_forward.3} parent=23 // pred_region
          %p809 = scmp.lt.s32.totalorder %s60, 1
          %s810 = scalar_select %p809, %s60, 1
          %s811 = scalar_lea.vmem %s2, %s810
        $region36: #{transformer_forward.3} parent=23 // pred_fallthru
          _
        // Predicated region
        $region37: #{transformer_forward.3} parent=23 // pred_check
          %p812 = pneg %p163
        $region38: #{transformer_forward.3} parent=23 // pred_check_branch
          %814 = sbr.rel (%p812) target = $region40
        $region39: #{transformer_forward.3} parent=23 // pred_region
          %p815 = scmp.lt.s32.totalorder %s60, 1
          %s816 = scalar_select %p815, %s60, 1
          %s817 = scalar_lea.vmem %s3, %s816
        $region40: #{transformer_forward.3} parent=23 // pred_fallthru
          _
        // Predicated region
        $region41: #{transformer_forward.3} parent=23 // pred_check
          %p818 = pneg %p189
        $region42: #{transformer_forward.3} parent=23 // pred_check_branch
          %820 = sbr.rel (%p818) target = $region44
        $region43: #{transformer_forward.3} parent=23 // pred_region
          %p821 = scmp.lt.s32.totalorder %s61, 2
          %s822 = scalar_select %p821, %s61, 2
          %s823 = smul.addr %s822, 48
          %s824 = smul.addr %s823, 4
          %s825 = scalar_lea.vmem %s4, %s824
        $region44: #{transformer_forward.3} parent=23 // pred_fallthru
          _
        // Predicated region
        $region45: #{transformer_forward.3} parent=23 // pred_check
          %p826 = pneg %p215
        $region46: #{transformer_forward.3} parent=23 // pred_check_branch
          %828 = sbr.rel (%p826) target = $region48
        $region47: #{transformer_forward.3} parent=23 // pred_region
          %p829 = scmp.lt.s32.totalorder %s61, 2
          %s830 = scalar_select %p829, %s61, 2
          %s831 = smul.addr %s830, 3
          %s832 = scalar_lea.vmem %s5, %s831
        $region48: #{transformer_forward.3} parent=23 // pred_fallthru
          _
        // Predicated region
        $region49: #{transformer_forward.3} parent=23 // pred_check
          %p833 = pneg %p241
        $region50: #{transformer_forward.3} parent=23 // pred_check_branch
          %835 = sbr.rel (%p833) target = $region52
        $region51: #{transformer_forward.3} parent=23 // pred_region
          %s836 = sand.u32 %s231, 1
          %s837 = scalar_lea.sflag [#allocation5], %s836
          %s838 = sand.u32 %s231, 1
          %s839 = smul.addr %s838, 64
          %s840 = scalar_lea.vmem [#allocation4], %s839
          %s842 = ssub.s32 1024, 1024
          %843 = vsyncadd %s837, %s842
          %s844 = smul.addr %s61, 16
          %s845 = smul.addr %s844, 64
          %s846 = scalar_lea.hbm %s6, %s845
          %s847 = sshll.u32 %s840, 4
          %s848 = int_to_ptr.vmem [resolvable:$true] %s847
          %853 = dma.hbm_to_vmem [thread:$0]  %s846, 1024, %s848, %s837, 64, 64, 4
        $region52: #{transformer_forward.3} parent=23 // pred_fallthru
          _
        // Predicated region
        $region53: #{transformer_forward.3} parent=23 // pred_check
          %p854 = pneg %p267
        $region54: #{transformer_forward.3} parent=23 // pred_check_branch
          %856 = sbr.rel (%p854) target = $region56
        $region55: #{transformer_forward.3} parent=23 // pred_region
          %s857 = sand.u32 %s53, 1
          %s858 = scalar_lea.sflag [#allocation8], %s857
          %s859 = sand.u32 %s257, 1
          %s860 = scalar_lea.vmem [#allocation7], %s859
          %s862 = ssub.s32 16, 16
          %863 = vsyncadd %s858, %s862
          %s864 = smul.addr %s61, 16
          %s865 = scalar_lea.hbm %s7, %s864
          %s867 = sshll.u32 %s860, 4
          %s868 = int_to_ptr.vmem [resolvable:$true] %s867
          %870 = dma.hbm_to_vmem [thread:$0]  %s865, 16, %s868, %s858
        $region56: #{transformer_forward.3} parent=23 // pred_fallthru
          _
        // Predicated region
        $region57: #{transformer_forward.3} parent=23 // pred_check
          %p871 = pneg %p293
        $region58: #{transformer_forward.3} parent=23 // pred_check_branch
          %873 = sbr.rel (%p871) target = $region60
        $region59: #{transformer_forward.3} parent=23 // pred_region
          %s874 = sand.u32 %s53, 1
          %s875 = scalar_lea.sflag [#allocation8], %s874
          %s876 = sand.u32 %s283, 1
          %s877 = scalar_lea.vmem [#allocation9], %s876
          %s879 = ssub.s32 16, 16
          %880 = vsyncadd %s875, %s879
          %s881 = smul.addr %s61, 16
          %s882 = scalar_lea.hbm %s8, %s881
          %s884 = sshll.u32 %s877, 4
          %s885 = int_to_ptr.vmem [resolvable:$true] %s884
          %887 = dma.hbm_to_vmem [thread:$0]  %s882, 16, %s885, %s875
        $region60: #{transformer_forward.3} parent=23 // pred_fallthru
          _
        // Predicated region
        $region61: #{transformer_forward.3} parent=23 // pred_check
          %p888 = pneg %p319
        $region62: #{transformer_forward.3} parent=23 // pred_check_branch
          %890 = sbr.rel (%p888) target = $region64
        $region63: #{transformer_forward.3} parent=23 // pred_region
          %s891 = sand.u32 %s53, 1
          %s892 = scalar_lea.sflag [#allocation11], %s891
          %s893 = sand.u32 %s309, 1
          %s894 = scalar_lea.vmem [#allocation10], %s893
          %s896 = ssub.s32 16, 16
          %897 = vsyncadd %s892, %s896
          %s898 = smul.addr %s61, 16
          %s899 = scalar_lea.hbm %s9, %s898
          %s901 = sshll.u32 %s894, 4
          %s902 = int_to_ptr.vmem [resolvable:$true] %s901
          %904 = dma.hbm_to_vmem [thread:$0]  %s899, 16, %s902, %s892
        $region64: #{transformer_forward.3} parent=23 // pred_fallthru
          _
        // Predicated region
        $region65: #{transformer_forward.3} parent=23 // pred_check
          %p905 = pneg %p345
        $region66: #{transformer_forward.3} parent=23 // pred_check_branch
          %907 = sbr.rel (%p905) target = $region68
        $region67: #{transformer_forward.3} parent=23 // pred_region
          %s908 = sand.u32 %s53, 1
          %s909 = scalar_lea.sflag [#allocation11], %s908
          %s910 = sand.u32 %s335, 1
          %s911 = smul.addr %s910, 64
          %s912 = scalar_lea.vmem [#allocation12], %s911
          %s914 = ssub.s32 1024, 1024
          %915 = vsyncadd %s909, %s914
          %s916 = smul.addr %s61, 16
          %s917 = smul.addr %s916, 64
          %s918 = scalar_lea.hbm %s10, %s917
          %s919 = sshll.u32 %s912, 4
          %s920 = int_to_ptr.vmem [resolvable:$true] %s919
          %925 = dma.hbm_to_vmem [thread:$0]  %s918, 1024, %s920, %s909, 64, 64, 4
        $region68: #{transformer_forward.3} parent=23 // pred_fallthru
          _
        // Predicated region
        $region69: #{transformer_forward.3} parent=23 // pred_check
          %p926 = pneg %p371
        $region70: #{transformer_forward.3} parent=23 // pred_check_branch
          %928 = sbr.rel (%p926) target = $region72
        $region71: #{transformer_forward.3} parent=23 // pred_region
          %p929 = scmp.lt.s32.totalorder %s61, 2
          %s930 = scalar_select %p929, %s61, 2
          %s931 = scalar_lea.vmem %s11, %s930
        $region72: #{transformer_forward.3} parent=23 // pred_fallthru
          _
        // Predicated region
        $region73: #{transformer_forward.3} parent=23 // pred_check
          %p932 = pneg %p397
        $region74: #{transformer_forward.3} parent=23 // pred_check_branch
          %934 = sbr.rel (%p932) target = $region76
        $region75: #{transformer_forward.3} parent=23 // pred_region
          %p935 = scmp.lt.s32.totalorder %s61, 2
          %s936 = scalar_select %p935, %s61, 2
          %s937 = smul.addr %s936, 32
          %s938 = smul.addr %s937, 4
          %s939 = scalar_lea.vmem %s12, %s938
        $region76: #{transformer_forward.3} parent=23 // pred_fallthru
          _
        // Predicated region
        $region77: #{transformer_forward.3} parent=23 // pred_check
          %p940 = pneg %p423
        $region78: #{transformer_forward.3} parent=23 // pred_check_branch
          %942 = sbr.rel (%p940) target = $region80
        $region79: #{transformer_forward.3} parent=23 // pred_region
          %p943 = scmp.lt.s32.totalorder %s61, 2
          %s944 = scalar_select %p943, %s61, 2
          %s945 = smul.addr %s944, 2
          %s946 = scalar_lea.vmem %s13, %s945
        $region80: #{transformer_forward.3} parent=23 // pred_fallthru
          _
        // Predicated region
        $region81: #{transformer_forward.3} parent=23 // pred_check
          %p947 = pneg %p449
        $region82: #{transformer_forward.3} parent=23 // pred_check_branch
          %949 = sbr.rel (%p947) target = $region84
        $region83: #{transformer_forward.3} parent=23 // pred_region
          %s950 = sand.u32 %s53, 1
          %s951 = scalar_lea.sflag [#allocation14], %s950
          %s952 = sand.u32 %s439, 1
          %s953 = smul.addr %s952, 64
          %s954 = scalar_lea.vmem [#allocation13], %s953
          %s956 = ssub.s32 1024, 1024
          %957 = vsyncadd %s951, %s956
          %s958 = smul.addr %s61, 16
          %s959 = smul.addr %s958, 64
          %s960 = scalar_lea.hbm %s14, %s959
          %s961 = sshll.u32 %s954, 4
          %s962 = int_to_ptr.vmem [resolvable:$true] %s961
          %967 = dma.hbm_to_vmem [thread:$0]  %s960, 1024, %s962, %s951, 64, 64, 4
        $region84: #{transformer_forward.3} parent=23 // pred_fallthru
          _
        // Predicated region
        $region85: #{transformer_forward.3} parent=23 // pred_check
          %p968 = pneg %p475
        $region86: #{transformer_forward.3} parent=23 // pred_check_branch
          %970 = sbr.rel (%p968) target = $region88
        $region87: #{transformer_forward.3} parent=23 // pred_region
          %p971 = scmp.lt.s32.totalorder %s61, 2
          %s972 = scalar_select %p971, %s61, 2
          %s973 = scalar_lea.vmem %s15, %s972
        $region88: #{transformer_forward.3} parent=23 // pred_fallthru
          _
        // Predicated region
        $region89: #{transformer_forward.3} parent=23 // pred_check
          %p974 = pneg %p501
        $region90: #{transformer_forward.3} parent=23 // pred_check_branch
          %976 = sbr.rel (%p974) target = $region92
        $region91: #{transformer_forward.3} parent=23 // pred_region
          %s977 = sand.u32 %s53, 1
          %s978 = scalar_lea.sflag [#allocation14], %s977
          %s979 = sand.u32 %s491, 1
          %s980 = scalar_lea.vmem [#allocation15], %s979
          %s982 = ssub.s32 16, 16
          %983 = vsyncadd %s978, %s982
          %s984 = smul.addr %s61, 16
          %s985 = scalar_lea.hbm %s16, %s984
          %s987 = sshll.u32 %s980, 4
          %s988 = int_to_ptr.vmem [resolvable:$true] %s987
          %990 = dma.hbm_to_vmem [thread:$0]  %s985, 16, %s988, %s978
        $region92: #{transformer_forward.3} parent=23 // pred_fallthru
          _
        // Predicated region
        $region93: #{transformer_forward.3} parent=23 // pred_check
          %p991 = pneg %p527
        $region94: #{transformer_forward.3} parent=23 // pred_check_branch
          %993 = sbr.rel (%p991) target = $region96
        $region95: #{transformer_forward.3} parent=23 // pred_region
          %s994 = sand.u32 %s53, 1
          %s995 = scalar_lea.sflag [#allocation17], %s994
          %s996 = sand.u32 %s517, 1
          %s997 = scalar_lea.vmem [#allocation16], %s996
          %s999 = ssub.s32 16, 16
          %1000 = vsyncadd %s995, %s999
          %s1001 = smul.addr %s61, 16
          %s1002 = scalar_lea.hbm %s17, %s1001
          %s1004 = sshll.u32 %s997, 4
          %s1005 = int_to_ptr.vmem [resolvable:$true] %s1004
          %1007 = dma.hbm_to_vmem [thread:$0]  %s1002, 16, %s1005, %s995
        $region96: #{transformer_forward.3} parent=23 // pred_fallthru
          _
        // Predicated region
        $region97: #{transformer_forward.3} parent=23 // pred_check
          %p1008 = pneg %p553
        $region98: #{transformer_forward.3} parent=23 // pred_check_branch
          %1010 = sbr.rel (%p1008) target = $region100
        $region99: #{transformer_forward.3} parent=23 // pred_region
          %p1011 = scmp.lt.s32.totalorder %s61, 2
          %s1012 = scalar_select %p1011, %s61, 2
          %s1013 = smul.addr %s1012, 32
          %s1014 = smul.addr %s1013, 4
          %s1015 = scalar_lea.vmem %s18, %s1014
        $region100: #{transformer_forward.3} parent=23 // pred_fallthru
          _
        // Predicated region
        $region101: #{transformer_forward.3} parent=23 // pred_check
          %p1016 = pneg %p579
        $region102: #{transformer_forward.3} parent=23 // pred_check_branch
          %1018 = sbr.rel (%p1016) target = $region104
        $region103: #{transformer_forward.3} parent=23 // pred_region
          %p1019 = scmp.lt.s32.totalorder %s61, 2
          %s1020 = scalar_select %p1019, %s61, 2
          %s1021 = smul.addr %s1020, 2
          %s1022 = scalar_lea.vmem %s19, %s1021
        $region104: #{transformer_forward.3} parent=23 // pred_fallthru
          _
        // Predicated region
        $region105: #{transformer_forward.3} parent=23 // pred_check
          %p1023 = pneg %p605
        $region106: #{transformer_forward.3} parent=23 // pred_check_branch
          %1025 = sbr.rel (%p1023) target = $region108
        $region107: #{transformer_forward.3} parent=23 // pred_region
          %p1026 = scmp.lt.s32.totalorder %s61, 2
          %s1027 = scalar_select %p1026, %s61, 2
          %s1028 = smul.addr %s1027, 32
          %s1029 = smul.addr %s1028, 4
          %s1030 = scalar_lea.vmem %s20, %s1029
        $region108: #{transformer_forward.3} parent=23 // pred_fallthru
          _
        // Predicated region
        $region109: #{transformer_forward.3} parent=23 // pred_check
          %p1031 = pneg %p631
        $region110: #{transformer_forward.3} parent=23 // pred_check_branch
          %1033 = sbr.rel (%p1031) target = $region112
        $region111: #{transformer_forward.3} parent=23 // pred_region
          %p1034 = scmp.lt.s32.totalorder %s61, 2
          %s1035 = scalar_select %p1034, %s61, 2
          %s1036 = scalar_lea.vmem %s21, %s1035
        $region112: #{transformer_forward.3} parent=23 // pred_fallthru
          _
        // Predicated region
        $region113: #{transformer_forward.3} parent=23 // pred_check
          %p1037 = pneg %p657
        $region114: #{transformer_forward.3} parent=23 // pred_check_branch
          %1039 = sbr.rel (%p1037) target = $region116
        $region115: #{transformer_forward.3} parent=23 // pred_region
          %s1040 = sand.u32 %s53, 1
          %s1041 = scalar_lea.sflag [#allocation17], %s1040
          %s1042 = sand.u32 %s647, 1
          %s1043 = scalar_lea.vmem [#allocation18], %s1042
          %s1045 = ssub.s32 16, 16
          %1046 = vsyncadd %s1041, %s1045
          %s1047 = smul.addr %s61, 16
          %s1048 = scalar_lea.hbm %s22, %s1047
          %s1050 = sshll.u32 %s1043, 4
          %s1051 = int_to_ptr.vmem [resolvable:$true] %s1050
          %1053 = dma.hbm_to_vmem [thread:$0]  %s1048, 16, %s1051, %s1041
        $region116: #{transformer_forward.3} parent=23 // pred_fallthru
          _
        // Predicated region
        $region117: #{transformer_forward.3} parent=23 // pred_check
          %p1054 = pneg %p683
        $region118: #{transformer_forward.3} parent=23 // pred_check_branch
          %1056 = sbr.rel (%p1054) target = $region120
        $region119: #{transformer_forward.3} parent=23 // pred_region
          %s1057 = sand.u32 %s53, 1
          %s1058 = scalar_lea.sflag [#allocation20], %s1057
          %s1059 = sand.u32 %s673, 1
          %s1060 = scalar_lea.vmem [#allocation19], %s1059
          %s1062 = ssub.s32 16, 16
          %1063 = vsyncadd %s1058, %s1062
          %s1064 = smul.addr %s61, 16
          %s1065 = scalar_lea.hbm %s23, %s1064
          %s1067 = sshll.u32 %s1060, 4
          %s1068 = int_to_ptr.vmem [resolvable:$true] %s1067
          %1070 = dma.hbm_to_vmem [thread:$0]  %s1065, 16, %s1068, %s1058
        $region120: #{transformer_forward.3} parent=23 // pred_fallthru
          _
      $region24: #{transformer_forward.3} parent=5 // pred_fallthru
        _
      %p1071 = scmp.le.s32.totalorder 1, %s53
      %p1072 = scmp.lt.s32.totalorder %s53, 7
      %p1073 = pnand %p1071, %p1072
      %p1074 = pneg %p1073
      // Predicated region
      $region121: #{transformer_forward.3} parent=5 // pred_check
        _
      $region122: #{transformer_forward.3} parent=5 // pred_check_branch
        %1076 = sbr.rel (%p1073) target = $region124
      $region123: #{transformer_forward.3} parent=5 // pred_region
        %s1077 = ssub.s32 %s53, 1
        %s1078 = sand.u32 %s234, 1
        %s1079 = scalar_lea.sflag [#allocation5], %s1078
        %s1080 = sand.u32 %s234, 1
        %s1081 = smul.addr %s1080, 64
        %s1082 = scalar_lea.vmem [#allocation4], %s1081
        // Predicated region
        $region125: #{transformer_forward.3} parent=123 // pred_check
          %p1083 = pneg %p247
        $region126: #{transformer_forward.3} parent=123 // pred_check_branch
          %1085 = sbr.rel (%p1083) target = $region128
        $region127: #{transformer_forward.3} parent=123 // pred_region
          %1086 = dma.done %s1079, 1024
        $region128: #{transformer_forward.3} parent=123 // pred_fallthru
          _
        %s1087 = sand.u32 %s58, 1
        %s1088 = scalar_lea.sflag [#allocation8], %s1087
        %s1089 = sand.u32 %s260, 1
        %s1090 = scalar_lea.vmem [#allocation7], %s1089
        // Predicated region
        $region129: #{transformer_forward.3} parent=123 // pred_check
          %p1091 = pneg %p273
        $region130: #{transformer_forward.3} parent=123 // pred_check_branch
          %1093 = sbr.rel (%p1091) target = $region132
        $region131: #{transformer_forward.3} parent=123 // pred_region
          %1094 = dma.done %s1088, 16
        $region132: #{transformer_forward.3} parent=123 // pred_fallthru
          _
        %s1095 = sand.u32 %s58, 1
        %s1096 = scalar_lea.sflag [#allocation8], %s1095
        %s1097 = sand.u32 %s286, 1
        %s1098 = scalar_lea.vmem [#allocation9], %s1097
        // Predicated region
        $region133: #{transformer_forward.3} parent=123 // pred_check
          %p1099 = pneg %p299
        $region134: #{transformer_forward.3} parent=123 // pred_check_branch
          %1101 = sbr.rel (%p1099) target = $region136
        $region135: #{transformer_forward.3} parent=123 // pred_region
          %1102 = dma.done %s1096, 16
        $region136: #{transformer_forward.3} parent=123 // pred_fallthru
          _
        %s1103 = sand.u32 %s58, 1
        %s1104 = scalar_lea.sflag [#allocation11], %s1103
        %s1105 = sand.u32 %s312, 1
        %s1106 = scalar_lea.vmem [#allocation10], %s1105
        // Predicated region
        $region137: #{transformer_forward.3} parent=123 // pred_check
          %p1107 = pneg %p325
        $region138: #{transformer_forward.3} parent=123 // pred_check_branch
          %1109 = sbr.rel (%p1107) target = $region140
        $region139: #{transformer_forward.3} parent=123 // pred_region
          %1110 = dma.done %s1104, 16
        $region140: #{transformer_forward.3} parent=123 // pred_fallthru
          _
        %s1111 = sand.u32 %s58, 1
        %s1112 = scalar_lea.sflag [#allocation11], %s1111
        %s1113 = sand.u32 %s338, 1
        %s1114 = smul.addr %s1113, 64
        %s1115 = scalar_lea.vmem [#allocation12], %s1114
        // Predicated region
        $region141: #{transformer_forward.3} parent=123 // pred_check
          %p1116 = pneg %p351
        $region142: #{transformer_forward.3} parent=123 // pred_check_branch
          %1118 = sbr.rel (%p1116) target = $region144
        $region143: #{transformer_forward.3} parent=123 // pred_region
          %1119 = dma.done %s1112, 1024
        $region144: #{transformer_forward.3} parent=123 // pred_fallthru
          _
        %s1120 = sand.u32 %s58, 1
        %s1121 = scalar_lea.sflag [#allocation14], %s1120
        %s1122 = sand.u32 %s442, 1
        %s1123 = smul.addr %s1122, 64
        %s1124 = scalar_lea.vmem [#allocation13], %s1123
        // Predicated region
        $region145: #{transformer_forward.3} parent=123 // pred_check
          %p1125 = pneg %p455
        $region146: #{transformer_forward.3} parent=123 // pred_check_branch
          %1127 = sbr.rel (%p1125) target = $region148
        $region147: #{transformer_forward.3} parent=123 // pred_region
          %1128 = dma.done %s1121, 1024
        $region148: #{transformer_forward.3} parent=123 // pred_fallthru
          _
        %s1129 = sand.u32 %s58, 1
        %s1130 = scalar_lea.sflag [#allocation14], %s1129
        %s1131 = sand.u32 %s494, 1
        %s1132 = scalar_lea.vmem [#allocation15], %s1131
        // Predicated region
        $region149: #{transformer_forward.3} parent=123 // pred_check
          %p1133 = pneg %p507
        $region150: #{transformer_forward.3} parent=123 // pred_check_branch
          %1135 = sbr.rel (%p1133) target = $region152
        $region151: #{transformer_forward.3} parent=123 // pred_region
          %1136 = dma.done %s1130, 16
        $region152: #{transformer_forward.3} parent=123 // pred_fallthru
          _
        %s1137 = sand.u32 %s58, 1
        %s1138 = scalar_lea.sflag [#allocation17], %s1137
        %s1139 = sand.u32 %s520, 1
        %s1140 = scalar_lea.vmem [#allocation16], %s1139
        // Predicated region
        $region153: #{transformer_forward.3} parent=123 // pred_check
          %p1141 = pneg %p533
        $region154: #{transformer_forward.3} parent=123 // pred_check_branch
          %1143 = sbr.rel (%p1141) target = $region156
        $region155: #{transformer_forward.3} parent=123 // pred_region
          %1144 = dma.done %s1138, 16
        $region156: #{transformer_forward.3} parent=123 // pred_fallthru
          _
        %s1145 = sand.u32 %s58, 1
        %s1146 = scalar_lea.sflag [#allocation17], %s1145
        %s1147 = sand.u32 %s650, 1
        %s1148 = scalar_lea.vmem [#allocation18], %s1147
        // Predicated region
        $region157: #{transformer_forward.3} parent=123 // pred_check
          %p1149 = pneg %p663
        $region158: #{transformer_forward.3} parent=123 // pred_check_branch
          %1151 = sbr.rel (%p1149) target = $region160
        $region159: #{transformer_forward.3} parent=123 // pred_region
          %1152 = dma.done %s1146, 16
        $region160: #{transformer_forward.3} parent=123 // pred_fallthru
          _
        %s1153 = sand.u32 %s58, 1
        %s1154 = scalar_lea.sflag [#allocation20], %s1153
        %s1155 = sand.u32 %s676, 1
        %s1156 = scalar_lea.vmem [#allocation19], %s1155
        // Predicated region
        $region161: #{transformer_forward.3} parent=123 // pred_check
          %p1157 = pneg %p689
        $region162: #{transformer_forward.3} parent=123 // pred_check_branch
          %1159 = sbr.rel (%p1157) target = $region164
        $region163: #{transformer_forward.3} parent=123 // pred_region
          %1160 = dma.done %s1154, 16
        $region164: #{transformer_forward.3} parent=123 // pred_fallthru
          _
        // Predicated region
        $region165: #{transformer_forward.3} parent=123 // pred_check
          %p1161 = pneg %p710
        $region166: #{transformer_forward.3} parent=123 // pred_check_branch
          %1163 = sbr.rel (%p1161) target = $region168
        $region167: #{transformer_forward.3} parent=123 // pred_region
          %1164 = dma.done [#allocation20], 1024
        $region168: #{transformer_forward.3} parent=123 // pred_fallthru
          _
        %p1165 = scmp.lt.s32.totalorder %s62, 1
        %s1166 = scalar_select %p1165, %s62, 1
        %s1167 = smul.addr %s1166, 8
        %s1168 = scalar_lea.vmem %s0, %s1167
        %p1169 = pneg %p91
        %p1170 = pneg %p88
        %p1171 = scmp.lt.s32.totalorder %s62, 1
        %s1172 = scalar_select %p1171, %s62, 1
        %s1173 = smul.addr %s1172, 8
        %s1174 = scalar_lea.vmem %s1, %s1173
        %p1175 = pneg %p117
        %p1176 = pneg %p114
        %p1177 = scmp.lt.s32.totalorder %s62, 1
        %s1178 = scalar_select %p1177, %s62, 1
        %s1179 = scalar_lea.vmem %s2, %s1178
        %p1180 = pneg %p143
        %p1181 = pneg %p140
        %p1182 = scmp.lt.s32.totalorder %s62, 1
        %s1183 = scalar_select %p1182, %s62, 1
        %s1184 = scalar_lea.vmem %s3, %s1183
        %p1185 = pneg %p169
        %p1186 = pneg %p166
        %p1187 = scmp.lt.s32.totalorder %s63, 2
        %s1188 = scalar_select %p1187, %s63, 2
        %s1189 = smul.addr %s1188, 48
        %s1190 = smul.addr %s1189, 4
        %s1191 = scalar_lea.vmem %s4, %s1190
        %p1192 = pneg %p195
        %p1193 = pneg %p192
        %p1194 = scmp.lt.s32.totalorder %s63, 2
        %s1195 = scalar_select %p1194, %s63, 2
        %s1196 = smul.addr %s1195, 3
        %s1197 = scalar_lea.vmem %s5, %s1196
        %p1198 = pneg %p221
        %p1199 = pneg %p218
        %s1200 = sand.u32 %s234, 1
        %s1201 = scalar_lea.sflag [#allocation5], %s1200
        %s1202 = sand.u32 %s234, 1
        %s1203 = smul.addr %s1202, 64
        %s1204 = scalar_lea.vmem [#allocation4], %s1203
        %p1205 = pneg %p247
        %p1206 = pneg %p244
        %s1207 = sand.u32 %s58, 1
        %s1208 = scalar_lea.sflag [#allocation8], %s1207
        %s1209 = sand.u32 %s260, 1
        %s1210 = scalar_lea.vmem [#allocation7], %s1209
        %p1211 = pneg %p273
        %p1212 = pneg %p270
        %s1213 = sand.u32 %s58, 1
        %s1214 = scalar_lea.sflag [#allocation8], %s1213
        %s1215 = sand.u32 %s286, 1
        %s1216 = scalar_lea.vmem [#allocation9], %s1215
        %p1217 = pneg %p299
        %p1218 = pneg %p296
        %s1219 = sand.u32 %s58, 1
        %s1220 = scalar_lea.sflag [#allocation11], %s1219
        %s1221 = sand.u32 %s312, 1
        %s1222 = scalar_lea.vmem [#allocation10], %s1221
        %p1223 = pneg %p325
        %p1224 = pneg %p322
        %s1225 = sand.u32 %s58, 1
        %s1226 = scalar_lea.sflag [#allocation11], %s1225
        %s1227 = sand.u32 %s338, 1
        %s1228 = smul.addr %s1227, 64
        %s1229 = scalar_lea.vmem [#allocation12], %s1228
        %p1230 = pneg %p351
        %p1231 = pneg %p348
        %p1232 = scmp.lt.s32.totalorder %s63, 2
        %s1233 = scalar_select %p1232, %s63, 2
        %s1234 = scalar_lea.vmem %s11, %s1233
        %p1235 = pneg %p377
        %p1236 = pneg %p374
        %p1237 = scmp.lt.s32.totalorder %s63, 2
        %s1238 = scalar_select %p1237, %s63, 2
        %s1239 = smul.addr %s1238, 32
        %s1240 = smul.addr %s1239, 4
        %s1241 = scalar_lea.vmem %s12, %s1240
        %p1242 = pneg %p403
        %p1243 = pneg %p400
        %p1244 = scmp.lt.s32.totalorder %s63, 2
        %s1245 = scalar_select %p1244, %s63, 2
        %s1246 = smul.addr %s1245, 2
        %s1247 = scalar_lea.vmem %s13, %s1246
        %p1248 = pneg %p429
        %p1249 = pneg %p426
        %s1250 = sand.u32 %s58, 1
        %s1251 = scalar_lea.sflag [#allocation14], %s1250
        %s1252 = sand.u32 %s442, 1
        %s1253 = smul.addr %s1252, 64
        %s1254 = scalar_lea.vmem [#allocation13], %s1253
        %p1255 = pneg %p455
        %p1256 = pneg %p452
        %p1257 = scmp.lt.s32.totalorder %s63, 2
        %s1258 = scalar_select %p1257, %s63, 2
        %s1259 = scalar_lea.vmem %s15, %s1258
        %p1260 = pneg %p481
        %p1261 = pneg %p478
        %s1262 = sand.u32 %s58, 1
        %s1263 = scalar_lea.sflag [#allocation14], %s1262
        %s1264 = sand.u32 %s494, 1
        %s1265 = scalar_lea.vmem [#allocation15], %s1264
        %p1266 = pneg %p507
        %p1267 = pneg %p504
        %s1268 = sand.u32 %s58, 1
        %s1269 = scalar_lea.sflag [#allocation17], %s1268
        %s1270 = sand.u32 %s520, 1
        %s1271 = scalar_lea.vmem [#allocation16], %s1270
        %p1272 = pneg %p533
        %p1273 = pneg %p530
        %p1274 = scmp.lt.s32.totalorder %s63, 2
        %s1275 = scalar_select %p1274, %s63, 2
        %s1276 = smul.addr %s1275, 32
        %s1277 = smul.addr %s1276, 4
        %s1278 = scalar_lea.vmem %s18, %s1277
        %p1279 = pneg %p559
        %p1280 = pneg %p556
        %p1281 = scmp.lt.s32.totalorder %s63, 2
        %s1282 = scalar_select %p1281, %s63, 2
        %s1283 = smul.addr %s1282, 2
        %s1284 = scalar_lea.vmem %s19, %s1283
        %p1285 = pneg %p585
        %p1286 = pneg %p582
        %p1287 = scmp.lt.s32.totalorder %s63, 2
        %s1288 = scalar_select %p1287, %s63, 2
        %s1289 = smul.addr %s1288, 32
        %s1290 = smul.addr %s1289, 4
        %s1291 = scalar_lea.vmem %s20, %s1290
        %p1292 = pneg %p611
        %p1293 = pneg %p608
        %p1294 = scmp.lt.s32.totalorder %s63, 2
        %s1295 = scalar_select %p1294, %s63, 2
        %s1296 = scalar_lea.vmem %s21, %s1295
        %p1297 = pneg %p637
        %p1298 = pneg %p634
        %s1299 = sand.u32 %s58, 1
        %s1300 = scalar_lea.sflag [#allocation17], %s1299
        %s1301 = sand.u32 %s650, 1
        %s1302 = scalar_lea.vmem [#allocation18], %s1301
        %p1303 = pneg %p663
        %p1304 = pneg %p660
        %s1305 = sand.u32 %s58, 1
        %s1306 = scalar_lea.sflag [#allocation20], %s1305
        %s1307 = sand.u32 %s676, 1
        %s1308 = scalar_lea.vmem [#allocation19], %s1307
        %p1309 = pneg %p689
        %p1310 = pneg %p686
        %p1311 = pneg %p710
        %p1312 = pneg %p707
        %p1313 = pneg %p731
        %p1314 = pneg %p728
        %p1315 = pneg %p757
        %p1316 = pneg %p754
        %s1317 = sand.u32 %s744, 1
        %s1318 = scalar_lea.sflag [#allocation6], %s1317
        %s1319 = sand.u32 %s744, 1
        %s1320 = smul.addr %s1319, 8
        %s1321 = scalar_lea.vmem [#allocation22], %s1320
        %p1322 = scmp.lt.s32.totalorder %s62, 1
        %s1323 = scalar_select %p1322, %s62, 1
        %s1324 = smul.addr %s1323, 8
        %s1325 = scalar_lea.vmem %s0, %s1324
        %p1326 = scmp.lt.s32.totalorder %s62, 1
        %s1327 = scalar_select %p1326, %s62, 1
        %s1328 = smul.addr %s1327, 8
        %s1329 = scalar_lea.vmem %s1, %s1328
        %p1330 = scmp.lt.s32.totalorder %s62, 1
        %s1331 = scalar_select %p1330, %s62, 1
        %s1332 = scalar_lea.vmem %s2, %s1331
        %p1333 = scmp.lt.s32.totalorder %s62, 1
        %s1334 = scalar_select %p1333, %s62, 1
        %s1335 = scalar_lea.vmem %s3, %s1334
        %p1336 = scmp.lt.s32.totalorder %s63, 2
        %s1337 = scalar_select %p1336, %s63, 2
        %s1338 = smul.addr %s1337, 48
        %s1339 = smul.addr %s1338, 4
        %s1340 = scalar_lea.vmem %s4, %s1339
        %p1341 = scmp.lt.s32.totalorder %s63, 2
        %s1342 = scalar_select %p1341, %s63, 2
        %s1343 = smul.addr %s1342, 3
        %s1344 = scalar_lea.vmem %s5, %s1343
        %p1345 = scmp.lt.s32.totalorder %s63, 2
        %s1346 = scalar_select %p1345, %s63, 2
        %s1347 = scalar_lea.vmem %s11, %s1346
        %p1348 = scmp.lt.s32.totalorder %s63, 2
        %s1349 = scalar_select %p1348, %s63, 2
        %s1350 = smul.addr %s1349, 32
        %s1351 = smul.addr %s1350, 4
        %s1352 = scalar_lea.vmem %s12, %s1351
        %p1353 = scmp.lt.s32.totalorder %s63, 2
        %s1354 = scalar_select %p1353, %s63, 2
        %s1355 = smul.addr %s1354, 2
        %s1356 = scalar_lea.vmem %s13, %s1355
        %p1357 = scmp.lt.s32.totalorder %s63, 2
        %s1358 = scalar_select %p1357, %s63, 2
        %s1359 = scalar_lea.vmem %s15, %s1358
        %p1360 = scmp.lt.s32.totalorder %s63, 2
        %s1361 = scalar_select %p1360, %s63, 2
        %s1362 = smul.addr %s1361, 32
        %s1363 = smul.addr %s1362, 4
        %s1364 = scalar_lea.vmem %s18, %s1363
        %p1365 = scmp.lt.s32.totalorder %s63, 2
        %s1366 = scalar_select %p1365, %s63, 2
        %s1367 = smul.addr %s1366, 2
        %s1368 = scalar_lea.vmem %s19, %s1367
        %p1369 = scmp.lt.s32.totalorder %s63, 2
        %s1370 = scalar_select %p1369, %s63, 2
        %s1371 = smul.addr %s1370, 32
        %s1372 = smul.addr %s1371, 4
        %s1373 = scalar_lea.vmem %s20, %s1372
        %p1374 = scmp.lt.s32.totalorder %s63, 2
        %s1375 = scalar_select %p1374, %s63, 2
        %s1376 = scalar_lea.vmem %s21, %s1375
        %p1378 = scmp.eq.s32.totalorder %s63, 0
        // Predicated region
        $region169: #{transformer_forward.3} parent=123 // pred_check
          %p1379 = pneg %p1378
        $region170: #{transformer_forward.3} parent=123 // pred_check_branch
          %1381 = sbr.rel (%p1379) target = $region172
        $region171: #{transformer_forward.3} parent=123 // pred_region
          %v1382 = vld [vmem:[%s1325] sm:$0xff]
          %1383 = vst [vmem:[#allocation2] sm:$0xff] %v1382
        $region172: #{transformer_forward.3} parent=123 // pred_fallthru
          _
        %v1384 = vld [vmem:[#allocation2] sm:$0xff]
        %v1385 = vld [vmem:[%s1329] sm:$0xff]
        %v1386 = vlaneseq
        %v1387 = vshrl.u32 %v1386, 7
        %v1388 = vlaneseq
        %v1389 = vand.u32 %v1388, 127
        %vm1390 = vcmp.ge.s32.totalorder %v1387, %v1389
        %v1391 = vsel %vm1390, 0.0, -1e+30
        %v1392 = vld [vmem:[%s1332] sm:$0x1]
        %v1394 = vlaneseq
        %v1395 = vshrl.u32 %v1394, 7
        %v1396 = vsub.s32 0, %v1395
        %v1397 = vrot.slane %v1392, %v1396
        %v1399 = vadd.f32 %v1391, %v1397
        %v1400 = vld [vmem:[%s1335] sm:$0x1]
        %v1401 = vpack.c.bf16 %v1384, %v1384
        %v1402 = vld [vmem:[%s1340] sm:$0xff]
        %v1403 = vld [vmem:[%s1340 + $0x8] sm:$0xf]
        %v1404 = vld [vmem:[%s1340 + $0xc] sm:$0xff]
        %v1405 = vld [vmem:[%s1340 + $0x14] sm:$0xf]
        %v1406 = vld [vmem:[%s1340 + $0x18] sm:$0xff]
        %v1407 = vld [vmem:[%s1340 + $0x20] sm:$0xf]
        %v1408 = vld [vmem:[%s1340 + $0x24] sm:$0xff]
        %v1409 = vld [vmem:[%s1340 + $0x2c] sm:$0xf]
        %v1410 = vld [vmem:[%s1340 + $0x30] sm:$0xff]
        %v1411 = vld [vmem:[%s1340 + $0x38] sm:$0xf]
        %v1412 = vld [vmem:[%s1340 + $0x3c] sm:$0xff]
        %v1413 = vld [vmem:[%s1340 + $0x44] sm:$0xf]
        %v1414 = vld [vmem:[%s1340 + $0x48] sm:$0xff]
        %v1415 = vld [vmem:[%s1340 + $0x50] sm:$0xf]
        %v1416 = vld [vmem:[%s1340 + $0x54] sm:$0xff]
        %v1417 = vld [vmem:[%s1340 + $0x5c] sm:$0xf]
        %v1418 = vld [vmem:[%s1340 + $0x60] sm:$0xff]
        %v1419 = vld [vmem:[%s1340 + $0x68] sm:$0xf]
        %v1420 = vld [vmem:[%s1340 + $0x6c] sm:$0xff]
        %v1421 = vld [vmem:[%s1340 + $0x74] sm:$0xf]
        %v1422 = vld [vmem:[%s1340 + $0x78] sm:$0xff]
        %v1423 = vld [vmem:[%s1340 + $0x80] sm:$0xf]
        %v1424 = vld [vmem:[%s1340 + $0x84] sm:$0xff]
        %v1425 = vld [vmem:[%s1340 + $0x8c] sm:$0xf]
        %v1426 = vld [vmem:[%s1340 + $0x90] sm:$0xff]
        %v1427 = vld [vmem:[%s1340 + $0x98] sm:$0xf]
        %v1428 = vld [vmem:[%s1340 + $0x9c] sm:$0xff]
        %v1429 = vld [vmem:[%s1340 + $0xa4] sm:$0xf]
        %v1430 = vld [vmem:[%s1340 + $0xa8] sm:$0xff]
        %v1431 = vld [vmem:[%s1340 + $0xb0] sm:$0xf]
        %v1432 = vld [vmem:[%s1340 + $0xb4] sm:$0xff]
        %v1433 = vld [vmem:[%s1340 + $0xbc] sm:$0xf]
        %v1434 = vld [vmem:[%s1344] sm:$0x7]
        %v1436 = vlaneseq
        %v1437 = vshrl.u32 %v1436, 7
        %v1438 = vsub.s32 0, %v1437
        %v1439 = vrot.slane %v1434, %v1438
        %v1440 = vlaneseq
        %v1441 = vshrl.u32 %v1440, 7
        %v1442 = vsub.s32 1, %v1441
        %v1443 = vrot.slane %v1434, %v1442
        %v1444 = vlaneseq
        %v1445 = vshrl.u32 %v1444, 7
        %v1446 = vsub.s32 2, %v1445
        %v1447 = vrot.slane %v1434, %v1446
        %v1483 = vunpack.c.l.b16 %v1402
        %v1484 = vunpack.c.h.b16 %v1402
        %v1485 = vunpack.c.l.b16 %v1403
        %v1486 = vunpack.c.l.b16 %v1404
        %v1487 = vunpack.c.h.b16 %v1404
        %v1488 = vunpack.c.l.b16 %v1405
        %v1489 = vunpack.c.l.b16 %v1406
        %v1490 = vunpack.c.h.b16 %v1406
        %v1491 = vunpack.c.l.b16 %v1407
        %v1492 = vunpack.c.l.b16 %v1408
        %v1493 = vunpack.c.h.b16 %v1408
        %v1494 = vunpack.c.l.b16 %v1409
        %v1495 = vunpack.c.l.b16 %v1410
        %v1496 = vunpack.c.h.b16 %v1410
        %v1497 = vunpack.c.l.b16 %v1411
        %v1498 = vunpack.c.l.b16 %v1412
        %v1499 = vunpack.c.h.b16 %v1412
        %v1500 = vunpack.c.l.b16 %v1413
        %v1501 = vunpack.c.l.b16 %v1414
        %v1502 = vunpack.c.h.b16 %v1414
        %v1503 = vunpack.c.l.b16 %v1415
        %v1504 = vunpack.c.l.b16 %v1416
        %v1505 = vunpack.c.h.b16 %v1416
        %v1506 = vunpack.c.l.b16 %v1417
        %v1507 = vunpack.c.l.b16 %v1418
        %v1508 = vunpack.c.h.b16 %v1418
        %v1509 = vunpack.c.l.b16 %v1419
        %v1510 = vunpack.c.l.b16 %v1420
        %v1511 = vunpack.c.h.b16 %v1420
        %v1512 = vunpack.c.l.b16 %v1421
        %v1513 = vunpack.c.l.b16 %v1422
        %v1514 = vunpack.c.h.b16 %v1422
        %v1515 = vunpack.c.l.b16 %v1423
        %v1516 = vunpack.c.l.b16 %v1424
        %v1517 = vunpack.c.h.b16 %v1424
        %v1518 = vunpack.c.l.b16 %v1425
        %v1519 = vunpack.c.l.b16 %v1426
        %v1520 = vunpack.c.h.b16 %v1426
        %v1521 = vunpack.c.l.b16 %v1427
        %v1522 = vunpack.c.l.b16 %v1428
        %v1523 = vunpack.c.h.b16 %v1428
        %v1524 = vunpack.c.l.b16 %v1429
        %v1525 = vunpack.c.l.b16 %v1430
        %v1526 = vunpack.c.h.b16 %v1430
        %v1527 = vunpack.c.l.b16 %v1431
        %v1528 = vunpack.c.l.b16 %v1432
        %v1529 = vunpack.c.h.b16 %v1432
        %v1530 = vunpack.c.l.b16 %v1433
        %v1531 = vpack.c.b16 %v1486, %v1483
        %v1532 = vpack.c.b16 %v1487, %v1484
        %v1533 = vpack.c.b16 %v1488, %v1485
        %v1534 = vpack.c.b16 %v1492, %v1489
        %v1535 = vpack.c.b16 %v1493, %v1490
        %v1536 = vpack.c.b16 %v1494, %v1491
        %v1537 = vpack.c.b16 %v1498, %v1495
        %v1538 = vpack.c.b16 %v1499, %v1496
        %v1539 = vpack.c.b16 %v1500, %v1497
        %v1540 = vpack.c.b16 %v1504, %v1501
        %v1541 = vpack.c.b16 %v1505, %v1502
        %v1542 = vpack.c.b16 %v1506, %v1503
        %v1543 = vpack.c.b16 %v1510, %v1507
        %v1544 = vpack.c.b16 %v1511, %v1508
        %v1545 = vpack.c.b16 %v1512, %v1509
        %v1546 = vpack.c.b16 %v1516, %v1513
        %v1547 = vpack.c.b16 %v1517, %v1514
        %v1548 = vpack.c.b16 %v1518, %v1515
        %v1549 = vpack.c.b16 %v1522, %v1519
        %v1550 = vpack.c.b16 %v1523, %v1520
        %v1551 = vpack.c.b16 %v1524, %v1521
        %v1552 = vpack.c.b16 %v1528, %v1525
        %v1553 = vpack.c.b16 %v1529, %v1526
        %v1554 = vpack.c.b16 %v1530, %v1527
        %1579 = vmatprep.subr.bf16.mxu0 %v1553
        %1580 = vmatpush1.bf16.msra.mxu0 %v1552
        %1581 = vmatprep.subr.bf16.mxu0 %v1550
        %1582 = vmatpush1.bf16.msra.mxu0 %v1549
        %1583 = vmatprep.subr.bf16.mxu0 %v1547
        %1584 = vmatpush1.bf16.msra.mxu0 %v1546
        %1585 = vmatprep.subr.bf16.mxu0 %v1544
        %1586 = vmatpush1.bf16.msra.mxu0 %v1543
        %1587 = vmatprep.subr.bf16.mxu0 %v1541
        %1588 = vmatpush1.bf16.msra.mxu0 %v1540
        %1589 = vmatprep.subr.bf16.mxu0 %v1538
        %1590 = vmatpush1.bf16.msra.mxu0 %v1537
        %1591 = vmatprep.subr.bf16.mxu0 %v1535
        %1592 = vmatpush1.bf16.msra.mxu0 %v1534
        %1593 = vmatprep.subr.bf16.mxu0 %v1532
        %1594 = vmatpush1.bf16.msra.mxu0 %v1531
        %1595 = vmatprep.subr.bf16.mxu0 0
        %1596 = vmatpush2.bf16.msra.mxu0 0
        %1597 = vmatprep.subr.bf16.mxu0 0
        %1598 = vmatpush2.bf16.msra.mxu0 0
        %1599 = vmatprep.subr.bf16.mxu0 0
        %1600 = vmatpush2.bf16.msra.mxu0 0
        %1601 = vmatprep.subr.bf16.mxu0 0
        %1602 = vmatpush2.bf16.msra.mxu0 0
        %1603 = vmatprep.subr.bf16.mxu0 0
        %1604 = vmatpush2.bf16.msra.mxu0 0
        %1605 = vmatprep.subr.bf16.mxu0 0
        %1606 = vmatpush2.bf16.msra.mxu0 0
        %1607 = vmatprep.subr.bf16.mxu0 0
        %1608 = vmatpush2.bf16.msra.mxu0 0
        %1609 = vmatprep.subr.bf16.mxu0 0
        %1610 = vmatpush2.bf16.msra.mxu0 0
        %1611 = vmatprep.mubr.bf16.mxu0 0
        %1612 = vmatmul.mubr.bf16.gmra.mxu0 %v1401
        %v1613 = vpop.f32.mrf.mxu0
        %v1614 = vadd.f32 %v1439, %v1613
        %v1615 = vpop.f32.mrf.mxu0
        %v1616 = vadd.f32 %v1443, %v1615
        %v1617 = vpop.f32.mrf.mxu0
        %v1618 = vpop.f32.mrf.mxu0
        %1619 = vdwg.mxu0
        %1620 = vmatprep.subr.bf16.mxu0 0
        %1621 = vmatpush1.bf16.msra.mxu0 %v1554
        %1622 = vmatprep.subr.bf16.mxu0 0
        %1623 = vmatpush1.bf16.msra.mxu0 %v1551
        %1624 = vmatprep.subr.bf16.mxu0 0
        %1625 = vmatpush1.bf16.msra.mxu0 %v1548
        %1626 = vmatprep.subr.bf16.mxu0 0
        %1627 = vmatpush1.bf16.msra.mxu0 %v1545
        %1628 = vmatprep.subr.bf16.mxu0 0
        %1629 = vmatpush1.bf16.msra.mxu0 %v1542
        %1630 = vmatprep.subr.bf16.mxu0 0
        %1631 = vmatpush1.bf16.msra.mxu0 %v1539
        %1632 = vmatprep.subr.bf16.mxu0 0
        %1633 = vmatpush1.bf16.msra.mxu0 %v1536
        %1634 = vmatprep.subr.bf16.mxu0 0
        %1635 = vmatpush1.bf16.msra.mxu0 %v1533
        %1636 = vmatprep.subr.bf16.mxu0 0
        %1637 = vmatpush2.bf16.msra.mxu0 0
        %1638 = vmatprep.subr.bf16.mxu0 0
        %1639 = vmatpush2.bf16.msra.mxu0 0
        %1640 = vmatprep.subr.bf16.mxu0 0
        %1641 = vmatpush2.bf16.msra.mxu0 0
        %1642 = vmatprep.subr.bf16.mxu0 0
        %1643 = vmatpush2.bf16.msra.mxu0 0
        %1644 = vmatprep.subr.bf16.mxu0 0
        %1645 = vmatpush2.bf16.msra.mxu0 0
        %1646 = vmatprep.subr.bf16.mxu0 0
        %1647 = vmatpush2.bf16.msra.mxu0 0
        %1648 = vmatprep.subr.bf16.mxu0 0
        %1649 = vmatpush2.bf16.msra.mxu0 0
        %1650 = vmatprep.subr.bf16.mxu0 0
        %1651 = vmatpush2.bf16.msra.mxu0 0
        %1652 = vmatprep.mubr.bf16.mxu0 0
        %1653 = vmatmul.mubr.bf16.gmra.mxu0 %v1401
        %v1654 = vpop.f32.mrf.mxu0
        %v1655 = vadd.f32 %v1447, %v1654
        %v1656 = vpop.f32.mrf.mxu0
        %v1657 = vpop.f32.mrf.mxu0
        %v1658 = vpop.f32.mrf.mxu0
        %1659 = vdwg.mxu0
        %v1660 = vmul.f32 %v1614, 0.17677669
        %v1661 = vpack.c.bf16 %v1660, %v1660
        %v1662 = vpack.c.bf16 %v1616, %v1616
        %v1663 = vpack.c.bf16 %v1655, %v1655
        %vm1664 = vcmask 261120
        %v1666 = vsel %vm1664, %v1661, 0
        %v1669 = vsel %vm1664, %v1662, 0
        %1671 = vmatprep.subr.bf16.mxu0 0
        %1672 = vmatpush1.bf16.xpose.msra.mxu0 0
        %1673 = vmatprep.subr.bf16.mxu0 0
        %1674 = vmatpush1.bf16.xpose.msra.mxu0 0
        %1675 = vmatprep.subr.bf16.mxu0 0
        %1676 = vmatpush1.bf16.xpose.msra.mxu0 0
        %1677 = vmatprep.subr.bf16.mxu0 0
        %1678 = vmatpush1.bf16.xpose.msra.mxu0 0
        %1679 = vmatprep.subr.bf16.mxu0 0
        %1680 = vmatpush1.bf16.xpose.msra.mxu0 0
        %1681 = vmatprep.subr.bf16.mxu0 0
        %1682 = vmatpush1.bf16.xpose.msra.mxu0 0
        %1683 = vmatprep.subr.bf16.mxu0 0
        %1684 = vmatpush1.bf16.xpose.msra.mxu0 0
        %1685 = vmatprep.subr.bf16.mxu0 0
        %1686 = vmatpush1.bf16.xpose.msra.mxu0 %v1669
        %1687 = vmatprep.subr.bf16.mxu0 0
        %1688 = vmatpush2.bf16.xpose.msra.mxu0 0
        %1689 = vmatprep.subr.bf16.mxu0 0
        %1690 = vmatpush2.bf16.xpose.msra.mxu0 0
        %1691 = vmatprep.subr.bf16.mxu0 0
        %1692 = vmatpush2.bf16.xpose.msra.mxu0 0
        %1693 = vmatprep.subr.bf16.mxu0 0
        %1694 = vmatpush2.bf16.xpose.msra.mxu0 0
        %1695 = vmatprep.subr.bf16.mxu0 0
        %1696 = vmatpush2.bf16.xpose.msra.mxu0 0
        %1697 = vmatprep.subr.bf16.mxu0 0
        %1698 = vmatpush2.bf16.xpose.msra.mxu0 0
        %1699 = vmatprep.subr.bf16.mxu0 0
        %1700 = vmatpush2.bf16.xpose.msra.mxu0 0
        %1701 = vmatprep.subr.bf16.mxu0 0
        %1702 = vmatpush2.bf16.xpose.msra.mxu0 0
        %1703 = vmatprep.mubr.bf16.mxu0 0
        %1704 = vmatmul.mubr.bf16.gmra.mxu0 %v1666
        %v1705 = vpop.f32.mrf.mxu0
        %v1706 = vadd.f32 %v1399, %v1705
        %v1707 = vpop.f32.mrf.mxu0
        %v1708 = vpop.f32.mrf.mxu0
        %v1709 = vpop.f32.mrf.mxu0
        %1710 = vdwg.mxu0
        %vm1711 = vcmask 64512
        %v1712 = vsel %vm1711, %v1706, -inf
        %1713 = vmax.xlane.f32.xlu0 %v1712
        %v1714 = vpop.xlane.xlu0 %1713
        %v1715 = vsub.f32 %v1706, %v1714
        %v1716 = vmul.f32 %v1715, 1.442695
        %v1717 = vpow.pop %v1716
        %v1718 = vsel %vm1711, %v1717, 0.0
        %1719 = vadd.xlane.f32.xlu0 %v1718
        %v1720 = vpop.xlane.xlu0 %1719
        %v1721 = vrcp.pop %v1720
        %v1722 = vmul.f32 %v1717, %v1721
        %v1723 = vpack.c.bf16 %v1722, %v1722
        %v1725 = vsel %vm1711, %v1723, 0
        %vm1727 = vcmask 1043456
        %v1729 = vsel %vm1727, %v1663, 0
        %1731 = vmatprep.subr.bf16.mxu0 0
        %1732 = vmatpush1.bf16.msra.mxu0 0
        %1733 = vmatprep.subr.bf16.mxu0 0
        %1734 = vmatpush1.bf16.msra.mxu0 0
        %1735 = vmatprep.subr.bf16.mxu0 0
        %1736 = vmatpush1.bf16.msra.mxu0 0
        %1737 = vmatprep.subr.bf16.mxu0 0
        %1738 = vmatpush1.bf16.msra.mxu0 0
        %1739 = vmatprep.subr.bf16.mxu0 0
        %1740 = vmatpush1.bf16.msra.mxu0 0
        %1741 = vmatprep.subr.bf16.mxu0 0
        %1742 = vmatpush1.bf16.msra.mxu0 0
        %1743 = vmatprep.subr.bf16.mxu0 0
        %1744 = vmatpush1.bf16.msra.mxu0 0
        %1745 = vmatprep.subr.bf16.mxu0 0
        %1746 = vmatpush1.bf16.msra.mxu0 %v1729
        %1747 = vmatprep.subr.bf16.mxu0 0
        %1748 = vmatpush2.bf16.msra.mxu0 0
        %1749 = vmatprep.subr.bf16.mxu0 0
        %1750 = vmatpush2.bf16.msra.mxu0 0
        %1751 = vmatprep.subr.bf16.mxu0 0
        %1752 = vmatpush2.bf16.msra.mxu0 0
        %1753 = vmatprep.subr.bf16.mxu0 0
        %1754 = vmatpush2.bf16.msra.mxu0 0
        %1755 = vmatprep.subr.bf16.mxu0 0
        %1756 = vmatpush2.bf16.msra.mxu0 0
        %1757 = vmatprep.subr.bf16.mxu0 0
        %1758 = vmatpush2.bf16.msra.mxu0 0
        %1759 = vmatprep.subr.bf16.mxu0 0
        %1760 = vmatpush2.bf16.msra.mxu0 0
        %1761 = vmatprep.subr.bf16.mxu0 0
        %1762 = vmatpush2.bf16.msra.mxu0 0
        %1763 = vmatprep.mubr.bf16.mxu0 0
        %1764 = vmatmul.mubr.bf16.gmra.mxu0 %v1725
        %v1765 = vpop.f32.mrf.mxu0
        %v1766 = vadd.f32 0.0, %v1765
        %v1767 = vpop.f32.mrf.mxu0
        %v1768 = vpop.f32.mrf.mxu0
        %v1769 = vpop.f32.mrf.mxu0
        %1770 = vdwg.mxu0
        %1771 = vst.msk [vmem:[#allocation3] sm:$0xff] %vm1664, %v1766
        %1773 = vrot.lane.b32.xlu0 %v1661, 96
        %v1774 = vpop.permute.xlu0 %1773
        %1776 = vrot.lane.b32.xlu0 %v1662, 96
        %v1777 = vpop.permute.xlu0 %1776
        %v1779 = vsel %vm1664, %v1774, 0
        %v1782 = vsel %vm1664, %v1777, 0
        %1784 = vmatprep.subr.bf16.mxu0 0
        %1785 = vmatpush1.bf16.xpose.msra.mxu0 0
        %1786 = vmatprep.subr.bf16.mxu0 0
        %1787 = vmatpush1.bf16.xpose.msra.mxu0 0
        %1788 = vmatprep.subr.bf16.mxu0 0
        %1789 = vmatpush1.bf16.xpose.msra.mxu0 0
        %1790 = vmatprep.subr.bf16.mxu0 0
        %1791 = vmatpush1.bf16.xpose.msra.mxu0 0
        %1792 = vmatprep.subr.bf16.mxu0 0
        %1793 = vmatpush1.bf16.xpose.msra.mxu0 0
        %1794 = vmatprep.subr.bf16.mxu0 0
        %1795 = vmatpush1.bf16.xpose.msra.mxu0 0
        %1796 = vmatprep.subr.bf16.mxu0 0
        %1797 = vmatpush1.bf16.xpose.msra.mxu0 0
        %1798 = vmatprep.subr.bf16.mxu0 0
        %1799 = vmatpush1.bf16.xpose.msra.mxu0 %v1782
        %1800 = vmatprep.subr.bf16.mxu0 0
        %1801 = vmatpush2.bf16.xpose.msra.mxu0 0
        %1802 = vmatprep.subr.bf16.mxu0 0
        %1803 = vmatpush2.bf16.xpose.msra.mxu0 0
        %1804 = vmatprep.subr.bf16.mxu0 0
        %1805 = vmatpush2.bf16.xpose.msra.mxu0 0
        %1806 = vmatprep.subr.bf16.mxu0 0
        %1807 = vmatpush2.bf16.xpose.msra.mxu0 0
        %1808 = vmatprep.subr.bf16.mxu0 0
        %1809 = vmatpush2.bf16.xpose.msra.mxu0 0
        %1810 = vmatprep.subr.bf16.mxu0 0
        %1811 = vmatpush2.bf16.xpose.msra.mxu0 0
        %1812 = vmatprep.subr.bf16.mxu0 0
        %1813 = vmatpush2.bf16.xpose.msra.mxu0 0
        %1814 = vmatprep.subr.bf16.mxu0 0
        %1815 = vmatpush2.bf16.xpose.msra.mxu0 0
        %1816 = vmatprep.mubr.bf16.mxu0 0
        %1817 = vmatmul.mubr.bf16.gmra.mxu0 %v1779
        %v1818 = vpop.f32.mrf.mxu0
        %v1819 = vadd.f32 %v1399, %v1818
        %v1820 = vpop.f32.mrf.mxu0
        %v1821 = vpop.f32.mrf.mxu0
        %v1822 = vpop.f32.mrf.mxu0
        %1823 = vdwg.mxu0
        %v1824 = vsel %vm1711, %v1819, -inf
        %1825 = vmax.xlane.f32.xlu0 %v1824
        %v1826 = vpop.xlane.xlu0 %1825
        %v1827 = vsub.f32 %v1819, %v1826
        %v1828 = vmul.f32 %v1827, 1.442695
        %v1829 = vpow.pop %v1828
        %v1830 = vsel %vm1711, %v1829, 0.0
        %1831 = vadd.xlane.f32.xlu0 %v1830
        %v1832 = vpop.xlane.xlu0 %1831
        %v1833 = vrcp.pop %v1832
        %v1834 = vmul.f32 %v1829, %v1833
        %v1835 = vpack.c.bf16 %v1834, %v1834
        %1837 = vrot.lane.b32.xlu0 %v1663, 96
        %v1838 = vpop.permute.xlu0 %1837
        %v1840 = vsel %vm1711, %v1835, 0
        %v1843 = vsel %vm1727, %v1838, 0
        %1845 = vmatprep.subr.bf16.mxu0 0
        %1846 = vmatpush1.bf16.msra.mxu0 0
        %1847 = vmatprep.subr.bf16.mxu0 0
        %1848 = vmatpush1.bf16.msra.mxu0 0
        %1849 = vmatprep.subr.bf16.mxu0 0
        %1850 = vmatpush1.bf16.msra.mxu0 0
        %1851 = vmatprep.subr.bf16.mxu0 0
        %1852 = vmatpush1.bf16.msra.mxu0 0
        %1853 = vmatprep.subr.bf16.mxu0 0
        %1854 = vmatpush1.bf16.msra.mxu0 0
        %1855 = vmatprep.subr.bf16.mxu0 0
        %1856 = vmatpush1.bf16.msra.mxu0 0
        %1857 = vmatprep.subr.bf16.mxu0 0
        %1858 = vmatpush1.bf16.msra.mxu0 0
        %1859 = vmatprep.subr.bf16.mxu0 0
        %1860 = vmatpush1.bf16.msra.mxu0 %v1843
        %1861 = vmatprep.subr.bf16.mxu0 0
        %1862 = vmatpush2.bf16.msra.mxu0 0
        %1863 = vmatprep.subr.bf16.mxu0 0
        %1864 = vmatpush2.bf16.msra.mxu0 0
        %1865 = vmatprep.subr.bf16.mxu0 0
        %1866 = vmatpush2.bf16.msra.mxu0 0
        %1867 = vmatprep.subr.bf16.mxu0 0
        %1868 = vmatpush2.bf16.msra.mxu0 0
        %1869 = vmatprep.subr.bf16.mxu0 0
        %1870 = vmatpush2.bf16.msra.mxu0 0
        %1871 = vmatprep.subr.bf16.mxu0 0
        %1872 = vmatpush2.bf16.msra.mxu0 0
        %1873 = vmatprep.subr.bf16.mxu0 0
        %1874 = vmatpush2.bf16.msra.mxu0 0
        %1875 = vmatprep.subr.bf16.mxu0 0
        %1876 = vmatpush2.bf16.msra.mxu0 0
        %1877 = vmatprep.mubr.bf16.mxu0 0
        %1878 = vmatmul.mubr.bf16.gmra.mxu0 %v1840
        %v1879 = vpop.f32.mrf.mxu0
        %v1880 = vadd.f32 0.0, %v1879
        %v1881 = vpop.f32.mrf.mxu0
        %v1882 = vpop.f32.mrf.mxu0
        %v1883 = vpop.f32.mrf.mxu0
        %1884 = vdwg.mxu0
        %1886 = vrot.lane.b32.xlu0 %v1880, 32
        %v1887 = vpop.permute.xlu0 %1886
        %vm1889 = vcmask 523520
        %1890 = vst.msk [vmem:[#allocation3] sm:$0xff] %vm1889, %v1887
        %1891 = vrot.lane.b32.xlu0 %v1661, 64
        %v1892 = vpop.permute.xlu0 %1891
        %1893 = vrot.lane.b32.xlu0 %v1662, 64
        %v1894 = vpop.permute.xlu0 %1893
        %v1896 = vsel %vm1664, %v1892, 0
        %v1899 = vsel %vm1664, %v1894, 0
        %1901 = vmatprep.subr.bf16.mxu0 0
        %1902 = vmatpush1.bf16.xpose.msra.mxu0 0
        %1903 = vmatprep.subr.bf16.mxu0 0
        %1904 = vmatpush1.bf16.xpose.msra.mxu0 0
        %1905 = vmatprep.subr.bf16.mxu0 0
        %1906 = vmatpush1.bf16.xpose.msra.mxu0 0
        %1907 = vmatprep.subr.bf16.mxu0 0
        %1908 = vmatpush1.bf16.xpose.msra.mxu0 0
        %1909 = vmatprep.subr.bf16.mxu0 0
        %1910 = vmatpush1.bf16.xpose.msra.mxu0 0
        %1911 = vmatprep.subr.bf16.mxu0 0
        %1912 = vmatpush1.bf16.xpose.msra.mxu0 0
        %1913 = vmatprep.subr.bf16.mxu0 0
        %1914 = vmatpush1.bf16.xpose.msra.mxu0 0
        %1915 = vmatprep.subr.bf16.mxu0 0
        %1916 = vmatpush1.bf16.xpose.msra.mxu0 %v1899
        %1917 = vmatprep.subr.bf16.mxu0 0
        %1918 = vmatpush2.bf16.xpose.msra.mxu0 0
        %1919 = vmatprep.subr.bf16.mxu0 0
        %1920 = vmatpush2.bf16.xpose.msra.mxu0 0
        %1921 = vmatprep.subr.bf16.mxu0 0
        %1922 = vmatpush2.bf16.xpose.msra.mxu0 0
        %1923 = vmatprep.subr.bf16.mxu0 0
        %1924 = vmatpush2.bf16.xpose.msra.mxu0 0
        %1925 = vmatprep.subr.bf16.mxu0 0
        %1926 = vmatpush2.bf16.xpose.msra.mxu0 0
        %1927 = vmatprep.subr.bf16.mxu0 0
        %1928 = vmatpush2.bf16.xpose.msra.mxu0 0
        %1929 = vmatprep.subr.bf16.mxu0 0
        %1930 = vmatpush2.bf16.xpose.msra.mxu0 0
        %1931 = vmatprep.subr.bf16.mxu0 0
        %1932 = vmatpush2.bf16.xpose.msra.mxu0 0
        %1933 = vmatprep.mubr.bf16.mxu0 0
        %1934 = vmatmul.mubr.bf16.gmra.mxu0 %v1896
        %v1935 = vpop.f32.mrf.mxu0
        %v1936 = vadd.f32 %v1399, %v1935
        %v1937 = vpop.f32.mrf.mxu0
        %v1938 = vpop.f32.mrf.mxu0
        %v1939 = vpop.f32.mrf.mxu0
        %1940 = vdwg.mxu0
        %v1941 = vsel %vm1711, %v1936, -inf
        %1942 = vmax.xlane.f32.xlu0 %v1941
        %v1943 = vpop.xlane.xlu0 %1942
        %v1944 = vsub.f32 %v1936, %v1943
        %v1945 = vmul.f32 %v1944, 1.442695
        %v1946 = vpow.pop %v1945
        %v1947 = vsel %vm1711, %v1946, 0.0
        %1948 = vadd.xlane.f32.xlu0 %v1947
        %v1949 = vpop.xlane.xlu0 %1948
        %v1950 = vrcp.pop %v1949
        %v1951 = vmul.f32 %v1946, %v1950
        %v1952 = vpack.c.bf16 %v1951, %v1951
        %1953 = vrot.lane.b32.xlu0 %v1663, 64
        %v1954 = vpop.permute.xlu0 %1953
        %v1956 = vsel %vm1711, %v1952, 0
        %v1959 = vsel %vm1727, %v1954, 0
        %1961 = vmatprep.subr.bf16.mxu0 0
        %1962 = vmatpush1.bf16.msra.mxu0 0
        %1963 = vmatprep.subr.bf16.mxu0 0
        %1964 = vmatpush1.bf16.msra.mxu0 0
        %1965 = vmatprep.subr.bf16.mxu0 0
        %1966 = vmatpush1.bf16.msra.mxu0 0
        %1967 = vmatprep.subr.bf16.mxu0 0
        %1968 = vmatpush1.bf16.msra.mxu0 0
        %1969 = vmatprep.subr.bf16.mxu0 0
        %1970 = vmatpush1.bf16.msra.mxu0 0
        %1971 = vmatprep.subr.bf16.mxu0 0
        %1972 = vmatpush1.bf16.msra.mxu0 0
        %1973 = vmatprep.subr.bf16.mxu0 0
        %1974 = vmatpush1.bf16.msra.mxu0 0
        %1975 = vmatprep.subr.bf16.mxu0 0
        %1976 = vmatpush1.bf16.msra.mxu0 %v1959
        %1977 = vmatprep.subr.bf16.mxu0 0
        %1978 = vmatpush2.bf16.msra.mxu0 0
        %1979 = vmatprep.subr.bf16.mxu0 0
        %1980 = vmatpush2.bf16.msra.mxu0 0
        %1981 = vmatprep.subr.bf16.mxu0 0
        %1982 = vmatpush2.bf16.msra.mxu0 0
        %1983 = vmatprep.subr.bf16.mxu0 0
        %1984 = vmatpush2.bf16.msra.mxu0 0
        %1985 = vmatprep.subr.bf16.mxu0 0
        %1986 = vmatpush2.bf16.msra.mxu0 0
        %1987 = vmatprep.subr.bf16.mxu0 0
        %1988 = vmatpush2.bf16.msra.mxu0 0
        %1989 = vmatprep.subr.bf16.mxu0 0
        %1990 = vmatpush2.bf16.msra.mxu0 0
        %1991 = vmatprep.subr.bf16.mxu0 0
        %1992 = vmatpush2.bf16.msra.mxu0 0
        %1993 = vmatprep.mubr.bf16.mxu0 0
        %1994 = vmatmul.mubr.bf16.gmra.mxu0 %v1956
        %v1995 = vpop.f32.mrf.mxu0
        %v1996 = vadd.f32 0.0, %v1995
        %v1997 = vpop.f32.mrf.mxu0
        %v1998 = vpop.f32.mrf.mxu0
        %v1999 = vpop.f32.mrf.mxu0
        %2000 = vdwg.mxu0
        %2002 = vrot.lane.b32.xlu0 %v1996, 64
        %v2003 = vpop.permute.xlu0 %2002
        %vm2005 = vcmask 785920
        %2006 = vst.msk [vmem:[#allocation3] sm:$0xff] %vm2005, %v2003
        %2007 = vrot.lane.b32.xlu0 %v1661, 32
        %v2008 = vpop.permute.xlu0 %2007
        %2009 = vrot.lane.b32.xlu0 %v1662, 32
        %v2010 = vpop.permute.xlu0 %2009
        %v2012 = vsel %vm1664, %v2008, 0
        %v2015 = vsel %vm1664, %v2010, 0
        %2017 = vmatprep.subr.bf16.mxu0 0
        %2018 = vmatpush1.bf16.xpose.msra.mxu0 0
        %2019 = vmatprep.subr.bf16.mxu0 0
        %2020 = vmatpush1.bf16.xpose.msra.mxu0 0
        %2021 = vmatprep.subr.bf16.mxu0 0
        %2022 = vmatpush1.bf16.xpose.msra.mxu0 0
        %2023 = vmatprep.subr.bf16.mxu0 0
        %2024 = vmatpush1.bf16.xpose.msra.mxu0 0
        %2025 = vmatprep.subr.bf16.mxu0 0
        %2026 = vmatpush1.bf16.xpose.msra.mxu0 0
        %2027 = vmatprep.subr.bf16.mxu0 0
        %2028 = vmatpush1.bf16.xpose.msra.mxu0 0
        %2029 = vmatprep.subr.bf16.mxu0 0
        %2030 = vmatpush1.bf16.xpose.msra.mxu0 0
        %2031 = vmatprep.subr.bf16.mxu0 0
        %2032 = vmatpush1.bf16.xpose.msra.mxu0 %v2015
        %2033 = vmatprep.subr.bf16.mxu0 0
        %2034 = vmatpush2.bf16.xpose.msra.mxu0 0
        %2035 = vmatprep.subr.bf16.mxu0 0
        %2036 = vmatpush2.bf16.xpose.msra.mxu0 0
        %2037 = vmatprep.subr.bf16.mxu0 0
        %2038 = vmatpush2.bf16.xpose.msra.mxu0 0
        %2039 = vmatprep.subr.bf16.mxu0 0
        %2040 = vmatpush2.bf16.xpose.msra.mxu0 0
        %2041 = vmatprep.subr.bf16.mxu0 0
        %2042 = vmatpush2.bf16.xpose.msra.mxu0 0
        %2043 = vmatprep.subr.bf16.mxu0 0
        %2044 = vmatpush2.bf16.xpose.msra.mxu0 0
        %2045 = vmatprep.subr.bf16.mxu0 0
        %2046 = vmatpush2.bf16.xpose.msra.mxu0 0
        %2047 = vmatprep.subr.bf16.mxu0 0
        %2048 = vmatpush2.bf16.xpose.msra.mxu0 0
        %2049 = vmatprep.mubr.bf16.mxu0 0
        %2050 = vmatmul.mubr.bf16.gmra.mxu0 %v2012
        %v2051 = vpop.f32.mrf.mxu0
        %v2052 = vadd.f32 %v1399, %v2051
        %v2053 = vpop.f32.mrf.mxu0
        %v2054 = vpop.f32.mrf.mxu0
        %v2055 = vpop.f32.mrf.mxu0
        %2056 = vdwg.mxu0
        %v2057 = vsel %vm1711, %v2052, -inf
        %2058 = vmax.xlane.f32.xlu0 %v2057
        %v2059 = vpop.xlane.xlu0 %2058
        %v2060 = vsub.f32 %v2052, %v2059
        %v2061 = vmul.f32 %v2060, 1.442695
        %v2062 = vpow.pop %v2061
        %v2063 = vsel %vm1711, %v2062, 0.0
        %2064 = vadd.xlane.f32.xlu0 %v2063
        %v2065 = vpop.xlane.xlu0 %2064
        %v2066 = vrcp.pop %v2065
        %v2067 = vmul.f32 %v2062, %v2066
        %v2068 = vpack.c.bf16 %v2067, %v2067
        %2069 = vrot.lane.b32.xlu0 %v1663, 32
        %v2070 = vpop.permute.xlu0 %2069
        %v2072 = vsel %vm1711, %v2068, 0
        %v2075 = vsel %vm1727, %v2070, 0
        %2077 = vmatprep.subr.bf16.mxu0 0
        %2078 = vmatpush1.bf16.msra.mxu0 0
        %2079 = vmatprep.subr.bf16.mxu0 0
        %2080 = vmatpush1.bf16.msra.mxu0 0
        %2081 = vmatprep.subr.bf16.mxu0 0
        %2082 = vmatpush1.bf16.msra.mxu0 0
        %2083 = vmatprep.subr.bf16.mxu0 0
        %2084 = vmatpush1.bf16.msra.mxu0 0
        %2085 = vmatprep.subr.bf16.mxu0 0
        %2086 = vmatpush1.bf16.msra.mxu0 0
        %2087 = vmatprep.subr.bf16.mxu0 0
        %2088 = vmatpush1.bf16.msra.mxu0 0
        %2089 = vmatprep.subr.bf16.mxu0 0
        %2090 = vmatpush1.bf16.msra.mxu0 0
        %2091 = vmatprep.subr.bf16.mxu0 0
        %2092 = vmatpush1.bf16.msra.mxu0 %v2075
        %2093 = vmatprep.subr.bf16.mxu0 0
        %2094 = vmatpush2.bf16.msra.mxu0 0
        %2095 = vmatprep.subr.bf16.mxu0 0
        %2096 = vmatpush2.bf16.msra.mxu0 0
        %2097 = vmatprep.subr.bf16.mxu0 0
        %2098 = vmatpush2.bf16.msra.mxu0 0
        %2099 = vmatprep.subr.bf16.mxu0 0
        %2100 = vmatpush2.bf16.msra.mxu0 0
        %2101 = vmatprep.subr.bf16.mxu0 0
        %2102 = vmatpush2.bf16.msra.mxu0 0
        %2103 = vmatprep.subr.bf16.mxu0 0
        %2104 = vmatpush2.bf16.msra.mxu0 0
        %2105 = vmatprep.subr.bf16.mxu0 0
        %2106 = vmatpush2.bf16.msra.mxu0 0
        %2107 = vmatprep.subr.bf16.mxu0 0
        %2108 = vmatpush2.bf16.msra.mxu0 0
        %2109 = vmatprep.mubr.bf16.mxu0 0
        %2110 = vmatmul.mubr.bf16.gmra.mxu0 %v2072
        %v2111 = vpop.f32.mrf.mxu0
        %v2112 = vadd.f32 0.0, %v2111
        %v2113 = vpop.f32.mrf.mxu0
        %v2114 = vpop.f32.mrf.mxu0
        %v2115 = vpop.f32.mrf.mxu0
        %2116 = vdwg.mxu0
        %2118 = vrot.lane.b32.xlu0 %v2112, 96
        %v2119 = vpop.permute.xlu0 %2118
        %vm2121 = vcmask 1048320
        %2122 = vst.msk [vmem:[#allocation3] sm:$0xff] %vm2121, %v2119
        %v2123 = vld [vmem:[#allocation3] sm:$0xff]
        %v2124 = vpack.c.bf16 %v2123, %v2123
        %v2125 = vld [vmem:[%s1082] sm:$0xf]
        %v2126 = vld [vmem:[%s1082 + $0x4] sm:$0xf]
        %v2127 = vld [vmem:[%s1082 + $0x8] sm:$0xf]
        %v2128 = vld [vmem:[%s1082 + $0xc] sm:$0xf]
        %v2129 = vld [vmem:[%s1082 + $0x10] sm:$0xf]
        %v2130 = vld [vmem:[%s1082 + $0x14] sm:$0xf]
        %v2131 = vld [vmem:[%s1082 + $0x18] sm:$0xf]
        %v2132 = vld [vmem:[%s1082 + $0x1c] sm:$0xf]
        %v2133 = vld [vmem:[%s1082 + $0x20] sm:$0xf]
        %v2134 = vld [vmem:[%s1082 + $0x24] sm:$0xf]
        %v2135 = vld [vmem:[%s1082 + $0x28] sm:$0xf]
        %v2136 = vld [vmem:[%s1082 + $0x2c] sm:$0xf]
        %v2137 = vld [vmem:[%s1082 + $0x30] sm:$0xf]
        %v2138 = vld [vmem:[%s1082 + $0x34] sm:$0xf]
        %v2139 = vld [vmem:[%s1082 + $0x38] sm:$0xf]
        %v2140 = vld [vmem:[%s1082 + $0x3c] sm:$0xf]
        %v2141 = vld [vmem:[%s1090] sm:$0x1]
        %v2143 = vlaneseq
        %v2144 = vshrl.u32 %v2143, 7
        %v2145 = vsub.s32 0, %v2144
        %v2146 = vrot.slane %v2141, %v2145
        %v2164 = vunpack.c.l.b16 %v2125
        %v2165 = vunpack.c.l.b16 %v2126
        %v2166 = vunpack.c.l.b16 %v2127
        %v2167 = vunpack.c.l.b16 %v2128
        %v2168 = vunpack.c.l.b16 %v2129
        %v2169 = vunpack.c.l.b16 %v2130
        %v2170 = vunpack.c.l.b16 %v2131
        %v2171 = vunpack.c.l.b16 %v2132
        %v2172 = vunpack.c.l.b16 %v2133
        %v2173 = vunpack.c.l.b16 %v2134
        %v2174 = vunpack.c.l.b16 %v2135
        %v2175 = vunpack.c.l.b16 %v2136
        %v2176 = vunpack.c.l.b16 %v2137
        %v2177 = vunpack.c.l.b16 %v2138
        %v2178 = vunpack.c.l.b16 %v2139
        %v2179 = vunpack.c.l.b16 %v2140
        %v2180 = vpack.c.b16 %v2165, %v2164
        %v2181 = vpack.c.b16 %v2167, %v2166
        %v2182 = vpack.c.b16 %v2169, %v2168
        %v2183 = vpack.c.b16 %v2171, %v2170
        %v2184 = vpack.c.b16 %v2173, %v2172
        %v2185 = vpack.c.b16 %v2175, %v2174
        %v2186 = vpack.c.b16 %v2177, %v2176
        %v2187 = vpack.c.b16 %v2179, %v2178
        %2196 = vmatprep.subr.bf16.mxu0 0
        %2197 = vmatpush1.bf16.msra.mxu0 %v2187
        %2198 = vmatprep.subr.bf16.mxu0 0
        %2199 = vmatpush1.bf16.msra.mxu0 %v2186
        %2200 = vmatprep.subr.bf16.mxu0 0
        %2201 = vmatpush1.bf16.msra.mxu0 %v2185
        %2202 = vmatprep.subr.bf16.mxu0 0
        %2203 = vmatpush1.bf16.msra.mxu0 %v2184
        %2204 = vmatprep.subr.bf16.mxu0 0
        %2205 = vmatpush1.bf16.msra.mxu0 %v2183
        %2206 = vmatprep.subr.bf16.mxu0 0
        %2207 = vmatpush1.bf16.msra.mxu0 %v2182
        %2208 = vmatprep.subr.bf16.mxu0 0
        %2209 = vmatpush1.bf16.msra.mxu0 %v2181
        %2210 = vmatprep.subr.bf16.mxu0 0
        %2211 = vmatpush1.bf16.msra.mxu0 %v2180
        %2212 = vmatprep.subr.bf16.mxu0 0
        %2213 = vmatpush2.bf16.msra.mxu0 0
        %2214 = vmatprep.subr.bf16.mxu0 0
        %2215 = vmatpush2.bf16.msra.mxu0 0
        %2216 = vmatprep.subr.bf16.mxu0 0
        %2217 = vmatpush2.bf16.msra.mxu0 0
        %2218 = vmatprep.subr.bf16.mxu0 0
        %2219 = vmatpush2.bf16.msra.mxu0 0
        %2220 = vmatprep.subr.bf16.mxu0 0
        %2221 = vmatpush2.bf16.msra.mxu0 0
        %2222 = vmatprep.subr.bf16.mxu0 0
        %2223 = vmatpush2.bf16.msra.mxu0 0
        %2224 = vmatprep.subr.bf16.mxu0 0
        %2225 = vmatpush2.bf16.msra.mxu0 0
        %2226 = vmatprep.subr.bf16.mxu0 0
        %2227 = vmatpush2.bf16.msra.mxu0 0
        %2228 = vmatprep.mubr.bf16.mxu0 0
        %2229 = vmatmul.mubr.bf16.gmra.mxu0 %v2124
        %v2230 = vpop.f32.mrf.mxu0
        %v2231 = vadd.f32 %v2146, %v2230
        %v2232 = vpop.f32.mrf.mxu0
        %v2233 = vpop.f32.mrf.mxu0
        %v2234 = vpop.f32.mrf.mxu0
        %2235 = vdwg.mxu0
        %v2236 = vadd.f32 %v1384, %v2231
        %v2237 = vld [vmem:[%s1098] sm:$0x1]
        %v2238 = vld [vmem:[%s1106] sm:$0x1]
        %2239 = vadd.xlane.f32.xlu0 %v2236
        %v2240 = vpop.xlane.xlu0 %2239
        %v2241 = vrcp.pop 128.0
        %v2242 = vmul.f32 %v2240, %v2241
        %v2243 = vsub.f32 %v2236, %v2242
        %v2244 = vmul.f32 %v2243, %v2243
        %2245 = vadd.xlane.f32.xlu0 %v2244
        %v2246 = vpop.xlane.xlu0 %2245
        %v2247 = vmul.f32 %v2246, %v2241
        %v2248 = vadd.f32 %v2247, 1e-05
        %v2249 = vrsqrt.pop %v2248
        %v2250 = vmul.f32 %v2243, %v2249
        %v2252 = vlaneseq
        %v2253 = vshrl.u32 %v2252, 7
        %v2254 = vsub.s32 0, %v2253
        %v2255 = vrot.slane %v2237, %v2254
        %v2257 = vmul.f32 %v2250, %v2255
        %v2259 = vlaneseq
        %v2260 = vshrl.u32 %v2259, 7
        %v2261 = vsub.s32 0, %v2260
        %v2262 = vrot.slane %v2238, %v2261
        %v2264 = vadd.f32 %v2257, %v2262
        %v2265 = vpack.c.bf16 %v2264, %v2264
        %v2266 = vld [vmem:[%s1115] sm:$0xf]
        %v2267 = vld [vmem:[%s1115 + $0x4] sm:$0xf]
        %v2268 = vld [vmem:[%s1115 + $0x8] sm:$0xf]
        %v2269 = vld [vmem:[%s1115 + $0xc] sm:$0xf]
        %v2270 = vld [vmem:[%s1115 + $0x10] sm:$0xf]
        %v2271 = vld [vmem:[%s1115 + $0x14] sm:$0xf]
        %v2272 = vld [vmem:[%s1115 + $0x18] sm:$0xf]
        %v2273 = vld [vmem:[%s1115 + $0x1c] sm:$0xf]
        %v2274 = vld [vmem:[%s1115 + $0x20] sm:$0xf]
        %v2275 = vld [vmem:[%s1115 + $0x24] sm:$0xf]
        %v2276 = vld [vmem:[%s1115 + $0x28] sm:$0xf]
        %v2277 = vld [vmem:[%s1115 + $0x2c] sm:$0xf]
        %v2278 = vld [vmem:[%s1115 + $0x30] sm:$0xf]
        %v2279 = vld [vmem:[%s1115 + $0x34] sm:$0xf]
        %v2280 = vld [vmem:[%s1115 + $0x38] sm:$0xf]
        %v2281 = vld [vmem:[%s1115 + $0x3c] sm:$0xf]
        %v2282 = vld [vmem:[%s1347] sm:$0x1]
        %v2284 = vlaneseq
        %v2285 = vshrl.u32 %v2284, 7
        %v2286 = vsub.s32 0, %v2285
        %v2287 = vrot.slane %v2282, %v2286
        %v2305 = vunpack.c.l.b16 %v2266
        %v2306 = vunpack.c.l.b16 %v2267
        %v2307 = vunpack.c.l.b16 %v2268
        %v2308 = vunpack.c.l.b16 %v2269
        %v2309 = vunpack.c.l.b16 %v2270
        %v2310 = vunpack.c.l.b16 %v2271
        %v2311 = vunpack.c.l.b16 %v2272
        %v2312 = vunpack.c.l.b16 %v2273
        %v2313 = vunpack.c.l.b16 %v2274
        %v2314 = vunpack.c.l.b16 %v2275
        %v2315 = vunpack.c.l.b16 %v2276
        %v2316 = vunpack.c.l.b16 %v2277
        %v2317 = vunpack.c.l.b16 %v2278
        %v2318 = vunpack.c.l.b16 %v2279
        %v2319 = vunpack.c.l.b16 %v2280
        %v2320 = vunpack.c.l.b16 %v2281
        %v2321 = vpack.c.b16 %v2306, %v2305
        %v2322 = vpack.c.b16 %v2308, %v2307
        %v2323 = vpack.c.b16 %v2310, %v2309
        %v2324 = vpack.c.b16 %v2312, %v2311
        %v2325 = vpack.c.b16 %v2314, %v2313
        %v2326 = vpack.c.b16 %v2316, %v2315
        %v2327 = vpack.c.b16 %v2318, %v2317
        %v2328 = vpack.c.b16 %v2320, %v2319
        %2337 = vmatprep.subr.bf16.mxu0 0
        %2338 = vmatpush1.bf16.msra.mxu0 %v2328
        %2339 = vmatprep.subr.bf16.mxu0 0
        %2340 = vmatpush1.bf16.msra.mxu0 %v2327
        %2341 = vmatprep.subr.bf16.mxu0 0
        %2342 = vmatpush1.bf16.msra.mxu0 %v2326
        %2343 = vmatprep.subr.bf16.mxu0 0
        %2344 = vmatpush1.bf16.msra.mxu0 %v2325
        %2345 = vmatprep.subr.bf16.mxu0 0
        %2346 = vmatpush1.bf16.msra.mxu0 %v2324
        %2347 = vmatprep.subr.bf16.mxu0 0
        %2348 = vmatpush1.bf16.msra.mxu0 %v2323
        %2349 = vmatprep.subr.bf16.mxu0 0
        %2350 = vmatpush1.bf16.msra.mxu0 %v2322
        %2351 = vmatprep.subr.bf16.mxu0 0
        %2352 = vmatpush1.bf16.msra.mxu0 %v2321
        %2353 = vmatprep.subr.bf16.mxu0 0
        %2354 = vmatpush2.bf16.msra.mxu0 0
        %2355 = vmatprep.subr.bf16.mxu0 0
        %2356 = vmatpush2.bf16.msra.mxu0 0
        %2357 = vmatprep.subr.bf16.mxu0 0
        %2358 = vmatpush2.bf16.msra.mxu0 0
        %2359 = vmatprep.subr.bf16.mxu0 0
        %2360 = vmatpush2.bf16.msra.mxu0 0
        %2361 = vmatprep.subr.bf16.mxu0 0
        %2362 = vmatpush2.bf16.msra.mxu0 0
        %2363 = vmatprep.subr.bf16.mxu0 0
        %2364 = vmatpush2.bf16.msra.mxu0 0
        %2365 = vmatprep.subr.bf16.mxu0 0
        %2366 = vmatpush2.bf16.msra.mxu0 0
        %2367 = vmatprep.subr.bf16.mxu0 0
        %2368 = vmatpush2.bf16.msra.mxu0 0
        %2369 = vmatprep.mubr.bf16.mxu0 0
        %2370 = vmatmul.mubr.bf16.gmra.mxu0 %v2265
        %v2371 = vpop.f32.mrf.mxu0
        %v2372 = vadd.f32 %v2287, %v2371
        %v2373 = vpop.f32.mrf.mxu0
        %v2374 = vpop.f32.mrf.mxu0
        %v2375 = vpop.f32.mrf.mxu0
        %2376 = vdwg.mxu0
        %v2377 = vpack.c.bf16 %v1385, %v1385
        %v2378 = vld [vmem:[%s1352] sm:$0xff]
        %v2379 = vld [vmem:[%s1352 + $0x8] sm:$0xff]
        %v2380 = vld [vmem:[%s1352 + $0x10] sm:$0xff]
        %v2381 = vld [vmem:[%s1352 + $0x18] sm:$0xff]
        %v2382 = vld [vmem:[%s1352 + $0x20] sm:$0xff]
        %v2383 = vld [vmem:[%s1352 + $0x28] sm:$0xff]
        %v2384 = vld [vmem:[%s1352 + $0x30] sm:$0xff]
        %v2385 = vld [vmem:[%s1352 + $0x38] sm:$0xff]
        %v2386 = vld [vmem:[%s1352 + $0x40] sm:$0xff]
        %v2387 = vld [vmem:[%s1352 + $0x48] sm:$0xff]
        %v2388 = vld [vmem:[%s1352 + $0x50] sm:$0xff]
        %v2389 = vld [vmem:[%s1352 + $0x58] sm:$0xff]
        %v2390 = vld [vmem:[%s1352 + $0x60] sm:$0xff]
        %v2391 = vld [vmem:[%s1352 + $0x68] sm:$0xff]
        %v2392 = vld [vmem:[%s1352 + $0x70] sm:$0xff]
        %v2393 = vld [vmem:[%s1352 + $0x78] sm:$0xff]
        %v2394 = vld [vmem:[%s1356] sm:$0x3]
        %v2396 = vlaneseq
        %v2397 = vshrl.u32 %v2396, 7
        %v2398 = vsub.s32 0, %v2397
        %v2399 = vrot.slane %v2394, %v2398
        %v2400 = vlaneseq
        %v2401 = vshrl.u32 %v2400, 7
        %v2402 = vsub.s32 1, %v2401
        %v2403 = vrot.slane %v2394, %v2402
        %v2422 = vunpack.c.l.b16 %v2378
        %v2423 = vunpack.c.h.b16 %v2378
        %v2424 = vunpack.c.l.b16 %v2379
        %v2425 = vunpack.c.h.b16 %v2379
        %v2426 = vunpack.c.l.b16 %v2380
        %v2427 = vunpack.c.h.b16 %v2380
        %v2428 = vunpack.c.l.b16 %v2381
        %v2429 = vunpack.c.h.b16 %v2381
        %v2430 = vunpack.c.l.b16 %v2382
        %v2431 = vunpack.c.h.b16 %v2382
        %v2432 = vunpack.c.l.b16 %v2383
        %v2433 = vunpack.c.h.b16 %v2383
        %v2434 = vunpack.c.l.b16 %v2384
        %v2435 = vunpack.c.h.b16 %v2384
        %v2436 = vunpack.c.l.b16 %v2385
        %v2437 = vunpack.c.h.b16 %v2385
        %v2438 = vunpack.c.l.b16 %v2386
        %v2439 = vunpack.c.h.b16 %v2386
        %v2440 = vunpack.c.l.b16 %v2387
        %v2441 = vunpack.c.h.b16 %v2387
        %v2442 = vunpack.c.l.b16 %v2388
        %v2443 = vunpack.c.h.b16 %v2388
        %v2444 = vunpack.c.l.b16 %v2389
        %v2445 = vunpack.c.h.b16 %v2389
        %v2446 = vunpack.c.l.b16 %v2390
        %v2447 = vunpack.c.h.b16 %v2390
        %v2448 = vunpack.c.l.b16 %v2391
        %v2449 = vunpack.c.h.b16 %v2391
        %v2450 = vunpack.c.l.b16 %v2392
        %v2451 = vunpack.c.h.b16 %v2392
        %v2452 = vunpack.c.l.b16 %v2393
        %v2453 = vunpack.c.h.b16 %v2393
        %v2454 = vpack.c.b16 %v2424, %v2422
        %v2455 = vpack.c.b16 %v2425, %v2423
        %v2456 = vpack.c.b16 %v2428, %v2426
        %v2457 = vpack.c.b16 %v2429, %v2427
        %v2458 = vpack.c.b16 %v2432, %v2430
        %v2459 = vpack.c.b16 %v2433, %v2431
        %v2460 = vpack.c.b16 %v2436, %v2434
        %v2461 = vpack.c.b16 %v2437, %v2435
        %v2462 = vpack.c.b16 %v2440, %v2438
        %v2463 = vpack.c.b16 %v2441, %v2439
        %v2464 = vpack.c.b16 %v2444, %v2442
        %v2465 = vpack.c.b16 %v2445, %v2443
        %v2466 = vpack.c.b16 %v2448, %v2446
        %v2467 = vpack.c.b16 %v2449, %v2447
        %v2468 = vpack.c.b16 %v2452, %v2450
        %v2469 = vpack.c.b16 %v2453, %v2451
        %2486 = vmatprep.subr.bf16.mxu0 %v2469
        %2487 = vmatpush1.bf16.msra.mxu0 %v2468
        %2488 = vmatprep.subr.bf16.mxu0 %v2467
        %2489 = vmatpush1.bf16.msra.mxu0 %v2466
        %2490 = vmatprep.subr.bf16.mxu0 %v2465
        %2491 = vmatpush1.bf16.msra.mxu0 %v2464
        %2492 = vmatprep.subr.bf16.mxu0 %v2463
        %2493 = vmatpush1.bf16.msra.mxu0 %v2462
        %2494 = vmatprep.subr.bf16.mxu0 %v2461
        %2495 = vmatpush1.bf16.msra.mxu0 %v2460
        %2496 = vmatprep.subr.bf16.mxu0 %v2459
        %2497 = vmatpush1.bf16.msra.mxu0 %v2458
        %2498 = vmatprep.subr.bf16.mxu0 %v2457
        %2499 = vmatpush1.bf16.msra.mxu0 %v2456
        %2500 = vmatprep.subr.bf16.mxu0 %v2455
        %2501 = vmatpush1.bf16.msra.mxu0 %v2454
        %2502 = vmatprep.subr.bf16.mxu0 0
        %2503 = vmatpush2.bf16.msra.mxu0 0
        %2504 = vmatprep.subr.bf16.mxu0 0
        %2505 = vmatpush2.bf16.msra.mxu0 0
        %2506 = vmatprep.subr.bf16.mxu0 0
        %2507 = vmatpush2.bf16.msra.mxu0 0
        %2508 = vmatprep.subr.bf16.mxu0 0
        %2509 = vmatpush2.bf16.msra.mxu0 0
        %2510 = vmatprep.subr.bf16.mxu0 0
        %2511 = vmatpush2.bf16.msra.mxu0 0
        %2512 = vmatprep.subr.bf16.mxu0 0
        %2513 = vmatpush2.bf16.msra.mxu0 0
        %2514 = vmatprep.subr.bf16.mxu0 0
        %2515 = vmatpush2.bf16.msra.mxu0 0
        %2516 = vmatprep.subr.bf16.mxu0 0
        %2517 = vmatpush2.bf16.msra.mxu0 0
        %2518 = vmatprep.mubr.bf16.mxu0 0
        %2519 = vmatmul.mubr.bf16.gmra.mxu0 %v2377
        %v2520 = vpop.f32.mrf.mxu0
        %v2521 = vadd.f32 %v2399, %v2520
        %v2522 = vpop.f32.mrf.mxu0
        %v2523 = vadd.f32 %v2403, %v2522
        %v2524 = vpop.f32.mrf.mxu0
        %v2525 = vpop.f32.mrf.mxu0
        %2526 = vdwg.mxu0
        %v2527 = vmul.f32 %v2372, 0.17677669
        %v2528 = vpack.c.bf16 %v2527, %v2527
        %v2529 = vpack.c.bf16 %v2521, %v2521
        %v2530 = vpack.c.bf16 %v2523, %v2523
        %v2532 = vlaneseq
        %v2533 = vshrl.u32 %v2532, 7
        %v2534 = vsub.s32 0, %v2533
        %v2535 = vrot.slane %v1400, %v2534
        %v2538 = vsel %vm1664, %v2528, 0
        %v2541 = vsel %vm1664, %v2529, 0
        %2543 = vmatprep.subr.bf16.mxu0 0
        %2544 = vmatpush1.bf16.xpose.msra.mxu0 0
        %2545 = vmatprep.subr.bf16.mxu0 0
        %2546 = vmatpush1.bf16.xpose.msra.mxu0 0
        %2547 = vmatprep.subr.bf16.mxu0 0
        %2548 = vmatpush1.bf16.xpose.msra.mxu0 0
        %2549 = vmatprep.subr.bf16.mxu0 0
        %2550 = vmatpush1.bf16.xpose.msra.mxu0 0
        %2551 = vmatprep.subr.bf16.mxu0 0
        %2552 = vmatpush1.bf16.xpose.msra.mxu0 0
        %2553 = vmatprep.subr.bf16.mxu0 0
        %2554 = vmatpush1.bf16.xpose.msra.mxu0 0
        %2555 = vmatprep.subr.bf16.mxu0 0
        %2556 = vmatpush1.bf16.xpose.msra.mxu0 0
        %2557 = vmatprep.subr.bf16.mxu0 0
        %2558 = vmatpush1.bf16.xpose.msra.mxu0 %v2541
        %2559 = vmatprep.subr.bf16.mxu0 0
        %2560 = vmatpush2.bf16.xpose.msra.mxu0 0
        %2561 = vmatprep.subr.bf16.mxu0 0
        %2562 = vmatpush2.bf16.xpose.msra.mxu0 0
        %2563 = vmatprep.subr.bf16.mxu0 0
        %2564 = vmatpush2.bf16.xpose.msra.mxu0 0
        %2565 = vmatprep.subr.bf16.mxu0 0
        %2566 = vmatpush2.bf16.xpose.msra.mxu0 0
        %2567 = vmatprep.subr.bf16.mxu0 0
        %2568 = vmatpush2.bf16.xpose.msra.mxu0 0
        %2569 = vmatprep.subr.bf16.mxu0 0
        %2570 = vmatpush2.bf16.xpose.msra.mxu0 0
        %2571 = vmatprep.subr.bf16.mxu0 0
        %2572 = vmatpush2.bf16.xpose.msra.mxu0 0
        %2573 = vmatprep.subr.bf16.mxu0 0
        %2574 = vmatpush2.bf16.xpose.msra.mxu0 0
        %2575 = vmatprep.mubr.bf16.mxu0 0
        %2576 = vmatmul.mubr.bf16.gmra.mxu0 %v2538
        %v2577 = vpop.f32.mrf.mxu0
        %v2578 = vadd.f32 %v2535, %v2577
        %v2579 = vpop.f32.mrf.mxu0
        %v2580 = vpop.f32.mrf.mxu0
        %v2581 = vpop.f32.mrf.mxu0
        %2582 = vdwg.mxu0
        %v2583 = vsel %vm1711, %v2578, -inf
        %2584 = vmax.xlane.f32.xlu0 %v2583
        %v2585 = vpop.xlane.xlu0 %2584
        %v2586 = vsub.f32 %v2578, %v2585
        %v2587 = vmul.f32 %v2586, 1.442695
        %v2588 = vpow.pop %v2587
        %v2589 = vsel %vm1711, %v2588, 0.0
        %2590 = vadd.xlane.f32.xlu0 %v2589
        %v2591 = vpop.xlane.xlu0 %2590
        %v2592 = vrcp.pop %v2591
        %v2593 = vmul.f32 %v2588, %v2592
        %v2594 = vpack.c.bf16 %v2593, %v2593
        %v2596 = vsel %vm1711, %v2594, 0
        %v2599 = vsel %vm1727, %v2530, 0
        %2601 = vmatprep.subr.bf16.mxu0 0
        %2602 = vmatpush1.bf16.msra.mxu0 0
        %2603 = vmatprep.subr.bf16.mxu0 0
        %2604 = vmatpush1.bf16.msra.mxu0 0
        %2605 = vmatprep.subr.bf16.mxu0 0
        %2606 = vmatpush1.bf16.msra.mxu0 0
        %2607 = vmatprep.subr.bf16.mxu0 0
        %2608 = vmatpush1.bf16.msra.mxu0 0
        %2609 = vmatprep.subr.bf16.mxu0 0
        %2610 = vmatpush1.bf16.msra.mxu0 0
        %2611 = vmatprep.subr.bf16.mxu0 0
        %2612 = vmatpush1.bf16.msra.mxu0 0
        %2613 = vmatprep.subr.bf16.mxu0 0
        %2614 = vmatpush1.bf16.msra.mxu0 0
        %2615 = vmatprep.subr.bf16.mxu0 0
        %2616 = vmatpush1.bf16.msra.mxu0 %v2599
        %2617 = vmatprep.subr.bf16.mxu0 0
        %2618 = vmatpush2.bf16.msra.mxu0 0
        %2619 = vmatprep.subr.bf16.mxu0 0
        %2620 = vmatpush2.bf16.msra.mxu0 0
        %2621 = vmatprep.subr.bf16.mxu0 0
        %2622 = vmatpush2.bf16.msra.mxu0 0
        %2623 = vmatprep.subr.bf16.mxu0 0
        %2624 = vmatpush2.bf16.msra.mxu0 0
        %2625 = vmatprep.subr.bf16.mxu0 0
        %2626 = vmatpush2.bf16.msra.mxu0 0
        %2627 = vmatprep.subr.bf16.mxu0 0
        %2628 = vmatpush2.bf16.msra.mxu0 0
        %2629 = vmatprep.subr.bf16.mxu0 0
        %2630 = vmatpush2.bf16.msra.mxu0 0
        %2631 = vmatprep.subr.bf16.mxu0 0
        %2632 = vmatpush2.bf16.msra.mxu0 0
        %2633 = vmatprep.mubr.bf16.mxu0 0
        %2634 = vmatmul.mubr.bf16.gmra.mxu0 %v2596
        %v2635 = vpop.f32.mrf.mxu0
        %v2636 = vadd.f32 0.0, %v2635
        %v2637 = vpop.f32.mrf.mxu0
        %v2638 = vpop.f32.mrf.mxu0
        %v2639 = vpop.f32.mrf.mxu0
        %2640 = vdwg.mxu0
        %2641 = vst.msk [vmem:[#allocation3] sm:$0xff] %vm1664, %v2636
        %2643 = vrot.lane.b32.xlu0 %v2528, 96
        %v2644 = vpop.permute.xlu0 %2643
        %2646 = vrot.lane.b32.xlu0 %v2529, 96
        %v2647 = vpop.permute.xlu0 %2646
        %v2649 = vsel %vm1664, %v2644, 0
        %v2652 = vsel %vm1664, %v2647, 0
        %2654 = vmatprep.subr.bf16.mxu0 0
        %2655 = vmatpush1.bf16.xpose.msra.mxu0 0
        %2656 = vmatprep.subr.bf16.mxu0 0
        %2657 = vmatpush1.bf16.xpose.msra.mxu0 0
        %2658 = vmatprep.subr.bf16.mxu0 0
        %2659 = vmatpush1.bf16.xpose.msra.mxu0 0
        %2660 = vmatprep.subr.bf16.mxu0 0
        %2661 = vmatpush1.bf16.xpose.msra.mxu0 0
        %2662 = vmatprep.subr.bf16.mxu0 0
        %2663 = vmatpush1.bf16.xpose.msra.mxu0 0
        %2664 = vmatprep.subr.bf16.mxu0 0
        %2665 = vmatpush1.bf16.xpose.msra.mxu0 0
        %2666 = vmatprep.subr.bf16.mxu0 0
        %2667 = vmatpush1.bf16.xpose.msra.mxu0 0
        %2668 = vmatprep.subr.bf16.mxu0 0
        %2669 = vmatpush1.bf16.xpose.msra.mxu0 %v2652
        %2670 = vmatprep.subr.bf16.mxu0 0
        %2671 = vmatpush2.bf16.xpose.msra.mxu0 0
        %2672 = vmatprep.subr.bf16.mxu0 0
        %2673 = vmatpush2.bf16.xpose.msra.mxu0 0
        %2674 = vmatprep.subr.bf16.mxu0 0
        %2675 = vmatpush2.bf16.xpose.msra.mxu0 0
        %2676 = vmatprep.subr.bf16.mxu0 0
        %2677 = vmatpush2.bf16.xpose.msra.mxu0 0
        %2678 = vmatprep.subr.bf16.mxu0 0
        %2679 = vmatpush2.bf16.xpose.msra.mxu0 0
        %2680 = vmatprep.subr.bf16.mxu0 0
        %2681 = vmatpush2.bf16.xpose.msra.mxu0 0
        %2682 = vmatprep.subr.bf16.mxu0 0
        %2683 = vmatpush2.bf16.xpose.msra.mxu0 0
        %2684 = vmatprep.subr.bf16.mxu0 0
        %2685 = vmatpush2.bf16.xpose.msra.mxu0 0
        %2686 = vmatprep.mubr.bf16.mxu0 0
        %2687 = vmatmul.mubr.bf16.gmra.mxu0 %v2649
        %v2688 = vpop.f32.mrf.mxu0
        %v2689 = vadd.f32 %v2535, %v2688
        %v2690 = vpop.f32.mrf.mxu0
        %v2691 = vpop.f32.mrf.mxu0
        %v2692 = vpop.f32.mrf.mxu0
        %2693 = vdwg.mxu0
        %v2694 = vsel %vm1711, %v2689, -inf
        %2695 = vmax.xlane.f32.xlu0 %v2694
        %v2696 = vpop.xlane.xlu0 %2695
        %v2697 = vsub.f32 %v2689, %v2696
        %v2698 = vmul.f32 %v2697, 1.442695
        %v2699 = vpow.pop %v2698
        %v2700 = vsel %vm1711, %v2699, 0.0
        %2701 = vadd.xlane.f32.xlu0 %v2700
        %v2702 = vpop.xlane.xlu0 %2701
        %v2703 = vrcp.pop %v2702
        %v2704 = vmul.f32 %v2699, %v2703
        %v2705 = vpack.c.bf16 %v2704, %v2704
        %2707 = vrot.lane.b32.xlu0 %v2530, 96
        %v2708 = vpop.permute.xlu0 %2707
        %v2710 = vsel %vm1711, %v2705, 0
        %v2713 = vsel %vm1727, %v2708, 0
        %2715 = vmatprep.subr.bf16.mxu0 0
        %2716 = vmatpush1.bf16.msra.mxu0 0
        %2717 = vmatprep.subr.bf16.mxu0 0
        %2718 = vmatpush1.bf16.msra.mxu0 0
        %2719 = vmatprep.subr.bf16.mxu0 0
        %2720 = vmatpush1.bf16.msra.mxu0 0
        %2721 = vmatprep.subr.bf16.mxu0 0
        %2722 = vmatpush1.bf16.msra.mxu0 0
        %2723 = vmatprep.subr.bf16.mxu0 0
        %2724 = vmatpush1.bf16.msra.mxu0 0
        %2725 = vmatprep.subr.bf16.mxu0 0
        %2726 = vmatpush1.bf16.msra.mxu0 0
        %2727 = vmatprep.subr.bf16.mxu0 0
        %2728 = vmatpush1.bf16.msra.mxu0 0
        %2729 = vmatprep.subr.bf16.mxu0 0
        %2730 = vmatpush1.bf16.msra.mxu0 %v2713
        %2731 = vmatprep.subr.bf16.mxu0 0
        %2732 = vmatpush2.bf16.msra.mxu0 0
        %2733 = vmatprep.subr.bf16.mxu0 0
        %2734 = vmatpush2.bf16.msra.mxu0 0
        %2735 = vmatprep.subr.bf16.mxu0 0
        %2736 = vmatpush2.bf16.msra.mxu0 0
        %2737 = vmatprep.subr.bf16.mxu0 0
        %2738 = vmatpush2.bf16.msra.mxu0 0
        %2739 = vmatprep.subr.bf16.mxu0 0
        %2740 = vmatpush2.bf16.msra.mxu0 0
        %2741 = vmatprep.subr.bf16.mxu0 0
        %2742 = vmatpush2.bf16.msra.mxu0 0
        %2743 = vmatprep.subr.bf16.mxu0 0
        %2744 = vmatpush2.bf16.msra.mxu0 0
        %2745 = vmatprep.subr.bf16.mxu0 0
        %2746 = vmatpush2.bf16.msra.mxu0 0
        %2747 = vmatprep.mubr.bf16.mxu0 0
        %2748 = vmatmul.mubr.bf16.gmra.mxu0 %v2710
        %v2749 = vpop.f32.mrf.mxu0
        %v2750 = vadd.f32 0.0, %v2749
        %v2751 = vpop.f32.mrf.mxu0
        %v2752 = vpop.f32.mrf.mxu0
        %v2753 = vpop.f32.mrf.mxu0
        %2754 = vdwg.mxu0
        %2756 = vrot.lane.b32.xlu0 %v2750, 32
        %v2757 = vpop.permute.xlu0 %2756
        %2759 = vst.msk [vmem:[#allocation3] sm:$0xff] %vm1889, %v2757
        %2760 = vrot.lane.b32.xlu0 %v2528, 64
        %v2761 = vpop.permute.xlu0 %2760
        %2762 = vrot.lane.b32.xlu0 %v2529, 64
        %v2763 = vpop.permute.xlu0 %2762
        %v2765 = vsel %vm1664, %v2761, 0
        %v2768 = vsel %vm1664, %v2763, 0
        %2770 = vmatprep.subr.bf16.mxu0 0
        %2771 = vmatpush1.bf16.xpose.msra.mxu0 0
        %2772 = vmatprep.subr.bf16.mxu0 0
        %2773 = vmatpush1.bf16.xpose.msra.mxu0 0
        %2774 = vmatprep.subr.bf16.mxu0 0
        %2775 = vmatpush1.bf16.xpose.msra.mxu0 0
        %2776 = vmatprep.subr.bf16.mxu0 0
        %2777 = vmatpush1.bf16.xpose.msra.mxu0 0
        %2778 = vmatprep.subr.bf16.mxu0 0
        %2779 = vmatpush1.bf16.xpose.msra.mxu0 0
        %2780 = vmatprep.subr.bf16.mxu0 0
        %2781 = vmatpush1.bf16.xpose.msra.mxu0 0
        %2782 = vmatprep.subr.bf16.mxu0 0
        %2783 = vmatpush1.bf16.xpose.msra.mxu0 0
        %2784 = vmatprep.subr.bf16.mxu0 0
        %2785 = vmatpush1.bf16.xpose.msra.mxu0 %v2768
        %2786 = vmatprep.subr.bf16.mxu0 0
        %2787 = vmatpush2.bf16.xpose.msra.mxu0 0
        %2788 = vmatprep.subr.bf16.mxu0 0
        %2789 = vmatpush2.bf16.xpose.msra.mxu0 0
        %2790 = vmatprep.subr.bf16.mxu0 0
        %2791 = vmatpush2.bf16.xpose.msra.mxu0 0
        %2792 = vmatprep.subr.bf16.mxu0 0
        %2793 = vmatpush2.bf16.xpose.msra.mxu0 0
        %2794 = vmatprep.subr.bf16.mxu0 0
        %2795 = vmatpush2.bf16.xpose.msra.mxu0 0
        %2796 = vmatprep.subr.bf16.mxu0 0
        %2797 = vmatpush2.bf16.xpose.msra.mxu0 0
        %2798 = vmatprep.subr.bf16.mxu0 0
        %2799 = vmatpush2.bf16.xpose.msra.mxu0 0
        %2800 = vmatprep.subr.bf16.mxu0 0
        %2801 = vmatpush2.bf16.xpose.msra.mxu0 0
        %2802 = vmatprep.mubr.bf16.mxu0 0
        %2803 = vmatmul.mubr.bf16.gmra.mxu0 %v2765
        %v2804 = vpop.f32.mrf.mxu0
        %v2805 = vadd.f32 %v2535, %v2804
        %v2806 = vpop.f32.mrf.mxu0
        %v2807 = vpop.f32.mrf.mxu0
        %v2808 = vpop.f32.mrf.mxu0
        %2809 = vdwg.mxu0
        %v2810 = vsel %vm1711, %v2805, -inf
        %2811 = vmax.xlane.f32.xlu0 %v2810
        %v2812 = vpop.xlane.xlu0 %2811
        %v2813 = vsub.f32 %v2805, %v2812
        %v2814 = vmul.f32 %v2813, 1.442695
        %v2815 = vpow.pop %v2814
        %v2816 = vsel %vm1711, %v2815, 0.0
        %2817 = vadd.xlane.f32.xlu0 %v2816
        %v2818 = vpop.xlane.xlu0 %2817
        %v2819 = vrcp.pop %v2818
        %v2820 = vmul.f32 %v2815, %v2819
        %v2821 = vpack.c.bf16 %v2820, %v2820
        %2822 = vrot.lane.b32.xlu0 %v2530, 64
        %v2823 = vpop.permute.xlu0 %2822
        %v2825 = vsel %vm1711, %v2821, 0
        %v2828 = vsel %vm1727, %v2823, 0
        %2830 = vmatprep.subr.bf16.mxu0 0
        %2831 = vmatpush1.bf16.msra.mxu0 0
        %2832 = vmatprep.subr.bf16.mxu0 0
        %2833 = vmatpush1.bf16.msra.mxu0 0
        %2834 = vmatprep.subr.bf16.mxu0 0
        %2835 = vmatpush1.bf16.msra.mxu0 0
        %2836 = vmatprep.subr.bf16.mxu0 0
        %2837 = vmatpush1.bf16.msra.mxu0 0
        %2838 = vmatprep.subr.bf16.mxu0 0
        %2839 = vmatpush1.bf16.msra.mxu0 0
        %2840 = vmatprep.subr.bf16.mxu0 0
        %2841 = vmatpush1.bf16.msra.mxu0 0
        %2842 = vmatprep.subr.bf16.mxu0 0
        %2843 = vmatpush1.bf16.msra.mxu0 0
        %2844 = vmatprep.subr.bf16.mxu0 0
        %2845 = vmatpush1.bf16.msra.mxu0 %v2828
        %2846 = vmatprep.subr.bf16.mxu0 0
        %2847 = vmatpush2.bf16.msra.mxu0 0
        %2848 = vmatprep.subr.bf16.mxu0 0
        %2849 = vmatpush2.bf16.msra.mxu0 0
        %2850 = vmatprep.subr.bf16.mxu0 0
        %2851 = vmatpush2.bf16.msra.mxu0 0
        %2852 = vmatprep.subr.bf16.mxu0 0
        %2853 = vmatpush2.bf16.msra.mxu0 0
        %2854 = vmatprep.subr.bf16.mxu0 0
        %2855 = vmatpush2.bf16.msra.mxu0 0
        %2856 = vmatprep.subr.bf16.mxu0 0
        %2857 = vmatpush2.bf16.msra.mxu0 0
        %2858 = vmatprep.subr.bf16.mxu0 0
        %2859 = vmatpush2.bf16.msra.mxu0 0
        %2860 = vmatprep.subr.bf16.mxu0 0
        %2861 = vmatpush2.bf16.msra.mxu0 0
        %2862 = vmatprep.mubr.bf16.mxu0 0
        %2863 = vmatmul.mubr.bf16.gmra.mxu0 %v2825
        %v2864 = vpop.f32.mrf.mxu0
        %v2865 = vadd.f32 0.0, %v2864
        %v2866 = vpop.f32.mrf.mxu0
        %v2867 = vpop.f32.mrf.mxu0
        %v2868 = vpop.f32.mrf.mxu0
        %2869 = vdwg.mxu0
        %2871 = vrot.lane.b32.xlu0 %v2865, 64
        %v2872 = vpop.permute.xlu0 %2871
        %2874 = vst.msk [vmem:[#allocation3] sm:$0xff] %vm2005, %v2872
        %2875 = vrot.lane.b32.xlu0 %v2528, 32
        %v2876 = vpop.permute.xlu0 %2875
        %2877 = vrot.lane.b32.xlu0 %v2529, 32
        %v2878 = vpop.permute.xlu0 %2877
        %v2880 = vsel %vm1664, %v2876, 0
        %v2883 = vsel %vm1664, %v2878, 0
        %2885 = vmatprep.subr.bf16.mxu0 0
        %2886 = vmatpush1.bf16.xpose.msra.mxu0 0
        %2887 = vmatprep.subr.bf16.mxu0 0
        %2888 = vmatpush1.bf16.xpose.msra.mxu0 0
        %2889 = vmatprep.subr.bf16.mxu0 0
        %2890 = vmatpush1.bf16.xpose.msra.mxu0 0
        %2891 = vmatprep.subr.bf16.mxu0 0
        %2892 = vmatpush1.bf16.xpose.msra.mxu0 0
        %2893 = vmatprep.subr.bf16.mxu0 0
        %2894 = vmatpush1.bf16.xpose.msra.mxu0 0
        %2895 = vmatprep.subr.bf16.mxu0 0
        %2896 = vmatpush1.bf16.xpose.msra.mxu0 0
        %2897 = vmatprep.subr.bf16.mxu0 0
        %2898 = vmatpush1.bf16.xpose.msra.mxu0 0
        %2899 = vmatprep.subr.bf16.mxu0 0
        %2900 = vmatpush1.bf16.xpose.msra.mxu0 %v2883
        %2901 = vmatprep.subr.bf16.mxu0 0
        %2902 = vmatpush2.bf16.xpose.msra.mxu0 0
        %2903 = vmatprep.subr.bf16.mxu0 0
        %2904 = vmatpush2.bf16.xpose.msra.mxu0 0
        %2905 = vmatprep.subr.bf16.mxu0 0
        %2906 = vmatpush2.bf16.xpose.msra.mxu0 0
        %2907 = vmatprep.subr.bf16.mxu0 0
        %2908 = vmatpush2.bf16.xpose.msra.mxu0 0
        %2909 = vmatprep.subr.bf16.mxu0 0
        %2910 = vmatpush2.bf16.xpose.msra.mxu0 0
        %2911 = vmatprep.subr.bf16.mxu0 0
        %2912 = vmatpush2.bf16.xpose.msra.mxu0 0
        %2913 = vmatprep.subr.bf16.mxu0 0
        %2914 = vmatpush2.bf16.xpose.msra.mxu0 0
        %2915 = vmatprep.subr.bf16.mxu0 0
        %2916 = vmatpush2.bf16.xpose.msra.mxu0 0
        %2917 = vmatprep.mubr.bf16.mxu0 0
        %2918 = vmatmul.mubr.bf16.gmra.mxu0 %v2880
        %v2919 = vpop.f32.mrf.mxu0
        %v2920 = vadd.f32 %v2535, %v2919
        %v2921 = vpop.f32.mrf.mxu0
        %v2922 = vpop.f32.mrf.mxu0
        %v2923 = vpop.f32.mrf.mxu0
        %2924 = vdwg.mxu0
        %v2925 = vsel %vm1711, %v2920, -inf
        %2926 = vmax.xlane.f32.xlu0 %v2925
        %v2927 = vpop.xlane.xlu0 %2926
        %v2928 = vsub.f32 %v2920, %v2927
        %v2929 = vmul.f32 %v2928, 1.442695
        %v2930 = vpow.pop %v2929
        %v2931 = vsel %vm1711, %v2930, 0.0
        %2932 = vadd.xlane.f32.xlu0 %v2931
        %v2933 = vpop.xlane.xlu0 %2932
        %v2934 = vrcp.pop %v2933
        %v2935 = vmul.f32 %v2930, %v2934
        %v2936 = vpack.c.bf16 %v2935, %v2935
        %2937 = vrot.lane.b32.xlu0 %v2530, 32
        %v2938 = vpop.permute.xlu0 %2937
        %v2940 = vsel %vm1711, %v2936, 0
        %v2943 = vsel %vm1727, %v2938, 0
        %2945 = vmatprep.subr.bf16.mxu0 0
        %2946 = vmatpush1.bf16.msra.mxu0 0
        %2947 = vmatprep.subr.bf16.mxu0 0
        %2948 = vmatpush1.bf16.msra.mxu0 0
        %2949 = vmatprep.subr.bf16.mxu0 0
        %2950 = vmatpush1.bf16.msra.mxu0 0
        %2951 = vmatprep.subr.bf16.mxu0 0
        %2952 = vmatpush1.bf16.msra.mxu0 0
        %2953 = vmatprep.subr.bf16.mxu0 0
        %2954 = vmatpush1.bf16.msra.mxu0 0
        %2955 = vmatprep.subr.bf16.mxu0 0
        %2956 = vmatpush1.bf16.msra.mxu0 0
        %2957 = vmatprep.subr.bf16.mxu0 0
        %2958 = vmatpush1.bf16.msra.mxu0 0
        %2959 = vmatprep.subr.bf16.mxu0 0
        %2960 = vmatpush1.bf16.msra.mxu0 %v2943
        %2961 = vmatprep.subr.bf16.mxu0 0
        %2962 = vmatpush2.bf16.msra.mxu0 0
        %2963 = vmatprep.subr.bf16.mxu0 0
        %2964 = vmatpush2.bf16.msra.mxu0 0
        %2965 = vmatprep.subr.bf16.mxu0 0
        %2966 = vmatpush2.bf16.msra.mxu0 0
        %2967 = vmatprep.subr.bf16.mxu0 0
        %2968 = vmatpush2.bf16.msra.mxu0 0
        %2969 = vmatprep.subr.bf16.mxu0 0
        %2970 = vmatpush2.bf16.msra.mxu0 0
        %2971 = vmatprep.subr.bf16.mxu0 0
        %2972 = vmatpush2.bf16.msra.mxu0 0
        %2973 = vmatprep.subr.bf16.mxu0 0
        %2974 = vmatpush2.bf16.msra.mxu0 0
        %2975 = vmatprep.subr.bf16.mxu0 0
        %2976 = vmatpush2.bf16.msra.mxu0 0
        %2977 = vmatprep.mubr.bf16.mxu0 0
        %2978 = vmatmul.mubr.bf16.gmra.mxu0 %v2940
        %v2979 = vpop.f32.mrf.mxu0
        %v2980 = vadd.f32 0.0, %v2979
        %v2981 = vpop.f32.mrf.mxu0
        %v2982 = vpop.f32.mrf.mxu0
        %v2983 = vpop.f32.mrf.mxu0
        %2984 = vdwg.mxu0
        %2986 = vrot.lane.b32.xlu0 %v2980, 96
        %v2987 = vpop.permute.xlu0 %2986
        %2989 = vst.msk [vmem:[#allocation3] sm:$0xff] %vm2121, %v2987
        %v2990 = vld [vmem:[#allocation3] sm:$0xff]
        %v2991 = vpack.c.bf16 %v2990, %v2990
        %v2992 = vld [vmem:[%s1124] sm:$0xf]
        %v2993 = vld [vmem:[%s1124 + $0x4] sm:$0xf]
        %v2994 = vld [vmem:[%s1124 + $0x8] sm:$0xf]
        %v2995 = vld [vmem:[%s1124 + $0xc] sm:$0xf]
        %v2996 = vld [vmem:[%s1124 + $0x10] sm:$0xf]
        %v2997 = vld [vmem:[%s1124 + $0x14] sm:$0xf]
        %v2998 = vld [vmem:[%s1124 + $0x18] sm:$0xf]
        %v2999 = vld [vmem:[%s1124 + $0x1c] sm:$0xf]
        %v3000 = vld [vmem:[%s1124 + $0x20] sm:$0xf]
        %v3001 = vld [vmem:[%s1124 + $0x24] sm:$0xf]
        %v3002 = vld [vmem:[%s1124 + $0x28] sm:$0xf]
        %v3003 = vld [vmem:[%s1124 + $0x2c] sm:$0xf]
        %v3004 = vld [vmem:[%s1124 + $0x30] sm:$0xf]
        %v3005 = vld [vmem:[%s1124 + $0x34] sm:$0xf]
        %v3006 = vld [vmem:[%s1124 + $0x38] sm:$0xf]
        %v3007 = vld [vmem:[%s1124 + $0x3c] sm:$0xf]
        %v3008 = vld [vmem:[%s1359] sm:$0x1]
        %v3010 = vlaneseq
        %v3011 = vshrl.u32 %v3010, 7
        %v3012 = vsub.s32 0, %v3011
        %v3013 = vrot.slane %v3008, %v3012
        %v3031 = vunpack.c.l.b16 %v2992
        %v3032 = vunpack.c.l.b16 %v2993
        %v3033 = vunpack.c.l.b16 %v2994
        %v3034 = vunpack.c.l.b16 %v2995
        %v3035 = vunpack.c.l.b16 %v2996
        %v3036 = vunpack.c.l.b16 %v2997
        %v3037 = vunpack.c.l.b16 %v2998
        %v3038 = vunpack.c.l.b16 %v2999
        %v3039 = vunpack.c.l.b16 %v3000
        %v3040 = vunpack.c.l.b16 %v3001
        %v3041 = vunpack.c.l.b16 %v3002
        %v3042 = vunpack.c.l.b16 %v3003
        %v3043 = vunpack.c.l.b16 %v3004
        %v3044 = vunpack.c.l.b16 %v3005
        %v3045 = vunpack.c.l.b16 %v3006
        %v3046 = vunpack.c.l.b16 %v3007
        %v3047 = vpack.c.b16 %v3032, %v3031
        %v3048 = vpack.c.b16 %v3034, %v3033
        %v3049 = vpack.c.b16 %v3036, %v3035
        %v3050 = vpack.c.b16 %v3038, %v3037
        %v3051 = vpack.c.b16 %v3040, %v3039
        %v3052 = vpack.c.b16 %v3042, %v3041
        %v3053 = vpack.c.b16 %v3044, %v3043
        %v3054 = vpack.c.b16 %v3046, %v3045
        %3063 = vmatprep.subr.bf16.mxu0 0
        %3064 = vmatpush1.bf16.msra.mxu0 %v3054
        %3065 = vmatprep.subr.bf16.mxu0 0
        %3066 = vmatpush1.bf16.msra.mxu0 %v3053
        %3067 = vmatprep.subr.bf16.mxu0 0
        %3068 = vmatpush1.bf16.msra.mxu0 %v3052
        %3069 = vmatprep.subr.bf16.mxu0 0
        %3070 = vmatpush1.bf16.msra.mxu0 %v3051
        %3071 = vmatprep.subr.bf16.mxu0 0
        %3072 = vmatpush1.bf16.msra.mxu0 %v3050
        %3073 = vmatprep.subr.bf16.mxu0 0
        %3074 = vmatpush1.bf16.msra.mxu0 %v3049
        %3075 = vmatprep.subr.bf16.mxu0 0
        %3076 = vmatpush1.bf16.msra.mxu0 %v3048
        %3077 = vmatprep.subr.bf16.mxu0 0
        %3078 = vmatpush1.bf16.msra.mxu0 %v3047
        %3079 = vmatprep.subr.bf16.mxu0 0
        %3080 = vmatpush2.bf16.msra.mxu0 0
        %3081 = vmatprep.subr.bf16.mxu0 0
        %3082 = vmatpush2.bf16.msra.mxu0 0
        %3083 = vmatprep.subr.bf16.mxu0 0
        %3084 = vmatpush2.bf16.msra.mxu0 0
        %3085 = vmatprep.subr.bf16.mxu0 0
        %3086 = vmatpush2.bf16.msra.mxu0 0
        %3087 = vmatprep.subr.bf16.mxu0 0
        %3088 = vmatpush2.bf16.msra.mxu0 0
        %3089 = vmatprep.subr.bf16.mxu0 0
        %3090 = vmatpush2.bf16.msra.mxu0 0
        %3091 = vmatprep.subr.bf16.mxu0 0
        %3092 = vmatpush2.bf16.msra.mxu0 0
        %3093 = vmatprep.subr.bf16.mxu0 0
        %3094 = vmatpush2.bf16.msra.mxu0 0
        %3095 = vmatprep.mubr.bf16.mxu0 0
        %3096 = vmatmul.mubr.bf16.gmra.mxu0 %v2991
        %v3097 = vpop.f32.mrf.mxu0
        %v3098 = vadd.f32 %v3013, %v3097
        %v3099 = vpop.f32.mrf.mxu0
        %v3100 = vpop.f32.mrf.mxu0
        %v3101 = vpop.f32.mrf.mxu0
        %3102 = vdwg.mxu0
        %v3103 = vadd.f32 %v2264, %v3098
        %v3104 = vld [vmem:[%s1132] sm:$0x1]
        %v3105 = vld [vmem:[%s1140] sm:$0x1]
        %3106 = vadd.xlane.f32.xlu0 %v3103
        %v3107 = vpop.xlane.xlu0 %3106
        %v3108 = vmul.f32 %v3107, %v2241
        %v3109 = vsub.f32 %v3103, %v3108
        %v3110 = vmul.f32 %v3109, %v3109
        %3111 = vadd.xlane.f32.xlu0 %v3110
        %v3112 = vpop.xlane.xlu0 %3111
        %v3113 = vmul.f32 %v3112, %v2241
        %v3114 = vadd.f32 %v3113, 1e-05
        %v3115 = vrsqrt.pop %v3114
        %v3116 = vmul.f32 %v3109, %v3115
        %v3118 = vlaneseq
        %v3119 = vshrl.u32 %v3118, 7
        %v3120 = vsub.s32 0, %v3119
        %v3121 = vrot.slane %v3104, %v3120
        %v3123 = vmul.f32 %v3116, %v3121
        %v3125 = vlaneseq
        %v3126 = vshrl.u32 %v3125, 7
        %v3127 = vsub.s32 0, %v3126
        %v3128 = vrot.slane %v3105, %v3127
        %v3130 = vadd.f32 %v3123, %v3128
        %v3131 = vpack.c.bf16 %v3130, %v3130
        %v3132 = vld [vmem:[%s1364] sm:$0xff]
        %v3133 = vld [vmem:[%s1364 + $0x8] sm:$0xff]
        %v3134 = vld [vmem:[%s1364 + $0x10] sm:$0xff]
        %v3135 = vld [vmem:[%s1364 + $0x18] sm:$0xff]
        %v3136 = vld [vmem:[%s1364 + $0x20] sm:$0xff]
        %v3137 = vld [vmem:[%s1364 + $0x28] sm:$0xff]
        %v3138 = vld [vmem:[%s1364 + $0x30] sm:$0xff]
        %v3139 = vld [vmem:[%s1364 + $0x38] sm:$0xff]
        %v3140 = vld [vmem:[%s1364 + $0x40] sm:$0xff]
        %v3141 = vld [vmem:[%s1364 + $0x48] sm:$0xff]
        %v3142 = vld [vmem:[%s1364 + $0x50] sm:$0xff]
        %v3143 = vld [vmem:[%s1364 + $0x58] sm:$0xff]
        %v3144 = vld [vmem:[%s1364 + $0x60] sm:$0xff]
        %v3145 = vld [vmem:[%s1364 + $0x68] sm:$0xff]
        %v3146 = vld [vmem:[%s1364 + $0x70] sm:$0xff]
        %v3147 = vld [vmem:[%s1364 + $0x78] sm:$0xff]
        %v3148 = vld [vmem:[%s1368] sm:$0x3]
        %v3150 = vlaneseq
        %v3151 = vshrl.u32 %v3150, 7
        %v3152 = vsub.s32 0, %v3151
        %v3153 = vrot.slane %v3148, %v3152
        %v3154 = vlaneseq
        %v3155 = vshrl.u32 %v3154, 7
        %v3156 = vsub.s32 1, %v3155
        %v3157 = vrot.slane %v3148, %v3156
        %v3176 = vunpack.c.l.b16 %v3132
        %v3177 = vunpack.c.h.b16 %v3132
        %v3178 = vunpack.c.l.b16 %v3133
        %v3179 = vunpack.c.h.b16 %v3133
        %v3180 = vunpack.c.l.b16 %v3134
        %v3181 = vunpack.c.h.b16 %v3134
        %v3182 = vunpack.c.l.b16 %v3135
        %v3183 = vunpack.c.h.b16 %v3135
        %v3184 = vunpack.c.l.b16 %v3136
        %v3185 = vunpack.c.h.b16 %v3136
        %v3186 = vunpack.c.l.b16 %v3137
        %v3187 = vunpack.c.h.b16 %v3137
        %v3188 = vunpack.c.l.b16 %v3138
        %v3189 = vunpack.c.h.b16 %v3138
        %v3190 = vunpack.c.l.b16 %v3139
        %v3191 = vunpack.c.h.b16 %v3139
        %v3192 = vunpack.c.l.b16 %v3140
        %v3193 = vunpack.c.h.b16 %v3140
        %v3194 = vunpack.c.l.b16 %v3141
        %v3195 = vunpack.c.h.b16 %v3141
        %v3196 = vunpack.c.l.b16 %v3142
        %v3197 = vunpack.c.h.b16 %v3142
        %v3198 = vunpack.c.l.b16 %v3143
        %v3199 = vunpack.c.h.b16 %v3143
        %v3200 = vunpack.c.l.b16 %v3144
        %v3201 = vunpack.c.h.b16 %v3144
        %v3202 = vunpack.c.l.b16 %v3145
        %v3203 = vunpack.c.h.b16 %v3145
        %v3204 = vunpack.c.l.b16 %v3146
        %v3205 = vunpack.c.h.b16 %v3146
        %v3206 = vunpack.c.l.b16 %v3147
        %v3207 = vunpack.c.h.b16 %v3147
        %v3208 = vpack.c.b16 %v3178, %v3176
        %v3209 = vpack.c.b16 %v3179, %v3177
        %v3210 = vpack.c.b16 %v3182, %v3180
        %v3211 = vpack.c.b16 %v3183, %v3181
        %v3212 = vpack.c.b16 %v3186, %v3184
        %v3213 = vpack.c.b16 %v3187, %v3185
        %v3214 = vpack.c.b16 %v3190, %v3188
        %v3215 = vpack.c.b16 %v3191, %v3189
        %v3216 = vpack.c.b16 %v3194, %v3192
        %v3217 = vpack.c.b16 %v3195, %v3193
        %v3218 = vpack.c.b16 %v3198, %v3196
        %v3219 = vpack.c.b16 %v3199, %v3197
        %v3220 = vpack.c.b16 %v3202, %v3200
        %v3221 = vpack.c.b16 %v3203, %v3201
        %v3222 = vpack.c.b16 %v3206, %v3204
        %v3223 = vpack.c.b16 %v3207, %v3205
        %3240 = vmatprep.subr.bf16.mxu0 %v3223
        %3241 = vmatpush1.bf16.msra.mxu0 %v3222
        %3242 = vmatprep.subr.bf16.mxu0 %v3221
        %3243 = vmatpush1.bf16.msra.mxu0 %v3220
        %3244 = vmatprep.subr.bf16.mxu0 %v3219
        %3245 = vmatpush1.bf16.msra.mxu0 %v3218
        %3246 = vmatprep.subr.bf16.mxu0 %v3217
        %3247 = vmatpush1.bf16.msra.mxu0 %v3216
        %3248 = vmatprep.subr.bf16.mxu0 %v3215
        %3249 = vmatpush1.bf16.msra.mxu0 %v3214
        %3250 = vmatprep.subr.bf16.mxu0 %v3213
        %3251 = vmatpush1.bf16.msra.mxu0 %v3212
        %3252 = vmatprep.subr.bf16.mxu0 %v3211
        %3253 = vmatpush1.bf16.msra.mxu0 %v3210
        %3254 = vmatprep.subr.bf16.mxu0 %v3209
        %3255 = vmatpush1.bf16.msra.mxu0 %v3208
        %3256 = vmatprep.subr.bf16.mxu0 0
        %3257 = vmatpush2.bf16.msra.mxu0 0
        %3258 = vmatprep.subr.bf16.mxu0 0
        %3259 = vmatpush2.bf16.msra.mxu0 0
        %3260 = vmatprep.subr.bf16.mxu0 0
        %3261 = vmatpush2.bf16.msra.mxu0 0
        %3262 = vmatprep.subr.bf16.mxu0 0
        %3263 = vmatpush2.bf16.msra.mxu0 0
        %3264 = vmatprep.subr.bf16.mxu0 0
        %3265 = vmatpush2.bf16.msra.mxu0 0
        %3266 = vmatprep.subr.bf16.mxu0 0
        %3267 = vmatpush2.bf16.msra.mxu0 0
        %3268 = vmatprep.subr.bf16.mxu0 0
        %3269 = vmatpush2.bf16.msra.mxu0 0
        %3270 = vmatprep.subr.bf16.mxu0 0
        %3271 = vmatpush2.bf16.msra.mxu0 0
        %3272 = vmatprep.mubr.bf16.mxu0 0
        %3273 = vmatmul.mubr.bf16.gmra.mxu0 %v3131
        %v3274 = vpop.f32.mrf.mxu0
        %v3275 = vadd.f32 %v3153, %v3274
        %v3276 = vpop.f32.mrf.mxu0
        %v3277 = vadd.f32 %v3157, %v3276
        %v3278 = vpop.f32.mrf.mxu0
        %v3279 = vpop.f32.mrf.mxu0
        %3280 = vdwg.mxu0
        %v3281 = vmax.f32 %v3275, 0.0
        %v3282 = vmax.f32 %v3277, 0.0
        %v3283 = vpack.c.bf16 %v3281, %v3281
        %v3284 = vpack.c.bf16 %v3282, %v3282
        %v3285 = vld [vmem:[%s1373] sm:$0xf]
        %v3286 = vld [vmem:[%s1373 + $0x4] sm:$0xf]
        %v3287 = vld [vmem:[%s1373 + $0x8] sm:$0xf]
        %v3288 = vld [vmem:[%s1373 + $0xc] sm:$0xf]
        %v3289 = vld [vmem:[%s1373 + $0x10] sm:$0xf]
        %v3290 = vld [vmem:[%s1373 + $0x14] sm:$0xf]
        %v3291 = vld [vmem:[%s1373 + $0x18] sm:$0xf]
        %v3292 = vld [vmem:[%s1373 + $0x1c] sm:$0xf]
        %v3293 = vld [vmem:[%s1373 + $0x20] sm:$0xf]
        %v3294 = vld [vmem:[%s1373 + $0x24] sm:$0xf]
        %v3295 = vld [vmem:[%s1373 + $0x28] sm:$0xf]
        %v3296 = vld [vmem:[%s1373 + $0x2c] sm:$0xf]
        %v3297 = vld [vmem:[%s1373 + $0x30] sm:$0xf]
        %v3298 = vld [vmem:[%s1373 + $0x34] sm:$0xf]
        %v3299 = vld [vmem:[%s1373 + $0x38] sm:$0xf]
        %v3300 = vld [vmem:[%s1373 + $0x3c] sm:$0xf]
        %v3301 = vld [vmem:[%s1373 + $0x40] sm:$0xf]
        %v3302 = vld [vmem:[%s1373 + $0x44] sm:$0xf]
        %v3303 = vld [vmem:[%s1373 + $0x48] sm:$0xf]
        %v3304 = vld [vmem:[%s1373 + $0x4c] sm:$0xf]
        %v3305 = vld [vmem:[%s1373 + $0x50] sm:$0xf]
        %v3306 = vld [vmem:[%s1373 + $0x54] sm:$0xf]
        %v3307 = vld [vmem:[%s1373 + $0x58] sm:$0xf]
        %v3308 = vld [vmem:[%s1373 + $0x5c] sm:$0xf]
        %v3309 = vld [vmem:[%s1373 + $0x60] sm:$0xf]
        %v3310 = vld [vmem:[%s1373 + $0x64] sm:$0xf]
        %v3311 = vld [vmem:[%s1373 + $0x68] sm:$0xf]
        %v3312 = vld [vmem:[%s1373 + $0x6c] sm:$0xf]
        %v3313 = vld [vmem:[%s1373 + $0x70] sm:$0xf]
        %v3314 = vld [vmem:[%s1373 + $0x74] sm:$0xf]
        %v3315 = vld [vmem:[%s1373 + $0x78] sm:$0xf]
        %v3316 = vld [vmem:[%s1373 + $0x7c] sm:$0xf]
        %v3317 = vld [vmem:[%s1376] sm:$0x1]
        %v3319 = vlaneseq
        %v3320 = vshrl.u32 %v3319, 7
        %v3321 = vsub.s32 0, %v3320
        %v3322 = vrot.slane %v3317, %v3321
        %v3356 = vunpack.c.l.b16 %v3285
        %v3357 = vunpack.c.l.b16 %v3286
        %v3358 = vunpack.c.l.b16 %v3287
        %v3359 = vunpack.c.l.b16 %v3288
        %v3360 = vunpack.c.l.b16 %v3289
        %v3361 = vunpack.c.l.b16 %v3290
        %v3362 = vunpack.c.l.b16 %v3291
        %v3363 = vunpack.c.l.b16 %v3292
        %v3364 = vunpack.c.l.b16 %v3293
        %v3365 = vunpack.c.l.b16 %v3294
        %v3366 = vunpack.c.l.b16 %v3295
        %v3367 = vunpack.c.l.b16 %v3296
        %v3368 = vunpack.c.l.b16 %v3297
        %v3369 = vunpack.c.l.b16 %v3298
        %v3370 = vunpack.c.l.b16 %v3299
        %v3371 = vunpack.c.l.b16 %v3300
        %v3372 = vunpack.c.l.b16 %v3301
        %v3373 = vunpack.c.l.b16 %v3302
        %v3374 = vunpack.c.l.b16 %v3303
        %v3375 = vunpack.c.l.b16 %v3304
        %v3376 = vunpack.c.l.b16 %v3305
        %v3377 = vunpack.c.l.b16 %v3306
        %v3378 = vunpack.c.l.b16 %v3307
        %v3379 = vunpack.c.l.b16 %v3308
        %v3380 = vunpack.c.l.b16 %v3309
        %v3381 = vunpack.c.l.b16 %v3310
        %v3382 = vunpack.c.l.b16 %v3311
        %v3383 = vunpack.c.l.b16 %v3312
        %v3384 = vunpack.c.l.b16 %v3313
        %v3385 = vunpack.c.l.b16 %v3314
        %v3386 = vunpack.c.l.b16 %v3315
        %v3387 = vunpack.c.l.b16 %v3316
        %v3388 = vpack.c.b16 %v3357, %v3356
        %v3389 = vpack.c.b16 %v3359, %v3358
        %v3390 = vpack.c.b16 %v3361, %v3360
        %v3391 = vpack.c.b16 %v3363, %v3362
        %v3392 = vpack.c.b16 %v3365, %v3364
        %v3393 = vpack.c.b16 %v3367, %v3366
        %v3394 = vpack.c.b16 %v3369, %v3368
        %v3395 = vpack.c.b16 %v3371, %v3370
        %v3396 = vpack.c.b16 %v3373, %v3372
        %v3397 = vpack.c.b16 %v3375, %v3374
        %v3398 = vpack.c.b16 %v3377, %v3376
        %v3399 = vpack.c.b16 %v3379, %v3378
        %v3400 = vpack.c.b16 %v3381, %v3380
        %v3401 = vpack.c.b16 %v3383, %v3382
        %v3402 = vpack.c.b16 %v3385, %v3384
        %v3403 = vpack.c.b16 %v3387, %v3386
        %3420 = vmatprep.subr.bf16.mxu0 0
        %3421 = vmatpush1.bf16.msra.mxu0 %v3395
        %3422 = vmatprep.subr.bf16.mxu0 0
        %3423 = vmatpush1.bf16.msra.mxu0 %v3394
        %3424 = vmatprep.subr.bf16.mxu0 0
        %3425 = vmatpush1.bf16.msra.mxu0 %v3393
        %3426 = vmatprep.subr.bf16.mxu0 0
        %3427 = vmatpush1.bf16.msra.mxu0 %v3392
        %3428 = vmatprep.subr.bf16.mxu0 0
        %3429 = vmatpush1.bf16.msra.mxu0 %v3391
        %3430 = vmatprep.subr.bf16.mxu0 0
        %3431 = vmatpush1.bf16.msra.mxu0 %v3390
        %3432 = vmatprep.subr.bf16.mxu0 0
        %3433 = vmatpush1.bf16.msra.mxu0 %v3389
        %3434 = vmatprep.subr.bf16.mxu0 0
        %3435 = vmatpush1.bf16.msra.mxu0 %v3388
        %3436 = vmatprep.subr.bf16.mxu0 0
        %3437 = vmatpush2.bf16.msra.mxu0 %v3403
        %3438 = vmatprep.subr.bf16.mxu0 0
        %3439 = vmatpush2.bf16.msra.mxu0 %v3402
        %3440 = vmatprep.subr.bf16.mxu0 0
        %3441 = vmatpush2.bf16.msra.mxu0 %v3401
        %3442 = vmatprep.subr.bf16.mxu0 0
        %3443 = vmatpush2.bf16.msra.mxu0 %v3400
        %3444 = vmatprep.subr.bf16.mxu0 0
        %3445 = vmatpush2.bf16.msra.mxu0 %v3399
        %3446 = vmatprep.subr.bf16.mxu0 0
        %3447 = vmatpush2.bf16.msra.mxu0 %v3398
        %3448 = vmatprep.subr.bf16.mxu0 0
        %3449 = vmatpush2.bf16.msra.mxu0 %v3397
        %3450 = vmatprep.subr.bf16.mxu0 0
        %3451 = vmatpush2.bf16.msra.mxu0 %v3396
        %3452 = vmatprep.mubr.bf16.mxu0 %v3284
        %3453 = vmatmul.mubr.bf16.gmra.mxu0 %v3283
        %v3454 = vpop.f32.mrf.mxu0
        %v3455 = vadd.f32 %v3322, %v3454
        %v3456 = vpop.f32.mrf.mxu0
        %v3457 = vpop.f32.mrf.mxu0
        %v3458 = vpop.f32.mrf.mxu0
        %3459 = vdwg.mxu0
        %v3460 = vadd.f32 %v3130, %v3455
        %v3461 = vld [vmem:[%s1148] sm:$0x1]
        %v3462 = vld [vmem:[%s1156] sm:$0x1]
        %3463 = vadd.xlane.f32.xlu0 %v3460
        %v3464 = vpop.xlane.xlu0 %3463
        %v3465 = vmul.f32 %v3464, %v2241
        %v3466 = vsub.f32 %v3460, %v3465
        %v3467 = vmul.f32 %v3466, %v3466
        %3468 = vadd.xlane.f32.xlu0 %v3467
        %v3469 = vpop.xlane.xlu0 %3468
        %v3470 = vmul.f32 %v3469, %v2241
        %v3471 = vadd.f32 %v3470, 1e-05
        %v3472 = vrsqrt.pop %v3471
        %v3473 = vmul.f32 %v3466, %v3472
        %v3475 = vlaneseq
        %v3476 = vshrl.u32 %v3475, 7
        %v3477 = vsub.s32 0, %v3476
        %v3478 = vrot.slane %v3461, %v3477
        %v3480 = vmul.f32 %v3473, %v3478
        %v3482 = vlaneseq
        %v3483 = vshrl.u32 %v3482, 7
        %v3484 = vsub.s32 0, %v3483
        %v3485 = vrot.slane %v3462, %v3484
        %v3487 = vadd.f32 %v3480, %v3485
        %3488 = vst [vmem:[#allocation2] sm:$0xff] %v3487
        %p3489 = scmp.eq.s32.totalorder %s63, 2
        // Predicated region
        $region173: #{transformer_forward.3} parent=123 // pred_check
          %p3490 = pneg %p3489
        $region174: #{transformer_forward.3} parent=123 // pred_check_branch
          %3492 = sbr.rel (%p3490) target = $region176
        $region175: #{transformer_forward.3} parent=123 // pred_region
          %v3493 = vpack.c.bf16 %v3487, %v3487
          %v3494 = vld [vmem:[#allocation21] sm:$0xf]
          %v3495 = vld [vmem:[#allocation21 + $0x4] sm:$0xf]
          %v3496 = vld [vmem:[#allocation21 + $0x8] sm:$0xf]
          %v3497 = vld [vmem:[#allocation21 + $0xc] sm:$0xf]
          %v3498 = vld [vmem:[#allocation21 + $0x10] sm:$0xf]
          %v3499 = vld [vmem:[#allocation21 + $0x14] sm:$0xf]
          %v3500 = vld [vmem:[#allocation21 + $0x18] sm:$0xf]
          %v3501 = vld [vmem:[#allocation21 + $0x1c] sm:$0xf]
          %v3502 = vld [vmem:[#allocation21 + $0x20] sm:$0xf]
          %v3503 = vld [vmem:[#allocation21 + $0x24] sm:$0xf]
          %v3504 = vld [vmem:[#allocation21 + $0x28] sm:$0xf]
          %v3505 = vld [vmem:[#allocation21 + $0x2c] sm:$0xf]
          %v3506 = vld [vmem:[#allocation21 + $0x30] sm:$0xf]
          %v3507 = vld [vmem:[#allocation21 + $0x34] sm:$0xf]
          %v3508 = vld [vmem:[#allocation21 + $0x38] sm:$0xf]
          %v3509 = vld [vmem:[#allocation21 + $0x3c] sm:$0xf]
          %v3510 = vld [vmem:[%s25] sm:$0x1]
          %v3512 = vlaneseq
          %v3513 = vshrl.u32 %v3512, 7
          %v3514 = vsub.s32 0, %v3513
          %v3515 = vrot.slane %v3510, %v3514
          %v3533 = vunpack.c.l.b16 %v3494
          %v3534 = vunpack.c.l.b16 %v3495
          %v3535 = vunpack.c.l.b16 %v3496
          %v3536 = vunpack.c.l.b16 %v3497
          %v3537 = vunpack.c.l.b16 %v3498
          %v3538 = vunpack.c.l.b16 %v3499
          %v3539 = vunpack.c.l.b16 %v3500
          %v3540 = vunpack.c.l.b16 %v3501
          %v3541 = vunpack.c.l.b16 %v3502
          %v3542 = vunpack.c.l.b16 %v3503
          %v3543 = vunpack.c.l.b16 %v3504
          %v3544 = vunpack.c.l.b16 %v3505
          %v3545 = vunpack.c.l.b16 %v3506
          %v3546 = vunpack.c.l.b16 %v3507
          %v3547 = vunpack.c.l.b16 %v3508
          %v3548 = vunpack.c.l.b16 %v3509
          %v3549 = vpack.c.b16 %v3534, %v3533
          %v3550 = vpack.c.b16 %v3536, %v3535
          %v3551 = vpack.c.b16 %v3538, %v3537
          %v3552 = vpack.c.b16 %v3540, %v3539
          %v3553 = vpack.c.b16 %v3542, %v3541
          %v3554 = vpack.c.b16 %v3544, %v3543
          %v3555 = vpack.c.b16 %v3546, %v3545
          %v3556 = vpack.c.b16 %v3548, %v3547
          %3565 = vmatprep.subr.bf16.mxu0 0
          %3566 = vmatpush1.bf16.msra.mxu0 %v3556
          %3567 = vmatprep.subr.bf16.mxu0 0
          %3568 = vmatpush1.bf16.msra.mxu0 %v3555
          %3569 = vmatprep.subr.bf16.mxu0 0
          %3570 = vmatpush1.bf16.msra.mxu0 %v3554
          %3571 = vmatprep.subr.bf16.mxu0 0
          %3572 = vmatpush1.bf16.msra.mxu0 %v3553
          %3573 = vmatprep.subr.bf16.mxu0 0
          %3574 = vmatpush1.bf16.msra.mxu0 %v3552
          %3575 = vmatprep.subr.bf16.mxu0 0
          %3576 = vmatpush1.bf16.msra.mxu0 %v3551
          %3577 = vmatprep.subr.bf16.mxu0 0
          %3578 = vmatpush1.bf16.msra.mxu0 %v3550
          %3579 = vmatprep.subr.bf16.mxu0 0
          %3580 = vmatpush1.bf16.msra.mxu0 %v3549
          %3581 = vmatprep.subr.bf16.mxu0 0
          %3582 = vmatpush2.bf16.msra.mxu0 0
          %3583 = vmatprep.subr.bf16.mxu0 0
          %3584 = vmatpush2.bf16.msra.mxu0 0
          %3585 = vmatprep.subr.bf16.mxu0 0
          %3586 = vmatpush2.bf16.msra.mxu0 0
          %3587 = vmatprep.subr.bf16.mxu0 0
          %3588 = vmatpush2.bf16.msra.mxu0 0
          %3589 = vmatprep.subr.bf16.mxu0 0
          %3590 = vmatpush2.bf16.msra.mxu0 0
          %3591 = vmatprep.subr.bf16.mxu0 0
          %3592 = vmatpush2.bf16.msra.mxu0 0
          %3593 = vmatprep.subr.bf16.mxu0 0
          %3594 = vmatpush2.bf16.msra.mxu0 0
          %3595 = vmatprep.subr.bf16.mxu0 0
          %3596 = vmatpush2.bf16.msra.mxu0 0
          %3597 = vmatprep.mubr.bf16.mxu0 0
          %3598 = vmatmul.mubr.bf16.gmra.mxu0 %v3493
          %v3599 = vpop.f32.mrf.mxu0
          %v3600 = vadd.f32 %v3515, %v3599
          %v3601 = vpop.f32.mrf.mxu0
          %v3602 = vpop.f32.mrf.mxu0
          %v3603 = vpop.f32.mrf.mxu0
          %3604 = vdwg.mxu0
          %3605 = vst [vmem:[%s1321] sm:$0xff] %v3600
        $region176: #{transformer_forward.3} parent=123 // pred_fallthru
          _
        %s3606 = sand.u32 %s744, 1
        %s3607 = scalar_lea.sflag [#allocation6], %s3606
        %s3608 = sand.u32 %s744, 1
        %s3609 = smul.addr %s3608, 8
        %s3610 = scalar_lea.vmem [#allocation22], %s3609
        // Predicated region
        $region177: #{transformer_forward.3} parent=123 // pred_check
          %p3611 = pneg %p754
        $region178: #{transformer_forward.3} parent=123 // pred_check_branch
          %3613 = sbr.rel (%p3611) target = $region180
        $region179: #{transformer_forward.3} parent=123 // pred_region
          %s3615 = ssub.s32 128, 128
          %3616 = vsyncadd %s3607, %s3615
          %s3617 = smul.addr %s62, 128
          %s3618 = scalar_lea.hbm %s26, %s3617
          %s3620 = sshll.u32 %s3610, 4
          %s3621 = int_to_ptr.vmem [resolvable:$true] %s3620
          %3623 = dma.vmem_to_hbm [thread:$0]  %s3621, 128, %s3618, %s3607
        $region180: #{transformer_forward.3} parent=123 // pred_fallthru
          _
      $region124: #{transformer_forward.3} parent=5 // pred_fallthru
        _
      %p3624 = scmp.le.s32.totalorder 2, %s53
      // Predicated region
      $region181: #{transformer_forward.3} parent=5 // pred_check
        %p3625 = pneg %p3624
      $region182: #{transformer_forward.3} parent=5 // pred_check_branch
        %3627 = sbr.rel (%p3625) target = $region184
      $region183: #{transformer_forward.3} parent=5 // pred_region
        %s3628 = ssub.s32 %s53, 2
        // Predicated region
        $region185: #{transformer_forward.3} parent=183 // pred_check
          %p3629 = pneg %p760
        $region186: #{transformer_forward.3} parent=183 // pred_check_branch
          %3631 = sbr.rel (%p3629) target = $region188
        $region187: #{transformer_forward.3} parent=183 // pred_region
          %s3632 = sand.u32 %s745, 1
          %s3633 = scalar_lea.sflag [#allocation6], %s3632
          %s3634 = sand.u32 %s745, 1
          %s3635 = smul.addr %s3634, 8
          %s3636 = scalar_lea.vmem [#allocation22], %s3635
          %3637 = dma.done %s3633, 128
        $region188: #{transformer_forward.3} parent=183 // pred_fallthru
          _
      $region184: #{transformer_forward.3} parent=5 // pred_fallthru
        _
    $region6: #{transformer_forward.3} parent=1 // loop_footer
      %s57 = sadd.s32 1, %s53
    $region7: #{transformer_forward.3} parent=1 // loop_footer_branch
      %52 = sbr.rel target = $region3
    $region8: #{transformer_forward.3} parent=1 // loop_exit
      _
    %3638 = vsyncpa [#allocation5], 1
    %s3639 = scalar_lea.sflag [#allocation5], 1
    %3640 = vsyncpa %s3639, 1
    %3641 = vsyncpa [#allocation8], 1
    %s3642 = scalar_lea.sflag [#allocation8], 1
    %3643 = vsyncpa %s3642, 1
    %3644 = vsyncpa [#allocation11], 1
    %s3645 = scalar_lea.sflag [#allocation11], 1
    %3646 = vsyncpa %s3645, 1
    %3647 = vsyncpa [#allocation14], 1
    %s3648 = scalar_lea.sflag [#allocation14], 1
    %3649 = vsyncpa %s3648, 1
    %3650 = vsyncpa [#allocation17], 1
    %s3651 = scalar_lea.sflag [#allocation17], 1
    %3652 = vsyncpa %s3651, 1
    %3653 = vsyncpa [#allocation20], 1
    %s3654 = scalar_lea.sflag [#allocation20], 1
    %3655 = vsyncpa %s3654, 1
    %3656 = vsyncpa [#allocation6], 1
    %s3657 = scalar_lea.sflag [#allocation6], 1
    %3658 = vsyncpa %s3657, 1

</llo_original>
